<compile_context>
chip_gen: v7x
topology: tpu7x:2x2x1
jax: 0.10.0
libtpu: 0.0.40
codegen_flags: <defaults>
</compile_context>

<pallas_src>
import functools

import jax
import jax.numpy as jnp
import numpy as np
from jax import lax
from jax.experimental import pallas as pl
from jax.experimental.pallas import tpu as pltpu

HIDDEN = 64                 # hardcoded in the PyTorch module
GRID = 10                   # size1: 32 -> conv(3,valid) 30 -> maxpool(3,s3) 10
PADG = GRID + 2             # 12: zero-padded grid used by the 3x3 "same" convs
ROWS = PADG * PADG          # 144 rows per batch element in the padded-flat layout
GUARD = 16                  # guard rows above/below for the shifted-slice reads
NGATE = 4 * HIDDEN          # 256
OUT_HW = 3 * (GRID - 1) + 4 + 1   # 32: ConvTranspose2d(k=4, s=3, output_padding=1)

_OFFSETS = [(du - 1) * PADG + (dv - 1) for du in range(3) for dv in range(3)]


# ------------------------------ fused Pallas kernel ------------------------------

def _fused_step_kernel(teacher_ref, mask_ref,
                       w1_ref, b1_ref, w2_ref, b2_ref,
                       wfb_ref, bfb_ref, wd_ref,
                       out_ref,
                       comb1, comb2, c1, c2, *, seq_start):
    t = pl.program_id(1)

    @pl.when(t == 0)
    def _init():                                   # fresh state for every batch element
        comb1[...] = jnp.zeros_like(comb1)
        comb2[...] = jnp.zeros_like(comb2)
        c1[...] = jnp.zeros_like(c1)
        c2[...] = jnp.zeros_like(c2)

    mask = mask_ref[...] > 0.5                     # [ROWS, 1] True on the interior 10x10

    def conv3x3(src_ref, w_ref, nout):
        # 3x3 "same" conv on the padded-flat layout: 9 shifted row slices, bf16 MXU dots.
        # Cast the whole slab once (hoisted out of the 9-tap loop).
        src = src_ref[...].astype(jnp.bfloat16)    # [GUARD+ROWS+GUARD, 128] bf16
        acc = jnp.zeros((ROWS, nout), jnp.float32)
        for k, off in enumerate(_OFFSETS):
            lhs = src[GUARD + off:GUARD + off + ROWS, :]
            acc = acc + jnp.dot(lhs, w_ref[k], preferred_element_type=jnp.float32)
        return acc

    # ---- input features x_t -> comb1 lanes 64:72 -------------------------------------
    @pl.when(t < seq_start)
    def _teacher():                                # pre-pooled conv features of X[:, t]
        # teacher features are already zero on the 12x12 border -> no masking needed.
        comb1[GUARD:GUARD + ROWS, 64:72] = teacher_ref[0, 0]

    @pl.when(t >= seq_start)
    def _auto():                                   # deconv -> conv -> maxpool of h2_{t-1}
        fb = conv3x3(comb2, wfb_ref, 72) + bfb_ref[...]     # [ROWS, 72]
        pooled = fb[:, 0:8]
        for s in range(1, 9):                      # group max over the 9 pooling taps
            pooled = jnp.maximum(pooled, fb[:, 8 * s:8 * (s + 1)])
        comb1[GUARD:GUARD + ROWS, 64:72] = jnp.where(mask, pooled, 0.0)

    # ---- ConvLSTM cell 1 : input slab = [h1 | x | 0] (128 ch) -------------------------
    g1 = conv3x3(comb1, w1_ref, NGATE) + b1_ref[...]
    s1 = jax.nn.sigmoid(g1[:, 0:3 * HIDDEN])       # one wide sigmoid (i, f, o)
    i1, f1, o1 = s1[:, 0:HIDDEN], s1[:, HIDDEN:2 * HIDDEN], s1[:, 2 * HIDDEN:3 * HIDDEN]
    gg1 = jnp.tanh(g1[:, 3 * HIDDEN:4 * HIDDEN])
    c1_new = f1 * c1[...] + i1 * gg1
    h1_new = o1 * jnp.tanh(c1_new)
    c1[...] = jnp.where(mask, c1_new, 0.0)
    h1_m = jnp.where(mask, h1_new, 0.0)
    comb1[GUARD:GUARD + ROWS, 0:64] = h1_m
    comb2[GUARD:GUARD + ROWS, 0:64] = h1_m

    # ---- ConvLSTM cell 2 : input slab = [h1 | h2] (128 ch) ----------------------------
    g2 = conv3x3(comb2, w2_ref, NGATE) + b2_ref[...]
    s2 = jax.nn.sigmoid(g2[:, 0:3 * HIDDEN])
    i2, f2, o2 = s2[:, 0:HIDDEN], s2[:, HIDDEN:2 * HIDDEN], s2[:, 2 * HIDDEN:3 * HIDDEN]
    gg2 = jnp.tanh(g2[:, 3 * HIDDEN:4 * HIDDEN])
    c2_new = f2 * c2[...] + i2 * gg2
    h2_new = o2 * jnp.tanh(c2_new)
    c2[...] = jnp.where(mask, c2_new, 0.0)
    comb2[GUARD:GUARD + ROWS, 64:128] = jnp.where(mask, h2_new, 0.0)

    # ---- deconv taps: [ROWS,128] @ [128,16] (rows 0:64 of wd are zero => uses h2 only)
    out_ref[0, 0] = jnp.dot(comb2[GUARD:GUARD + ROWS, :].astype(jnp.bfloat16),
                            wd_ref[...], preferred_element_type=jnp.float32)


def fused_convlstm_rollout(teacher, mask, w1, b1, w2, b2, wfb, bfb, wd,
                           *, seq_start, seq_length):
    B, T = teacher.shape[0], seq_length
    kernel = functools.partial(_fused_step_kernel, seq_start=seq_start)
    # Autoregressive steps ignore the teacher block -> clamp its index to the last
    # teacher frame instead of DMAing zero padding.
    t_clamp = lambda b, t: (b, jnp.minimum(t, seq_start - 1), 0, 0)
    return pl.pallas_call(
        kernel,
        out_shape=jax.ShapeDtypeStruct((B, T, ROWS, 16), jnp.float32),
        grid=(B, T),
        in_specs=[
            pl.BlockSpec((1, 1, ROWS, 8), t_clamp),                       # teacher feats
            pl.BlockSpec((ROWS, 1), lambda b, t: (0, 0)),                 # interior mask
            pl.BlockSpec((9, 128, NGATE), lambda b, t: (0, 0, 0)),        # W1 (bf16)
            pl.BlockSpec((1, NGATE), lambda b, t: (0, 0)),                # b1
            pl.BlockSpec((9, 128, NGATE), lambda b, t: (0, 0, 0)),        # W2 (bf16)
            pl.BlockSpec((1, NGATE), lambda b, t: (0, 0)),                # b2
            pl.BlockSpec((9, 128, 72), lambda b, t: (0, 0, 0)),           # Wfb (bf16)
            pl.BlockSpec((1, 72), lambda b, t: (0, 0)),                   # bfb
            pl.BlockSpec((128, 16), lambda b, t: (0, 0)),                 # Wd (bf16)
        ],
        out_specs=pl.BlockSpec((1, 1, ROWS, 16), lambda b, t: (b, t, 0, 0)),
        scratch_shapes=[
            pltpu.VMEM((2 * GUARD + ROWS, 128), jnp.float32),   # comb1: [h1 | x | 0]
            pltpu.VMEM((2 * GUARD + ROWS, 128), jnp.float32),   # comb2: [h1 | h2]
            pltpu.VMEM((ROWS, HIDDEN), jnp.float32),            # c1
            pltpu.VMEM((ROWS, HIDDEN), jnp.float32),            # c2
        ],
        compiler_params=pltpu.CompilerParams(
            dimension_semantics=("parallel", "arbitrary")),      # batch across TCs on v7x
    )(teacher, mask, w1, b1, w2, b2, wfb, bfb, wd)


# ------------------------------ parameter preparation ------------------------------

def prepare_kernel_params(params):
    f32, bf16 = jnp.float32, jnp.bfloat16

    # ConvLSTM1 gate conv: torch [4H, 8+H, 3, 3] (in = [x(0:8) | h(8:72)]).
    # Kernel slab channel order is [h1(0:64) | x(64:72) | pad(72:128)].
    w = params["lstm1_w"]
    w = jnp.concatenate([w[:, 8:8 + HIDDEN], w[:, 0:8],
                         jnp.zeros((NGATE, 128 - HIDDEN - 8, 3, 3), f32)], axis=1)
    w1 = jnp.transpose(w, (2, 3, 1, 0)).reshape(9, 128, NGATE).astype(bf16)
    b1 = params["lstm1_b"].reshape(1, NGATE).astype(f32)

    # ConvLSTM2 gate conv: torch in = [h1(0:64) | h2(64:128)] == kernel slab order.
    w2 = jnp.transpose(params["lstm2_w"], (2, 3, 1, 0)).reshape(9, 128, NGATE).astype(bf16)
    b2 = params["lstm2_b"].reshape(1, NGATE).astype(f32)

    # Feedback path deconv(4,s3,op1) -> conv(3) -> maxpool(3,s3) collapsed into a single
    # 3x3 conv on the 10x10 grid: 64 -> 72 = 8 conv channels x 9 pooling sub-positions.
    sel = np.zeros((3, 3, 3, 4), np.float32)        # [dp, a, u, di]: di == a+u+3-3*dp
    for dp in range(3):
        for a in range(3):
            for u in range(3):
                di = a + u + 3 - 3 * dp
                if 0 <= di <= 3:
                    sel[dp, a, u, di] = 1.0
    sel = jnp.asarray(sel)
    wc = params["conv_w"][:, 0]                     # [8, 3, 3]   (o, u, v)
    wdk = params["deconv_w"][:, 0]                  # [64, 4, 4]  (ci, di, dj)
    weff = jnp.einsum("paud,qbve,ouv,ide->pqiabo", sel, sel, wc, wdk)
    weff = weff.reshape(9, HIDDEN, 72)              # [(dp,dq), ci, (a,b,o)]
    wfb = jnp.concatenate([jnp.zeros((9, HIDDEN, 72), f32), weff], axis=1).astype(bf16)
    bias_fb = params["deconv_b"][0] * jnp.sum(wc, axis=(1, 2)) + params["conv_b"]   # [8]
    bfb = jnp.tile(bias_fb, 9).reshape(1, 72).astype(f32)

    # Output deconv as a [128,16] matmul on the [h1 | h2] slab (h1 rows zeroed).
    wd_flat = params["deconv_w"][:, 0].reshape(HIDDEN, 16)
    wd = jnp.concatenate([jnp.zeros((HIDDEN, 16), f32), wd_flat], axis=0).astype(bf16)

    return dict(w1=w1, b1=b1, w2=w2, b2=b2, wfb=wfb, bfb=bfb, wd=wd)


def teacher_features(x, conv_w, conv_b, seq_start):
    """Front conv + maxpool of the teacher frames, laid out padded-flat: [B,S0,144,8]."""
    # TODO(synk): this tiny 1->8 channel K=9 conv + 3x3 maxpool and the final stride-3
    # overlap-add scatter stay in XLA on purpose (terrible MXU shapes).
    B, H, W = x.shape[0], x.shape[2], x.shape[3]
    img = x.reshape(B * seq_start, 1, H, W)
    dn = ("NCHW", "OIHW", "NCHW")
    y = lax.conv_general_dilated(img, conv_w, (1, 1), "VALID", dimension_numbers=dn)
    y = y + conv_b[None, :, None, None]
    y = lax.reduce_window(y, -jnp.inf, lax.max, (1, 1, 3, 3), (1, 1, 3, 3), "VALID")
    y = jnp.transpose(y, (0, 2, 3, 1))                               # [B*S0, 10, 10, 8]
    y = jnp.pad(y, ((0, 0), (1, 1), (1, 1), (0, 0)))                 # zero-pad to 12x12
    return y.reshape(B, seq_start, ROWS, 8).astype(jnp.float32)


# ------------------------------------ forward --------------------------------------

def conv_lstm_forward(params, x, *, seq_start, seq_length):
    """x: [B, seq_start, H, W] -> [B, seq_length - seq_start, H, W]."""
    B = x.shape[0]
    kp = prepare_kernel_params(params)
    teacher = teacher_features(x, params["conv_w"], params["conv_b"], seq_start)

    m = np.zeros((PADG, PADG), np.float32)
    m[1:GRID + 1, 1:GRID + 1] = 1.0
    mask = jnp.asarray(m.reshape(ROWS, 1))

    taps = fused_convlstm_rollout(teacher, mask, kp["w1"], kp["b1"], kp["w2"], kp["b2"],
                                  kp["wfb"], kp["bfb"], kp["wd"],
                                  seq_start=seq_start, seq_length=seq_length)

    # Overlap-add the 4x4 deconv taps onto the 32x32 canvas (stride 3, output_padding 1).
    T2 = seq_length - seq_start
    c = taps[:, seq_start:].reshape(B, T2, PADG, PADG, 16)[:, :, 1:GRID + 1, 1:GRID + 1, :]
    c = c.reshape(B, T2, GRID, GRID, 4, 4)
    out = jnp.zeros((B, T2, OUT_HW, OUT_HW), jnp.float32)
    for di in range(4):
        for dj in range(4):
            out = out.at[:, :, di:di + 3 * GRID - 2:3, dj:dj + 3 * GRID - 2:3].add(c[..., di, dj])
    out = out + params["deconv_b"][0]
    # NOTE: matches torch .stack(...).squeeze().permute(1,0,2,3) for batch > 1
    # (torch .squeeze() would also drop the batch dim when B == 1).
    return out


# -------------------------- pure-JAX f32 reference (self-check) ----------------------

def reference_forward(params, x, *, seq_start, seq_length):
    B = x.shape[0]
    dn = ("NCHW", "OIHW", "NCHW")

    def front(img):
        y = lax.conv_general_dilated(img, params["conv_w"], (1, 1), "VALID",
                                     dimension_numbers=dn)
        y = y + params["conv_b"][None, :, None, None]
        return lax.reduce_window(y, -jnp.inf, lax.max, (1, 1, 3, 3), (1, 1, 3, 3), "VALID")

    def cell(xin, h, c, w, b):
        comb = jnp.concatenate([xin, h], axis=1)
        g = lax.conv_general_dilated(comb, w, (1, 1), ((1, 1), (1, 1)),
                                     dimension_numbers=dn) + b[None, :, None, None]
        gi, gf, go, gg = jnp.split(g, 4, axis=1)
        c_new = jax.nn.sigmoid(gf) * c + jax.nn.sigmoid(gi) * jnp.tanh(gg)
        return jax.nn.sigmoid(go) * jnp.tanh(c_new), c_new

    def deconv(h):
        w_eq = jnp.flip(params["deconv_w"], axis=(2, 3)).transpose(1, 0, 2, 3)
        y = lax.conv_general_dilated(h, w_eq, (1, 1), ((3, 4), (3, 4)),
                                     lhs_dilation=(3, 3), dimension_numbers=dn)
        return y + params["deconv_b"][None, :, None, None]

    h1 = jnp.zeros((B, HIDDEN, GRID, GRID), jnp.float32)
    c1 = jnp.zeros_like(h1); h2 = jnp.zeros_like(h1); c2 = jnp.zeros_like(h1)
    outs, prev = [], None
    for i in range(seq_length):
        frame = x[:, i:i + 1] if i < seq_start else prev
        feat = front(frame)
        h1, c1 = cell(feat, h1, c1, params["lstm1_w"], params["lstm1_b"])
        h2, c2 = cell(h1, h2, c2, params["lstm2_w"], params["lstm2_b"])
        prev = deconv(h2)
        outs.append(prev)
    out = jnp.stack(outs[seq_start:])[:, :, 0]          # [T2, B, H, W]
    return jnp.transpose(out, (1, 0, 2, 3))


# --------------------------------------- init ----------------------------------------

def init_params(key, input_size):
    size = input_size - 2
    size1 = (size - 3) // 3 + 1

    def u(k, shape, fan_in):
        bound = 1.0 / jnp.sqrt(jnp.float32(fan_in))
        return jax.random.uniform(k, shape, jnp.float32, -bound, bound)

    ks = jax.random.split(key, 8)
    params = {
        "conv_w":   u(ks[0], (8, 1, 3, 3), 9),
        "conv_b":   u(ks[1], (8,), 9),
        "lstm1_w":  u(ks[2], (4 * HIDDEN, 8 + HIDDEN, 3, 3), (8 + HIDDEN) * 9),
        "lstm1_b":  u(ks[3], (4 * HIDDEN,), (8 + HIDDEN) * 9),
        "lstm2_w":  u(ks[4], (4 * HIDDEN, 2 * HIDDEN, 3, 3), 2 * HIDDEN * 9),
        "lstm2_b":  u(ks[5], (4 * HIDDEN,), 2 * HIDDEN * 9),
        "deconv_w": u(ks[6], (HIDDEN, 1, 4, 4), HIDDEN * 16),
        "deconv_b": u(ks[7], (1,), HIDDEN * 16),
    }
    return params, size1


if __name__ == "__main__":
    input_size = 32
    batch = 2
    seq_start = 4
    seq_length = 8

    key = jax.random.PRNGKey(0)
    pkey, xkey = jax.random.split(key)
    params, size1 = init_params(pkey, input_size)
    assert size1 == GRID

    # Input X: [B, seq_start, H, W] ('BSHW', chunked along dim 1 into 1-channel frames)
    X = jax.random.normal(xkey, (batch, seq_start, input_size, input_size), jnp.float32)

    fwd = jax.jit(functools.partial(conv_lstm_forward,
                                    seq_start=seq_start, seq_length=seq_length))
    out = jax.block_until_ready(fwd(params, X))

    expected = (batch, seq_length - seq_start, input_size, input_size)
    assert out.shape == expected, (out.shape, expected)
    assert bool(jnp.all(jnp.isfinite(out)))

    # Cross-check against a pure-JAX f32 reference (kernel uses bf16 MXU inputs,
    # f32 accumulation and f32 cell state -> small drift only).
    ref = jax.jit(functools.partial(reference_forward,
                                    seq_start=seq_start, seq_length=seq_length))(params, X)
    err = float(jnp.max(jnp.abs(out - ref)))
    assert err < 0.1, err

    print("KERNEL_OK")
</pallas_src>

<mosaic_0001>
module attributes {stable_mosaic.version = 11 : i64} {
  func.func @_fused_step_kernel(%arg0: i32, %arg1: i32, %arg2: memref<1x1x144x8xf32, #tpu.memory_space<vmem>>, %arg3: memref<144x1xf32, #tpu.memory_space<vmem>>, %arg4: memref<9x128x256xbf16, #tpu.memory_space<vmem>>, %arg5: memref<1x256xf32, #tpu.memory_space<vmem>>, %arg6: memref<9x128x256xbf16, #tpu.memory_space<vmem>>, %arg7: memref<1x256xf32, #tpu.memory_space<vmem>>, %arg8: memref<9x128x72xbf16, #tpu.memory_space<vmem>>, %arg9: memref<1x72xf32, #tpu.memory_space<vmem>>, %arg10: memref<128x16xbf16, #tpu.memory_space<vmem>>, %arg11: memref<1x1x144x16xf32, #tpu.memory_space<vmem>>, %arg12: memref<176x128xf32, #tpu.memory_space<vmem>>, %arg13: memref<176x128xf32, #tpu.memory_space<vmem>>, %arg14: memref<144x64xf32, #tpu.memory_space<vmem>>, %arg15: memref<144x64xf32, #tpu.memory_space<vmem>>) attributes {dimension_semantics = [#tpu.dimension_semantics<parallel>, #tpu.dimension_semantics<arbitrary>], iteration_bounds = array<i64: 2, 8>, scalar_prefetch = 0 : i64, scratch_operands = 4 : i64, tpu.core_type = #tpu.core_type<tc>, window_params = [{transform_indices = @transform_0, window_bounds = array<i64: 1, 1, 144, 8>}, {pipeline_mode = #tpu.pipeline_mode<synchronous>, transform_indices = @transform_1, window_bounds = array<i64: 144, 1>}, {pipeline_mode = #tpu.pipeline_mode<synchronous>, transform_indices = @transform_2, window_bounds = array<i64: 9, 128, 256>}, {pipeline_mode = #tpu.pipeline_mode<synchronous>, transform_indices = @transform_3, window_bounds = array<i64: 1, 256>}, {pipeline_mode = #tpu.pipeline_mode<synchronous>, transform_indices = @transform_4, window_bounds = array<i64: 9, 128, 256>}, {pipeline_mode = #tpu.pipeline_mode<synchronous>, transform_indices = @transform_5, window_bounds = array<i64: 1, 256>}, {pipeline_mode = #tpu.pipeline_mode<synchronous>, transform_indices = @transform_6, window_bounds = array<i64: 9, 128, 72>}, {pipeline_mode = #tpu.pipeline_mode<synchronous>, transform_indices = @transform_7, window_bounds = array<i64: 1, 72>}, {pipeline_mode = #tpu.pipeline_mode<synchronous>, transform_indices = @transform_8, window_bounds = array<i64: 128, 16>}, {transform_indices = @transform_9, window_bounds = array<i64: 1, 1, 144, 16>}]} {
    %c0_i32 = arith.constant 0 : i32
    %0 = arith.cmpi eq, %arg1, %c0_i32 : i32
    %1 = arith.extui %0 : i1 to i32
    %c0_i32_0 = arith.constant 0 : i32
    %2 = arith.cmpi ne, %1, %c0_i32_0 : i32
    scf.if %2 {
      %cst_106 = arith.constant 0.000000e+00 : f32
      %176 = vector.broadcast %cst_106 : f32 to vector<176x128xf32>
      %c0_107 = arith.constant 0 : index
      %c0_108 = arith.constant 0 : index
      %177 = vector.load %arg12[%c0_107, %c0_108] : memref<176x128xf32, #tpu.memory_space<vmem>>, vector<176x128xf32>
      tpu.vector_store %arg12[%c0_107, %c0_108], %176 {strides = array<i32>} : memref<176x128xf32, #tpu.memory_space<vmem>>, vector<176x128xf32>,
      %cst_109 = arith.constant 0.000000e+00 : f32
      %178 = vector.broadcast %cst_109 : f32 to vector<176x128xf32>
      %c0_110 = arith.constant 0 : index
      %c0_111 = arith.constant 0 : index
      %179 = vector.load %arg13[%c0_110, %c0_111] : memref<176x128xf32, #tpu.memory_space<vmem>>, vector<176x128xf32>
      tpu.vector_store %arg13[%c0_110, %c0_111], %178 {strides = array<i32>} : memref<176x128xf32, #tpu.memory_space<vmem>>, vector<176x128xf32>,
      %cst_112 = arith.constant 0.000000e+00 : f32
      %180 = vector.broadcast %cst_112 : f32 to vector<144x64xf32>
      %c0_113 = arith.constant 0 : index
      %c0_114 = arith.constant 0 : index
      %181 = vector.load %arg14[%c0_113, %c0_114] : memref<144x64xf32, #tpu.memory_space<vmem>>, vector<144x64xf32>
      tpu.vector_store %arg14[%c0_113, %c0_114], %180 {strides = array<i32>} : memref<144x64xf32, #tpu.memory_space<vmem>>, vector<144x64xf32>,
      %cst_115 = arith.constant 0.000000e+00 : f32
      %182 = vector.broadcast %cst_115 : f32 to vector<144x64xf32>
      %c0_116 = arith.constant 0 : index
      %c0_117 = arith.constant 0 : index
      %183 = vector.load %arg15[%c0_116, %c0_117] : memref<144x64xf32, #tpu.memory_space<vmem>>, vector<144x64xf32>
      tpu.vector_store %arg15[%c0_116, %c0_117], %182 {strides = array<i32>} : memref<144x64xf32, #tpu.memory_space<vmem>>, vector<144x64xf32>,
    } else {
    }
    %c0 = arith.constant 0 : index
    %c0_1 = arith.constant 0 : index
    %3 = vector.load %arg3[%c0, %c0_1] : memref<144x1xf32, #tpu.memory_space<vmem>>, vector<144x1xf32>
    %cst = arith.constant 5.000000e-01 : f32
    %4 = vector.broadcast %cst : f32 to vector<144x1xf32>
    %5 = arith.cmpf ogt, %3, %4 : vector<144x1xf32>
    %c4_i32 = arith.constant 4 : i32
    %6 = arith.cmpi slt, %arg1, %c4_i32 : i32
    %7 = arith.extui %6 : i1 to i32
    %c0_i32_2 = arith.constant 0 : i32
    %8 = arith.cmpi ne, %7, %c0_i32_2 : i32
    scf.if %8 {
      %c0_106 = arith.constant 0 : index
      %c0_107 = arith.constant 0 : index
      %c0_108 = arith.constant 0 : index
      %c0_109 = arith.constant 0 : index
      %176 = vector.load %arg2[%c0_106, %c0_107, %c0_108, %c0_109] : memref<1x1x144x8xf32, #tpu.memory_space<vmem>>, vector<1x1x144x8xf32>
      %177 = vector.shape_cast %176 : vector<1x1x144x8xf32> to vector<144x8xf32>
      %c16_110 = arith.constant 16 : index
      %c64_111 = arith.constant 64 : index
      %178 = vector.load %arg12[%c16_110, %c64_111] : memref<176x128xf32, #tpu.memory_space<vmem>>, vector<144x8xf32>
      tpu.vector_store %arg12[%c16_110, %c64_111], %177 {strides = array<i32>} : memref<176x128xf32, #tpu.memory_space<vmem>>, vector<144x8xf32>,
    } else {
    }
    %c4_i32_3 = arith.constant 4 : i32
    %9 = arith.cmpi sge, %arg1, %c4_i32_3 : i32
    %10 = arith.extui %9 : i1 to i32
    %c0_i32_4 = arith.constant 0 : i32
    %11 = arith.cmpi ne, %10, %c0_i32_4 : i32
    scf.if %11 {
      %c0_106 = arith.constant 0 : index
      %c0_107 = arith.constant 0 : index
      %176 = vector.load %arg13[%c0_106, %c0_107] : memref<176x128xf32, #tpu.memory_space<vmem>>, vector<176x128xf32>
      %177 = arith.truncf %176 : vector<176x128xf32> to vector<176x128xbf16>
      %cst_108 = arith.constant 0.000000e+00 : f32
      %178 = vector.broadcast %cst_108 : f32 to vector<144x72xf32>
      %179 = vector.extract_strided_slice %177 {offsets = [3, 0], sizes = [144, 128], strides = [1, 1]} : vector<176x128xbf16> to vector<144x128xbf16>
      %c0_109 = arith.constant 0 : index
      %c0_110 = arith.constant 0 : index
      %c0_111 = arith.constant 0 : index
      %180 = vector.load %arg8[%c0_109, %c0_110, %c0_111] : memref<9x128x72xbf16, #tpu.memory_space<vmem>>, vector<1x128x72xbf16>
      %181 = vector.shape_cast %180 : vector<1x128x72xbf16> to vector<128x72xbf16>
      %cst_112 = arith.constant dense<0.000000e+00> : vector<144x72xf32>
      %182 = tpu.matmul %179, %181, %cst_112 {dimension_numbers = #tpu.dot_dimension_numbers<[1], [0], [0], [1], [0, 0, 1, 1], [], []>} : vector<144x128xbf16>, vector<128x72xbf16>, vector<144x72xf32> -> vector<144x72xf32>
      %183 = arith.addf %178, %182 : vector<144x72xf32>
      %184 = vector.extract_strided_slice %177 {offsets = [4, 0], sizes = [144, 128], strides = [1, 1]} : vector<176x128xbf16> to vector<144x128xbf16>
      %c1_113 = arith.constant 1 : index
      %c0_114 = arith.constant 0 : index
      %c0_115 = arith.constant 0 : index
      %185 = vector.load %arg8[%c1_113, %c0_114, %c0_115] : memref<9x128x72xbf16, #tpu.memory_space<vmem>>, vector<1x128x72xbf16>
      %186 = vector.shape_cast %185 : vector<1x128x72xbf16> to vector<128x72xbf16>
      %cst_116 = arith.constant dense<0.000000e+00> : vector<144x72xf32>
      %187 = tpu.matmul %184, %186, %cst_116 {dimension_numbers = #tpu.dot_dimension_numbers<[1], [0], [0], [1], [0, 0, 1, 1], [], []>} : vector<144x128xbf16>, vector<128x72xbf16>, vector<144x72xf32> -> vector<144x72xf32>
      %188 = arith.addf %183, %187 : vector<144x72xf32>
      %189 = vector.extract_strided_slice %177 {offsets = [5, 0], sizes = [144, 128], strides = [1, 1]} : vector<176x128xbf16> to vector<144x128xbf16>
      %c2_117 = arith.constant 2 : index
      %c0_118 = arith.constant 0 : index
      %c0_119 = arith.constant 0 : index
      %190 = vector.load %arg8[%c2_117, %c0_118, %c0_119] : memref<9x128x72xbf16, #tpu.memory_space<vmem>>, vector<1x128x72xbf16>
      %191 = vector.shape_cast %190 : vector<1x128x72xbf16> to vector<128x72xbf16>
      %cst_120 = arith.constant dense<0.000000e+00> : vector<144x72xf32>
      %192 = tpu.matmul %189, %191, %cst_120 {dimension_numbers = #tpu.dot_dimension_numbers<[1], [0], [0], [1], [0, 0, 1, 1], [], []>} : vector<144x128xbf16>, vector<128x72xbf16>, vector<144x72xf32> -> vector<144x72xf32>
      %193 = arith.addf %188, %192 : vector<144x72xf32>
      %194 = vector.extract_strided_slice %177 {offsets = [15, 0], sizes = [144, 128], strides = [1, 1]} : vector<176x128xbf16> to vector<144x128xbf16>
      %c3_121 = arith.constant 3 : index
      %c0_122 = arith.constant 0 : index
      %c0_123 = arith.constant 0 : index
      %195 = vector.load %arg8[%c3_121, %c0_122, %c0_123] : memref<9x128x72xbf16, #tpu.memory_space<vmem>>, vector<1x128x72xbf16>
      %196 = vector.shape_cast %195 : vector<1x128x72xbf16> to vector<128x72xbf16>
      %cst_124 = arith.constant dense<0.000000e+00> : vector<144x72xf32>
      %197 = tpu.matmul %194, %196, %cst_124 {dimension_numbers = #tpu.dot_dimension_numbers<[1], [0], [0], [1], [0, 0, 1, 1], [], []>} : vector<144x128xbf16>, vector<128x72xbf16>, vector<144x72xf32> -> vector<144x72xf32>
      %198 = arith.addf %193, %197 : vector<144x72xf32>
      %199 = vector.extract_strided_slice %177 {offsets = [16, 0], sizes = [144, 128], strides = [1, 1]} : vector<176x128xbf16> to vector<144x128xbf16>
      %c4_125 = arith.constant 4 : index
      %c0_126 = arith.constant 0 : index
      %c0_127 = arith.constant 0 : index
      %200 = vector.load %arg8[%c4_125, %c0_126, %c0_127] : memref<9x128x72xbf16, #tpu.memory_space<vmem>>, vector<1x128x72xbf16>
      %201 = vector.shape_cast %200 : vector<1x128x72xbf16> to vector<128x72xbf16>
      %cst_128 = arith.constant dense<0.000000e+00> : vector<144x72xf32>
      %202 = tpu.matmul %199, %201, %cst_128 {dimension_numbers = #tpu.dot_dimension_numbers<[1], [0], [0], [1], [0, 0, 1, 1], [], []>} : vector<144x128xbf16>, vector<128x72xbf16>, vector<144x72xf32> -> vector<144x72xf32>
      %203 = arith.addf %198, %202 : vector<144x72xf32>
      %204 = vector.extract_strided_slice %177 {offsets = [17, 0], sizes = [144, 128], strides = [1, 1]} : vector<176x128xbf16> to vector<144x128xbf16>
      %c5_129 = arith.constant 5 : index
      %c0_130 = arith.constant 0 : index
      %c0_131 = arith.constant 0 : index
      %205 = vector.load %arg8[%c5_129, %c0_130, %c0_131] : memref<9x128x72xbf16, #tpu.memory_space<vmem>>, vector<1x128x72xbf16>
      %206 = vector.shape_cast %205 : vector<1x128x72xbf16> to vector<128x72xbf16>
      %cst_132 = arith.constant dense<0.000000e+00> : vector<144x72xf32>
      %207 = tpu.matmul %204, %206, %cst_132 {dimension_numbers = #tpu.dot_dimension_numbers<[1], [0], [0], [1], [0, 0, 1, 1], [], []>} : vector<144x128xbf16>, vector<128x72xbf16>, vector<144x72xf32> -> vector<144x72xf32>
      %208 = arith.addf %203, %207 : vector<144x72xf32>
      %209 = vector.extract_strided_slice %177 {offsets = [27, 0], sizes = [144, 128], strides = [1, 1]} : vector<176x128xbf16> to vector<144x128xbf16>
      %c6_133 = arith.constant 6 : index
      %c0_134 = arith.constant 0 : index
      %c0_135 = arith.constant 0 : index
      %210 = vector.load %arg8[%c6_133, %c0_134, %c0_135] : memref<9x128x72xbf16, #tpu.memory_space<vmem>>, vector<1x128x72xbf16>
      %211 = vector.shape_cast %210 : vector<1x128x72xbf16> to vector<128x72xbf16>
      %cst_136 = arith.constant dense<0.000000e+00> : vector<144x72xf32>
      %212 = tpu.matmul %209, %211, %cst_136 {dimension_numbers = #tpu.dot_dimension_numbers<[1], [0], [0], [1], [0, 0, 1, 1], [], []>} : vector<144x128xbf16>, vector<128x72xbf16>, vector<144x72xf32> -> vector<144x72xf32>
      %213 = arith.addf %208, %212 : vector<144x72xf32>
      %214 = vector.extract_strided_slice %177 {offsets = [28, 0], sizes = [144, 128], strides = [1, 1]} : vector<176x128xbf16> to vector<144x128xbf16>
      %c7_137 = arith.constant 7 : index
      %c0_138 = arith.constant 0 : index
      %c0_139 = arith.constant 0 : index
      %215 = vector.load %arg8[%c7_137, %c0_138, %c0_139] : memref<9x128x72xbf16, #tpu.memory_space<vmem>>, vector<1x128x72xbf16>
      %216 = vector.shape_cast %215 : vector<1x128x72xbf16> to vector<128x72xbf16>
      %cst_140 = arith.constant dense<0.000000e+00> : vector<144x72xf32>
      %217 = tpu.matmul %214, %216, %cst_140 {dimension_numbers = #tpu.dot_dimension_numbers<[1], [0], [0], [1], [0, 0, 1, 1], [], []>} : vector<144x128xbf16>, vector<128x72xbf16>, vector<144x72xf32> -> vector<144x72xf32>
      %218 = arith.addf %213, %217 : vector<144x72xf32>
      %219 = vector.extract_strided_slice %177 {offsets = [29, 0], sizes = [144, 128], strides = [1, 1]} : vector<176x128xbf16> to vector<144x128xbf16>
      %c8_141 = arith.constant 8 : index
      %c0_142 = arith.constant 0 : index
      %c0_143 = arith.constant 0 : index
      %220 = vector.load %arg8[%c8_141, %c0_142, %c0_143] : memref<9x128x72xbf16, #tpu.memory_space<vmem>>, vector<1x128x72xbf16>
      %221 = vector.shape_cast %220 : vector<1x128x72xbf16> to vector<128x72xbf16>
      %cst_144 = arith.constant dense<0.000000e+00> : vector<144x72xf32>
      %222 = tpu.matmul %219, %221, %cst_144 {dimension_numbers = #tpu.dot_dimension_numbers<[1], [0], [0], [1], [0, 0, 1, 1], [], []>} : vector<144x128xbf16>, vector<128x72xbf16>, vector<144x72xf32> -> vector<144x72xf32>
      %223 = arith.addf %218, %222 : vector<144x72xf32>
      %c0_145 = arith.constant 0 : index
      %c0_146 = arith.constant 0 : index
      %224 = vector.load %arg9[%c0_145, %c0_146] : memref<1x72xf32, #tpu.memory_space<vmem>>, vector<1x72xf32>
      %225 = vector.broadcast %224 : vector<1x72xf32> to vector<144x72xf32>
      %226 = arith.addf %223, %225 : vector<144x72xf32>
      %227 = vector.extract_strided_slice %226 {offsets = [0, 0], sizes = [144, 8], strides = [1, 1]} : vector<144x72xf32> to vector<144x8xf32>
      %228 = vector.extract_strided_slice %226 {offsets = [0, 8], sizes = [144, 8], strides = [1, 1]} : vector<144x72xf32> to vector<144x8xf32>
      %229 = arith.maximumf %227, %228 : vector<144x8xf32>
      %230 = vector.extract_strided_slice %226 {offsets = [0, 16], sizes = [144, 8], strides = [1, 1]} : vector<144x72xf32> to vector<144x8xf32>
      %231 = arith.maximumf %229, %230 : vector<144x8xf32>
      %232 = vector.extract_strided_slice %226 {offsets = [0, 24], sizes = [144, 8], strides = [1, 1]} : vector<144x72xf32> to vector<144x8xf32>
      %233 = arith.maximumf %231, %232 : vector<144x8xf32>
      %234 = vector.extract_strided_slice %226 {offsets = [0, 32], sizes = [144, 8], strides = [1, 1]} : vector<144x72xf32> to vector<144x8xf32>
      %235 = arith.maximumf %233, %234 : vector<144x8xf32>
      %236 = vector.extract_strided_slice %226 {offsets = [0, 40], sizes = [144, 8], strides = [1, 1]} : vector<144x72xf32> to vector<144x8xf32>
      %237 = arith.maximumf %235, %236 : vector<144x8xf32>
      %238 = vector.extract_strided_slice %226 {offsets = [0, 48], sizes = [144, 8], strides = [1, 1]} : vector<144x72xf32> to vector<144x8xf32>
      %239 = arith.maximumf %237, %238 : vector<144x8xf32>
      %240 = vector.extract_strided_slice %226 {offsets = [0, 56], sizes = [144, 8], strides = [1, 1]} : vector<144x72xf32> to vector<144x8xf32>
      %241 = arith.maximumf %239, %240 : vector<144x8xf32>
      %242 = vector.extract_strided_slice %226 {offsets = [0, 64], sizes = [144, 8], strides = [1, 1]} : vector<144x72xf32> to vector<144x8xf32>
      %243 = arith.maximumf %241, %242 : vector<144x8xf32>
      %cst_147 = arith.constant 0.000000e+00 : f32
      %244 = vector.shape_cast %5 : vector<144x1xi1> to vector<144x1xi1>
      %245 = vector.broadcast %244 : vector<144x1xi1> to vector<144x8xi1>
      %246 = vector.broadcast %cst_147 : f32 to vector<144x8xf32>
      %247 = arith.select %245, %243, %246 : vector<144x8xi1>, vector<144x8xf32>
      %c16_148 = arith.constant 16 : index
      %c64_149 = arith.constant 64 : index
      %248 = vector.load %arg12[%c16_148, %c64_149] : memref<176x128xf32, #tpu.memory_space<vmem>>, vector<144x8xf32>
      tpu.vector_store %arg12[%c16_148, %c64_149], %247 {strides = array<i32>} : memref<176x128xf32, #tpu.memory_space<vmem>>, vector<144x8xf32>,
    } else {
    }
    %c0_5 = arith.constant 0 : index
    %c0_6 = arith.constant 0 : index
    %12 = vector.load %arg12[%c0_5, %c0_6] : memref<176x128xf32, #tpu.memory_space<vmem>>, vector<176x128xf32>
    %13 = arith.truncf %12 : vector<176x128xf32> to vector<176x128xbf16>
    %cst_7 = arith.constant 0.000000e+00 : f32
    %14 = vector.broadcast %cst_7 : f32 to vector<144x256xf32>
    %15 = vector.extract_strided_slice %13 {offsets = [3, 0], sizes = [144, 128], strides = [1, 1]} : vector<176x128xbf16> to vector<144x128xbf16>
    %c0_8 = arith.constant 0 : index
    %c0_9 = arith.constant 0 : index
    %c0_10 = arith.constant 0 : index
    %16 = vector.load %arg4[%c0_8, %c0_9, %c0_10] : memref<9x128x256xbf16, #tpu.memory_space<vmem>>, vector<1x128x256xbf16>
    %17 = vector.shape_cast %16 : vector<1x128x256xbf16> to vector<128x256xbf16>
    %cst_11 = arith.constant dense<0.000000e+00> : vector<144x256xf32>
    %18 = tpu.matmul %15, %17, %cst_11 {dimension_numbers = #tpu.dot_dimension_numbers<[1], [0], [0], [1], [0, 0, 1, 1], [], []>} : vector<144x128xbf16>, vector<128x256xbf16>, vector<144x256xf32> -> vector<144x256xf32>
    %19 = arith.addf %14, %18 : vector<144x256xf32>
    %20 = vector.extract_strided_slice %13 {offsets = [4, 0], sizes = [144, 128], strides = [1, 1]} : vector<176x128xbf16> to vector<144x128xbf16>
    %c1 = arith.constant 1 : index
    %c0_12 = arith.constant 0 : index
    %c0_13 = arith.constant 0 : index
    %21 = vector.load %arg4[%c1, %c0_12, %c0_13] : memref<9x128x256xbf16, #tpu.memory_space<vmem>>, vector<1x128x256xbf16>
    %22 = vector.shape_cast %21 : vector<1x128x256xbf16> to vector<128x256xbf16>
    %cst_14 = arith.constant dense<0.000000e+00> : vector<144x256xf32>
    %23 = tpu.matmul %20, %22, %cst_14 {dimension_numbers = #tpu.dot_dimension_numbers<[1], [0], [0], [1], [0, 0, 1, 1], [], []>} : vector<144x128xbf16>, vector<128x256xbf16>, vector<144x256xf32> -> vector<144x256xf32>
    %24 = arith.addf %19, %23 : vector<144x256xf32>
    %25 = vector.extract_strided_slice %13 {offsets = [5, 0], sizes = [144, 128], strides = [1, 1]} : vector<176x128xbf16> to vector<144x128xbf16>
    %c2 = arith.constant 2 : index
    %c0_15 = arith.constant 0 : index
    %c0_16 = arith.constant 0 : index
    %26 = vector.load %arg4[%c2, %c0_15, %c0_16] : memref<9x128x256xbf16, #tpu.memory_space<vmem>>, vector<1x128x256xbf16>
    %27 = vector.shape_cast %26 : vector<1x128x256xbf16> to vector<128x256xbf16>
    %cst_17 = arith.constant dense<0.000000e+00> : vector<144x256xf32>
    %28 = tpu.matmul %25, %27, %cst_17 {dimension_numbers = #tpu.dot_dimension_numbers<[1], [0], [0], [1], [0, 0, 1, 1], [], []>} : vector<144x128xbf16>, vector<128x256xbf16>, vector<144x256xf32> -> vector<144x256xf32>
    %29 = arith.addf %24, %28 : vector<144x256xf32>
    %30 = vector.extract_strided_slice %13 {offsets = [15, 0], sizes = [144, 128], strides = [1, 1]} : vector<176x128xbf16> to vector<144x128xbf16>
    %c3 = arith.constant 3 : index
    %c0_18 = arith.constant 0 : index
    %c0_19 = arith.constant 0 : index
    %31 = vector.load %arg4[%c3, %c0_18, %c0_19] : memref<9x128x256xbf16, #tpu.memory_space<vmem>>, vector<1x128x256xbf16>
    %32 = vector.shape_cast %31 : vector<1x128x256xbf16> to vector<128x256xbf16>
    %cst_20 = arith.constant dense<0.000000e+00> : vector<144x256xf32>
    %33 = tpu.matmul %30, %32, %cst_20 {dimension_numbers = #tpu.dot_dimension_numbers<[1], [0], [0], [1], [0, 0, 1, 1], [], []>} : vector<144x128xbf16>, vector<128x256xbf16>, vector<144x256xf32> -> vector<144x256xf32>
    %34 = arith.addf %29, %33 : vector<144x256xf32>
    %35 = vector.extract_strided_slice %13 {offsets = [16, 0], sizes = [144, 128], strides = [1, 1]} : vector<176x128xbf16> to vector<144x128xbf16>
    %c4 = arith.constant 4 : index
    %c0_21 = arith.constant 0 : index
    %c0_22 = arith.constant 0 : index
    %36 = vector.load %arg4[%c4, %c0_21, %c0_22] : memref<9x128x256xbf16, #tpu.memory_space<vmem>>, vector<1x128x256xbf16>
    %37 = vector.shape_cast %36 : vector<1x128x256xbf16> to vector<128x256xbf16>
    %cst_23 = arith.constant dense<0.000000e+00> : vector<144x256xf32>
    %38 = tpu.matmul %35, %37, %cst_23 {dimension_numbers = #tpu.dot_dimension_numbers<[1], [0], [0], [1], [0, 0, 1, 1], [], []>} : vector<144x128xbf16>, vector<128x256xbf16>, vector<144x256xf32> -> vector<144x256xf32>
    %39 = arith.addf %34, %38 : vector<144x256xf32>
    %40 = vector.extract_strided_slice %13 {offsets = [17, 0], sizes = [144, 128], strides = [1, 1]} : vector<176x128xbf16> to vector<144x128xbf16>
    %c5 = arith.constant 5 : index
    %c0_24 = arith.constant 0 : index
    %c0_25 = arith.constant 0 : index
    %41 = vector.load %arg4[%c5, %c0_24, %c0_25] : memref<9x128x256xbf16, #tpu.memory_space<vmem>>, vector<1x128x256xbf16>
    %42 = vector.shape_cast %41 : vector<1x128x256xbf16> to vector<128x256xbf16>
    %cst_26 = arith.constant dense<0.000000e+00> : vector<144x256xf32>
    %43 = tpu.matmul %40, %42, %cst_26 {dimension_numbers = #tpu.dot_dimension_numbers<[1], [0], [0], [1], [0, 0, 1, 1], [], []>} : vector<144x128xbf16>, vector<128x256xbf16>, vector<144x256xf32> -> vector<144x256xf32>
    %44 = arith.addf %39, %43 : vector<144x256xf32>
    %45 = vector.extract_strided_slice %13 {offsets = [27, 0], sizes = [144, 128], strides = [1, 1]} : vector<176x128xbf16> to vector<144x128xbf16>
    %c6 = arith.constant 6 : index
    %c0_27 = arith.constant 0 : index
    %c0_28 = arith.constant 0 : index
    %46 = vector.load %arg4[%c6, %c0_27, %c0_28] : memref<9x128x256xbf16, #tpu.memory_space<vmem>>, vector<1x128x256xbf16>
    %47 = vector.shape_cast %46 : vector<1x128x256xbf16> to vector<128x256xbf16>
    %cst_29 = arith.constant dense<0.000000e+00> : vector<144x256xf32>
    %48 = tpu.matmul %45, %47, %cst_29 {dimension_numbers = #tpu.dot_dimension_numbers<[1], [0], [0], [1], [0, 0, 1, 1], [], []>} : vector<144x128xbf16>, vector<128x256xbf16>, vector<144x256xf32> -> vector<144x256xf32>
    %49 = arith.addf %44, %48 : vector<144x256xf32>
    %50 = vector.extract_strided_slice %13 {offsets = [28, 0], sizes = [144, 128], strides = [1, 1]} : vector<176x128xbf16> to vector<144x128xbf16>
    %c7 = arith.constant 7 : index
    %c0_30 = arith.constant 0 : index
    %c0_31 = arith.constant 0 : index
    %51 = vector.load %arg4[%c7, %c0_30, %c0_31] : memref<9x128x256xbf16, #tpu.memory_space<vmem>>, vector<1x128x256xbf16>
    %52 = vector.shape_cast %51 : vector<1x128x256xbf16> to vector<128x256xbf16>
    %cst_32 = arith.constant dense<0.000000e+00> : vector<144x256xf32>
    %53 = tpu.matmul %50, %52, %cst_32 {dimension_numbers = #tpu.dot_dimension_numbers<[1], [0], [0], [1], [0, 0, 1, 1], [], []>} : vector<144x128xbf16>, vector<128x256xbf16>, vector<144x256xf32> -> vector<144x256xf32>
    %54 = arith.addf %49, %53 : vector<144x256xf32>
    %55 = vector.extract_strided_slice %13 {offsets = [29, 0], sizes = [144, 128], strides = [1, 1]} : vector<176x128xbf16> to vector<144x128xbf16>
    %c8 = arith.constant 8 : index
    %c0_33 = arith.constant 0 : index
    %c0_34 = arith.constant 0 : index
    %56 = vector.load %arg4[%c8, %c0_33, %c0_34] : memref<9x128x256xbf16, #tpu.memory_space<vmem>>, vector<1x128x256xbf16>
    %57 = vector.shape_cast %56 : vector<1x128x256xbf16> to vector<128x256xbf16>
    %cst_35 = arith.constant dense<0.000000e+00> : vector<144x256xf32>
    %58 = tpu.matmul %55, %57, %cst_35 {dimension_numbers = #tpu.dot_dimension_numbers<[1], [0], [0], [1], [0, 0, 1, 1], [], []>} : vector<144x128xbf16>, vector<128x256xbf16>, vector<144x256xf32> -> vector<144x256xf32>
    %59 = arith.addf %54, %58 : vector<144x256xf32>
    %c0_36 = arith.constant 0 : index
    %c0_37 = arith.constant 0 : index
    %60 = vector.load %arg5[%c0_36, %c0_37] : memref<1x256xf32, #tpu.memory_space<vmem>>, vector<1x256xf32>
    %61 = vector.broadcast %60 : vector<1x256xf32> to vector<144x256xf32>
    %62 = arith.addf %59, %61 : vector<144x256xf32>
    %63 = vector.extract_strided_slice %62 {offsets = [0, 0], sizes = [144, 192], strides = [1, 1]} : vector<144x256xf32> to vector<144x192xf32>
    %64 = arith.negf %63 : vector<144x192xf32>
    %65 = math.exp %64 : vector<144x192xf32>
    %cst_38 = arith.constant 1.000000e+00 : f32
    %66 = vector.broadcast %cst_38 : f32 to vector<144x192xf32>
    %67 = arith.addf %66, %65 : vector<144x192xf32>
    %68 = arith.divf %66, %67 : vector<144x192xf32>
    %69 = vector.extract_strided_slice %68 {offsets = [0, 0], sizes = [144, 64], strides = [1, 1]} : vector<144x192xf32> to vector<144x64xf32>
    %70 = vector.extract_strided_slice %68 {offsets = [0, 64], sizes = [144, 64], strides = [1, 1]} : vector<144x192xf32> to vector<144x64xf32>
    %71 = vector.extract_strided_slice %68 {offsets = [0, 128], sizes = [144, 64], strides = [1, 1]} : vector<144x192xf32> to vector<144x64xf32>
    %72 = vector.extract_strided_slice %62 {offsets = [0, 192], sizes = [144, 64], strides = [1, 1]} : vector<144x256xf32> to vector<144x64xf32>
    %73 = math.tanh %72 : vector<144x64xf32>
    %c0_39 = arith.constant 0 : index
    %c0_40 = arith.constant 0 : index
    %74 = vector.load %arg14[%c0_39, %c0_40] : memref<144x64xf32, #tpu.memory_space<vmem>>, vector<144x64xf32>
    %75 = arith.mulf %70, %74 : vector<144x64xf32>
    %76 = arith.mulf %69, %73 : vector<144x64xf32>
    %77 = arith.addf %75, %76 : vector<144x64xf32>
    %78 = math.tanh %77 : vector<144x64xf32>
    %79 = arith.mulf %71, %78 : vector<144x64xf32>
    %cst_41 = arith.constant 0.000000e+00 : f32
    %80 = vector.shape_cast %5 : vector<144x1xi1> to vector<144x1xi1>
    %81 = vector.broadcast %80 : vector<144x1xi1> to vector<144x64xi1>
    %82 = vector.broadcast %cst_41 : f32 to vector<144x64xf32>
    %83 = arith.select %81, %77, %82 : vector<144x64xi1>, vector<144x64xf32>
    %c0_42 = arith.constant 0 : index
    %c0_43 = arith.constant 0 : index
    %84 = vector.load %arg14[%c0_42, %c0_43] : memref<144x64xf32, #tpu.memory_space<vmem>>, vector<144x64xf32>
    tpu.vector_store %arg14[%c0_42, %c0_43], %83 {strides = array<i32>} : memref<144x64xf32, #tpu.memory_space<vmem>>, vector<144x64xf32>,
    %cst_44 = arith.constant 0.000000e+00 : f32
    %85 = vector.shape_cast %5 : vector<144x1xi1> to vector<144x1xi1>
    %86 = vector.broadcast %85 : vector<144x1xi1> to vector<144x64xi1>
    %87 = vector.broadcast %cst_44 : f32 to vector<144x64xf32>
    %88 = arith.select %86, %79, %87 : vector<144x64xi1>, vector<144x64xf32>
    %c16 = arith.constant 16 : index
    %c0_45 = arith.constant 0 : index
    %89 = vector.load %arg12[%c16, %c0_45] : memref<176x128xf32, #tpu.memory_space<vmem>>, vector<144x64xf32>
    tpu.vector_store %arg12[%c16, %c0_45], %88 {strides = array<i32>} : memref<176x128xf32, #tpu.memory_space<vmem>>, vector<144x64xf32>,
    %c16_46 = arith.constant 16 : index
    %c0_47 = arith.constant 0 : index
    %90 = vector.load %arg13[%c16_46, %c0_47] : memref<176x128xf32, #tpu.memory_space<vmem>>, vector<144x64xf32>
    tpu.vector_store %arg13[%c16_46, %c0_47], %88 {strides = array<i32>} : memref<176x128xf32, #tpu.memory_space<vmem>>, vector<144x64xf32>,
    %c0_48 = arith.constant 0 : index
    %c0_49 = arith.constant 0 : index
    %91 = vector.load %arg13[%c0_48, %c0_49] : memref<176x128xf32, #tpu.memory_space<vmem>>, vector<176x128xf32>
    %92 = arith.truncf %91 : vector<176x128xf32> to vector<176x128xbf16>
    %cst_50 = arith.constant 0.000000e+00 : f32
    %93 = vector.broadcast %cst_50 : f32 to vector<144x256xf32>
    %94 = vector.extract_strided_slice %92 {offsets = [3, 0], sizes = [144, 128], strides = [1, 1]} : vector<176x128xbf16> to vector<144x128xbf16>
    %c0_51 = arith.constant 0 : index
    %c0_52 = arith.constant 0 : index
    %c0_53 = arith.constant 0 : index
    %95 = vector.load %arg6[%c0_51, %c0_52, %c0_53] : memref<9x128x256xbf16, #tpu.memory_space<vmem>>, vector<1x128x256xbf16>
    %96 = vector.shape_cast %95 : vector<1x128x256xbf16> to vector<128x256xbf16>
    %cst_54 = arith.constant dense<0.000000e+00> : vector<144x256xf32>
    %97 = tpu.matmul %94, %96, %cst_54 {dimension_numbers = #tpu.dot_dimension_numbers<[1], [0], [0], [1], [0, 0, 1, 1], [], []>} : vector<144x128xbf16>, vector<128x256xbf16>, vector<144x256xf32> -> vector<144x256xf32>
    %98 = arith.addf %93, %97 : vector<144x256xf32>
    %99 = vector.extract_strided_slice %92 {offsets = [4, 0], sizes = [144, 128], strides = [1, 1]} : vector<176x128xbf16> to vector<144x128xbf16>
    %c1_55 = arith.constant 1 : index
    %c0_56 = arith.constant 0 : index
    %c0_57 = arith.constant 0 : index
    %100 = vector.load %arg6[%c1_55, %c0_56, %c0_57] : memref<9x128x256xbf16, #tpu.memory_space<vmem>>, vector<1x128x256xbf16>
    %101 = vector.shape_cast %100 : vector<1x128x256xbf16> to vector<128x256xbf16>
    %cst_58 = arith.constant dense<0.000000e+00> : vector<144x256xf32>
    %102 = tpu.matmul %99, %101, %cst_58 {dimension_numbers = #tpu.dot_dimension_numbers<[1], [0], [0], [1], [0, 0, 1, 1], [], []>} : vector<144x128xbf16>, vector<128x256xbf16>, vector<144x256xf32> -> vector<144x256xf32>
    %103 = arith.addf %98, %102 : vector<144x256xf32>
    %104 = vector.extract_strided_slice %92 {offsets = [5, 0], sizes = [144, 128], strides = [1, 1]} : vector<176x128xbf16> to vector<144x128xbf16>
    %c2_59 = arith.constant 2 : index
    %c0_60 = arith.constant 0 : index
    %c0_61 = arith.constant 0 : index
    %105 = vector.load %arg6[%c2_59, %c0_60, %c0_61] : memref<9x128x256xbf16, #tpu.memory_space<vmem>>, vector<1x128x256xbf16>
    %106 = vector.shape_cast %105 : vector<1x128x256xbf16> to vector<128x256xbf16>
    %cst_62 = arith.constant dense<0.000000e+00> : vector<144x256xf32>
    %107 = tpu.matmul %104, %106, %cst_62 {dimension_numbers = #tpu.dot_dimension_numbers<[1], [0], [0], [1], [0, 0, 1, 1], [], []>} : vector<144x128xbf16>, vector<128x256xbf16>, vector<144x256xf32> -> vector<144x256xf32>
    %108 = arith.addf %103, %107 : vector<144x256xf32>
    %109 = vector.extract_strided_slice %92 {offsets = [15, 0], sizes = [144, 128], strides = [1, 1]} : vector<176x128xbf16> to vector<144x128xbf16>
    %c3_63 = arith.constant 3 : index
    %c0_64 = arith.constant 0 : index
    %c0_65 = arith.constant 0 : index
    %110 = vector.load %arg6[%c3_63, %c0_64, %c0_65] : memref<9x128x256xbf16, #tpu.memory_space<vmem>>, vector<1x128x256xbf16>
    %111 = vector.shape_cast %110 : vector<1x128x256xbf16> to vector<128x256xbf16>
    %cst_66 = arith.constant dense<0.000000e+00> : vector<144x256xf32>
    %112 = tpu.matmul %109, %111, %cst_66 {dimension_numbers = #tpu.dot_dimension_numbers<[1], [0], [0], [1], [0, 0, 1, 1], [], []>} : vector<144x128xbf16>, vector<128x256xbf16>, vector<144x256xf32> -> vector<144x256xf32>
    %113 = arith.addf %108, %112 : vector<144x256xf32>
    %114 = vector.extract_strided_slice %92 {offsets = [16, 0], sizes = [144, 128], strides = [1, 1]} : vector<176x128xbf16> to vector<144x128xbf16>
    %c4_67 = arith.constant 4 : index
    %c0_68 = arith.constant 0 : index
    %c0_69 = arith.constant 0 : index
    %115 = vector.load %arg6[%c4_67, %c0_68, %c0_69] : memref<9x128x256xbf16, #tpu.memory_space<vmem>>, vector<1x128x256xbf16>
    %116 = vector.shape_cast %115 : vector<1x128x256xbf16> to vector<128x256xbf16>
    %cst_70 = arith.constant dense<0.000000e+00> : vector<144x256xf32>
    %117 = tpu.matmul %114, %116, %cst_70 {dimension_numbers = #tpu.dot_dimension_numbers<[1], [0], [0], [1], [0, 0, 1, 1], [], []>} : vector<144x128xbf16>, vector<128x256xbf16>, vector<144x256xf32> -> vector<144x256xf32>
    %118 = arith.addf %113, %117 : vector<144x256xf32>
    %119 = vector.extract_strided_slice %92 {offsets = [17, 0], sizes = [144, 128], strides = [1, 1]} : vector<176x128xbf16> to vector<144x128xbf16>
    %c5_71 = arith.constant 5 : index
    %c0_72 = arith.constant 0 : index
    %c0_73 = arith.constant 0 : index
    %120 = vector.load %arg6[%c5_71, %c0_72, %c0_73] : memref<9x128x256xbf16, #tpu.memory_space<vmem>>, vector<1x128x256xbf16>
    %121 = vector.shape_cast %120 : vector<1x128x256xbf16> to vector<128x256xbf16>
    %cst_74 = arith.constant dense<0.000000e+00> : vector<144x256xf32>
    %122 = tpu.matmul %119, %121, %cst_74 {dimension_numbers = #tpu.dot_dimension_numbers<[1], [0], [0], [1], [0, 0, 1, 1], [], []>} : vector<144x128xbf16>, vector<128x256xbf16>, vector<144x256xf32> -> vector<144x256xf32>
    %123 = arith.addf %118, %122 : vector<144x256xf32>
    %124 = vector.extract_strided_slice %92 {offsets = [27, 0], sizes = [144, 128], strides = [1, 1]} : vector<176x128xbf16> to vector<144x128xbf16>
    %c6_75 = arith.constant 6 : index
    %c0_76 = arith.constant 0 : index
    %c0_77 = arith.constant 0 : index
    %125 = vector.load %arg6[%c6_75, %c0_76, %c0_77] : memref<9x128x256xbf16, #tpu.memory_space<vmem>>, vector<1x128x256xbf16>
    %126 = vector.shape_cast %125 : vector<1x128x256xbf16> to vector<128x256xbf16>
    %cst_78 = arith.constant dense<0.000000e+00> : vector<144x256xf32>
    %127 = tpu.matmul %124, %126, %cst_78 {dimension_numbers = #tpu.dot_dimension_numbers<[1], [0], [0], [1], [0, 0, 1, 1], [], []>} : vector<144x128xbf16>, vector<128x256xbf16>, vector<144x256xf32> -> vector<144x256xf32>
    %128 = arith.addf %123, %127 : vector<144x256xf32>
    %129 = vector.extract_strided_slice %92 {offsets = [28, 0], sizes = [144, 128], strides = [1, 1]} : vector<176x128xbf16> to vector<144x128xbf16>
    %c7_79 = arith.constant 7 : index
    %c0_80 = arith.constant 0 : index
    %c0_81 = arith.constant 0 : index
    %130 = vector.load %arg6[%c7_79, %c0_80, %c0_81] : memref<9x128x256xbf16, #tpu.memory_space<vmem>>, vector<1x128x256xbf16>
    %131 = vector.shape_cast %130 : vector<1x128x256xbf16> to vector<128x256xbf16>
    %cst_82 = arith.constant dense<0.000000e+00> : vector<144x256xf32>
    %132 = tpu.matmul %129, %131, %cst_82 {dimension_numbers = #tpu.dot_dimension_numbers<[1], [0], [0], [1], [0, 0, 1, 1], [], []>} : vector<144x128xbf16>, vector<128x256xbf16>, vector<144x256xf32> -> vector<144x256xf32>
    %133 = arith.addf %128, %132 : vector<144x256xf32>
    %134 = vector.extract_strided_slice %92 {offsets = [29, 0], sizes = [144, 128], strides = [1, 1]} : vector<176x128xbf16> to vector<144x128xbf16>
    %c8_83 = arith.constant 8 : index
    %c0_84 = arith.constant 0 : index
    %c0_85 = arith.constant 0 : index
    %135 = vector.load %arg6[%c8_83, %c0_84, %c0_85] : memref<9x128x256xbf16, #tpu.memory_space<vmem>>, vector<1x128x256xbf16>
    %136 = vector.shape_cast %135 : vector<1x128x256xbf16> to vector<128x256xbf16>
    %cst_86 = arith.constant dense<0.000000e+00> : vector<144x256xf32>
    %137 = tpu.matmul %134, %136, %cst_86 {dimension_numbers = #tpu.dot_dimension_numbers<[1], [0], [0], [1], [0, 0, 1, 1], [], []>} : vector<144x128xbf16>, vector<128x256xbf16>, vector<144x256xf32> -> vector<144x256xf32>
    %138 = arith.addf %133, %137 : vector<144x256xf32>
    %c0_87 = arith.constant 0 : index
    %c0_88 = arith.constant 0 : index
    %139 = vector.load %arg7[%c0_87, %c0_88] : memref<1x256xf32, #tpu.memory_space<vmem>>, vector<1x256xf32>
    %140 = vector.broadcast %139 : vector<1x256xf32> to vector<144x256xf32>
    %141 = arith.addf %138, %140 : vector<144x256xf32>
    %142 = vector.extract_strided_slice %141 {offsets = [0, 0], sizes = [144, 192], strides = [1, 1]} : vector<144x256xf32> to vector<144x192xf32>
    %143 = arith.negf %142 : vector<144x192xf32>
    %144 = math.exp %143 : vector<144x192xf32>
    %cst_89 = arith.constant 1.000000e+00 : f32
    %145 = vector.broadcast %cst_89 : f32 to vector<144x192xf32>
    %146 = arith.addf %145, %144 : vector<144x192xf32>
    %147 = arith.divf %145, %146 : vector<144x192xf32>
    %148 = vector.extract_strided_slice %147 {offsets = [0, 0], sizes = [144, 64], strides = [1, 1]} : vector<144x192xf32> to vector<144x64xf32>
    %149 = vector.extract_strided_slice %147 {offsets = [0, 64], sizes = [144, 64], strides = [1, 1]} : vector<144x192xf32> to vector<144x64xf32>
    %150 = vector.extract_strided_slice %147 {offsets = [0, 128], sizes = [144, 64], strides = [1, 1]} : vector<144x192xf32> to vector<144x64xf32>
    %151 = vector.extract_strided_slice %141 {offsets = [0, 192], sizes = [144, 64], strides = [1, 1]} : vector<144x256xf32> to vector<144x64xf32>
    %152 = math.tanh %151 : vector<144x64xf32>
    %c0_90 = arith.constant 0 : index
    %c0_91 = arith.constant 0 : index
    %153 = vector.load %arg15[%c0_90, %c0_91] : memref<144x64xf32, #tpu.memory_space<vmem>>, vector<144x64xf32>
    %154 = arith.mulf %149, %153 : vector<144x64xf32>
    %155 = arith.mulf %148, %152 : vector<144x64xf32>
    %156 = arith.addf %154, %155 : vector<144x64xf32>
    %157 = math.tanh %156 : vector<144x64xf32>
    %158 = arith.mulf %150, %157 : vector<144x64xf32>
    %cst_92 = arith.constant 0.000000e+00 : f32
    %159 = vector.shape_cast %5 : vector<144x1xi1> to vector<144x1xi1>
    %160 = vector.broadcast %159 : vector<144x1xi1> to vector<144x64xi1>
    %161 = vector.broadcast %cst_92 : f32 to vector<144x64xf32>
    %162 = arith.select %160, %156, %161 : vector<144x64xi1>, vector<144x64xf32>
    %c0_93 = arith.constant 0 : index
    %c0_94 = arith.constant 0 : index
    %163 = vector.load %arg15[%c0_93, %c0_94] : memref<144x64xf32, #tpu.memory_space<vmem>>, vector<144x64xf32>
    tpu.vector_store %arg15[%c0_93, %c0_94], %162 {strides = array<i32>} : memref<144x64xf32, #tpu.memory_space<vmem>>, vector<144x64xf32>,
    %cst_95 = arith.constant 0.000000e+00 : f32
    %164 = vector.shape_cast %5 : vector<144x1xi1> to vector<144x1xi1>
    %165 = vector.broadcast %164 : vector<144x1xi1> to vector<144x64xi1>
    %166 = vector.broadcast %cst_95 : f32 to vector<144x64xf32>
    %167 = arith.select %165, %158, %166 : vector<144x64xi1>, vector<144x64xf32>
    %c16_96 = arith.constant 16 : index
    %c64 = arith.constant 64 : index
    %168 = vector.load %arg13[%c16_96, %c64] : memref<176x128xf32, #tpu.memory_space<vmem>>, vector<144x64xf32>
    tpu.vector_store %arg13[%c16_96, %c64], %167 {strides = array<i32>} : memref<176x128xf32, #tpu.memory_space<vmem>>, vector<144x64xf32>,
    %c16_97 = arith.constant 16 : index
    %c0_98 = arith.constant 0 : index
    %169 = vector.load %arg13[%c16_97, %c0_98] : memref<176x128xf32, #tpu.memory_space<vmem>>, vector<144x128xf32>
    %170 = arith.truncf %169 : vector<144x128xf32> to vector<144x128xbf16>
    %c0_99 = arith.constant 0 : index
    %c0_100 = arith.constant 0 : index
    %171 = vector.load %arg10[%c0_99, %c0_100] : memref<128x16xbf16, #tpu.memory_space<vmem>>, vector<128x16xbf16>
    %cst_101 = arith.constant dense<0.000000e+00> : vector<144x16xf32>
    %172 = tpu.matmul %170, %171, %cst_101 {dimension_numbers = #tpu.dot_dimension_numbers<[1], [0], [0], [1], [0, 0, 1, 1], [], []>} : vector<144x128xbf16>, vector<128x16xbf16>, vector<144x16xf32> -> vector<144x16xf32>
    %c0_102 = arith.constant 0 : index
    %c0_103 = arith.constant 0 : index
    %c0_104 = arith.constant 0 : index
    %c0_105 = arith.constant 0 : index
    %173 = vector.load %arg11[%c0_102, %c0_103, %c0_104, %c0_105] : memref<1x1x144x16xf32, #tpu.memory_space<vmem>>, vector<1x1x144x16xf32>
    %174 = vector.shape_cast %173 : vector<1x1x144x16xf32> to vector<144x16xf32>
    %175 = vector.shape_cast %172 : vector<144x16xf32> to vector<1x1x144x16xf32>
    tpu.vector_store %arg11[%c0_102, %c0_103, %c0_104, %c0_105], %175 {strides = array<i32>} : memref<1x1x144x16xf32, #tpu.memory_space<vmem>>, vector<1x1x144x16xf32>,
    return
  }
  func.func @transform_0(%arg0: i32, %arg1: i32) -> (i32, i32, i32, i32) {
    %c3_i32 = arith.constant 3 : i32
    %0 = arith.minsi %arg1, %c3_i32 : i32
    %c0_i32 = arith.constant 0 : i32
    %c0_i32_0 = arith.constant 0 : i32
    %c0_i32_1 = arith.constant 0 : i32
    return %arg0, %0, %c0_i32, %c0_i32_0 : i32, i32, i32, i32
  }
  func.func @transform_1(%arg0: i32, %arg1: i32) -> (i32, i32) {
    %c0_i32 = arith.constant 0 : i32
    %c0_i32_0 = arith.constant 0 : i32
    %c0_i32_1 = arith.constant 0 : i32
    return %c0_i32, %c0_i32_0 : i32, i32
  }
  func.func @transform_2(%arg0: i32, %arg1: i32) -> (i32, i32, i32) {
    %c0_i32 = arith.constant 0 : i32
    %c0_i32_0 = arith.constant 0 : i32
    %c0_i32_1 = arith.constant 0 : i32
    %c0_i32_2 = arith.constant 0 : i32
    return %c0_i32, %c0_i32_0, %c0_i32_1 : i32, i32, i32
  }
  func.func @transform_3(%arg0: i32, %arg1: i32) -> (i32, i32) {
    %c0_i32 = arith.constant 0 : i32
    %c0_i32_0 = arith.constant 0 : i32
    %c0_i32_1 = arith.constant 0 : i32
    return %c0_i32, %c0_i32_0 : i32, i32
  }
  func.func @transform_4(%arg0: i32, %arg1: i32) -> (i32, i32, i32) {
    %c0_i32 = arith.constant 0 : i32
    %c0_i32_0 = arith.constant 0 : i32
    %c0_i32_1 = arith.constant 0 : i32
    %c0_i32_2 = arith.constant 0 : i32
    return %c0_i32, %c0_i32_0, %c0_i32_1 : i32, i32, i32
  }
  func.func @transform_5(%arg0: i32, %arg1: i32) -> (i32, i32) {
    %c0_i32 = arith.constant 0 : i32
    %c0_i32_0 = arith.constant 0 : i32
    %c0_i32_1 = arith.constant 0 : i32
    return %c0_i32, %c0_i32_0 : i32, i32
  }
  func.func @transform_6(%arg0: i32, %arg1: i32) -> (i32, i32, i32) {
    %c0_i32 = arith.constant 0 : i32
    %c0_i32_0 = arith.constant 0 : i32
    %c0_i32_1 = arith.constant 0 : i32
    %c0_i32_2 = arith.constant 0 : i32
    return %c0_i32, %c0_i32_0, %c0_i32_1 : i32, i32, i32
  }
  func.func @transform_7(%arg0: i32, %arg1: i32) -> (i32, i32) {
    %c0_i32 = arith.constant 0 : i32
    %c0_i32_0 = arith.constant 0 : i32
    %c0_i32_1 = arith.constant 0 : i32
    return %c0_i32, %c0_i32_0 : i32, i32
  }
  func.func @transform_8(%arg0: i32, %arg1: i32) -> (i32, i32) {
    %c0_i32 = arith.constant 0 : i32
    %c0_i32_0 = arith.constant 0 : i32
    %c0_i32_1 = arith.constant 0 : i32
    return %c0_i32, %c0_i32_0 : i32, i32
  }
  func.func @transform_9(%arg0: i32, %arg1: i32) -> (i32, i32, i32, i32) {
    %c0_i32 = arith.constant 0 : i32
    %c0_i32_0 = arith.constant 0 : i32
    %c0_i32_1 = arith.constant 0 : i32
    return %arg0, %arg1, %c0_i32, %c0_i32_0 : i32, i32, i32, i32
  }
}

</mosaic_0001>

<llo_original>
// kernel: tile.8
$region0: #{tile.8}
  #allocation0 [shape = 's32[1]{0}', space=sflag, size = 0x4, scoped, tag = 'scoped memory for tile.8']
  %s0 = inlined_call_operand.vmem [shape: f32[8], index: 0, kind: input, shape index: {}]
  %s1 = inlined_call_operand.vmem [shape: f32[9,8], index: 1, kind: output, shape index: {}]
  // Predicated region
  $region2: #{tile.8} parent=0 // pred_check
    _
  $region3: #{tile.8} parent=0 // pred_check_branch
    %3 = sbr.rel (0) target = $region5
  $region4: #{tile.8} parent=0 // pred_region
    _
  $region5: #{tile.8} parent=0 // pred_fallthru
    _
  %v4 = vld [vmem:[%s0] ss:$0 sm:$0xff]
  %5 = vst [vmem:[%s1] sm:$0xff] %v4
  %s6 = scalar_lea.vmem %s1, 8
  %7 = vst [vmem:[%s6] sm:$0xff] %v4

// kernel: tile.9
$region0: #{tile.9}
  %s0 = inlined_call_operand.vmem [shape: f32[9,8], index: 0, kind: input, shape index: {}]
  %s1 = inlined_call_operand.vmem [shape: f32[1,72], index: 1, kind: output, shape index: {}]
  $region1: #{tile.9} parent=0
    #allocation0 [shape = 'u8[4096]{0}', space=vmem, size = 0x1000, scoped, tag = 'scoped mem for output reshape']
    %v2 = vld [vmem:[%s0] sm:$0x1]
    %vm3 = vcmask 64512
    %4 = vst.msk [vmem:[#allocation0] sm:$0x1] %vm3, %v2
    %s5 = scalar_lea.vmem %s0, 8
    %v6 = vld [vmem:[%s5] sm:$0x1]
    %7 = vrot.lane.b32.xlu0 %v6, 64
    %v8 = vpop.permute.xlu0 %7
    %vm9 = vcmask 589312
    %10 = vst.msk [vmem:[#allocation0] sm:$0x1] %vm9, %v8
    %s11 = scalar_lea.vmem %s0, 7
    %v12 = vld [vmem:[%s11] sm:$0x1]
    %13 = vrot.lane.b32.xlu0 %v12, 56
    %v14 = vpop.permute.xlu0 %13
    %vm15 = vcmask 523712
    %16 = vst.msk [vmem:[#allocation0] sm:$0x1] %vm15, %v14
    %s17 = scalar_lea.vmem %s0, 6
    %v18 = vld [vmem:[%s17] sm:$0x1]
    %19 = vrot.lane.b32.xlu0 %v18, 48
    %v20 = vpop.permute.xlu0 %19
    %vm21 = vcmask 458112
    %22 = vst.msk [vmem:[#allocation0] sm:$0x1] %vm21, %v20
    %s23 = scalar_lea.vmem %s0, 5
    %v24 = vld [vmem:[%s23] sm:$0x1]
    %25 = vrot.lane.b32.xlu0 %v24, 40
    %v26 = vpop.permute.xlu0 %25
    %vm27 = vcmask 392512
    %28 = vst.msk [vmem:[#allocation0] sm:$0x1] %vm27, %v26
    %s29 = scalar_lea.vmem %s0, 4
    %v30 = vld [vmem:[%s29] sm:$0x1]
    %31 = vrot.lane.b32.xlu0 %v30, 32
    %v32 = vpop.permute.xlu0 %31
    %vm33 = vcmask 326912
    %34 = vst.msk [vmem:[#allocation0] sm:$0x1] %vm33, %v32
    %s35 = scalar_lea.vmem %s0, 3
    %v36 = vld [vmem:[%s35] sm:$0x1]
    %37 = vrot.lane.b32.xlu0 %v36, 24
    %v38 = vpop.permute.xlu0 %37
    %vm39 = vcmask 261312
    %40 = vst.msk [vmem:[#allocation0] sm:$0x1] %vm39, %v38
    %s41 = scalar_lea.vmem %s0, 2
    %v42 = vld [vmem:[%s41] sm:$0x1]
    %43 = vrot.lane.b32.xlu0 %v42, 16
    %v44 = vpop.permute.xlu0 %43
    %vm45 = vcmask 195712
    %46 = vst.msk [vmem:[#allocation0] sm:$0x1] %vm45, %v44
    %s47 = scalar_lea.vmem %s0, 1
    %v48 = vld [vmem:[%s47] sm:$0x1]
    %49 = vrot.lane.b32.xlu0 %v48, 8
    %v50 = vpop.permute.xlu0 %49
    %vm51 = vcmask 130112
    %52 = vst.msk [vmem:[#allocation0] sm:$0x1] %vm51, %v50
    %s54 = sshllo.u32 0, 1
    %v56 = vld [vmem:[#allocation0] sm:%s54]
    %s57 = sshllo.u32 0, 1
    %58 = vst [vmem:[%s1] sm:%s57] %v56

// kernel: conv_lstm_forward.1
$region0: #{conv_lstm_forward.1}
  #allocation0 [shape = 'u32[]', space=smem, size = 0x4, offset = 0x4, fixed_abs, tag = 'smem constant byte address 0x4 - core index']
  #allocation1 [shape = 'u32[144,128]{1,0:T(1,128)}', space=vmem, size = 0x12000, scoped, tag = 'internal scratch']
  #allocation2 [shape = 'f32[176,128]{1,0:T(8,128)}', space=vmem, size = 0x16000, scoped, tag = 'scratch operand']
  #allocation3 [shape = 'f32[176,128]{1,0:T(8,128)}', space=vmem, size = 0x16000, scoped, tag = 'scratch operand']
  #allocation4 [shape = 'f32[144,64]{1,0:T(8,128)}', space=vmem, size = 0x12000, scoped, tag = 'scratch operand']
  #allocation5 [shape = 'f32[144,64]{1,0:T(8,128)}', space=vmem, size = 0x12000, scoped, tag = 'scratch operand']
  %s0 = inlined_call_operand.vmem [shape: f32[2,4,144,8], index: 0, kind: input, shape index: {}]
  %s1 = inlined_call_operand.vmem [shape: f32[144,1], index: 1, kind: input, shape index: {}]
  %s2 = inlined_call_operand.vmem [shape: bf16[9,128,256], index: 2, kind: input, shape index: {}]
  %s3 = inlined_call_operand.vmem [shape: f32[1,256], index: 3, kind: input, shape index: {}]
  %s4 = inlined_call_operand.vmem [shape: bf16[9,128,256], index: 4, kind: input, shape index: {}]
  %s5 = inlined_call_operand.vmem [shape: f32[1,256], index: 5, kind: input, shape index: {}]
  %s6 = inlined_call_operand.vmem [shape: bf16[9,128,72], index: 6, kind: input, shape index: {}]
  %s7 = inlined_call_operand.vmem [shape: f32[1,72], index: 7, kind: input, shape index: {}]
  %s8 = inlined_call_operand.vmem [shape: bf16[128,16], index: 8, kind: input, shape index: {}]
  %s9 = inlined_call_operand.vmem [shape: f32[2,8,144,16], index: 9, kind: output, shape index: {}]
  %s10 = sld [smem:[#allocation0]]
  $region81: #{conv_lstm_forward.1} parent=0
    _
  %s12 = ssub.s32 1, %s10
  %s13 = scalar_select 0, %s12, %s10
  loop: start=0, step=1, limit=18
  $region2: #{conv_lstm_forward.1} parent=0 // loop_pre_header
    _
  $region3: #{conv_lstm_forward.1} parent=0 // loop_header
    %s15 = sphi 0, %s19
    %p16 = scmp.ge.s32.totalorder %s15, 18
    %s22 = sphi 0, %s34
    %s23 = sphi 0, %s30
    %s24 = sphi 0, %s22
    %s25 = sphi 0, %s23
    %s26 = sphi 0, %s24
    %s27 = sphi 0, %s25
    %s43 = sphi 0, %s45
    %s46 = sphi 0, %s43
    %s47 = sphi 0, %s46
    %s63 = sphi 0, %s47
    %s67 = sphi 0, %s67
    %s69 = sphi 0, %s67
    %s70 = sphi 0, %s69
    %s84 = sphi 0, %s70
    %s88 = sphi 0, %s88
    %s90 = sphi 0, %s88
    %s91 = sphi 0, %s90
    %s105 = sphi 0, %s91
    %s109 = sphi 0, %s109
    %s111 = sphi 0, %s109
    %s112 = sphi 0, %s111
    %s126 = sphi 0, %s112
    %s130 = sphi 0, %s130
    %s132 = sphi 0, %s130
    %s133 = sphi 0, %s132
    %s147 = sphi 0, %s133
    %s151 = sphi 0, %s151
    %s153 = sphi 0, %s151
    %s154 = sphi 0, %s153
    %s168 = sphi 0, %s154
    %s172 = sphi 0, %s172
    %s174 = sphi 0, %s172
    %s175 = sphi 0, %s174
    %s189 = sphi 0, %s175
    %s193 = sphi 0, %s193
    %s195 = sphi 0, %s193
    %s196 = sphi 0, %s195
    %s210 = sphi 0, %s196
    %s214 = sphi 0, %s214
    %s216 = sphi 0, %s214
    %s217 = sphi 0, %s216
    %s231 = sphi 0, %s217
    %s239 = sphi 0, %s241
    %s242 = sphi 0, %s239
    %s243 = sphi 0, %s242
    %s259 = sphi 0, %s243
  $region4: #{conv_lstm_forward.1} parent=0 // loop_header_branch
    %18 = sbr.rel (%p16) target = $region8
  $region5: #{conv_lstm_forward.1} parent=0 // loop_body
    %s20 = ssub.s32 %s15, 1
    %s21 = ssub.s32 %s15, 2
    %s28 = sadd.s32 1, %s23
    %p29 = scmp.ge.s32.totalorder %s28, 8
    %s30 = scalar_select %p29, 0, %s28
    %s31 = sadd.s32 1, %s22
    %s32 = scalar_select %p29, %s31, %s22
    %p33 = scmp.ge.s32.totalorder %s32, 2
    %s34 = scalar_select %p33, 0, %s32
    %p35 = scmp.lt.s32.totalorder %s23, 3
    %s36 = scalar_select %p35, %s23, 3
    %p37 = scmp.lt.s32.totalorder %s30, 3
    %s38 = scalar_select %p37, %s30, 3
    %s39 = ssub.s32 %s22, %s34
    %s40 = ssub.s32 %s36, %s38
    %s41 = sor.u32 %s39, %s40
    %p42 = scmp.eq.s32.totalorder %s41, 0
    %s44 = sadd.s32 %s43, 1
    %s45 = scalar_select %p42, %s43, %s44
    %p48 = pneg %p42
    %p49 = scmp.eq.s32.totalorder %s15, 15
    %p50 = por %p48, %p49
    %p51 = scmp.ne.s32.totalorder %s43, %s46
    %p52 = scmp.eq.s32.totalorder %s15, 0
    %p53 = por %p51, %p52
    %p54 = scmp.ne.s32.totalorder %s43, %s46
    %p55 = scmp.eq.s32.totalorder %s20, 15
    %p56 = por %p54, %p55
    %p57 = scmp.ne.s32.totalorder %s46, %s47
    %p58 = scmp.eq.s32.totalorder %s20, 0
    %p59 = por %p57, %p58
    %p60 = scmp.ne.s32.totalorder %s46, %s47
    %p61 = scmp.eq.s32.totalorder %s21, 15
    %p62 = por %p60, %p61
    %p64 = scmp.ne.s32.totalorder %s47, %s63
    %p65 = scmp.eq.s32.totalorder %s21, 0
    %p66 = por %p64, %p65
    %s68 = sadd.s32 %s67, 1
    %p71 = scmp.eq.s32.totalorder %s15, 15
    %p72 = scmp.ne.s32.totalorder %s67, %s69
    %p73 = scmp.eq.s32.totalorder %s15, 0
    %p74 = por %p72, %p73
    %p75 = scmp.ne.s32.totalorder %s67, %s69
    %p76 = scmp.eq.s32.totalorder %s20, 15
    %p77 = por %p75, %p76
    %p78 = scmp.ne.s32.totalorder %s69, %s70
    %p79 = scmp.eq.s32.totalorder %s20, 0
    %p80 = por %p78, %p79
    %p81 = scmp.ne.s32.totalorder %s69, %s70
    %p82 = scmp.eq.s32.totalorder %s21, 15
    %p83 = por %p81, %p82
    %p85 = scmp.ne.s32.totalorder %s70, %s84
    %p86 = scmp.eq.s32.totalorder %s21, 0
    %p87 = por %p85, %p86
    %s89 = sadd.s32 %s88, 1
    %p92 = scmp.eq.s32.totalorder %s15, 15
    %p93 = scmp.ne.s32.totalorder %s88, %s90
    %p94 = scmp.eq.s32.totalorder %s15, 0
    %p95 = por %p93, %p94
    %p96 = scmp.ne.s32.totalorder %s88, %s90
    %p97 = scmp.eq.s32.totalorder %s20, 15
    %p98 = por %p96, %p97
    %p99 = scmp.ne.s32.totalorder %s90, %s91
    %p100 = scmp.eq.s32.totalorder %s20, 0
    %p101 = por %p99, %p100
    %p102 = scmp.ne.s32.totalorder %s90, %s91
    %p103 = scmp.eq.s32.totalorder %s21, 15
    %p104 = por %p102, %p103
    %p106 = scmp.ne.s32.totalorder %s91, %s105
    %p107 = scmp.eq.s32.totalorder %s21, 0
    %p108 = por %p106, %p107
    %s110 = sadd.s32 %s109, 1
    %p113 = scmp.eq.s32.totalorder %s15, 15
    %p114 = scmp.ne.s32.totalorder %s109, %s111
    %p115 = scmp.eq.s32.totalorder %s15, 0
    %p116 = por %p114, %p115
    %p117 = scmp.ne.s32.totalorder %s109, %s111
    %p118 = scmp.eq.s32.totalorder %s20, 15
    %p119 = por %p117, %p118
    %p120 = scmp.ne.s32.totalorder %s111, %s112
    %p121 = scmp.eq.s32.totalorder %s20, 0
    %p122 = por %p120, %p121
    %p123 = scmp.ne.s32.totalorder %s111, %s112
    %p124 = scmp.eq.s32.totalorder %s21, 15
    %p125 = por %p123, %p124
    %p127 = scmp.ne.s32.totalorder %s112, %s126
    %p128 = scmp.eq.s32.totalorder %s21, 0
    %p129 = por %p127, %p128
    %s131 = sadd.s32 %s130, 1
    %p134 = scmp.eq.s32.totalorder %s15, 15
    %p135 = scmp.ne.s32.totalorder %s130, %s132
    %p136 = scmp.eq.s32.totalorder %s15, 0
    %p137 = por %p135, %p136
    %p138 = scmp.ne.s32.totalorder %s130, %s132
    %p139 = scmp.eq.s32.totalorder %s20, 15
    %p140 = por %p138, %p139
    %p141 = scmp.ne.s32.totalorder %s132, %s133
    %p142 = scmp.eq.s32.totalorder %s20, 0
    %p143 = por %p141, %p142
    %p144 = scmp.ne.s32.totalorder %s132, %s133
    %p145 = scmp.eq.s32.totalorder %s21, 15
    %p146 = por %p144, %p145
    %p148 = scmp.ne.s32.totalorder %s133, %s147
    %p149 = scmp.eq.s32.totalorder %s21, 0
    %p150 = por %p148, %p149
    %s152 = sadd.s32 %s151, 1
    %p155 = scmp.eq.s32.totalorder %s15, 15
    %p156 = scmp.ne.s32.totalorder %s151, %s153
    %p157 = scmp.eq.s32.totalorder %s15, 0
    %p158 = por %p156, %p157
    %p159 = scmp.ne.s32.totalorder %s151, %s153
    %p160 = scmp.eq.s32.totalorder %s20, 15
    %p161 = por %p159, %p160
    %p162 = scmp.ne.s32.totalorder %s153, %s154
    %p163 = scmp.eq.s32.totalorder %s20, 0
    %p164 = por %p162, %p163
    %p165 = scmp.ne.s32.totalorder %s153, %s154
    %p166 = scmp.eq.s32.totalorder %s21, 15
    %p167 = por %p165, %p166
    %p169 = scmp.ne.s32.totalorder %s154, %s168
    %p170 = scmp.eq.s32.totalorder %s21, 0
    %p171 = por %p169, %p170
    %s173 = sadd.s32 %s172, 1
    %p176 = scmp.eq.s32.totalorder %s15, 15
    %p177 = scmp.ne.s32.totalorder %s172, %s174
    %p178 = scmp.eq.s32.totalorder %s15, 0
    %p179 = por %p177, %p178
    %p180 = scmp.ne.s32.totalorder %s172, %s174
    %p181 = scmp.eq.s32.totalorder %s20, 15
    %p182 = por %p180, %p181
    %p183 = scmp.ne.s32.totalorder %s174, %s175
    %p184 = scmp.eq.s32.totalorder %s20, 0
    %p185 = por %p183, %p184
    %p186 = scmp.ne.s32.totalorder %s174, %s175
    %p187 = scmp.eq.s32.totalorder %s21, 15
    %p188 = por %p186, %p187
    %p190 = scmp.ne.s32.totalorder %s175, %s189
    %p191 = scmp.eq.s32.totalorder %s21, 0
    %p192 = por %p190, %p191
    %s194 = sadd.s32 %s193, 1
    %p197 = scmp.eq.s32.totalorder %s15, 15
    %p198 = scmp.ne.s32.totalorder %s193, %s195
    %p199 = scmp.eq.s32.totalorder %s15, 0
    %p200 = por %p198, %p199
    %p201 = scmp.ne.s32.totalorder %s193, %s195
    %p202 = scmp.eq.s32.totalorder %s20, 15
    %p203 = por %p201, %p202
    %p204 = scmp.ne.s32.totalorder %s195, %s196
    %p205 = scmp.eq.s32.totalorder %s20, 0
    %p206 = por %p204, %p205
    %p207 = scmp.ne.s32.totalorder %s195, %s196
    %p208 = scmp.eq.s32.totalorder %s21, 15
    %p209 = por %p207, %p208
    %p211 = scmp.ne.s32.totalorder %s196, %s210
    %p212 = scmp.eq.s32.totalorder %s21, 0
    %p213 = por %p211, %p212
    %s215 = sadd.s32 %s214, 1
    %p218 = scmp.eq.s32.totalorder %s15, 15
    %p219 = scmp.ne.s32.totalorder %s214, %s216
    %p220 = scmp.eq.s32.totalorder %s15, 0
    %p221 = por %p219, %p220
    %p222 = scmp.ne.s32.totalorder %s214, %s216
    %p223 = scmp.eq.s32.totalorder %s20, 15
    %p224 = por %p222, %p223
    %p225 = scmp.ne.s32.totalorder %s216, %s217
    %p226 = scmp.eq.s32.totalorder %s20, 0
    %p227 = por %p225, %p226
    %p228 = scmp.ne.s32.totalorder %s216, %s217
    %p229 = scmp.eq.s32.totalorder %s21, 15
    %p230 = por %p228, %p229
    %p232 = scmp.ne.s32.totalorder %s217, %s231
    %p233 = scmp.eq.s32.totalorder %s21, 0
    %p234 = por %p232, %p233
    %s235 = ssub.s32 %s22, %s34
    %s236 = ssub.s32 %s23, %s30
    %s237 = sor.u32 %s235, %s236
    %p238 = scmp.eq.s32.totalorder %s237, 0
    %s240 = sadd.s32 %s239, 1
    %s241 = scalar_select %p238, %s239, %s240
    %p244 = pneg %p238
    %p245 = scmp.eq.s32.totalorder %s15, 15
    %p246 = por %p244, %p245
    %p247 = scmp.ne.s32.totalorder %s239, %s242
    %p248 = scmp.eq.s32.totalorder %s15, 0
    %p249 = por %p247, %p248
    %p250 = scmp.ne.s32.totalorder %s239, %s242
    %p251 = scmp.eq.s32.totalorder %s20, 15
    %p252 = por %p250, %p251
    %p253 = scmp.ne.s32.totalorder %s242, %s243
    %p254 = scmp.eq.s32.totalorder %s20, 0
    %p255 = por %p253, %p254
    %p256 = scmp.ne.s32.totalorder %s242, %s243
    %p257 = scmp.eq.s32.totalorder %s21, 15
    %p258 = por %p256, %p257
    %p260 = scmp.ne.s32.totalorder %s243, %s259
    %p261 = scmp.eq.s32.totalorder %s21, 0
    %p262 = por %p260, %p261
    %p263 = scmp.le.s32.totalorder 1, %s15
    %p264 = scmp.lt.s32.totalorder %s15, 17
    %p265 = pnand %p263, %p264
    %p266 = pneg %p265
    // Predicated region
    $region9: #{conv_lstm_forward.1} parent=5 // pred_check
      _
    $region10: #{conv_lstm_forward.1} parent=5 // pred_check_branch
      %268 = sbr.rel (%p265) target = $region12
    $region11: #{conv_lstm_forward.1} parent=5 // pred_region
      %s269 = ssub.s32 %s15, 1
      // Predicated region
      $region13: #{conv_lstm_forward.1} parent=11 // pred_check
        %p270 = pneg %p80
      $region14: #{conv_lstm_forward.1} parent=11 // pred_check_branch
        %272 = sbr.rel (%p270) target = $region16
      $region15: #{conv_lstm_forward.1} parent=11 // pred_region
        _
      $region16: #{conv_lstm_forward.1} parent=11 // pred_fallthru
        _
      // Predicated region
      $region17: #{conv_lstm_forward.1} parent=11 // pred_check
        %p273 = pneg %p101
      $region18: #{conv_lstm_forward.1} parent=11 // pred_check_branch
        %275 = sbr.rel (%p273) target = $region20
      $region19: #{conv_lstm_forward.1} parent=11 // pred_region
        _
      $region20: #{conv_lstm_forward.1} parent=11 // pred_fallthru
        _
      // Predicated region
      $region21: #{conv_lstm_forward.1} parent=11 // pred_check
        %p276 = pneg %p122
      $region22: #{conv_lstm_forward.1} parent=11 // pred_check_branch
        %278 = sbr.rel (%p276) target = $region24
      $region23: #{conv_lstm_forward.1} parent=11 // pred_region
        _
      $region24: #{conv_lstm_forward.1} parent=11 // pred_fallthru
        _
      // Predicated region
      $region25: #{conv_lstm_forward.1} parent=11 // pred_check
        %p279 = pneg %p143
      $region26: #{conv_lstm_forward.1} parent=11 // pred_check_branch
        %281 = sbr.rel (%p279) target = $region28
      $region27: #{conv_lstm_forward.1} parent=11 // pred_region
        _
      $region28: #{conv_lstm_forward.1} parent=11 // pred_fallthru
        _
      // Predicated region
      $region29: #{conv_lstm_forward.1} parent=11 // pred_check
        %p282 = pneg %p164
      $region30: #{conv_lstm_forward.1} parent=11 // pred_check_branch
        %284 = sbr.rel (%p282) target = $region32
      $region31: #{conv_lstm_forward.1} parent=11 // pred_region
        _
      $region32: #{conv_lstm_forward.1} parent=11 // pred_fallthru
        _
      // Predicated region
      $region33: #{conv_lstm_forward.1} parent=11 // pred_check
        %p285 = pneg %p185
      $region34: #{conv_lstm_forward.1} parent=11 // pred_check_branch
        %287 = sbr.rel (%p285) target = $region36
      $region35: #{conv_lstm_forward.1} parent=11 // pred_region
        _
      $region36: #{conv_lstm_forward.1} parent=11 // pred_fallthru
        _
      // Predicated region
      $region37: #{conv_lstm_forward.1} parent=11 // pred_check
        %p288 = pneg %p206
      $region38: #{conv_lstm_forward.1} parent=11 // pred_check_branch
        %290 = sbr.rel (%p288) target = $region40
      $region39: #{conv_lstm_forward.1} parent=11 // pred_region
        _
      $region40: #{conv_lstm_forward.1} parent=11 // pred_fallthru
        _
      // Predicated region
      $region41: #{conv_lstm_forward.1} parent=11 // pred_check
        %p291 = pneg %p227
      $region42: #{conv_lstm_forward.1} parent=11 // pred_check_branch
        %293 = sbr.rel (%p291) target = $region44
      $region43: #{conv_lstm_forward.1} parent=11 // pred_region
        _
      $region44: #{conv_lstm_forward.1} parent=11 // pred_fallthru
        _
    $region12: #{conv_lstm_forward.1} parent=5 // pred_fallthru
      _
    %p294 = scmp.lt.s32.totalorder %s15, 16
    // Predicated region
    $region45: #{conv_lstm_forward.1} parent=5 // pred_check
      %p295 = pneg %p294
    $region46: #{conv_lstm_forward.1} parent=5 // pred_check_branch
      %297 = sbr.rel (%p295) target = $region48
    $region47: #{conv_lstm_forward.1} parent=5 // pred_region
      // Predicated region
      $region49: #{conv_lstm_forward.1} parent=47 // pred_check
        %p298 = pneg %p53
      $region50: #{conv_lstm_forward.1} parent=47 // pred_check_branch
        %300 = sbr.rel (%p298) target = $region52
      $region51: #{conv_lstm_forward.1} parent=47 // pred_region
        %p301 = scmp.lt.s32.totalorder %s23, 3
        %s302 = scalar_select %p301, %s23, 3
        %p303 = scmp.lt.s32.totalorder %s22, 1
        %s304 = scalar_select %p303, %s22, 1
        %p305 = scmp.lt.s32.totalorder %s302, 3
        %s306 = scalar_select %p305, %s302, 3
        %s307 = smul.addr %s306, 18
        %s308 = smul.addr %s304, 72
        %s309 = sadd.s32 %s307, %s308
        %s310 = smul.addr %s309, 8
        %s311 = scalar_lea.vmem %s0, %s310
        %p312 = scmp.lt.s32.totalorder %s23, 3
        %s313 = scalar_select %p312, %s23, 3
      $region52: #{conv_lstm_forward.1} parent=47 // pred_fallthru
        _
    $region48: #{conv_lstm_forward.1} parent=5 // pred_fallthru
      _
    %p314 = scmp.le.s32.totalorder 1, %s15
    %p315 = scmp.lt.s32.totalorder %s15, 17
    %p316 = pnand %p314, %p315
    %p317 = pneg %p316
    // Predicated region
    $region53: #{conv_lstm_forward.1} parent=5 // pred_check
      _
    $region54: #{conv_lstm_forward.1} parent=5 // pred_check_branch
      %319 = sbr.rel (%p316) target = $region56
    $region55: #{conv_lstm_forward.1} parent=5 // pred_region
      %s320 = ssub.s32 %s15, 1
      %p321 = scmp.lt.s32.totalorder %s25, 3
      %s322 = scalar_select %p321, %s25, 3
      %p323 = scmp.lt.s32.totalorder %s24, 1
      %s324 = scalar_select %p323, %s24, 1
      %p325 = scmp.lt.s32.totalorder %s322, 3
      %s326 = scalar_select %p325, %s322, 3
      %s327 = smul.addr %s326, 18
      %s328 = smul.addr %s324, 72
      %s329 = sadd.s32 %s327, %s328
      %s330 = smul.addr %s329, 8
      %s331 = scalar_lea.vmem %s0, %s330
      %p332 = pneg %p59
      %p333 = pneg %p56
      %p334 = pneg %p80
      %p335 = pneg %p77
      %p336 = pneg %p101
      %p337 = pneg %p98
      %p338 = pneg %p122
      %p339 = pneg %p119
      %p340 = pneg %p143
      %p341 = pneg %p140
      %p342 = pneg %p164
      %p343 = pneg %p161
      %p344 = pneg %p185
      %p345 = pneg %p182
      %p346 = pneg %p206
      %p347 = pneg %p203
      %p348 = pneg %p227
      %p349 = pneg %p224
      %p350 = pneg %p255
      %p351 = pneg %p252
      %p352 = scmp.lt.s32.totalorder %s24, 1
      %s353 = scalar_select %p352, %s24, 1
      %p354 = scmp.lt.s32.totalorder %s25, 7
      %s355 = scalar_select %p354, %s25, 7
      %s356 = smul.addr %s355, 18
      %s357 = smul.addr %s353, 144
      %s358 = sadd.s32 %s356, %s357
      %s359 = smul.addr %s358, 8
      %s360 = scalar_lea.vmem %s9, %s359
      %p361 = scmp.lt.s32.totalorder %s25, 3
      %s362 = scalar_select %p361, %s25, 3
      %p363 = scmp.lt.s32.totalorder %s24, 1
      %s364 = scalar_select %p363, %s24, 1
      %p365 = scmp.lt.s32.totalorder %s362, 3
      %s366 = scalar_select %p365, %s362, 3
      %s367 = smul.addr %s366, 18
      %s368 = smul.addr %s364, 72
      %s369 = sadd.s32 %s367, %s368
      %s370 = smul.addr %s369, 8
      %s371 = scalar_lea.vmem %s0, %s370
      %p372 = scmp.lt.s32.totalorder %s25, 3
      %s373 = scalar_select %p372, %s25, 3
      %p374 = scmp.lt.s32.totalorder %s24, 1
      %s375 = scalar_select %p374, %s24, 1
      %p376 = scmp.lt.s32.totalorder %s25, 7
      %s377 = scalar_select %p376, %s25, 7
      %s378 = smul.addr %s377, 18
      %s379 = smul.addr %s375, 144
      %s380 = sadd.s32 %s378, %s379
      %s381 = smul.addr %s380, 8
      %s382 = scalar_lea.vmem %s9, %s381
      %p384 = scmp.eq.s32.totalorder %s25, 0
      // Predicated region
      $region57: #{conv_lstm_forward.1} parent=55 // pred_check
        %p385 = pneg %p384
      $region58: #{conv_lstm_forward.1} parent=55 // pred_check_branch
        %387 = sbr.rel (%p385) target = $region60
      $region59: #{conv_lstm_forward.1} parent=55 // pred_region
        %388 = vst [vmem:[#allocation2] sm:$0xff] 0.0
        %389 = vst [vmem:[#allocation2 + $0x8] sm:$0xff] 0.0
        %390 = vst [vmem:[#allocation2 + $0x10] sm:$0xff] 0.0
        %391 = vst [vmem:[#allocation2 + $0x18] sm:$0xff] 0.0
        %392 = vst [vmem:[#allocation2 + $0x20] sm:$0xff] 0.0
        %393 = vst [vmem:[#allocation2 + $0x28] sm:$0xff] 0.0
        %394 = vst [vmem:[#allocation2 + $0x30] sm:$0xff] 0.0
        %395 = vst [vmem:[#allocation2 + $0x38] sm:$0xff] 0.0
        %396 = vst [vmem:[#allocation2 + $0x40] sm:$0xff] 0.0
        %397 = vst [vmem:[#allocation2 + $0x48] sm:$0xff] 0.0
        %398 = vst [vmem:[#allocation2 + $0x50] sm:$0xff] 0.0
        %399 = vst [vmem:[#allocation2 + $0x58] sm:$0xff] 0.0
        %400 = vst [vmem:[#allocation2 + $0x60] sm:$0xff] 0.0
        %401 = vst [vmem:[#allocation2 + $0x68] sm:$0xff] 0.0
        %402 = vst [vmem:[#allocation2 + $0x70] sm:$0xff] 0.0
        %403 = vst [vmem:[#allocation2 + $0x78] sm:$0xff] 0.0
        %404 = vst [vmem:[#allocation2 + $0x80] sm:$0xff] 0.0
        %405 = vst [vmem:[#allocation2 + $0x88] sm:$0xff] 0.0
        %406 = vst [vmem:[#allocation2 + $0x90] sm:$0xff] 0.0
        %407 = vst [vmem:[#allocation2 + $0x98] sm:$0xff] 0.0
        %408 = vst [vmem:[#allocation2 + $0xa0] sm:$0xff] 0.0
        %409 = vst [vmem:[#allocation2 + $0xa8] sm:$0xff] 0.0
        %410 = vst [vmem:[#allocation3] sm:$0xff] 0.0
        %411 = vst [vmem:[#allocation3 + $0x8] sm:$0xff] 0.0
        %412 = vst [vmem:[#allocation3 + $0x10] sm:$0xff] 0.0
        %413 = vst [vmem:[#allocation3 + $0x18] sm:$0xff] 0.0
        %414 = vst [vmem:[#allocation3 + $0x20] sm:$0xff] 0.0
        %415 = vst [vmem:[#allocation3 + $0x28] sm:$0xff] 0.0
        %416 = vst [vmem:[#allocation3 + $0x30] sm:$0xff] 0.0
        %417 = vst [vmem:[#allocation3 + $0x38] sm:$0xff] 0.0
        %418 = vst [vmem:[#allocation3 + $0x40] sm:$0xff] 0.0
        %419 = vst [vmem:[#allocation3 + $0x48] sm:$0xff] 0.0
        %420 = vst [vmem:[#allocation3 + $0x50] sm:$0xff] 0.0
        %421 = vst [vmem:[#allocation3 + $0x58] sm:$0xff] 0.0
        %422 = vst [vmem:[#allocation3 + $0x60] sm:$0xff] 0.0
        %423 = vst [vmem:[#allocation3 + $0x68] sm:$0xff] 0.0
        %424 = vst [vmem:[#allocation3 + $0x70] sm:$0xff] 0.0
        %425 = vst [vmem:[#allocation3 + $0x78] sm:$0xff] 0.0
        %426 = vst [vmem:[#allocation3 + $0x80] sm:$0xff] 0.0
        %427 = vst [vmem:[#allocation3 + $0x88] sm:$0xff] 0.0
        %428 = vst [vmem:[#allocation3 + $0x90] sm:$0xff] 0.0
        %429 = vst [vmem:[#allocation3 + $0x98] sm:$0xff] 0.0
        %430 = vst [vmem:[#allocation3 + $0xa0] sm:$0xff] 0.0
        %431 = vst [vmem:[#allocation3 + $0xa8] sm:$0xff] 0.0
        %vm432 = vcmask 523264
        %433 = vst.msk [vmem:[#allocation4] sm:$0xff] %vm432, 0.0
        %434 = vst.msk [vmem:[#allocation4 + $0x8] sm:$0xff] %vm432, 0.0
        %435 = vst.msk [vmem:[#allocation4 + $0x10] sm:$0xff] %vm432, 0.0
        %436 = vst.msk [vmem:[#allocation4 + $0x18] sm:$0xff] %vm432, 0.0
        %437 = vst.msk [vmem:[#allocation4 + $0x20] sm:$0xff] %vm432, 0.0
        %438 = vst.msk [vmem:[#allocation4 + $0x28] sm:$0xff] %vm432, 0.0
        %439 = vst.msk [vmem:[#allocation4 + $0x30] sm:$0xff] %vm432, 0.0
        %440 = vst.msk [vmem:[#allocation4 + $0x38] sm:$0xff] %vm432, 0.0
        %441 = vst.msk [vmem:[#allocation4 + $0x40] sm:$0xff] %vm432, 0.0
        %442 = vst.msk [vmem:[#allocation4 + $0x48] sm:$0xff] %vm432, 0.0
        %443 = vst.msk [vmem:[#allocation4 + $0x50] sm:$0xff] %vm432, 0.0
        %444 = vst.msk [vmem:[#allocation4 + $0x58] sm:$0xff] %vm432, 0.0
        %445 = vst.msk [vmem:[#allocation4 + $0x60] sm:$0xff] %vm432, 0.0
        %446 = vst.msk [vmem:[#allocation4 + $0x68] sm:$0xff] %vm432, 0.0
        %447 = vst.msk [vmem:[#allocation4 + $0x70] sm:$0xff] %vm432, 0.0
        %448 = vst.msk [vmem:[#allocation4 + $0x78] sm:$0xff] %vm432, 0.0
        %449 = vst.msk [vmem:[#allocation4 + $0x80] sm:$0xff] %vm432, 0.0
        %450 = vst.msk [vmem:[#allocation4 + $0x88] sm:$0xff] %vm432, 0.0
        %451 = vst.msk [vmem:[#allocation5] sm:$0xff] %vm432, 0.0
        %452 = vst.msk [vmem:[#allocation5 + $0x8] sm:$0xff] %vm432, 0.0
        %453 = vst.msk [vmem:[#allocation5 + $0x10] sm:$0xff] %vm432, 0.0
        %454 = vst.msk [vmem:[#allocation5 + $0x18] sm:$0xff] %vm432, 0.0
        %455 = vst.msk [vmem:[#allocation5 + $0x20] sm:$0xff] %vm432, 0.0
        %456 = vst.msk [vmem:[#allocation5 + $0x28] sm:$0xff] %vm432, 0.0
        %457 = vst.msk [vmem:[#allocation5 + $0x30] sm:$0xff] %vm432, 0.0
        %458 = vst.msk [vmem:[#allocation5 + $0x38] sm:$0xff] %vm432, 0.0
        %459 = vst.msk [vmem:[#allocation5 + $0x40] sm:$0xff] %vm432, 0.0
        %460 = vst.msk [vmem:[#allocation5 + $0x48] sm:$0xff] %vm432, 0.0
        %461 = vst.msk [vmem:[#allocation5 + $0x50] sm:$0xff] %vm432, 0.0
        %462 = vst.msk [vmem:[#allocation5 + $0x58] sm:$0xff] %vm432, 0.0
        %463 = vst.msk [vmem:[#allocation5 + $0x60] sm:$0xff] %vm432, 0.0
        %464 = vst.msk [vmem:[#allocation5 + $0x68] sm:$0xff] %vm432, 0.0
        %465 = vst.msk [vmem:[#allocation5 + $0x70] sm:$0xff] %vm432, 0.0
        %466 = vst.msk [vmem:[#allocation5 + $0x78] sm:$0xff] %vm432, 0.0
        %467 = vst.msk [vmem:[#allocation5 + $0x80] sm:$0xff] %vm432, 0.0
        %468 = vst.msk [vmem:[#allocation5 + $0x88] sm:$0xff] %vm432, 0.0
      $region60: #{conv_lstm_forward.1} parent=55 // pred_fallthru
        _
      %v469 = vld [vmem:[%s1] sm:$0xff]
      %v470 = vld [vmem:[%s1 + $0x8] sm:$0xff]
      %v471 = vld [vmem:[%s1 + $0x10] sm:$0xff]
      %v472 = vld [vmem:[%s1 + $0x18] sm:$0xff]
      %v473 = vld [vmem:[%s1 + $0x20] sm:$0xff]
      %v474 = vld [vmem:[%s1 + $0x28] sm:$0xff]
      %v475 = vld [vmem:[%s1 + $0x30] sm:$0xff]
      %v476 = vld [vmem:[%s1 + $0x38] sm:$0xff]
      %v477 = vld [vmem:[%s1 + $0x40] sm:$0xff]
      %v478 = vld [vmem:[%s1 + $0x48] sm:$0xff]
      %v479 = vld [vmem:[%s1 + $0x50] sm:$0xff]
      %v480 = vld [vmem:[%s1 + $0x58] sm:$0xff]
      %v481 = vld [vmem:[%s1 + $0x60] sm:$0xff]
      %v482 = vld [vmem:[%s1 + $0x68] sm:$0xff]
      %v483 = vld [vmem:[%s1 + $0x70] sm:$0xff]
      %v484 = vld [vmem:[%s1 + $0x78] sm:$0xff]
      %v485 = vld [vmem:[%s1 + $0x80] sm:$0xff]
      %v486 = vld [vmem:[%s1 + $0x88] sm:$0xff]
      %vm487 = vcmp.gt.f32.partialorder %v469, 0.5
      %vm488 = vcmp.gt.f32.partialorder %v470, 0.5
      %vm489 = vcmp.gt.f32.partialorder %v471, 0.5
      %vm490 = vcmp.gt.f32.partialorder %v472, 0.5
      %vm491 = vcmp.gt.f32.partialorder %v473, 0.5
      %vm492 = vcmp.gt.f32.partialorder %v474, 0.5
      %vm493 = vcmp.gt.f32.partialorder %v475, 0.5
      %vm494 = vcmp.gt.f32.partialorder %v476, 0.5
      %vm495 = vcmp.gt.f32.partialorder %v477, 0.5
      %vm496 = vcmp.gt.f32.partialorder %v478, 0.5
      %vm497 = vcmp.gt.f32.partialorder %v479, 0.5
      %vm498 = vcmp.gt.f32.partialorder %v480, 0.5
      %vm499 = vcmp.gt.f32.partialorder %v481, 0.5
      %vm500 = vcmp.gt.f32.partialorder %v482, 0.5
      %vm501 = vcmp.gt.f32.partialorder %v483, 0.5
      %vm502 = vcmp.gt.f32.partialorder %v484, 0.5
      %vm503 = vcmp.gt.f32.partialorder %v485, 0.5
      %vm504 = vcmp.gt.f32.partialorder %v486, 0.5
      %p505 = scmp.lt.s32.totalorder %s25, 4
      // Predicated region
      $region61: #{conv_lstm_forward.1} parent=55 // pred_check
        %p506 = pneg %p505
      $region62: #{conv_lstm_forward.1} parent=55 // pred_check_branch
        %508 = sbr.rel (%p506) target = $region64
      $region63: #{conv_lstm_forward.1} parent=55 // pred_region
        %v509 = vld [vmem:[%s371] sm:$0xff]
        %v510 = vld [vmem:[%s371 + $0x8] sm:$0xff]
        %v511 = vld [vmem:[%s371 + $0x10] sm:$0xff]
        %v512 = vld [vmem:[%s371 + $0x18] sm:$0xff]
        %v513 = vld [vmem:[%s371 + $0x20] sm:$0xff]
        %v514 = vld [vmem:[%s371 + $0x28] sm:$0xff]
        %v515 = vld [vmem:[%s371 + $0x30] sm:$0xff]
        %v516 = vld [vmem:[%s371 + $0x38] sm:$0xff]
        %v517 = vld [vmem:[%s371 + $0x40] sm:$0xff]
        %v518 = vld [vmem:[%s371 + $0x48] sm:$0xff]
        %v519 = vld [vmem:[%s371 + $0x50] sm:$0xff]
        %v520 = vld [vmem:[%s371 + $0x58] sm:$0xff]
        %v521 = vld [vmem:[%s371 + $0x60] sm:$0xff]
        %v522 = vld [vmem:[%s371 + $0x68] sm:$0xff]
        %v523 = vld [vmem:[%s371 + $0x70] sm:$0xff]
        %v524 = vld [vmem:[%s371 + $0x78] sm:$0xff]
        %v525 = vld [vmem:[%s371 + $0x80] sm:$0xff]
        %v526 = vld [vmem:[%s371 + $0x88] sm:$0xff]
        %545 = vrot.lane.b32.xlu0 %v509, 64
        %v546 = vpop.permute.xlu0 %545
        %547 = vrot.lane.b32.xlu0 %v510, 64
        %v548 = vpop.permute.xlu0 %547
        %549 = vrot.lane.b32.xlu0 %v511, 64
        %v550 = vpop.permute.xlu0 %549
        %551 = vrot.lane.b32.xlu0 %v512, 64
        %v552 = vpop.permute.xlu0 %551
        %553 = vrot.lane.b32.xlu0 %v513, 64
        %v554 = vpop.permute.xlu0 %553
        %555 = vrot.lane.b32.xlu0 %v514, 64
        %v556 = vpop.permute.xlu0 %555
        %557 = vrot.lane.b32.xlu0 %v515, 64
        %v558 = vpop.permute.xlu0 %557
        %559 = vrot.lane.b32.xlu0 %v516, 64
        %v560 = vpop.permute.xlu0 %559
        %561 = vrot.lane.b32.xlu0 %v517, 64
        %v562 = vpop.permute.xlu0 %561
        %563 = vrot.lane.b32.xlu0 %v518, 64
        %v564 = vpop.permute.xlu0 %563
        %565 = vrot.lane.b32.xlu0 %v519, 64
        %v566 = vpop.permute.xlu0 %565
        %567 = vrot.lane.b32.xlu0 %v520, 64
        %v568 = vpop.permute.xlu0 %567
        %569 = vrot.lane.b32.xlu0 %v521, 64
        %v570 = vpop.permute.xlu0 %569
        %571 = vrot.lane.b32.xlu0 %v522, 64
        %v572 = vpop.permute.xlu0 %571
        %573 = vrot.lane.b32.xlu0 %v523, 64
        %v574 = vpop.permute.xlu0 %573
        %575 = vrot.lane.b32.xlu0 %v524, 64
        %v576 = vpop.permute.xlu0 %575
        %577 = vrot.lane.b32.xlu0 %v525, 64
        %v578 = vpop.permute.xlu0 %577
        %579 = vrot.lane.b32.xlu0 %v526, 64
        %v580 = vpop.permute.xlu0 %579
        %vm599 = vcmask 589312
        %600 = vst.msk [vmem:[#allocation2 + $0x10] sm:$0xff] %vm599, %v546
        %601 = vst.msk [vmem:[#allocation2 + $0x18] sm:$0xff] %vm599, %v548
        %602 = vst.msk [vmem:[#allocation2 + $0x20] sm:$0xff] %vm599, %v550
        %603 = vst.msk [vmem:[#allocation2 + $0x28] sm:$0xff] %vm599, %v552
        %604 = vst.msk [vmem:[#allocation2 + $0x30] sm:$0xff] %vm599, %v554
        %605 = vst.msk [vmem:[#allocation2 + $0x38] sm:$0xff] %vm599, %v556
        %606 = vst.msk [vmem:[#allocation2 + $0x40] sm:$0xff] %vm599, %v558
        %607 = vst.msk [vmem:[#allocation2 + $0x48] sm:$0xff] %vm599, %v560
        %608 = vst.msk [vmem:[#allocation2 + $0x50] sm:$0xff] %vm599, %v562
        %609 = vst.msk [vmem:[#allocation2 + $0x58] sm:$0xff] %vm599, %v564
        %610 = vst.msk [vmem:[#allocation2 + $0x60] sm:$0xff] %vm599, %v566
        %611 = vst.msk [vmem:[#allocation2 + $0x68] sm:$0xff] %vm599, %v568
        %612 = vst.msk [vmem:[#allocation2 + $0x70] sm:$0xff] %vm599, %v570
        %613 = vst.msk [vmem:[#allocation2 + $0x78] sm:$0xff] %vm599, %v572
        %614 = vst.msk [vmem:[#allocation2 + $0x80] sm:$0xff] %vm599, %v574
        %615 = vst.msk [vmem:[#allocation2 + $0x88] sm:$0xff] %vm599, %v576
        %616 = vst.msk [vmem:[#allocation2 + $0x90] sm:$0xff] %vm599, %v578
        %617 = vst.msk [vmem:[#allocation2 + $0x98] sm:$0xff] %vm599, %v580
      $region64: #{conv_lstm_forward.1} parent=55 // pred_fallthru
        _
      %p618 = scmp.ge.s32.totalorder %s25, 4
      // Predicated region
      $region65: #{conv_lstm_forward.1} parent=55 // pred_check
        %p619 = pneg %p618
      $region66: #{conv_lstm_forward.1} parent=55 // pred_check_branch
        %621 = sbr.rel (%p619) target = $region68
      $region67: #{conv_lstm_forward.1} parent=55 // pred_region
        %v622 = vld [vmem:[#allocation3] sm:$0xff]
        %v623 = vld [vmem:[#allocation3 + $0x8] sm:$0xff]
        %v624 = vld [vmem:[#allocation3 + $0x10] sm:$0xff]
        %v625 = vld [vmem:[#allocation3 + $0x18] sm:$0xff]
        %v626 = vld [vmem:[#allocation3 + $0x20] sm:$0xff]
        %v627 = vld [vmem:[#allocation3 + $0x28] sm:$0xff]
        %v628 = vld [vmem:[#allocation3 + $0x30] sm:$0xff]
        %v629 = vld [vmem:[#allocation3 + $0x38] sm:$0xff]
        %v630 = vld [vmem:[#allocation3 + $0x40] sm:$0xff]
        %v631 = vld [vmem:[#allocation3 + $0x48] sm:$0xff]
        %v632 = vld [vmem:[#allocation3 + $0x50] sm:$0xff]
        %v633 = vld [vmem:[#allocation3 + $0x58] sm:$0xff]
        %v634 = vld [vmem:[#allocation3 + $0x60] sm:$0xff]
        %v635 = vld [vmem:[#allocation3 + $0x68] sm:$0xff]
        %v636 = vld [vmem:[#allocation3 + $0x70] sm:$0xff]
        %v637 = vld [vmem:[#allocation3 + $0x78] sm:$0xff]
        %v638 = vld [vmem:[#allocation3 + $0x80] sm:$0xff]
        %v639 = vld [vmem:[#allocation3 + $0x88] sm:$0xff]
        %v640 = vld [vmem:[#allocation3 + $0x90] sm:$0xff]
        %v641 = vld [vmem:[#allocation3 + $0x98] sm:$0xff]
        %v642 = vld [vmem:[#allocation3 + $0xa0] sm:$0xff]
        %v643 = vld [vmem:[#allocation3 + $0xa8] sm:$0xff]
        %v644 = vpack.c.bf16 %v623, %v622
        %v645 = vpack.c.bf16 %v625, %v624
        %v646 = vpack.c.bf16 %v627, %v626
        %v647 = vpack.c.bf16 %v629, %v628
        %v648 = vpack.c.bf16 %v631, %v630
        %v649 = vpack.c.bf16 %v633, %v632
        %v650 = vpack.c.bf16 %v635, %v634
        %v651 = vpack.c.bf16 %v637, %v636
        %v652 = vpack.c.bf16 %v639, %v638
        %v653 = vpack.c.bf16 %v641, %v640
        %v654 = vpack.c.bf16 %v643, %v642
        %v655 = vld [vmem:[%s6] sm:$0xf]
        %v656 = vld [vmem:[%s6 + $0x4] sm:$0xf]
        %v657 = vld [vmem:[%s6 + $0x8] sm:$0xf]
        %v658 = vld [vmem:[%s6 + $0xc] sm:$0xf]
        %v659 = vld [vmem:[%s6 + $0x10] sm:$0xf]
        %v660 = vld [vmem:[%s6 + $0x14] sm:$0xf]
        %v661 = vld [vmem:[%s6 + $0x18] sm:$0xf]
        %v662 = vld [vmem:[%s6 + $0x1c] sm:$0xf]
        %v663 = vld [vmem:[%s6 + $0x20] sm:$0xf]
        %v664 = vld [vmem:[%s6 + $0x24] sm:$0xf]
        %v665 = vld [vmem:[%s6 + $0x28] sm:$0xf]
        %v666 = vld [vmem:[%s6 + $0x2c] sm:$0xf]
        %v667 = vld [vmem:[%s6 + $0x30] sm:$0xf]
        %v668 = vld [vmem:[%s6 + $0x34] sm:$0xf]
        %v669 = vld [vmem:[%s6 + $0x38] sm:$0xf]
        %v670 = vld [vmem:[%s6 + $0x3c] sm:$0xf]
        %s671 = scalar_lea.vmem %s6, 64
        %v672 = vld [vmem:[%s671] sm:$0xf]
        %v673 = vld [vmem:[%s671 + $0x4] sm:$0xf]
        %v674 = vld [vmem:[%s671 + $0x8] sm:$0xf]
        %v675 = vld [vmem:[%s671 + $0xc] sm:$0xf]
        %v676 = vld [vmem:[%s671 + $0x10] sm:$0xf]
        %v677 = vld [vmem:[%s671 + $0x14] sm:$0xf]
        %v678 = vld [vmem:[%s671 + $0x18] sm:$0xf]
        %v679 = vld [vmem:[%s671 + $0x1c] sm:$0xf]
        %v680 = vld [vmem:[%s671 + $0x20] sm:$0xf]
        %v681 = vld [vmem:[%s671 + $0x24] sm:$0xf]
        %v682 = vld [vmem:[%s671 + $0x28] sm:$0xf]
        %v683 = vld [vmem:[%s671 + $0x2c] sm:$0xf]
        %v684 = vld [vmem:[%s671 + $0x30] sm:$0xf]
        %v685 = vld [vmem:[%s671 + $0x34] sm:$0xf]
        %v686 = vld [vmem:[%s671 + $0x38] sm:$0xf]
        %v687 = vld [vmem:[%s671 + $0x3c] sm:$0xf]
        %vm698 = vcmask 1045504
        %v699 = vrot.slane %v644, 2
        %v700 = vrot.slane %v645, 2
        %v701 = vsel %vm698, %v699, %v700
        %v702 = vrot.slane %v646, 2
        %v703 = vsel %vm698, %v700, %v702
        %v704 = vrot.slane %v647, 2
        %v705 = vsel %vm698, %v702, %v704
        %v706 = vrot.slane %v648, 2
        %v707 = vsel %vm698, %v704, %v706
        %v708 = vrot.slane %v649, 2
        %v709 = vsel %vm698, %v706, %v708
        %v710 = vrot.slane %v650, 2
        %v711 = vsel %vm698, %v708, %v710
        %v712 = vrot.slane %v651, 2
        %v713 = vsel %vm698, %v710, %v712
        %v714 = vrot.slane %v652, 2
        %v715 = vsel %vm698, %v712, %v714
        %v716 = vrot.slane %v653, 2
        %v717 = vsel %vm698, %v714, %v716
        %v743 = vunpack.c.l.b16 %v672
        %v744 = vunpack.c.l.b16 %v673
        %v745 = vunpack.c.l.b16 %v674
        %v746 = vunpack.c.l.b16 %v675
        %v747 = vunpack.c.l.b16 %v676
        %v748 = vunpack.c.l.b16 %v677
        %v749 = vunpack.c.l.b16 %v678
        %v750 = vunpack.c.l.b16 %v679
        %v751 = vunpack.c.l.b16 %v680
        %v752 = vunpack.c.l.b16 %v681
        %v753 = vunpack.c.l.b16 %v682
        %v754 = vunpack.c.l.b16 %v683
        %v755 = vunpack.c.l.b16 %v684
        %v756 = vunpack.c.l.b16 %v685
        %v757 = vunpack.c.l.b16 %v686
        %v758 = vunpack.c.l.b16 %v687
        %v759 = vpack.c.b16 %v744, %v743
        %v760 = vpack.c.b16 %v746, %v745
        %v761 = vpack.c.b16 %v748, %v747
        %v762 = vpack.c.b16 %v750, %v749
        %v763 = vpack.c.b16 %v752, %v751
        %v764 = vpack.c.b16 %v754, %v753
        %v765 = vpack.c.b16 %v756, %v755
        %v766 = vpack.c.b16 %v758, %v757
        %775 = vmatprep.subr.bf16.mxu0 0
        %776 = vmatpush1.bf16.msra.mxu0 %v759
        %777 = vmatprep.subr.bf16.mxu0 0
        %778 = vmatpush1.bf16.msra.mxu0 %v760
        %779 = vmatprep.subr.bf16.mxu0 0
        %780 = vmatpush1.bf16.msra.mxu0 %v761
        %781 = vmatprep.subr.bf16.mxu0 0
        %782 = vmatpush1.bf16.msra.mxu0 %v762
        %783 = vmatprep.subr.bf16.mxu0 0
        %784 = vmatpush1.bf16.msra.mxu0 %v763
        %785 = vmatprep.subr.bf16.mxu0 0
        %786 = vmatpush1.bf16.msra.mxu0 %v764
        %787 = vmatprep.subr.bf16.mxu0 0
        %788 = vmatpush1.bf16.msra.mxu0 %v765
        %789 = vmatprep.subr.bf16.mxu0 0
        %790 = vmatpush1.bf16.msra.mxu0 %v766
        %791 = vmatprep.subr.bf16.mxu0 0
        %792 = vmatpush1.bf16.msra.mxu0 0
        %793 = vmatprep.subr.bf16.mxu0 0
        %794 = vmatpush1.bf16.msra.mxu0 0
        %795 = vmatprep.subr.bf16.mxu0 0
        %796 = vmatpush1.bf16.msra.mxu0 0
        %797 = vmatprep.subr.bf16.mxu0 0
        %798 = vmatpush1.bf16.msra.mxu0 0
        %799 = vmatprep.subr.bf16.mxu0 0
        %800 = vmatpush1.bf16.msra.mxu0 0
        %801 = vmatprep.subr.bf16.mxu0 0
        %802 = vmatpush1.bf16.msra.mxu0 0
        %803 = vmatprep.subr.bf16.mxu0 0
        %804 = vmatpush1.bf16.msra.mxu0 0
        %805 = vmatprep.subr.bf16.mxu0 0
        %806 = vmatpush1.bf16.msra.mxu0 0
        %807 = vmatprep.mubr.bf16.mxu0 0
        %808 = vmatmul.mubr.bf16.gmra.mrb[0].mxu0 %v701
        %v809 = vpop.f32.mrb[0].mxu0
        %v810 = vadd.f32 0.0, %v809
        %v811 = vpop.f32.mrb[0].mxu0
        %v812 = vpop.f32.mrb[0].mxu0
        %v813 = vadd.f32 0.0, %v812
        %v814 = vpop.f32.mrb[0].mxu0
        %815 = vmatprep.mubr.bf16.mxu0 0
        %816 = vmatmul.mubr.bf16.gmra.mrb[0].mxu0 %v703
        %v817 = vpop.f32.mrb[0].mxu0
        %v818 = vadd.f32 0.0, %v817
        %v819 = vpop.f32.mrb[0].mxu0
        %v820 = vpop.f32.mrb[0].mxu0
        %v821 = vadd.f32 0.0, %v820
        %v822 = vpop.f32.mrb[0].mxu0
        %823 = vmatprep.mubr.bf16.mxu0 0
        %824 = vmatmul.mubr.bf16.gmra.mrb[0].mxu0 %v705
        %v825 = vpop.f32.mrb[0].mxu0
        %v826 = vadd.f32 0.0, %v825
        %v827 = vpop.f32.mrb[0].mxu0
        %v828 = vpop.f32.mrb[0].mxu0
        %v829 = vadd.f32 0.0, %v828
        %v830 = vpop.f32.mrb[0].mxu0
        %831 = vmatprep.mubr.bf16.mxu0 0
        %832 = vmatmul.mubr.bf16.gmra.mrb[0].mxu0 %v707
        %v833 = vpop.f32.mrb[0].mxu0
        %v834 = vadd.f32 0.0, %v833
        %v835 = vpop.f32.mrb[0].mxu0
        %v836 = vpop.f32.mrb[0].mxu0
        %v837 = vadd.f32 0.0, %v836
        %v838 = vpop.f32.mrb[0].mxu0
        %839 = vmatprep.mubr.bf16.mxu0 0
        %840 = vmatmul.mubr.bf16.gmra.mrb[0].mxu0 %v709
        %v841 = vpop.f32.mrb[0].mxu0
        %v842 = vadd.f32 0.0, %v841
        %v843 = vpop.f32.mrb[0].mxu0
        %v844 = vpop.f32.mrb[0].mxu0
        %v845 = vadd.f32 0.0, %v844
        %v846 = vpop.f32.mrb[0].mxu0
        %847 = vmatprep.mubr.bf16.mxu0 0
        %848 = vmatmul.mubr.bf16.gmra.mrb[0].mxu0 %v711
        %v849 = vpop.f32.mrb[0].mxu0
        %v850 = vadd.f32 0.0, %v849
        %v851 = vpop.f32.mrb[0].mxu0
        %v852 = vpop.f32.mrb[0].mxu0
        %v853 = vadd.f32 0.0, %v852
        %v854 = vpop.f32.mrb[0].mxu0
        %855 = vmatprep.mubr.bf16.mxu0 0
        %856 = vmatmul.mubr.bf16.gmra.mrb[0].mxu0 %v713
        %v857 = vpop.f32.mrb[0].mxu0
        %v858 = vadd.f32 0.0, %v857
        %v859 = vpop.f32.mrb[0].mxu0
        %v860 = vpop.f32.mrb[0].mxu0
        %v861 = vadd.f32 0.0, %v860
        %v862 = vpop.f32.mrb[0].mxu0
        %863 = vmatprep.mubr.bf16.mxu0 0
        %864 = vmatmul.mubr.bf16.gmra.mrb[0].mxu0 %v715
        %v865 = vpop.f32.mrb[0].mxu0
        %v866 = vadd.f32 0.0, %v865
        %v867 = vpop.f32.mrb[0].mxu0
        %v868 = vpop.f32.mrb[0].mxu0
        %v869 = vadd.f32 0.0, %v868
        %v870 = vpop.f32.mrb[0].mxu0
        %871 = vmatprep.mubr.bf16.mxu0 0
        %872 = vmatmul.mubr.bf16.gmra.mrb[0].mxu0 %v717
        %v873 = vpop.f32.mrb[0].mxu0
        %v874 = vadd.f32 0.0, %v873
        %v875 = vpop.f32.mrb[0].mxu0
        %v876 = vpop.f32.mrb[0].mxu0
        %v877 = vadd.f32 0.0, %v876
        %v878 = vpop.f32.mrb[0].mxu0
        %879 = vdwg.mxu0
        %vm880 = vsmask.f32 6400
        %v882 = vshrl.u32 %v644, 16
        %v884 = vrot.slane %v882, 1
        %v885 = vshll.u32 %v644, 16
        %v887 = vrot.slane %v885, 2
        %v888 = vor.u32 %v884, %v887
        %v890 = vshrl.u32 %v645, 16
        %v892 = vrot.slane %v890, 1
        %v893 = vshll.u32 %v645, 16
        %v895 = vrot.slane %v893, 2
        %v896 = vor.u32 %v892, %v895
        %v897 = vsel %vm880, %v888, %v896
        %v899 = vshrl.u32 %v646, 16
        %v901 = vrot.slane %v899, 1
        %v902 = vshll.u32 %v646, 16
        %v904 = vrot.slane %v902, 2
        %v905 = vor.u32 %v901, %v904
        %v906 = vsel %vm880, %v896, %v905
        %v908 = vshrl.u32 %v647, 16
        %v910 = vrot.slane %v908, 1
        %v911 = vshll.u32 %v647, 16
        %v913 = vrot.slane %v911, 2
        %v914 = vor.u32 %v910, %v913
        %v915 = vsel %vm880, %v905, %v914
        %v917 = vshrl.u32 %v648, 16
        %v919 = vrot.slane %v917, 1
        %v920 = vshll.u32 %v648, 16
        %v922 = vrot.slane %v920, 2
        %v923 = vor.u32 %v919, %v922
        %v924 = vsel %vm880, %v914, %v923
        %v926 = vshrl.u32 %v649, 16
        %v928 = vrot.slane %v926, 1
        %v929 = vshll.u32 %v649, 16
        %v931 = vrot.slane %v929, 2
        %v932 = vor.u32 %v928, %v931
        %v933 = vsel %vm880, %v923, %v932
        %v935 = vshrl.u32 %v650, 16
        %v937 = vrot.slane %v935, 1
        %v938 = vshll.u32 %v650, 16
        %v940 = vrot.slane %v938, 2
        %v941 = vor.u32 %v937, %v940
        %v942 = vsel %vm880, %v932, %v941
        %v944 = vshrl.u32 %v651, 16
        %v946 = vrot.slane %v944, 1
        %v947 = vshll.u32 %v651, 16
        %v949 = vrot.slane %v947, 2
        %v950 = vor.u32 %v946, %v949
        %v951 = vsel %vm880, %v941, %v950
        %v953 = vshrl.u32 %v652, 16
        %v955 = vrot.slane %v953, 1
        %v956 = vshll.u32 %v652, 16
        %v958 = vrot.slane %v956, 2
        %v959 = vor.u32 %v955, %v958
        %v960 = vsel %vm880, %v950, %v959
        %v962 = vshrl.u32 %v653, 16
        %v964 = vrot.slane %v962, 1
        %v965 = vshll.u32 %v653, 16
        %v967 = vrot.slane %v965, 2
        %v968 = vor.u32 %v964, %v967
        %v969 = vsel %vm880, %v959, %v968
        %v995 = vunpack.c.l.b16 %v655
        %v996 = vunpack.c.l.b16 %v656
        %v997 = vunpack.c.l.b16 %v657
        %v998 = vunpack.c.l.b16 %v658
        %v999 = vunpack.c.l.b16 %v659
        %v1000 = vunpack.c.l.b16 %v660
        %v1001 = vunpack.c.l.b16 %v661
        %v1002 = vunpack.c.l.b16 %v662
        %v1003 = vunpack.c.l.b16 %v663
        %v1004 = vunpack.c.l.b16 %v664
        %v1005 = vunpack.c.l.b16 %v665
        %v1006 = vunpack.c.l.b16 %v666
        %v1007 = vunpack.c.l.b16 %v667
        %v1008 = vunpack.c.l.b16 %v668
        %v1009 = vunpack.c.l.b16 %v669
        %v1010 = vunpack.c.l.b16 %v670
        %v1011 = vpack.c.b16 %v996, %v995
        %v1012 = vpack.c.b16 %v998, %v997
        %v1013 = vpack.c.b16 %v1000, %v999
        %v1014 = vpack.c.b16 %v1002, %v1001
        %v1015 = vpack.c.b16 %v1004, %v1003
        %v1016 = vpack.c.b16 %v1006, %v1005
        %v1017 = vpack.c.b16 %v1008, %v1007
        %v1018 = vpack.c.b16 %v1010, %v1009
        %1027 = vmatprep.subr.bf16.mxu0 0
        %1028 = vmatpush1.bf16.msra.mxu0 %v1011
        %1029 = vmatprep.subr.bf16.mxu0 0
        %1030 = vmatpush1.bf16.msra.mxu0 %v1012
        %1031 = vmatprep.subr.bf16.mxu0 0
        %1032 = vmatpush1.bf16.msra.mxu0 %v1013
        %1033 = vmatprep.subr.bf16.mxu0 0
        %1034 = vmatpush1.bf16.msra.mxu0 %v1014
        %1035 = vmatprep.subr.bf16.mxu0 0
        %1036 = vmatpush1.bf16.msra.mxu0 %v1015
        %1037 = vmatprep.subr.bf16.mxu0 0
        %1038 = vmatpush1.bf16.msra.mxu0 %v1016
        %1039 = vmatprep.subr.bf16.mxu0 0
        %1040 = vmatpush1.bf16.msra.mxu0 %v1017
        %1041 = vmatprep.subr.bf16.mxu0 0
        %1042 = vmatpush1.bf16.msra.mxu0 %v1018
        %1043 = vmatprep.subr.bf16.mxu0 0
        %1044 = vmatpush1.bf16.msra.mxu0 0
        %1045 = vmatprep.subr.bf16.mxu0 0
        %1046 = vmatpush1.bf16.msra.mxu0 0
        %1047 = vmatprep.subr.bf16.mxu0 0
        %1048 = vmatpush1.bf16.msra.mxu0 0
        %1049 = vmatprep.subr.bf16.mxu0 0
        %1050 = vmatpush1.bf16.msra.mxu0 0
        %1051 = vmatprep.subr.bf16.mxu0 0
        %1052 = vmatpush1.bf16.msra.mxu0 0
        %1053 = vmatprep.subr.bf16.mxu0 0
        %1054 = vmatpush1.bf16.msra.mxu0 0
        %1055 = vmatprep.subr.bf16.mxu0 0
        %1056 = vmatpush1.bf16.msra.mxu0 0
        %1057 = vmatprep.subr.bf16.mxu0 0
        %1058 = vmatpush1.bf16.msra.mxu0 0
        %1059 = vmatprep.mubr.bf16.mxu0 0
        %1060 = vmatmul.mubr.bf16.gmra.mrb[0].mxu0 %v897
        %v1061 = vpop.f32.mrb[0].mxu0
        %v1062 = vadd.f32 %v810, %v1061
        %v1063 = vpop.f32.mrb[0].mxu0
        %v1064 = vpop.f32.mrb[0].mxu0
        %v1065 = vadd.f32 %v813, %v1064
        %v1066 = vpop.f32.mrb[0].mxu0
        %1067 = vmatprep.mubr.bf16.mxu0 0
        %1068 = vmatmul.mubr.bf16.gmra.mrb[0].mxu0 %v906
        %v1069 = vpop.f32.mrb[0].mxu0
        %v1070 = vadd.f32 %v818, %v1069
        %v1071 = vpop.f32.mrb[0].mxu0
        %v1072 = vpop.f32.mrb[0].mxu0
        %v1073 = vadd.f32 %v821, %v1072
        %v1074 = vpop.f32.mrb[0].mxu0
        %1075 = vmatprep.mubr.bf16.mxu0 0
        %1076 = vmatmul.mubr.bf16.gmra.mrb[0].mxu0 %v915
        %v1077 = vpop.f32.mrb[0].mxu0
        %v1078 = vadd.f32 %v826, %v1077
        %v1079 = vpop.f32.mrb[0].mxu0
        %v1080 = vpop.f32.mrb[0].mxu0
        %v1081 = vadd.f32 %v829, %v1080
        %v1082 = vpop.f32.mrb[0].mxu0
        %1083 = vmatprep.mubr.bf16.mxu0 0
        %1084 = vmatmul.mubr.bf16.gmra.mrb[0].mxu0 %v924
        %v1085 = vpop.f32.mrb[0].mxu0
        %v1086 = vadd.f32 %v834, %v1085
        %v1087 = vpop.f32.mrb[0].mxu0
        %v1088 = vpop.f32.mrb[0].mxu0
        %v1089 = vadd.f32 %v837, %v1088
        %v1090 = vpop.f32.mrb[0].mxu0
        %1091 = vmatprep.mubr.bf16.mxu0 0
        %1092 = vmatmul.mubr.bf16.gmra.mrb[0].mxu0 %v933
        %v1093 = vpop.f32.mrb[0].mxu0
        %v1094 = vadd.f32 %v842, %v1093
        %v1095 = vpop.f32.mrb[0].mxu0
        %v1096 = vpop.f32.mrb[0].mxu0
        %v1097 = vadd.f32 %v845, %v1096
        %v1098 = vpop.f32.mrb[0].mxu0
        %1099 = vmatprep.mubr.bf16.mxu0 0
        %1100 = vmatmul.mubr.bf16.gmra.mrb[0].mxu0 %v942
        %v1101 = vpop.f32.mrb[0].mxu0
        %v1102 = vadd.f32 %v850, %v1101
        %v1103 = vpop.f32.mrb[0].mxu0
        %v1104 = vpop.f32.mrb[0].mxu0
        %v1105 = vadd.f32 %v853, %v1104
        %v1106 = vpop.f32.mrb[0].mxu0
        %1107 = vmatprep.mubr.bf16.mxu0 0
        %1108 = vmatmul.mubr.bf16.gmra.mrb[0].mxu0 %v951
        %v1109 = vpop.f32.mrb[0].mxu0
        %v1110 = vadd.f32 %v858, %v1109
        %v1111 = vpop.f32.mrb[0].mxu0
        %v1112 = vpop.f32.mrb[0].mxu0
        %v1113 = vadd.f32 %v861, %v1112
        %v1114 = vpop.f32.mrb[0].mxu0
        %1115 = vmatprep.mubr.bf16.mxu0 0
        %1116 = vmatmul.mubr.bf16.gmra.mrb[0].mxu0 %v960
        %v1117 = vpop.f32.mrb[0].mxu0
        %v1118 = vadd.f32 %v866, %v1117
        %v1119 = vpop.f32.mrb[0].mxu0
        %v1120 = vpop.f32.mrb[0].mxu0
        %v1121 = vadd.f32 %v869, %v1120
        %v1122 = vpop.f32.mrb[0].mxu0
        %1123 = vmatprep.mubr.bf16.mxu0 0
        %1124 = vmatmul.mubr.bf16.gmra.mrb[0].mxu0 %v969
        %v1125 = vpop.f32.mrb[0].mxu0
        %v1126 = vadd.f32 %v874, %v1125
        %v1127 = vpop.f32.mrb[0].mxu0
        %v1128 = vpop.f32.mrb[0].mxu0
        %v1129 = vadd.f32 %v877, %v1128
        %v1130 = vpop.f32.mrb[0].mxu0
        %1131 = vdwg.mxu0
        %s1132 = scalar_lea.vmem %s6, 128
        %v1133 = vld [vmem:[%s1132] sm:$0xf]
        %v1134 = vld [vmem:[%s1132 + $0x4] sm:$0xf]
        %v1135 = vld [vmem:[%s1132 + $0x8] sm:$0xf]
        %v1136 = vld [vmem:[%s1132 + $0xc] sm:$0xf]
        %v1137 = vld [vmem:[%s1132 + $0x10] sm:$0xf]
        %v1138 = vld [vmem:[%s1132 + $0x14] sm:$0xf]
        %v1139 = vld [vmem:[%s1132 + $0x18] sm:$0xf]
        %v1140 = vld [vmem:[%s1132 + $0x1c] sm:$0xf]
        %v1141 = vld [vmem:[%s1132 + $0x20] sm:$0xf]
        %v1142 = vld [vmem:[%s1132 + $0x24] sm:$0xf]
        %v1143 = vld [vmem:[%s1132 + $0x28] sm:$0xf]
        %v1144 = vld [vmem:[%s1132 + $0x2c] sm:$0xf]
        %v1145 = vld [vmem:[%s1132 + $0x30] sm:$0xf]
        %v1146 = vld [vmem:[%s1132 + $0x34] sm:$0xf]
        %v1147 = vld [vmem:[%s1132 + $0x38] sm:$0xf]
        %v1148 = vld [vmem:[%s1132 + $0x3c] sm:$0xf]
        %vm1149 = vsmask.f32 5376
        %v1150 = vrot.slane %v882, 2
        %v1151 = vrot.slane %v885, 3
        %v1152 = vor.u32 %v1150, %v1151
        %v1153 = vrot.slane %v890, 2
        %v1154 = vrot.slane %v893, 3
        %v1155 = vor.u32 %v1153, %v1154
        %v1156 = vsel %vm1149, %v1152, %v1155
        %v1157 = vrot.slane %v899, 2
        %v1158 = vrot.slane %v902, 3
        %v1159 = vor.u32 %v1157, %v1158
        %v1160 = vsel %vm1149, %v1155, %v1159
        %v1161 = vrot.slane %v908, 2
        %v1162 = vrot.slane %v911, 3
        %v1163 = vor.u32 %v1161, %v1162
        %v1164 = vsel %vm1149, %v1159, %v1163
        %v1165 = vrot.slane %v917, 2
        %v1166 = vrot.slane %v920, 3
        %v1167 = vor.u32 %v1165, %v1166
        %v1168 = vsel %vm1149, %v1163, %v1167
        %v1169 = vrot.slane %v926, 2
        %v1170 = vrot.slane %v929, 3
        %v1171 = vor.u32 %v1169, %v1170
        %v1172 = vsel %vm1149, %v1167, %v1171
        %v1173 = vrot.slane %v935, 2
        %v1174 = vrot.slane %v938, 3
        %v1175 = vor.u32 %v1173, %v1174
        %v1176 = vsel %vm1149, %v1171, %v1175
        %v1177 = vrot.slane %v944, 2
        %v1178 = vrot.slane %v947, 3
        %v1179 = vor.u32 %v1177, %v1178
        %v1180 = vsel %vm1149, %v1175, %v1179
        %v1181 = vrot.slane %v953, 2
        %v1182 = vrot.slane %v956, 3
        %v1183 = vor.u32 %v1181, %v1182
        %v1184 = vsel %vm1149, %v1179, %v1183
        %v1185 = vrot.slane %v962, 2
        %v1186 = vrot.slane %v965, 3
        %v1187 = vor.u32 %v1185, %v1186
        %v1188 = vsel %vm1149, %v1183, %v1187
        %v1214 = vunpack.c.l.b16 %v1133
        %v1215 = vunpack.c.l.b16 %v1134
        %v1216 = vunpack.c.l.b16 %v1135
        %v1217 = vunpack.c.l.b16 %v1136
        %v1218 = vunpack.c.l.b16 %v1137
        %v1219 = vunpack.c.l.b16 %v1138
        %v1220 = vunpack.c.l.b16 %v1139
        %v1221 = vunpack.c.l.b16 %v1140
        %v1222 = vunpack.c.l.b16 %v1141
        %v1223 = vunpack.c.l.b16 %v1142
        %v1224 = vunpack.c.l.b16 %v1143
        %v1225 = vunpack.c.l.b16 %v1144
        %v1226 = vunpack.c.l.b16 %v1145
        %v1227 = vunpack.c.l.b16 %v1146
        %v1228 = vunpack.c.l.b16 %v1147
        %v1229 = vunpack.c.l.b16 %v1148
        %v1230 = vpack.c.b16 %v1215, %v1214
        %v1231 = vpack.c.b16 %v1217, %v1216
        %v1232 = vpack.c.b16 %v1219, %v1218
        %v1233 = vpack.c.b16 %v1221, %v1220
        %v1234 = vpack.c.b16 %v1223, %v1222
        %v1235 = vpack.c.b16 %v1225, %v1224
        %v1236 = vpack.c.b16 %v1227, %v1226
        %v1237 = vpack.c.b16 %v1229, %v1228
        %1246 = vmatprep.subr.bf16.mxu0 0
        %1247 = vmatpush1.bf16.msra.mxu0 %v1230
        %1248 = vmatprep.subr.bf16.mxu0 0
        %1249 = vmatpush1.bf16.msra.mxu0 %v1231
        %1250 = vmatprep.subr.bf16.mxu0 0
        %1251 = vmatpush1.bf16.msra.mxu0 %v1232
        %1252 = vmatprep.subr.bf16.mxu0 0
        %1253 = vmatpush1.bf16.msra.mxu0 %v1233
        %1254 = vmatprep.subr.bf16.mxu0 0
        %1255 = vmatpush1.bf16.msra.mxu0 %v1234
        %1256 = vmatprep.subr.bf16.mxu0 0
        %1257 = vmatpush1.bf16.msra.mxu0 %v1235
        %1258 = vmatprep.subr.bf16.mxu0 0
        %1259 = vmatpush1.bf16.msra.mxu0 %v1236
        %1260 = vmatprep.subr.bf16.mxu0 0
        %1261 = vmatpush1.bf16.msra.mxu0 %v1237
        %1262 = vmatprep.subr.bf16.mxu0 0
        %1263 = vmatpush1.bf16.msra.mxu0 0
        %1264 = vmatprep.subr.bf16.mxu0 0
        %1265 = vmatpush1.bf16.msra.mxu0 0
        %1266 = vmatprep.subr.bf16.mxu0 0
        %1267 = vmatpush1.bf16.msra.mxu0 0
        %1268 = vmatprep.subr.bf16.mxu0 0
        %1269 = vmatpush1.bf16.msra.mxu0 0
        %1270 = vmatprep.subr.bf16.mxu0 0
        %1271 = vmatpush1.bf16.msra.mxu0 0
        %1272 = vmatprep.subr.bf16.mxu0 0
        %1273 = vmatpush1.bf16.msra.mxu0 0
        %1274 = vmatprep.subr.bf16.mxu0 0
        %1275 = vmatpush1.bf16.msra.mxu0 0
        %1276 = vmatprep.subr.bf16.mxu0 0
        %1277 = vmatpush1.bf16.msra.mxu0 0
        %1278 = vmatprep.mubr.bf16.mxu0 0
        %1279 = vmatmul.mubr.bf16.gmra.mrb[0].mxu0 %v1156
        %v1280 = vpop.f32.mrb[0].mxu0
        %v1281 = vadd.f32 0.0, %v1280
        %v1282 = vpop.f32.mrb[0].mxu0
        %v1283 = vpop.f32.mrb[0].mxu0
        %v1284 = vadd.f32 0.0, %v1283
        %v1285 = vpop.f32.mrb[0].mxu0
        %1286 = vmatprep.mubr.bf16.mxu0 0
        %1287 = vmatmul.mubr.bf16.gmra.mrb[0].mxu0 %v1160
        %v1288 = vpop.f32.mrb[0].mxu0
        %v1289 = vadd.f32 0.0, %v1288
        %v1290 = vpop.f32.mrb[0].mxu0
        %v1291 = vpop.f32.mrb[0].mxu0
        %v1292 = vadd.f32 0.0, %v1291
        %v1293 = vpop.f32.mrb[0].mxu0
        %1294 = vmatprep.mubr.bf16.mxu0 0
        %1295 = vmatmul.mubr.bf16.gmra.mrb[0].mxu0 %v1164
        %v1296 = vpop.f32.mrb[0].mxu0
        %v1297 = vadd.f32 0.0, %v1296
        %v1298 = vpop.f32.mrb[0].mxu0
        %v1299 = vpop.f32.mrb[0].mxu0
        %v1300 = vadd.f32 0.0, %v1299
        %v1301 = vpop.f32.mrb[0].mxu0
        %1302 = vmatprep.mubr.bf16.mxu0 0
        %1303 = vmatmul.mubr.bf16.gmra.mrb[0].mxu0 %v1168
        %v1304 = vpop.f32.mrb[0].mxu0
        %v1305 = vadd.f32 0.0, %v1304
        %v1306 = vpop.f32.mrb[0].mxu0
        %v1307 = vpop.f32.mrb[0].mxu0
        %v1308 = vadd.f32 0.0, %v1307
        %v1309 = vpop.f32.mrb[0].mxu0
        %1310 = vmatprep.mubr.bf16.mxu0 0
        %1311 = vmatmul.mubr.bf16.gmra.mrb[0].mxu0 %v1172
        %v1312 = vpop.f32.mrb[0].mxu0
        %v1313 = vadd.f32 0.0, %v1312
        %v1314 = vpop.f32.mrb[0].mxu0
        %v1315 = vpop.f32.mrb[0].mxu0
        %v1316 = vadd.f32 0.0, %v1315
        %v1317 = vpop.f32.mrb[0].mxu0
        %1318 = vmatprep.mubr.bf16.mxu0 0
        %1319 = vmatmul.mubr.bf16.gmra.mrb[0].mxu0 %v1176
        %v1320 = vpop.f32.mrb[0].mxu0
        %v1321 = vadd.f32 0.0, %v1320
        %v1322 = vpop.f32.mrb[0].mxu0
        %v1323 = vpop.f32.mrb[0].mxu0
        %v1324 = vadd.f32 0.0, %v1323
        %v1325 = vpop.f32.mrb[0].mxu0
        %1326 = vmatprep.mubr.bf16.mxu0 0
        %1327 = vmatmul.mubr.bf16.gmra.mrb[0].mxu0 %v1180
        %v1328 = vpop.f32.mrb[0].mxu0
        %v1329 = vadd.f32 0.0, %v1328
        %v1330 = vpop.f32.mrb[0].mxu0
        %v1331 = vpop.f32.mrb[0].mxu0
        %v1332 = vadd.f32 0.0, %v1331
        %v1333 = vpop.f32.mrb[0].mxu0
        %1334 = vmatprep.mubr.bf16.mxu0 0
        %1335 = vmatmul.mubr.bf16.gmra.mrb[0].mxu0 %v1184
        %v1336 = vpop.f32.mrb[0].mxu0
        %v1337 = vadd.f32 0.0, %v1336
        %v1338 = vpop.f32.mrb[0].mxu0
        %v1339 = vpop.f32.mrb[0].mxu0
        %v1340 = vadd.f32 0.0, %v1339
        %v1341 = vpop.f32.mrb[0].mxu0
        %1342 = vmatprep.mubr.bf16.mxu0 0
        %1343 = vmatmul.mubr.bf16.gmra.mrb[0].mxu0 %v1188
        %v1344 = vpop.f32.mrb[0].mxu0
        %v1345 = vadd.f32 0.0, %v1344
        %v1346 = vpop.f32.mrb[0].mxu0
        %v1347 = vpop.f32.mrb[0].mxu0
        %v1348 = vadd.f32 0.0, %v1347
        %v1349 = vpop.f32.mrb[0].mxu0
        %1350 = vdwg.mxu0
        %v1351 = vadd.f32 %v1062, %v1281
        %v1352 = vadd.f32 %v1065, %v1284
        %v1353 = vadd.f32 %v1070, %v1289
        %v1354 = vadd.f32 %v1073, %v1292
        %v1355 = vadd.f32 %v1078, %v1297
        %v1356 = vadd.f32 %v1081, %v1300
        %v1357 = vadd.f32 %v1086, %v1305
        %v1358 = vadd.f32 %v1089, %v1308
        %v1359 = vadd.f32 %v1094, %v1313
        %v1360 = vadd.f32 %v1097, %v1316
        %v1361 = vadd.f32 %v1102, %v1321
        %v1362 = vadd.f32 %v1105, %v1324
        %v1363 = vadd.f32 %v1110, %v1329
        %v1364 = vadd.f32 %v1113, %v1332
        %v1365 = vadd.f32 %v1118, %v1337
        %v1366 = vadd.f32 %v1121, %v1340
        %v1367 = vadd.f32 %v1126, %v1345
        %v1368 = vadd.f32 %v1129, %v1348
        %s1369 = scalar_lea.vmem %s6, 192
        %v1370 = vld [vmem:[%s1369] sm:$0xf]
        %v1371 = vld [vmem:[%s1369 + $0x4] sm:$0xf]
        %v1372 = vld [vmem:[%s1369 + $0x8] sm:$0xf]
        %v1373 = vld [vmem:[%s1369 + $0xc] sm:$0xf]
        %v1374 = vld [vmem:[%s1369 + $0x10] sm:$0xf]
        %v1375 = vld [vmem:[%s1369 + $0x14] sm:$0xf]
        %v1376 = vld [vmem:[%s1369 + $0x18] sm:$0xf]
        %v1377 = vld [vmem:[%s1369 + $0x1c] sm:$0xf]
        %v1378 = vld [vmem:[%s1369 + $0x20] sm:$0xf]
        %v1379 = vld [vmem:[%s1369 + $0x24] sm:$0xf]
        %v1380 = vld [vmem:[%s1369 + $0x28] sm:$0xf]
        %v1381 = vld [vmem:[%s1369 + $0x2c] sm:$0xf]
        %v1382 = vld [vmem:[%s1369 + $0x30] sm:$0xf]
        %v1383 = vld [vmem:[%s1369 + $0x34] sm:$0xf]
        %v1384 = vld [vmem:[%s1369 + $0x38] sm:$0xf]
        %v1385 = vld [vmem:[%s1369 + $0x3c] sm:$0xf]
        %vm1386 = vsmask.f32 256
        %v1387 = vrot.slane %v882, 7
        %v1388 = vrot.slane %v890, 7
        %v1389 = vor.u32 %v1388, %v893
        %v1390 = vsel %vm1386, %v1387, %v1389
        %v1391 = vrot.slane %v899, 7
        %v1392 = vor.u32 %v1391, %v902
        %v1393 = vsel %vm1386, %v1388, %v1392
        %v1394 = vrot.slane %v908, 7
        %v1395 = vor.u32 %v1394, %v911
        %v1396 = vsel %vm1386, %v1391, %v1395
        %v1397 = vrot.slane %v917, 7
        %v1398 = vor.u32 %v1397, %v920
        %v1399 = vsel %vm1386, %v1394, %v1398
        %v1400 = vrot.slane %v926, 7
        %v1401 = vor.u32 %v1400, %v929
        %v1402 = vsel %vm1386, %v1397, %v1401
        %v1403 = vrot.slane %v935, 7
        %v1404 = vor.u32 %v1403, %v938
        %v1405 = vsel %vm1386, %v1400, %v1404
        %v1406 = vrot.slane %v944, 7
        %v1407 = vor.u32 %v1406, %v947
        %v1408 = vsel %vm1386, %v1403, %v1407
        %v1409 = vrot.slane %v953, 7
        %v1410 = vor.u32 %v1409, %v956
        %v1411 = vsel %vm1386, %v1406, %v1410
        %v1412 = vrot.slane %v962, 7
        %v1413 = vor.u32 %v1412, %v965
        %v1414 = vsel %vm1386, %v1409, %v1413
        %v1440 = vunpack.c.l.b16 %v1370
        %v1441 = vunpack.c.l.b16 %v1371
        %v1442 = vunpack.c.l.b16 %v1372
        %v1443 = vunpack.c.l.b16 %v1373
        %v1444 = vunpack.c.l.b16 %v1374
        %v1445 = vunpack.c.l.b16 %v1375
        %v1446 = vunpack.c.l.b16 %v1376
        %v1447 = vunpack.c.l.b16 %v1377
        %v1448 = vunpack.c.l.b16 %v1378
        %v1449 = vunpack.c.l.b16 %v1379
        %v1450 = vunpack.c.l.b16 %v1380
        %v1451 = vunpack.c.l.b16 %v1381
        %v1452 = vunpack.c.l.b16 %v1382
        %v1453 = vunpack.c.l.b16 %v1383
        %v1454 = vunpack.c.l.b16 %v1384
        %v1455 = vunpack.c.l.b16 %v1385
        %v1456 = vpack.c.b16 %v1441, %v1440
        %v1457 = vpack.c.b16 %v1443, %v1442
        %v1458 = vpack.c.b16 %v1445, %v1444
        %v1459 = vpack.c.b16 %v1447, %v1446
        %v1460 = vpack.c.b16 %v1449, %v1448
        %v1461 = vpack.c.b16 %v1451, %v1450
        %v1462 = vpack.c.b16 %v1453, %v1452
        %v1463 = vpack.c.b16 %v1455, %v1454
        %1472 = vmatprep.subr.bf16.mxu0 0
        %1473 = vmatpush1.bf16.msra.mxu0 %v1456
        %1474 = vmatprep.subr.bf16.mxu0 0
        %1475 = vmatpush1.bf16.msra.mxu0 %v1457
        %1476 = vmatprep.subr.bf16.mxu0 0
        %1477 = vmatpush1.bf16.msra.mxu0 %v1458
        %1478 = vmatprep.subr.bf16.mxu0 0
        %1479 = vmatpush1.bf16.msra.mxu0 %v1459
        %1480 = vmatprep.subr.bf16.mxu0 0
        %1481 = vmatpush1.bf16.msra.mxu0 %v1460
        %1482 = vmatprep.subr.bf16.mxu0 0
        %1483 = vmatpush1.bf16.msra.mxu0 %v1461
        %1484 = vmatprep.subr.bf16.mxu0 0
        %1485 = vmatpush1.bf16.msra.mxu0 %v1462
        %1486 = vmatprep.subr.bf16.mxu0 0
        %1487 = vmatpush1.bf16.msra.mxu0 %v1463
        %1488 = vmatprep.subr.bf16.mxu0 0
        %1489 = vmatpush1.bf16.msra.mxu0 0
        %1490 = vmatprep.subr.bf16.mxu0 0
        %1491 = vmatpush1.bf16.msra.mxu0 0
        %1492 = vmatprep.subr.bf16.mxu0 0
        %1493 = vmatpush1.bf16.msra.mxu0 0
        %1494 = vmatprep.subr.bf16.mxu0 0
        %1495 = vmatpush1.bf16.msra.mxu0 0
        %1496 = vmatprep.subr.bf16.mxu0 0
        %1497 = vmatpush1.bf16.msra.mxu0 0
        %1498 = vmatprep.subr.bf16.mxu0 0
        %1499 = vmatpush1.bf16.msra.mxu0 0
        %1500 = vmatprep.subr.bf16.mxu0 0
        %1501 = vmatpush1.bf16.msra.mxu0 0
        %1502 = vmatprep.subr.bf16.mxu0 0
        %1503 = vmatpush1.bf16.msra.mxu0 0
        %1504 = vmatprep.mubr.bf16.mxu0 0
        %1505 = vmatmul.mubr.bf16.gmra.mrb[0].mxu0 %v1390
        %v1506 = vpop.f32.mrb[0].mxu0
        %v1507 = vadd.f32 0.0, %v1506
        %v1508 = vpop.f32.mrb[0].mxu0
        %v1509 = vpop.f32.mrb[0].mxu0
        %v1510 = vadd.f32 0.0, %v1509
        %v1511 = vpop.f32.mrb[0].mxu0
        %1512 = vmatprep.mubr.bf16.mxu0 0
        %1513 = vmatmul.mubr.bf16.gmra.mrb[0].mxu0 %v1393
        %v1514 = vpop.f32.mrb[0].mxu0
        %v1515 = vadd.f32 0.0, %v1514
        %v1516 = vpop.f32.mrb[0].mxu0
        %v1517 = vpop.f32.mrb[0].mxu0
        %v1518 = vadd.f32 0.0, %v1517
        %v1519 = vpop.f32.mrb[0].mxu0
        %1520 = vmatprep.mubr.bf16.mxu0 0
        %1521 = vmatmul.mubr.bf16.gmra.mrb[0].mxu0 %v1396
        %v1522 = vpop.f32.mrb[0].mxu0
        %v1523 = vadd.f32 0.0, %v1522
        %v1524 = vpop.f32.mrb[0].mxu0
        %v1525 = vpop.f32.mrb[0].mxu0
        %v1526 = vadd.f32 0.0, %v1525
        %v1527 = vpop.f32.mrb[0].mxu0
        %1528 = vmatprep.mubr.bf16.mxu0 0
        %1529 = vmatmul.mubr.bf16.gmra.mrb[0].mxu0 %v1399
        %v1530 = vpop.f32.mrb[0].mxu0
        %v1531 = vadd.f32 0.0, %v1530
        %v1532 = vpop.f32.mrb[0].mxu0
        %v1533 = vpop.f32.mrb[0].mxu0
        %v1534 = vadd.f32 0.0, %v1533
        %v1535 = vpop.f32.mrb[0].mxu0
        %1536 = vmatprep.mubr.bf16.mxu0 0
        %1537 = vmatmul.mubr.bf16.gmra.mrb[0].mxu0 %v1402
        %v1538 = vpop.f32.mrb[0].mxu0
        %v1539 = vadd.f32 0.0, %v1538
        %v1540 = vpop.f32.mrb[0].mxu0
        %v1541 = vpop.f32.mrb[0].mxu0
        %v1542 = vadd.f32 0.0, %v1541
        %v1543 = vpop.f32.mrb[0].mxu0
        %1544 = vmatprep.mubr.bf16.mxu0 0
        %1545 = vmatmul.mubr.bf16.gmra.mrb[0].mxu0 %v1405
        %v1546 = vpop.f32.mrb[0].mxu0
        %v1547 = vadd.f32 0.0, %v1546
        %v1548 = vpop.f32.mrb[0].mxu0
        %v1549 = vpop.f32.mrb[0].mxu0
        %v1550 = vadd.f32 0.0, %v1549
        %v1551 = vpop.f32.mrb[0].mxu0
        %1552 = vmatprep.mubr.bf16.mxu0 0
        %1553 = vmatmul.mubr.bf16.gmra.mrb[0].mxu0 %v1408
        %v1554 = vpop.f32.mrb[0].mxu0
        %v1555 = vadd.f32 0.0, %v1554
        %v1556 = vpop.f32.mrb[0].mxu0
        %v1557 = vpop.f32.mrb[0].mxu0
        %v1558 = vadd.f32 0.0, %v1557
        %v1559 = vpop.f32.mrb[0].mxu0
        %1560 = vmatprep.mubr.bf16.mxu0 0
        %1561 = vmatmul.mubr.bf16.gmra.mrb[0].mxu0 %v1411
        %v1562 = vpop.f32.mrb[0].mxu0
        %v1563 = vadd.f32 0.0, %v1562
        %v1564 = vpop.f32.mrb[0].mxu0
        %v1565 = vpop.f32.mrb[0].mxu0
        %v1566 = vadd.f32 0.0, %v1565
        %v1567 = vpop.f32.mrb[0].mxu0
        %1568 = vmatprep.mubr.bf16.mxu0 0
        %1569 = vmatmul.mubr.bf16.gmra.mrb[0].mxu0 %v1414
        %v1570 = vpop.f32.mrb[0].mxu0
        %v1571 = vadd.f32 0.0, %v1570
        %v1572 = vpop.f32.mrb[0].mxu0
        %v1573 = vpop.f32.mrb[0].mxu0
        %v1574 = vadd.f32 0.0, %v1573
        %v1575 = vpop.f32.mrb[0].mxu0
        %1576 = vdwg.mxu0
        %v1577 = vadd.f32 %v1351, %v1507
        %v1578 = vadd.f32 %v1352, %v1510
        %v1579 = vadd.f32 %v1353, %v1515
        %v1580 = vadd.f32 %v1354, %v1518
        %v1581 = vadd.f32 %v1355, %v1523
        %v1582 = vadd.f32 %v1356, %v1526
        %v1583 = vadd.f32 %v1357, %v1531
        %v1584 = vadd.f32 %v1358, %v1534
        %v1585 = vadd.f32 %v1359, %v1539
        %v1586 = vadd.f32 %v1360, %v1542
        %v1587 = vadd.f32 %v1361, %v1547
        %v1588 = vadd.f32 %v1362, %v1550
        %v1589 = vadd.f32 %v1363, %v1555
        %v1590 = vadd.f32 %v1364, %v1558
        %v1591 = vadd.f32 %v1365, %v1563
        %v1592 = vadd.f32 %v1366, %v1566
        %v1593 = vadd.f32 %v1367, %v1571
        %v1594 = vadd.f32 %v1368, %v1574
        %s1595 = scalar_lea.vmem %s6, 256
        %v1596 = vld [vmem:[%s1595] sm:$0xf]
        %v1597 = vld [vmem:[%s1595 + $0x4] sm:$0xf]
        %v1598 = vld [vmem:[%s1595 + $0x8] sm:$0xf]
        %v1599 = vld [vmem:[%s1595 + $0xc] sm:$0xf]
        %v1600 = vld [vmem:[%s1595 + $0x10] sm:$0xf]
        %v1601 = vld [vmem:[%s1595 + $0x14] sm:$0xf]
        %v1602 = vld [vmem:[%s1595 + $0x18] sm:$0xf]
        %v1603 = vld [vmem:[%s1595 + $0x1c] sm:$0xf]
        %v1604 = vld [vmem:[%s1595 + $0x20] sm:$0xf]
        %v1605 = vld [vmem:[%s1595 + $0x24] sm:$0xf]
        %v1606 = vld [vmem:[%s1595 + $0x28] sm:$0xf]
        %v1607 = vld [vmem:[%s1595 + $0x2c] sm:$0xf]
        %v1608 = vld [vmem:[%s1595 + $0x30] sm:$0xf]
        %v1609 = vld [vmem:[%s1595 + $0x34] sm:$0xf]
        %v1610 = vld [vmem:[%s1595 + $0x38] sm:$0xf]
        %v1611 = vld [vmem:[%s1595 + $0x3c] sm:$0xf]
        %v1628 = vunpack.c.l.b16 %v1596
        %v1629 = vunpack.c.l.b16 %v1597
        %v1630 = vunpack.c.l.b16 %v1598
        %v1631 = vunpack.c.l.b16 %v1599
        %v1632 = vunpack.c.l.b16 %v1600
        %v1633 = vunpack.c.l.b16 %v1601
        %v1634 = vunpack.c.l.b16 %v1602
        %v1635 = vunpack.c.l.b16 %v1603
        %v1636 = vunpack.c.l.b16 %v1604
        %v1637 = vunpack.c.l.b16 %v1605
        %v1638 = vunpack.c.l.b16 %v1606
        %v1639 = vunpack.c.l.b16 %v1607
        %v1640 = vunpack.c.l.b16 %v1608
        %v1641 = vunpack.c.l.b16 %v1609
        %v1642 = vunpack.c.l.b16 %v1610
        %v1643 = vunpack.c.l.b16 %v1611
        %v1644 = vpack.c.b16 %v1629, %v1628
        %v1645 = vpack.c.b16 %v1631, %v1630
        %v1646 = vpack.c.b16 %v1633, %v1632
        %v1647 = vpack.c.b16 %v1635, %v1634
        %v1648 = vpack.c.b16 %v1637, %v1636
        %v1649 = vpack.c.b16 %v1639, %v1638
        %v1650 = vpack.c.b16 %v1641, %v1640
        %v1651 = vpack.c.b16 %v1643, %v1642
        %1660 = vmatprep.subr.bf16.mxu0 0
        %1661 = vmatpush1.bf16.msra.mxu0 %v1644
        %1662 = vmatprep.subr.bf16.mxu0 0
        %1663 = vmatpush1.bf16.msra.mxu0 %v1645
        %1664 = vmatprep.subr.bf16.mxu0 0
        %1665 = vmatpush1.bf16.msra.mxu0 %v1646
        %1666 = vmatprep.subr.bf16.mxu0 0
        %1667 = vmatpush1.bf16.msra.mxu0 %v1647
        %1668 = vmatprep.subr.bf16.mxu0 0
        %1669 = vmatpush1.bf16.msra.mxu0 %v1648
        %1670 = vmatprep.subr.bf16.mxu0 0
        %1671 = vmatpush1.bf16.msra.mxu0 %v1649
        %1672 = vmatprep.subr.bf16.mxu0 0
        %1673 = vmatpush1.bf16.msra.mxu0 %v1650
        %1674 = vmatprep.subr.bf16.mxu0 0
        %1675 = vmatpush1.bf16.msra.mxu0 %v1651
        %1676 = vmatprep.subr.bf16.mxu0 0
        %1677 = vmatpush1.bf16.msra.mxu0 0
        %1678 = vmatprep.subr.bf16.mxu0 0
        %1679 = vmatpush1.bf16.msra.mxu0 0
        %1680 = vmatprep.subr.bf16.mxu0 0
        %1681 = vmatpush1.bf16.msra.mxu0 0
        %1682 = vmatprep.subr.bf16.mxu0 0
        %1683 = vmatpush1.bf16.msra.mxu0 0
        %1684 = vmatprep.subr.bf16.mxu0 0
        %1685 = vmatpush1.bf16.msra.mxu0 0
        %1686 = vmatprep.subr.bf16.mxu0 0
        %1687 = vmatpush1.bf16.msra.mxu0 0
        %1688 = vmatprep.subr.bf16.mxu0 0
        %1689 = vmatpush1.bf16.msra.mxu0 0
        %1690 = vmatprep.subr.bf16.mxu0 0
        %1691 = vmatpush1.bf16.msra.mxu0 0
        %1692 = vmatprep.mubr.bf16.mxu0 0
        %1693 = vmatmul.mubr.bf16.gmra.mrb[0].mxu0 %v645
        %v1694 = vpop.f32.mrb[0].mxu0
        %v1695 = vadd.f32 0.0, %v1694
        %v1696 = vpop.f32.mrb[0].mxu0
        %v1697 = vpop.f32.mrb[0].mxu0
        %v1698 = vadd.f32 0.0, %v1697
        %v1699 = vpop.f32.mrb[0].mxu0
        %1700 = vmatprep.mubr.bf16.mxu0 0
        %1701 = vmatmul.mubr.bf16.gmra.mrb[0].mxu0 %v646
        %v1702 = vpop.f32.mrb[0].mxu0
        %v1703 = vadd.f32 0.0, %v1702
        %v1704 = vpop.f32.mrb[0].mxu0
        %v1705 = vpop.f32.mrb[0].mxu0
        %v1706 = vadd.f32 0.0, %v1705
        %v1707 = vpop.f32.mrb[0].mxu0
        %1708 = vmatprep.mubr.bf16.mxu0 0
        %1709 = vmatmul.mubr.bf16.gmra.mrb[0].mxu0 %v647
        %v1710 = vpop.f32.mrb[0].mxu0
        %v1711 = vadd.f32 0.0, %v1710
        %v1712 = vpop.f32.mrb[0].mxu0
        %v1713 = vpop.f32.mrb[0].mxu0
        %v1714 = vadd.f32 0.0, %v1713
        %v1715 = vpop.f32.mrb[0].mxu0
        %1716 = vmatprep.mubr.bf16.mxu0 0
        %1717 = vmatmul.mubr.bf16.gmra.mrb[0].mxu0 %v648
        %v1718 = vpop.f32.mrb[0].mxu0
        %v1719 = vadd.f32 0.0, %v1718
        %v1720 = vpop.f32.mrb[0].mxu0
        %v1721 = vpop.f32.mrb[0].mxu0
        %v1722 = vadd.f32 0.0, %v1721
        %v1723 = vpop.f32.mrb[0].mxu0
        %1724 = vmatprep.mubr.bf16.mxu0 0
        %1725 = vmatmul.mubr.bf16.gmra.mrb[0].mxu0 %v649
        %v1726 = vpop.f32.mrb[0].mxu0
        %v1727 = vadd.f32 0.0, %v1726
        %v1728 = vpop.f32.mrb[0].mxu0
        %v1729 = vpop.f32.mrb[0].mxu0
        %v1730 = vadd.f32 0.0, %v1729
        %v1731 = vpop.f32.mrb[0].mxu0
        %1732 = vmatprep.mubr.bf16.mxu0 0
        %1733 = vmatmul.mubr.bf16.gmra.mrb[0].mxu0 %v650
        %v1734 = vpop.f32.mrb[0].mxu0
        %v1735 = vadd.f32 0.0, %v1734
        %v1736 = vpop.f32.mrb[0].mxu0
        %v1737 = vpop.f32.mrb[0].mxu0
        %v1738 = vadd.f32 0.0, %v1737
        %v1739 = vpop.f32.mrb[0].mxu0
        %1740 = vmatprep.mubr.bf16.mxu0 0
        %1741 = vmatmul.mubr.bf16.gmra.mrb[0].mxu0 %v651
        %v1742 = vpop.f32.mrb[0].mxu0
        %v1743 = vadd.f32 0.0, %v1742
        %v1744 = vpop.f32.mrb[0].mxu0
        %v1745 = vpop.f32.mrb[0].mxu0
        %v1746 = vadd.f32 0.0, %v1745
        %v1747 = vpop.f32.mrb[0].mxu0
        %1748 = vmatprep.mubr.bf16.mxu0 0
        %1749 = vmatmul.mubr.bf16.gmra.mrb[0].mxu0 %v652
        %v1750 = vpop.f32.mrb[0].mxu0
        %v1751 = vadd.f32 0.0, %v1750
        %v1752 = vpop.f32.mrb[0].mxu0
        %v1753 = vpop.f32.mrb[0].mxu0
        %v1754 = vadd.f32 0.0, %v1753
        %v1755 = vpop.f32.mrb[0].mxu0
        %1756 = vmatprep.mubr.bf16.mxu0 0
        %1757 = vmatmul.mubr.bf16.gmra.mrb[0].mxu0 %v653
        %v1758 = vpop.f32.mrb[0].mxu0
        %v1759 = vadd.f32 0.0, %v1758
        %v1760 = vpop.f32.mrb[0].mxu0
        %v1761 = vpop.f32.mrb[0].mxu0
        %v1762 = vadd.f32 0.0, %v1761
        %v1763 = vpop.f32.mrb[0].mxu0
        %1764 = vdwg.mxu0
        %v1765 = vadd.f32 %v1577, %v1695
        %v1766 = vadd.f32 %v1578, %v1698
        %v1767 = vadd.f32 %v1579, %v1703
        %v1768 = vadd.f32 %v1580, %v1706
        %v1769 = vadd.f32 %v1581, %v1711
        %v1770 = vadd.f32 %v1582, %v1714
        %v1771 = vadd.f32 %v1583, %v1719
        %v1772 = vadd.f32 %v1584, %v1722
        %v1773 = vadd.f32 %v1585, %v1727
        %v1774 = vadd.f32 %v1586, %v1730
        %v1775 = vadd.f32 %v1587, %v1735
        %v1776 = vadd.f32 %v1588, %v1738
        %v1777 = vadd.f32 %v1589, %v1743
        %v1778 = vadd.f32 %v1590, %v1746
        %v1779 = vadd.f32 %v1591, %v1751
        %v1780 = vadd.f32 %v1592, %v1754
        %v1781 = vadd.f32 %v1593, %v1759
        %v1782 = vadd.f32 %v1594, %v1762
        %s1783 = scalar_lea.vmem %s6, 320
        %v1784 = vld [vmem:[%s1783] sm:$0xf]
        %v1785 = vld [vmem:[%s1783 + $0x4] sm:$0xf]
        %v1786 = vld [vmem:[%s1783 + $0x8] sm:$0xf]
        %v1787 = vld [vmem:[%s1783 + $0xc] sm:$0xf]
        %v1788 = vld [vmem:[%s1783 + $0x10] sm:$0xf]
        %v1789 = vld [vmem:[%s1783 + $0x14] sm:$0xf]
        %v1790 = vld [vmem:[%s1783 + $0x18] sm:$0xf]
        %v1791 = vld [vmem:[%s1783 + $0x1c] sm:$0xf]
        %v1792 = vld [vmem:[%s1783 + $0x20] sm:$0xf]
        %v1793 = vld [vmem:[%s1783 + $0x24] sm:$0xf]
        %v1794 = vld [vmem:[%s1783 + $0x28] sm:$0xf]
        %v1795 = vld [vmem:[%s1783 + $0x2c] sm:$0xf]
        %v1796 = vld [vmem:[%s1783 + $0x30] sm:$0xf]
        %v1797 = vld [vmem:[%s1783 + $0x34] sm:$0xf]
        %v1798 = vld [vmem:[%s1783 + $0x38] sm:$0xf]
        %v1799 = vld [vmem:[%s1783 + $0x3c] sm:$0xf]
        %vm1800 = vsmask.f32 7424
        %v1801 = vrot.slane %v893, 1
        %v1802 = vor.u32 %v890, %v1801
        %v1803 = vrot.slane %v902, 1
        %v1804 = vsel %vm1800, %v1802, %v1803
        %v1805 = vor.u32 %v899, %v1803
        %v1806 = vrot.slane %v911, 1
        %v1807 = vsel %vm1800, %v1805, %v1806
        %v1808 = vor.u32 %v908, %v1806
        %v1809 = vrot.slane %v920, 1
        %v1810 = vsel %vm1800, %v1808, %v1809
        %v1811 = vor.u32 %v917, %v1809
        %v1812 = vrot.slane %v929, 1
        %v1813 = vsel %vm1800, %v1811, %v1812
        %v1814 = vor.u32 %v926, %v1812
        %v1815 = vrot.slane %v938, 1
        %v1816 = vsel %vm1800, %v1814, %v1815
        %v1817 = vor.u32 %v935, %v1815
        %v1818 = vrot.slane %v947, 1
        %v1819 = vsel %vm1800, %v1817, %v1818
        %v1820 = vor.u32 %v944, %v1818
        %v1821 = vrot.slane %v956, 1
        %v1822 = vsel %vm1800, %v1820, %v1821
        %v1823 = vor.u32 %v953, %v1821
        %v1824 = vrot.slane %v965, 1
        %v1825 = vsel %vm1800, %v1823, %v1824
        %v1826 = vor.u32 %v962, %v1824
        %v1828 = vshll.u32 %v654, 16
        %v1830 = vrot.slane %v1828, 1
        %v1831 = vsel %vm1800, %v1826, %v1830
        %v1857 = vunpack.c.l.b16 %v1784
        %v1858 = vunpack.c.l.b16 %v1785
        %v1859 = vunpack.c.l.b16 %v1786
        %v1860 = vunpack.c.l.b16 %v1787
        %v1861 = vunpack.c.l.b16 %v1788
        %v1862 = vunpack.c.l.b16 %v1789
        %v1863 = vunpack.c.l.b16 %v1790
        %v1864 = vunpack.c.l.b16 %v1791
        %v1865 = vunpack.c.l.b16 %v1792
        %v1866 = vunpack.c.l.b16 %v1793
        %v1867 = vunpack.c.l.b16 %v1794
        %v1868 = vunpack.c.l.b16 %v1795
        %v1869 = vunpack.c.l.b16 %v1796
        %v1870 = vunpack.c.l.b16 %v1797
        %v1871 = vunpack.c.l.b16 %v1798
        %v1872 = vunpack.c.l.b16 %v1799
        %v1873 = vpack.c.b16 %v1858, %v1857
        %v1874 = vpack.c.b16 %v1860, %v1859
        %v1875 = vpack.c.b16 %v1862, %v1861
        %v1876 = vpack.c.b16 %v1864, %v1863
        %v1877 = vpack.c.b16 %v1866, %v1865
        %v1878 = vpack.c.b16 %v1868, %v1867
        %v1879 = vpack.c.b16 %v1870, %v1869
        %v1880 = vpack.c.b16 %v1872, %v1871
        %1889 = vmatprep.subr.bf16.mxu0 0
        %1890 = vmatpush1.bf16.msra.mxu0 %v1873
        %1891 = vmatprep.subr.bf16.mxu0 0
        %1892 = vmatpush1.bf16.msra.mxu0 %v1874
        %1893 = vmatprep.subr.bf16.mxu0 0
        %1894 = vmatpush1.bf16.msra.mxu0 %v1875
        %1895 = vmatprep.subr.bf16.mxu0 0
        %1896 = vmatpush1.bf16.msra.mxu0 %v1876
        %1897 = vmatprep.subr.bf16.mxu0 0
        %1898 = vmatpush1.bf16.msra.mxu0 %v1877
        %1899 = vmatprep.subr.bf16.mxu0 0
        %1900 = vmatpush1.bf16.msra.mxu0 %v1878
        %1901 = vmatprep.subr.bf16.mxu0 0
        %1902 = vmatpush1.bf16.msra.mxu0 %v1879
        %1903 = vmatprep.subr.bf16.mxu0 0
        %1904 = vmatpush1.bf16.msra.mxu0 %v1880
        %1905 = vmatprep.subr.bf16.mxu0 0
        %1906 = vmatpush1.bf16.msra.mxu0 0
        %1907 = vmatprep.subr.bf16.mxu0 0
        %1908 = vmatpush1.bf16.msra.mxu0 0
        %1909 = vmatprep.subr.bf16.mxu0 0
        %1910 = vmatpush1.bf16.msra.mxu0 0
        %1911 = vmatprep.subr.bf16.mxu0 0
        %1912 = vmatpush1.bf16.msra.mxu0 0
        %1913 = vmatprep.subr.bf16.mxu0 0
        %1914 = vmatpush1.bf16.msra.mxu0 0
        %1915 = vmatprep.subr.bf16.mxu0 0
        %1916 = vmatpush1.bf16.msra.mxu0 0
        %1917 = vmatprep.subr.bf16.mxu0 0
        %1918 = vmatpush1.bf16.msra.mxu0 0
        %1919 = vmatprep.subr.bf16.mxu0 0
        %1920 = vmatpush1.bf16.msra.mxu0 0
        %1921 = vmatprep.mubr.bf16.mxu0 0
        %1922 = vmatmul.mubr.bf16.gmra.mrb[0].mxu0 %v1804
        %v1923 = vpop.f32.mrb[0].mxu0
        %v1924 = vadd.f32 0.0, %v1923
        %v1925 = vpop.f32.mrb[0].mxu0
        %v1926 = vpop.f32.mrb[0].mxu0
        %v1927 = vadd.f32 0.0, %v1926
        %v1928 = vpop.f32.mrb[0].mxu0
        %1929 = vmatprep.mubr.bf16.mxu0 0
        %1930 = vmatmul.mubr.bf16.gmra.mrb[0].mxu0 %v1807
        %v1931 = vpop.f32.mrb[0].mxu0
        %v1932 = vadd.f32 0.0, %v1931
        %v1933 = vpop.f32.mrb[0].mxu0
        %v1934 = vpop.f32.mrb[0].mxu0
        %v1935 = vadd.f32 0.0, %v1934
        %v1936 = vpop.f32.mrb[0].mxu0
        %1937 = vmatprep.mubr.bf16.mxu0 0
        %1938 = vmatmul.mubr.bf16.gmra.mrb[0].mxu0 %v1810
        %v1939 = vpop.f32.mrb[0].mxu0
        %v1940 = vadd.f32 0.0, %v1939
        %v1941 = vpop.f32.mrb[0].mxu0
        %v1942 = vpop.f32.mrb[0].mxu0
        %v1943 = vadd.f32 0.0, %v1942
        %v1944 = vpop.f32.mrb[0].mxu0
        %1945 = vmatprep.mubr.bf16.mxu0 0
        %1946 = vmatmul.mubr.bf16.gmra.mrb[0].mxu0 %v1813
        %v1947 = vpop.f32.mrb[0].mxu0
        %v1948 = vadd.f32 0.0, %v1947
        %v1949 = vpop.f32.mrb[0].mxu0
        %v1950 = vpop.f32.mrb[0].mxu0
        %v1951 = vadd.f32 0.0, %v1950
        %v1952 = vpop.f32.mrb[0].mxu0
        %1953 = vmatprep.mubr.bf16.mxu0 0
        %1954 = vmatmul.mubr.bf16.gmra.mrb[0].mxu0 %v1816
        %v1955 = vpop.f32.mrb[0].mxu0
        %v1956 = vadd.f32 0.0, %v1955
        %v1957 = vpop.f32.mrb[0].mxu0
        %v1958 = vpop.f32.mrb[0].mxu0
        %v1959 = vadd.f32 0.0, %v1958
        %v1960 = vpop.f32.mrb[0].mxu0
        %1961 = vmatprep.mubr.bf16.mxu0 0
        %1962 = vmatmul.mubr.bf16.gmra.mrb[0].mxu0 %v1819
        %v1963 = vpop.f32.mrb[0].mxu0
        %v1964 = vadd.f32 0.0, %v1963
        %v1965 = vpop.f32.mrb[0].mxu0
        %v1966 = vpop.f32.mrb[0].mxu0
        %v1967 = vadd.f32 0.0, %v1966
        %v1968 = vpop.f32.mrb[0].mxu0
        %1969 = vmatprep.mubr.bf16.mxu0 0
        %1970 = vmatmul.mubr.bf16.gmra.mrb[0].mxu0 %v1822
        %v1971 = vpop.f32.mrb[0].mxu0
        %v1972 = vadd.f32 0.0, %v1971
        %v1973 = vpop.f32.mrb[0].mxu0
        %v1974 = vpop.f32.mrb[0].mxu0
        %v1975 = vadd.f32 0.0, %v1974
        %v1976 = vpop.f32.mrb[0].mxu0
        %1977 = vmatprep.mubr.bf16.mxu0 0
        %1978 = vmatmul.mubr.bf16.gmra.mrb[0].mxu0 %v1825
        %v1979 = vpop.f32.mrb[0].mxu0
        %v1980 = vadd.f32 0.0, %v1979
        %v1981 = vpop.f32.mrb[0].mxu0
        %v1982 = vpop.f32.mrb[0].mxu0
        %v1983 = vadd.f32 0.0, %v1982
        %v1984 = vpop.f32.mrb[0].mxu0
        %1985 = vmatprep.mubr.bf16.mxu0 0
        %1986 = vmatmul.mubr.bf16.gmra.mrb[0].mxu0 %v1831
        %v1987 = vpop.f32.mrb[0].mxu0
        %v1988 = vadd.f32 0.0, %v1987
        %v1989 = vpop.f32.mrb[0].mxu0
        %v1990 = vpop.f32.mrb[0].mxu0
        %v1991 = vadd.f32 0.0, %v1990
        %v1992 = vpop.f32.mrb[0].mxu0
        %1993 = vdwg.mxu0
        %v1994 = vadd.f32 %v1765, %v1924
        %v1995 = vadd.f32 %v1766, %v1927
        %v1996 = vadd.f32 %v1767, %v1932
        %v1997 = vadd.f32 %v1768, %v1935
        %v1998 = vadd.f32 %v1769, %v1940
        %v1999 = vadd.f32 %v1770, %v1943
        %v2000 = vadd.f32 %v1771, %v1948
        %v2001 = vadd.f32 %v1772, %v1951
        %v2002 = vadd.f32 %v1773, %v1956
        %v2003 = vadd.f32 %v1774, %v1959
        %v2004 = vadd.f32 %v1775, %v1964
        %v2005 = vadd.f32 %v1776, %v1967
        %v2006 = vadd.f32 %v1777, %v1972
        %v2007 = vadd.f32 %v1778, %v1975
        %v2008 = vadd.f32 %v1779, %v1980
        %v2009 = vadd.f32 %v1780, %v1983
        %v2010 = vadd.f32 %v1781, %v1988
        %v2011 = vadd.f32 %v1782, %v1991
        %s2012 = scalar_lea.vmem %s6, 384
        %v2013 = vld [vmem:[%s2012] sm:$0xf]
        %v2014 = vld [vmem:[%s2012 + $0x4] sm:$0xf]
        %v2015 = vld [vmem:[%s2012 + $0x8] sm:$0xf]
        %v2016 = vld [vmem:[%s2012 + $0xc] sm:$0xf]
        %v2017 = vld [vmem:[%s2012 + $0x10] sm:$0xf]
        %v2018 = vld [vmem:[%s2012 + $0x14] sm:$0xf]
        %v2019 = vld [vmem:[%s2012 + $0x18] sm:$0xf]
        %v2020 = vld [vmem:[%s2012 + $0x1c] sm:$0xf]
        %v2021 = vld [vmem:[%s2012 + $0x20] sm:$0xf]
        %v2022 = vld [vmem:[%s2012 + $0x24] sm:$0xf]
        %v2023 = vld [vmem:[%s2012 + $0x28] sm:$0xf]
        %v2024 = vld [vmem:[%s2012 + $0x2c] sm:$0xf]
        %v2025 = vld [vmem:[%s2012 + $0x30] sm:$0xf]
        %v2026 = vld [vmem:[%s2012 + $0x34] sm:$0xf]
        %v2027 = vld [vmem:[%s2012 + $0x38] sm:$0xf]
        %v2028 = vld [vmem:[%s2012 + $0x3c] sm:$0xf]
        %vm2029 = vsmask.f32 2304
        %v2030 = vrot.slane %v890, 5
        %v2031 = vrot.slane %v893, 6
        %v2032 = vor.u32 %v2030, %v2031
        %v2033 = vrot.slane %v899, 5
        %v2034 = vrot.slane %v902, 6
        %v2035 = vor.u32 %v2033, %v2034
        %v2036 = vsel %vm2029, %v2032, %v2035
        %v2037 = vrot.slane %v908, 5
        %v2038 = vrot.slane %v911, 6
        %v2039 = vor.u32 %v2037, %v2038
        %v2040 = vsel %vm2029, %v2035, %v2039
        %v2041 = vrot.slane %v917, 5
        %v2042 = vrot.slane %v920, 6
        %v2043 = vor.u32 %v2041, %v2042
        %v2044 = vsel %vm2029, %v2039, %v2043
        %v2045 = vrot.slane %v926, 5
        %v2046 = vrot.slane %v929, 6
        %v2047 = vor.u32 %v2045, %v2046
        %v2048 = vsel %vm2029, %v2043, %v2047
        %v2049 = vrot.slane %v935, 5
        %v2050 = vrot.slane %v938, 6
        %v2051 = vor.u32 %v2049, %v2050
        %v2052 = vsel %vm2029, %v2047, %v2051
        %v2053 = vrot.slane %v944, 5
        %v2054 = vrot.slane %v947, 6
        %v2055 = vor.u32 %v2053, %v2054
        %v2056 = vsel %vm2029, %v2051, %v2055
        %v2057 = vrot.slane %v953, 5
        %v2058 = vrot.slane %v956, 6
        %v2059 = vor.u32 %v2057, %v2058
        %v2060 = vsel %vm2029, %v2055, %v2059
        %v2061 = vrot.slane %v962, 5
        %v2062 = vrot.slane %v965, 6
        %v2063 = vor.u32 %v2061, %v2062
        %v2064 = vsel %vm2029, %v2059, %v2063
        %v2065 = vshrl.u32 %v654, 16
        %v2067 = vrot.slane %v2065, 5
        %v2068 = vrot.slane %v1828, 6
        %v2069 = vor.u32 %v2067, %v2068
        %v2070 = vsel %vm2029, %v2063, %v2069
        %v2096 = vunpack.c.l.b16 %v2013
        %v2097 = vunpack.c.l.b16 %v2014
        %v2098 = vunpack.c.l.b16 %v2015
        %v2099 = vunpack.c.l.b16 %v2016
        %v2100 = vunpack.c.l.b16 %v2017
        %v2101 = vunpack.c.l.b16 %v2018
        %v2102 = vunpack.c.l.b16 %v2019
        %v2103 = vunpack.c.l.b16 %v2020
        %v2104 = vunpack.c.l.b16 %v2021
        %v2105 = vunpack.c.l.b16 %v2022
        %v2106 = vunpack.c.l.b16 %v2023
        %v2107 = vunpack.c.l.b16 %v2024
        %v2108 = vunpack.c.l.b16 %v2025
        %v2109 = vunpack.c.l.b16 %v2026
        %v2110 = vunpack.c.l.b16 %v2027
        %v2111 = vunpack.c.l.b16 %v2028
        %v2112 = vpack.c.b16 %v2097, %v2096
        %v2113 = vpack.c.b16 %v2099, %v2098
        %v2114 = vpack.c.b16 %v2101, %v2100
        %v2115 = vpack.c.b16 %v2103, %v2102
        %v2116 = vpack.c.b16 %v2105, %v2104
        %v2117 = vpack.c.b16 %v2107, %v2106
        %v2118 = vpack.c.b16 %v2109, %v2108
        %v2119 = vpack.c.b16 %v2111, %v2110
        %2128 = vmatprep.subr.bf16.mxu0 0
        %2129 = vmatpush1.bf16.msra.mxu0 %v2112
        %2130 = vmatprep.subr.bf16.mxu0 0
        %2131 = vmatpush1.bf16.msra.mxu0 %v2113
        %2132 = vmatprep.subr.bf16.mxu0 0
        %2133 = vmatpush1.bf16.msra.mxu0 %v2114
        %2134 = vmatprep.subr.bf16.mxu0 0
        %2135 = vmatpush1.bf16.msra.mxu0 %v2115
        %2136 = vmatprep.subr.bf16.mxu0 0
        %2137 = vmatpush1.bf16.msra.mxu0 %v2116
        %2138 = vmatprep.subr.bf16.mxu0 0
        %2139 = vmatpush1.bf16.msra.mxu0 %v2117
        %2140 = vmatprep.subr.bf16.mxu0 0
        %2141 = vmatpush1.bf16.msra.mxu0 %v2118
        %2142 = vmatprep.subr.bf16.mxu0 0
        %2143 = vmatpush1.bf16.msra.mxu0 %v2119
        %2144 = vmatprep.subr.bf16.mxu0 0
        %2145 = vmatpush1.bf16.msra.mxu0 0
        %2146 = vmatprep.subr.bf16.mxu0 0
        %2147 = vmatpush1.bf16.msra.mxu0 0
        %2148 = vmatprep.subr.bf16.mxu0 0
        %2149 = vmatpush1.bf16.msra.mxu0 0
        %2150 = vmatprep.subr.bf16.mxu0 0
        %2151 = vmatpush1.bf16.msra.mxu0 0
        %2152 = vmatprep.subr.bf16.mxu0 0
        %2153 = vmatpush1.bf16.msra.mxu0 0
        %2154 = vmatprep.subr.bf16.mxu0 0
        %2155 = vmatpush1.bf16.msra.mxu0 0
        %2156 = vmatprep.subr.bf16.mxu0 0
        %2157 = vmatpush1.bf16.msra.mxu0 0
        %2158 = vmatprep.subr.bf16.mxu0 0
        %2159 = vmatpush1.bf16.msra.mxu0 0
        %2160 = vmatprep.mubr.bf16.mxu0 0
        %2161 = vmatmul.mubr.bf16.gmra.mrb[0].mxu0 %v2036
        %v2162 = vpop.f32.mrb[0].mxu0
        %v2163 = vadd.f32 0.0, %v2162
        %v2164 = vpop.f32.mrb[0].mxu0
        %v2165 = vpop.f32.mrb[0].mxu0
        %v2166 = vadd.f32 0.0, %v2165
        %v2167 = vpop.f32.mrb[0].mxu0
        %2168 = vmatprep.mubr.bf16.mxu0 0
        %2169 = vmatmul.mubr.bf16.gmra.mrb[0].mxu0 %v2040
        %v2170 = vpop.f32.mrb[0].mxu0
        %v2171 = vadd.f32 0.0, %v2170
        %v2172 = vpop.f32.mrb[0].mxu0
        %v2173 = vpop.f32.mrb[0].mxu0
        %v2174 = vadd.f32 0.0, %v2173
        %v2175 = vpop.f32.mrb[0].mxu0
        %2176 = vmatprep.mubr.bf16.mxu0 0
        %2177 = vmatmul.mubr.bf16.gmra.mrb[0].mxu0 %v2044
        %v2178 = vpop.f32.mrb[0].mxu0
        %v2179 = vadd.f32 0.0, %v2178
        %v2180 = vpop.f32.mrb[0].mxu0
        %v2181 = vpop.f32.mrb[0].mxu0
        %v2182 = vadd.f32 0.0, %v2181
        %v2183 = vpop.f32.mrb[0].mxu0
        %2184 = vmatprep.mubr.bf16.mxu0 0
        %2185 = vmatmul.mubr.bf16.gmra.mrb[0].mxu0 %v2048
        %v2186 = vpop.f32.mrb[0].mxu0
        %v2187 = vadd.f32 0.0, %v2186
        %v2188 = vpop.f32.mrb[0].mxu0
        %v2189 = vpop.f32.mrb[0].mxu0
        %v2190 = vadd.f32 0.0, %v2189
        %v2191 = vpop.f32.mrb[0].mxu0
        %2192 = vmatprep.mubr.bf16.mxu0 0
        %2193 = vmatmul.mubr.bf16.gmra.mrb[0].mxu0 %v2052
        %v2194 = vpop.f32.mrb[0].mxu0
        %v2195 = vadd.f32 0.0, %v2194
        %v2196 = vpop.f32.mrb[0].mxu0
        %v2197 = vpop.f32.mrb[0].mxu0
        %v2198 = vadd.f32 0.0, %v2197
        %v2199 = vpop.f32.mrb[0].mxu0
        %2200 = vmatprep.mubr.bf16.mxu0 0
        %2201 = vmatmul.mubr.bf16.gmra.mrb[0].mxu0 %v2056
        %v2202 = vpop.f32.mrb[0].mxu0
        %v2203 = vadd.f32 0.0, %v2202
        %v2204 = vpop.f32.mrb[0].mxu0
        %v2205 = vpop.f32.mrb[0].mxu0
        %v2206 = vadd.f32 0.0, %v2205
        %v2207 = vpop.f32.mrb[0].mxu0
        %2208 = vmatprep.mubr.bf16.mxu0 0
        %2209 = vmatmul.mubr.bf16.gmra.mrb[0].mxu0 %v2060
        %v2210 = vpop.f32.mrb[0].mxu0
        %v2211 = vadd.f32 0.0, %v2210
        %v2212 = vpop.f32.mrb[0].mxu0
        %v2213 = vpop.f32.mrb[0].mxu0
        %v2214 = vadd.f32 0.0, %v2213
        %v2215 = vpop.f32.mrb[0].mxu0
        %2216 = vmatprep.mubr.bf16.mxu0 0
        %2217 = vmatmul.mubr.bf16.gmra.mrb[0].mxu0 %v2064
        %v2218 = vpop.f32.mrb[0].mxu0
        %v2219 = vadd.f32 0.0, %v2218
        %v2220 = vpop.f32.mrb[0].mxu0
        %v2221 = vpop.f32.mrb[0].mxu0
        %v2222 = vadd.f32 0.0, %v2221
        %v2223 = vpop.f32.mrb[0].mxu0
        %2224 = vmatprep.mubr.bf16.mxu0 0
        %2225 = vmatmul.mubr.bf16.gmra.mrb[0].mxu0 %v2070
        %v2226 = vpop.f32.mrb[0].mxu0
        %v2227 = vadd.f32 0.0, %v2226
        %v2228 = vpop.f32.mrb[0].mxu0
        %v2229 = vpop.f32.mrb[0].mxu0
        %v2230 = vadd.f32 0.0, %v2229
        %v2231 = vpop.f32.mrb[0].mxu0
        %2232 = vdwg.mxu0
        %v2233 = vadd.f32 %v1994, %v2163
        %v2234 = vadd.f32 %v1995, %v2166
        %v2235 = vadd.f32 %v1996, %v2171
        %v2236 = vadd.f32 %v1997, %v2174
        %v2237 = vadd.f32 %v1998, %v2179
        %v2238 = vadd.f32 %v1999, %v2182
        %v2239 = vadd.f32 %v2000, %v2187
        %v2240 = vadd.f32 %v2001, %v2190
        %v2241 = vadd.f32 %v2002, %v2195
        %v2242 = vadd.f32 %v2003, %v2198
        %v2243 = vadd.f32 %v2004, %v2203
        %v2244 = vadd.f32 %v2005, %v2206
        %v2245 = vadd.f32 %v2006, %v2211
        %v2246 = vadd.f32 %v2007, %v2214
        %v2247 = vadd.f32 %v2008, %v2219
        %v2248 = vadd.f32 %v2009, %v2222
        %v2249 = vadd.f32 %v2010, %v2227
        %v2250 = vadd.f32 %v2011, %v2230
        %s2251 = scalar_lea.vmem %s6, 448
        %v2252 = vld [vmem:[%s2251] sm:$0xf]
        %v2253 = vld [vmem:[%s2251 + $0x4] sm:$0xf]
        %v2254 = vld [vmem:[%s2251 + $0x8] sm:$0xf]
        %v2255 = vld [vmem:[%s2251 + $0xc] sm:$0xf]
        %v2256 = vld [vmem:[%s2251 + $0x10] sm:$0xf]
        %v2257 = vld [vmem:[%s2251 + $0x14] sm:$0xf]
        %v2258 = vld [vmem:[%s2251 + $0x18] sm:$0xf]
        %v2259 = vld [vmem:[%s2251 + $0x1c] sm:$0xf]
        %v2260 = vld [vmem:[%s2251 + $0x20] sm:$0xf]
        %v2261 = vld [vmem:[%s2251 + $0x24] sm:$0xf]
        %v2262 = vld [vmem:[%s2251 + $0x28] sm:$0xf]
        %v2263 = vld [vmem:[%s2251 + $0x2c] sm:$0xf]
        %v2264 = vld [vmem:[%s2251 + $0x30] sm:$0xf]
        %v2265 = vld [vmem:[%s2251 + $0x34] sm:$0xf]
        %v2266 = vld [vmem:[%s2251 + $0x38] sm:$0xf]
        %v2267 = vld [vmem:[%s2251 + $0x3c] sm:$0xf]
        %vm2269 = vcmask 1041408
        %v2270 = vrot.slane %v645, 6
        %v2271 = vrot.slane %v646, 6
        %v2272 = vsel %vm2269, %v2270, %v2271
        %v2273 = vrot.slane %v647, 6
        %v2274 = vsel %vm2269, %v2271, %v2273
        %v2275 = vrot.slane %v648, 6
        %v2276 = vsel %vm2269, %v2273, %v2275
        %v2277 = vrot.slane %v649, 6
        %v2278 = vsel %vm2269, %v2275, %v2277
        %v2279 = vrot.slane %v650, 6
        %v2280 = vsel %vm2269, %v2277, %v2279
        %v2281 = vrot.slane %v651, 6
        %v2282 = vsel %vm2269, %v2279, %v2281
        %v2283 = vrot.slane %v652, 6
        %v2284 = vsel %vm2269, %v2281, %v2283
        %v2285 = vrot.slane %v653, 6
        %v2286 = vsel %vm2269, %v2283, %v2285
        %v2287 = vrot.slane %v654, 6
        %v2288 = vsel %vm2269, %v2285, %v2287
        %v2314 = vunpack.c.l.b16 %v2252
        %v2315 = vunpack.c.l.b16 %v2253
        %v2316 = vunpack.c.l.b16 %v2254
        %v2317 = vunpack.c.l.b16 %v2255
        %v2318 = vunpack.c.l.b16 %v2256
        %v2319 = vunpack.c.l.b16 %v2257
        %v2320 = vunpack.c.l.b16 %v2258
        %v2321 = vunpack.c.l.b16 %v2259
        %v2322 = vunpack.c.l.b16 %v2260
        %v2323 = vunpack.c.l.b16 %v2261
        %v2324 = vunpack.c.l.b16 %v2262
        %v2325 = vunpack.c.l.b16 %v2263
        %v2326 = vunpack.c.l.b16 %v2264
        %v2327 = vunpack.c.l.b16 %v2265
        %v2328 = vunpack.c.l.b16 %v2266
        %v2329 = vunpack.c.l.b16 %v2267
        %v2330 = vpack.c.b16 %v2315, %v2314
        %v2331 = vpack.c.b16 %v2317, %v2316
        %v2332 = vpack.c.b16 %v2319, %v2318
        %v2333 = vpack.c.b16 %v2321, %v2320
        %v2334 = vpack.c.b16 %v2323, %v2322
        %v2335 = vpack.c.b16 %v2325, %v2324
        %v2336 = vpack.c.b16 %v2327, %v2326
        %v2337 = vpack.c.b16 %v2329, %v2328
        %2346 = vmatprep.subr.bf16.mxu0 0
        %2347 = vmatpush1.bf16.msra.mxu0 %v2330
        %2348 = vmatprep.subr.bf16.mxu0 0
        %2349 = vmatpush1.bf16.msra.mxu0 %v2331
        %2350 = vmatprep.subr.bf16.mxu0 0
        %2351 = vmatpush1.bf16.msra.mxu0 %v2332
        %2352 = vmatprep.subr.bf16.mxu0 0
        %2353 = vmatpush1.bf16.msra.mxu0 %v2333
        %2354 = vmatprep.subr.bf16.mxu0 0
        %2355 = vmatpush1.bf16.msra.mxu0 %v2334
        %2356 = vmatprep.subr.bf16.mxu0 0
        %2357 = vmatpush1.bf16.msra.mxu0 %v2335
        %2358 = vmatprep.subr.bf16.mxu0 0
        %2359 = vmatpush1.bf16.msra.mxu0 %v2336
        %2360 = vmatprep.subr.bf16.mxu0 0
        %2361 = vmatpush1.bf16.msra.mxu0 %v2337
        %2362 = vmatprep.subr.bf16.mxu0 0
        %2363 = vmatpush1.bf16.msra.mxu0 0
        %2364 = vmatprep.subr.bf16.mxu0 0
        %2365 = vmatpush1.bf16.msra.mxu0 0
        %2366 = vmatprep.subr.bf16.mxu0 0
        %2367 = vmatpush1.bf16.msra.mxu0 0
        %2368 = vmatprep.subr.bf16.mxu0 0
        %2369 = vmatpush1.bf16.msra.mxu0 0
        %2370 = vmatprep.subr.bf16.mxu0 0
        %2371 = vmatpush1.bf16.msra.mxu0 0
        %2372 = vmatprep.subr.bf16.mxu0 0
        %2373 = vmatpush1.bf16.msra.mxu0 0
        %2374 = vmatprep.subr.bf16.mxu0 0
        %2375 = vmatpush1.bf16.msra.mxu0 0
        %2376 = vmatprep.subr.bf16.mxu0 0
        %2377 = vmatpush1.bf16.msra.mxu0 0
        %2378 = vmatprep.mubr.bf16.mxu0 0
        %2379 = vmatmul.mubr.bf16.gmra.mrb[0].mxu0 %v2272
        %v2380 = vpop.f32.mrb[0].mxu0
        %v2381 = vadd.f32 0.0, %v2380
        %v2382 = vpop.f32.mrb[0].mxu0
        %v2383 = vpop.f32.mrb[0].mxu0
        %v2384 = vadd.f32 0.0, %v2383
        %v2385 = vpop.f32.mrb[0].mxu0
        %2386 = vmatprep.mubr.bf16.mxu0 0
        %2387 = vmatmul.mubr.bf16.gmra.mrb[0].mxu0 %v2274
        %v2388 = vpop.f32.mrb[0].mxu0
        %v2389 = vadd.f32 0.0, %v2388
        %v2390 = vpop.f32.mrb[0].mxu0
        %v2391 = vpop.f32.mrb[0].mxu0
        %v2392 = vadd.f32 0.0, %v2391
        %v2393 = vpop.f32.mrb[0].mxu0
        %2394 = vmatprep.mubr.bf16.mxu0 0
        %2395 = vmatmul.mubr.bf16.gmra.mrb[0].mxu0 %v2276
        %v2396 = vpop.f32.mrb[0].mxu0
        %v2397 = vadd.f32 0.0, %v2396
        %v2398 = vpop.f32.mrb[0].mxu0
        %v2399 = vpop.f32.mrb[0].mxu0
        %v2400 = vadd.f32 0.0, %v2399
        %v2401 = vpop.f32.mrb[0].mxu0
        %2402 = vmatprep.mubr.bf16.mxu0 0
        %2403 = vmatmul.mubr.bf16.gmra.mrb[0].mxu0 %v2278
        %v2404 = vpop.f32.mrb[0].mxu0
        %v2405 = vadd.f32 0.0, %v2404
        %v2406 = vpop.f32.mrb[0].mxu0
        %v2407 = vpop.f32.mrb[0].mxu0
        %v2408 = vadd.f32 0.0, %v2407
        %v2409 = vpop.f32.mrb[0].mxu0
        %2410 = vmatprep.mubr.bf16.mxu0 0
        %2411 = vmatmul.mubr.bf16.gmra.mrb[0].mxu0 %v2280
        %v2412 = vpop.f32.mrb[0].mxu0
        %v2413 = vadd.f32 0.0, %v2412
        %v2414 = vpop.f32.mrb[0].mxu0
        %v2415 = vpop.f32.mrb[0].mxu0
        %v2416 = vadd.f32 0.0, %v2415
        %v2417 = vpop.f32.mrb[0].mxu0
        %2418 = vmatprep.mubr.bf16.mxu0 0
        %2419 = vmatmul.mubr.bf16.gmra.mrb[0].mxu0 %v2282
        %v2420 = vpop.f32.mrb[0].mxu0
        %v2421 = vadd.f32 0.0, %v2420
        %v2422 = vpop.f32.mrb[0].mxu0
        %v2423 = vpop.f32.mrb[0].mxu0
        %v2424 = vadd.f32 0.0, %v2423
        %v2425 = vpop.f32.mrb[0].mxu0
        %2426 = vmatprep.mubr.bf16.mxu0 0
        %2427 = vmatmul.mubr.bf16.gmra.mrb[0].mxu0 %v2284
        %v2428 = vpop.f32.mrb[0].mxu0
        %v2429 = vadd.f32 0.0, %v2428
        %v2430 = vpop.f32.mrb[0].mxu0
        %v2431 = vpop.f32.mrb[0].mxu0
        %v2432 = vadd.f32 0.0, %v2431
        %v2433 = vpop.f32.mrb[0].mxu0
        %2434 = vmatprep.mubr.bf16.mxu0 0
        %2435 = vmatmul.mubr.bf16.gmra.mrb[0].mxu0 %v2286
        %v2436 = vpop.f32.mrb[0].mxu0
        %v2437 = vadd.f32 0.0, %v2436
        %v2438 = vpop.f32.mrb[0].mxu0
        %v2439 = vpop.f32.mrb[0].mxu0
        %v2440 = vadd.f32 0.0, %v2439
        %v2441 = vpop.f32.mrb[0].mxu0
        %2442 = vmatprep.mubr.bf16.mxu0 0
        %2443 = vmatmul.mubr.bf16.gmra.mrb[0].mxu0 %v2288
        %v2444 = vpop.f32.mrb[0].mxu0
        %v2445 = vadd.f32 0.0, %v2444
        %v2446 = vpop.f32.mrb[0].mxu0
        %v2447 = vpop.f32.mrb[0].mxu0
        %v2448 = vadd.f32 0.0, %v2447
        %v2449 = vpop.f32.mrb[0].mxu0
        %2450 = vdwg.mxu0
        %v2451 = vadd.f32 %v2233, %v2381
        %v2452 = vadd.f32 %v2234, %v2384
        %v2453 = vadd.f32 %v2235, %v2389
        %v2454 = vadd.f32 %v2236, %v2392
        %v2455 = vadd.f32 %v2237, %v2397
        %v2456 = vadd.f32 %v2238, %v2400
        %v2457 = vadd.f32 %v2239, %v2405
        %v2458 = vadd.f32 %v2240, %v2408
        %v2459 = vadd.f32 %v2241, %v2413
        %v2460 = vadd.f32 %v2242, %v2416
        %v2461 = vadd.f32 %v2243, %v2421
        %v2462 = vadd.f32 %v2244, %v2424
        %v2463 = vadd.f32 %v2245, %v2429
        %v2464 = vadd.f32 %v2246, %v2432
        %v2465 = vadd.f32 %v2247, %v2437
        %v2466 = vadd.f32 %v2248, %v2440
        %v2467 = vadd.f32 %v2249, %v2445
        %v2468 = vadd.f32 %v2250, %v2448
        %s2469 = scalar_lea.vmem %s6, 512
        %v2470 = vld [vmem:[%s2469] sm:$0xf]
        %v2471 = vld [vmem:[%s2469 + $0x4] sm:$0xf]
        %v2472 = vld [vmem:[%s2469 + $0x8] sm:$0xf]
        %v2473 = vld [vmem:[%s2469 + $0xc] sm:$0xf]
        %v2474 = vld [vmem:[%s2469 + $0x10] sm:$0xf]
        %v2475 = vld [vmem:[%s2469 + $0x14] sm:$0xf]
        %v2476 = vld [vmem:[%s2469 + $0x18] sm:$0xf]
        %v2477 = vld [vmem:[%s2469 + $0x1c] sm:$0xf]
        %v2478 = vld [vmem:[%s2469 + $0x20] sm:$0xf]
        %v2479 = vld [vmem:[%s2469 + $0x24] sm:$0xf]
        %v2480 = vld [vmem:[%s2469 + $0x28] sm:$0xf]
        %v2481 = vld [vmem:[%s2469 + $0x2c] sm:$0xf]
        %v2482 = vld [vmem:[%s2469 + $0x30] sm:$0xf]
        %v2483 = vld [vmem:[%s2469 + $0x34] sm:$0xf]
        %v2484 = vld [vmem:[%s2469 + $0x38] sm:$0xf]
        %v2485 = vld [vmem:[%s2469 + $0x3c] sm:$0xf]
        %vm2486 = vsmask.f32 1280
        %v2487 = vrot.slane %v890, 6
        %v2488 = vrot.slane %v893, 7
        %v2489 = vor.u32 %v2487, %v2488
        %v2490 = vrot.slane %v899, 6
        %v2491 = vrot.slane %v902, 7
        %v2492 = vor.u32 %v2490, %v2491
        %v2493 = vsel %vm2486, %v2489, %v2492
        %v2494 = vrot.slane %v908, 6
        %v2495 = vrot.slane %v911, 7
        %v2496 = vor.u32 %v2494, %v2495
        %v2497 = vsel %vm2486, %v2492, %v2496
        %v2498 = vrot.slane %v917, 6
        %v2499 = vrot.slane %v920, 7
        %v2500 = vor.u32 %v2498, %v2499
        %v2501 = vsel %vm2486, %v2496, %v2500
        %v2502 = vrot.slane %v926, 6
        %v2503 = vrot.slane %v929, 7
        %v2504 = vor.u32 %v2502, %v2503
        %v2505 = vsel %vm2486, %v2500, %v2504
        %v2506 = vrot.slane %v935, 6
        %v2507 = vrot.slane %v938, 7
        %v2508 = vor.u32 %v2506, %v2507
        %v2509 = vsel %vm2486, %v2504, %v2508
        %v2510 = vrot.slane %v944, 6
        %v2511 = vrot.slane %v947, 7
        %v2512 = vor.u32 %v2510, %v2511
        %v2513 = vsel %vm2486, %v2508, %v2512
        %v2514 = vrot.slane %v953, 6
        %v2515 = vrot.slane %v956, 7
        %v2516 = vor.u32 %v2514, %v2515
        %v2517 = vsel %vm2486, %v2512, %v2516
        %v2518 = vrot.slane %v962, 6
        %v2519 = vrot.slane %v965, 7
        %v2520 = vor.u32 %v2518, %v2519
        %v2521 = vsel %vm2486, %v2516, %v2520
        %v2522 = vrot.slane %v2065, 6
        %v2523 = vrot.slane %v1828, 7
        %v2524 = vor.u32 %v2522, %v2523
        %v2525 = vsel %vm2486, %v2520, %v2524
        %v2551 = vunpack.c.l.b16 %v2470
        %v2552 = vunpack.c.l.b16 %v2471
        %v2553 = vunpack.c.l.b16 %v2472
        %v2554 = vunpack.c.l.b16 %v2473
        %v2555 = vunpack.c.l.b16 %v2474
        %v2556 = vunpack.c.l.b16 %v2475
        %v2557 = vunpack.c.l.b16 %v2476
        %v2558 = vunpack.c.l.b16 %v2477
        %v2559 = vunpack.c.l.b16 %v2478
        %v2560 = vunpack.c.l.b16 %v2479
        %v2561 = vunpack.c.l.b16 %v2480
        %v2562 = vunpack.c.l.b16 %v2481
        %v2563 = vunpack.c.l.b16 %v2482
        %v2564 = vunpack.c.l.b16 %v2483
        %v2565 = vunpack.c.l.b16 %v2484
        %v2566 = vunpack.c.l.b16 %v2485
        %v2567 = vpack.c.b16 %v2552, %v2551
        %v2568 = vpack.c.b16 %v2554, %v2553
        %v2569 = vpack.c.b16 %v2556, %v2555
        %v2570 = vpack.c.b16 %v2558, %v2557
        %v2571 = vpack.c.b16 %v2560, %v2559
        %v2572 = vpack.c.b16 %v2562, %v2561
        %v2573 = vpack.c.b16 %v2564, %v2563
        %v2574 = vpack.c.b16 %v2566, %v2565
        %2583 = vmatprep.subr.bf16.mxu0 0
        %2584 = vmatpush1.bf16.msra.mxu0 %v2567
        %2585 = vmatprep.subr.bf16.mxu0 0
        %2586 = vmatpush1.bf16.msra.mxu0 %v2568
        %2587 = vmatprep.subr.bf16.mxu0 0
        %2588 = vmatpush1.bf16.msra.mxu0 %v2569
        %2589 = vmatprep.subr.bf16.mxu0 0
        %2590 = vmatpush1.bf16.msra.mxu0 %v2570
        %2591 = vmatprep.subr.bf16.mxu0 0
        %2592 = vmatpush1.bf16.msra.mxu0 %v2571
        %2593 = vmatprep.subr.bf16.mxu0 0
        %2594 = vmatpush1.bf16.msra.mxu0 %v2572
        %2595 = vmatprep.subr.bf16.mxu0 0
        %2596 = vmatpush1.bf16.msra.mxu0 %v2573
        %2597 = vmatprep.subr.bf16.mxu0 0
        %2598 = vmatpush1.bf16.msra.mxu0 %v2574
        %2599 = vmatprep.subr.bf16.mxu0 0
        %2600 = vmatpush1.bf16.msra.mxu0 0
        %2601 = vmatprep.subr.bf16.mxu0 0
        %2602 = vmatpush1.bf16.msra.mxu0 0
        %2603 = vmatprep.subr.bf16.mxu0 0
        %2604 = vmatpush1.bf16.msra.mxu0 0
        %2605 = vmatprep.subr.bf16.mxu0 0
        %2606 = vmatpush1.bf16.msra.mxu0 0
        %2607 = vmatprep.subr.bf16.mxu0 0
        %2608 = vmatpush1.bf16.msra.mxu0 0
        %2609 = vmatprep.subr.bf16.mxu0 0
        %2610 = vmatpush1.bf16.msra.mxu0 0
        %2611 = vmatprep.subr.bf16.mxu0 0
        %2612 = vmatpush1.bf16.msra.mxu0 0
        %2613 = vmatprep.subr.bf16.mxu0 0
        %2614 = vmatpush1.bf16.msra.mxu0 0
        %2615 = vmatprep.mubr.bf16.mxu0 0
        %2616 = vmatmul.mubr.bf16.gmra.mrb[0].mxu0 %v2493
        %v2617 = vpop.f32.mrb[0].mxu0
        %v2618 = vadd.f32 0.0, %v2617
        %v2619 = vpop.f32.mrb[0].mxu0
        %v2620 = vpop.f32.mrb[0].mxu0
        %v2621 = vadd.f32 0.0, %v2620
        %v2622 = vpop.f32.mrb[0].mxu0
        %2623 = vmatprep.mubr.bf16.mxu0 0
        %2624 = vmatmul.mubr.bf16.gmra.mrb[0].mxu0 %v2497
        %v2625 = vpop.f32.mrb[0].mxu0
        %v2626 = vadd.f32 0.0, %v2625
        %v2627 = vpop.f32.mrb[0].mxu0
        %v2628 = vpop.f32.mrb[0].mxu0
        %v2629 = vadd.f32 0.0, %v2628
        %v2630 = vpop.f32.mrb[0].mxu0
        %2631 = vmatprep.mubr.bf16.mxu0 0
        %2632 = vmatmul.mubr.bf16.gmra.mrb[0].mxu0 %v2501
        %v2633 = vpop.f32.mrb[0].mxu0
        %v2634 = vadd.f32 0.0, %v2633
        %v2635 = vpop.f32.mrb[0].mxu0
        %v2636 = vpop.f32.mrb[0].mxu0
        %v2637 = vadd.f32 0.0, %v2636
        %v2638 = vpop.f32.mrb[0].mxu0
        %2639 = vmatprep.mubr.bf16.mxu0 0
        %2640 = vmatmul.mubr.bf16.gmra.mrb[0].mxu0 %v2505
        %v2641 = vpop.f32.mrb[0].mxu0
        %v2642 = vadd.f32 0.0, %v2641
        %v2643 = vpop.f32.mrb[0].mxu0
        %v2644 = vpop.f32.mrb[0].mxu0
        %v2645 = vadd.f32 0.0, %v2644
        %v2646 = vpop.f32.mrb[0].mxu0
        %2647 = vmatprep.mubr.bf16.mxu0 0
        %2648 = vmatmul.mubr.bf16.gmra.mrb[0].mxu0 %v2509
        %v2649 = vpop.f32.mrb[0].mxu0
        %v2650 = vadd.f32 0.0, %v2649
        %v2651 = vpop.f32.mrb[0].mxu0
        %v2652 = vpop.f32.mrb[0].mxu0
        %v2653 = vadd.f32 0.0, %v2652
        %v2654 = vpop.f32.mrb[0].mxu0
        %2655 = vmatprep.mubr.bf16.mxu0 0
        %2656 = vmatmul.mubr.bf16.gmra.mrb[0].mxu0 %v2513
        %v2657 = vpop.f32.mrb[0].mxu0
        %v2658 = vadd.f32 0.0, %v2657
        %v2659 = vpop.f32.mrb[0].mxu0
        %v2660 = vpop.f32.mrb[0].mxu0
        %v2661 = vadd.f32 0.0, %v2660
        %v2662 = vpop.f32.mrb[0].mxu0
        %2663 = vmatprep.mubr.bf16.mxu0 0
        %2664 = vmatmul.mubr.bf16.gmra.mrb[0].mxu0 %v2517
        %v2665 = vpop.f32.mrb[0].mxu0
        %v2666 = vadd.f32 0.0, %v2665
        %v2667 = vpop.f32.mrb[0].mxu0
        %v2668 = vpop.f32.mrb[0].mxu0
        %v2669 = vadd.f32 0.0, %v2668
        %v2670 = vpop.f32.mrb[0].mxu0
        %2671 = vmatprep.mubr.bf16.mxu0 0
        %2672 = vmatmul.mubr.bf16.gmra.mrb[0].mxu0 %v2521
        %v2673 = vpop.f32.mrb[0].mxu0
        %v2674 = vadd.f32 0.0, %v2673
        %v2675 = vpop.f32.mrb[0].mxu0
        %v2676 = vpop.f32.mrb[0].mxu0
        %v2677 = vadd.f32 0.0, %v2676
        %v2678 = vpop.f32.mrb[0].mxu0
        %2679 = vmatprep.mubr.bf16.mxu0 0
        %2680 = vmatmul.mubr.bf16.gmra.mrb[0].mxu0 %v2525
        %v2681 = vpop.f32.mrb[0].mxu0
        %v2682 = vadd.f32 0.0, %v2681
        %v2683 = vpop.f32.mrb[0].mxu0
        %v2684 = vpop.f32.mrb[0].mxu0
        %v2685 = vadd.f32 0.0, %v2684
        %v2686 = vpop.f32.mrb[0].mxu0
        %2687 = vdwg.mxu0
        %v2688 = vadd.f32 %v2451, %v2618
        %v2689 = vadd.f32 %v2452, %v2621
        %v2690 = vadd.f32 %v2453, %v2626
        %v2691 = vadd.f32 %v2454, %v2629
        %v2692 = vadd.f32 %v2455, %v2634
        %v2693 = vadd.f32 %v2456, %v2637
        %v2694 = vadd.f32 %v2457, %v2642
        %v2695 = vadd.f32 %v2458, %v2645
        %v2696 = vadd.f32 %v2459, %v2650
        %v2697 = vadd.f32 %v2460, %v2653
        %v2698 = vadd.f32 %v2461, %v2658
        %v2699 = vadd.f32 %v2462, %v2661
        %v2700 = vadd.f32 %v2463, %v2666
        %v2701 = vadd.f32 %v2464, %v2669
        %v2702 = vadd.f32 %v2465, %v2674
        %v2703 = vadd.f32 %v2466, %v2677
        %v2704 = vadd.f32 %v2467, %v2682
        %v2705 = vadd.f32 %v2468, %v2685
        %v2706 = vld [vmem:[%s7] sm:$0x1]
        %v2708 = vlaneseq
        %v2709 = vshrl.u32 %v2708, 7
        %v2710 = vsub.s32 0, %v2709
        %v2711 = vrot.slane %v2706, %v2710
        %v2713 = vadd.f32 %v2688, %v2711
        %v2714 = vadd.f32 %v2689, %v2711
        %v2715 = vadd.f32 %v2690, %v2711
        %v2716 = vadd.f32 %v2691, %v2711
        %v2717 = vadd.f32 %v2692, %v2711
        %v2718 = vadd.f32 %v2693, %v2711
        %v2719 = vadd.f32 %v2694, %v2711
        %v2720 = vadd.f32 %v2695, %v2711
        %v2721 = vadd.f32 %v2696, %v2711
        %v2722 = vadd.f32 %v2697, %v2711
        %v2723 = vadd.f32 %v2698, %v2711
        %v2724 = vadd.f32 %v2699, %v2711
        %v2725 = vadd.f32 %v2700, %v2711
        %v2726 = vadd.f32 %v2701, %v2711
        %v2727 = vadd.f32 %v2702, %v2711
        %v2728 = vadd.f32 %v2703, %v2711
        %v2729 = vadd.f32 %v2704, %v2711
        %v2730 = vadd.f32 %v2705, %v2711
        %2749 = vrot.lane.b32.xlu0 %v2713, 120
        %v2750 = vpop.permute.xlu0 %2749
        %2751 = vrot.lane.b32.xlu0 %v2714, 120
        %v2752 = vpop.permute.xlu0 %2751
        %2753 = vrot.lane.b32.xlu0 %v2715, 120
        %v2754 = vpop.permute.xlu0 %2753
        %2755 = vrot.lane.b32.xlu0 %v2716, 120
        %v2756 = vpop.permute.xlu0 %2755
        %2757 = vrot.lane.b32.xlu0 %v2717, 120
        %v2758 = vpop.permute.xlu0 %2757
        %2759 = vrot.lane.b32.xlu0 %v2718, 120
        %v2760 = vpop.permute.xlu0 %2759
        %2761 = vrot.lane.b32.xlu0 %v2719, 120
        %v2762 = vpop.permute.xlu0 %2761
        %2763 = vrot.lane.b32.xlu0 %v2720, 120
        %v2764 = vpop.permute.xlu0 %2763
        %2765 = vrot.lane.b32.xlu0 %v2721, 120
        %v2766 = vpop.permute.xlu0 %2765
        %2767 = vrot.lane.b32.xlu0 %v2722, 120
        %v2768 = vpop.permute.xlu0 %2767
        %2769 = vrot.lane.b32.xlu0 %v2723, 120
        %v2770 = vpop.permute.xlu0 %2769
        %2771 = vrot.lane.b32.xlu0 %v2724, 120
        %v2772 = vpop.permute.xlu0 %2771
        %2773 = vrot.lane.b32.xlu0 %v2725, 120
        %v2774 = vpop.permute.xlu0 %2773
        %2775 = vrot.lane.b32.xlu0 %v2726, 120
        %v2776 = vpop.permute.xlu0 %2775
        %2777 = vrot.lane.b32.xlu0 %v2727, 120
        %v2778 = vpop.permute.xlu0 %2777
        %2779 = vrot.lane.b32.xlu0 %v2728, 120
        %v2780 = vpop.permute.xlu0 %2779
        %2781 = vrot.lane.b32.xlu0 %v2729, 120
        %v2782 = vpop.permute.xlu0 %2781
        %2783 = vrot.lane.b32.xlu0 %v2730, 120
        %v2784 = vpop.permute.xlu0 %2783
        %v2803 = vmax.f32 %v2713, %v2750
        %v2804 = vmax.f32 %v2714, %v2752
        %v2805 = vmax.f32 %v2715, %v2754
        %v2806 = vmax.f32 %v2716, %v2756
        %v2807 = vmax.f32 %v2717, %v2758
        %v2808 = vmax.f32 %v2718, %v2760
        %v2809 = vmax.f32 %v2719, %v2762
        %v2810 = vmax.f32 %v2720, %v2764
        %v2811 = vmax.f32 %v2721, %v2766
        %v2812 = vmax.f32 %v2722, %v2768
        %v2813 = vmax.f32 %v2723, %v2770
        %v2814 = vmax.f32 %v2724, %v2772
        %v2815 = vmax.f32 %v2725, %v2774
        %v2816 = vmax.f32 %v2726, %v2776
        %v2817 = vmax.f32 %v2727, %v2778
        %v2818 = vmax.f32 %v2728, %v2780
        %v2819 = vmax.f32 %v2729, %v2782
        %v2820 = vmax.f32 %v2730, %v2784
        %2821 = vrot.lane.b32.xlu0 %v2713, 112
        %v2822 = vpop.permute.xlu0 %2821
        %2823 = vrot.lane.b32.xlu0 %v2714, 112
        %v2824 = vpop.permute.xlu0 %2823
        %2825 = vrot.lane.b32.xlu0 %v2715, 112
        %v2826 = vpop.permute.xlu0 %2825
        %2827 = vrot.lane.b32.xlu0 %v2716, 112
        %v2828 = vpop.permute.xlu0 %2827
        %2829 = vrot.lane.b32.xlu0 %v2717, 112
        %v2830 = vpop.permute.xlu0 %2829
        %2831 = vrot.lane.b32.xlu0 %v2718, 112
        %v2832 = vpop.permute.xlu0 %2831
        %2833 = vrot.lane.b32.xlu0 %v2719, 112
        %v2834 = vpop.permute.xlu0 %2833
        %2835 = vrot.lane.b32.xlu0 %v2720, 112
        %v2836 = vpop.permute.xlu0 %2835
        %2837 = vrot.lane.b32.xlu0 %v2721, 112
        %v2838 = vpop.permute.xlu0 %2837
        %2839 = vrot.lane.b32.xlu0 %v2722, 112
        %v2840 = vpop.permute.xlu0 %2839
        %2841 = vrot.lane.b32.xlu0 %v2723, 112
        %v2842 = vpop.permute.xlu0 %2841
        %2843 = vrot.lane.b32.xlu0 %v2724, 112
        %v2844 = vpop.permute.xlu0 %2843
        %2845 = vrot.lane.b32.xlu0 %v2725, 112
        %v2846 = vpop.permute.xlu0 %2845
        %2847 = vrot.lane.b32.xlu0 %v2726, 112
        %v2848 = vpop.permute.xlu0 %2847
        %2849 = vrot.lane.b32.xlu0 %v2727, 112
        %v2850 = vpop.permute.xlu0 %2849
        %2851 = vrot.lane.b32.xlu0 %v2728, 112
        %v2852 = vpop.permute.xlu0 %2851
        %2853 = vrot.lane.b32.xlu0 %v2729, 112
        %v2854 = vpop.permute.xlu0 %2853
        %2855 = vrot.lane.b32.xlu0 %v2730, 112
        %v2856 = vpop.permute.xlu0 %2855
        %v2875 = vmax.f32 %v2803, %v2822
        %v2876 = vmax.f32 %v2804, %v2824
        %v2877 = vmax.f32 %v2805, %v2826
        %v2878 = vmax.f32 %v2806, %v2828
        %v2879 = vmax.f32 %v2807, %v2830
        %v2880 = vmax.f32 %v2808, %v2832
        %v2881 = vmax.f32 %v2809, %v2834
        %v2882 = vmax.f32 %v2810, %v2836
        %v2883 = vmax.f32 %v2811, %v2838
        %v2884 = vmax.f32 %v2812, %v2840
        %v2885 = vmax.f32 %v2813, %v2842
        %v2886 = vmax.f32 %v2814, %v2844
        %v2887 = vmax.f32 %v2815, %v2846
        %v2888 = vmax.f32 %v2816, %v2848
        %v2889 = vmax.f32 %v2817, %v2850
        %v2890 = vmax.f32 %v2818, %v2852
        %v2891 = vmax.f32 %v2819, %v2854
        %v2892 = vmax.f32 %v2820, %v2856
        %2893 = vrot.lane.b32.xlu0 %v2713, 104
        %v2894 = vpop.permute.xlu0 %2893
        %2895 = vrot.lane.b32.xlu0 %v2714, 104
        %v2896 = vpop.permute.xlu0 %2895
        %2897 = vrot.lane.b32.xlu0 %v2715, 104
        %v2898 = vpop.permute.xlu0 %2897
        %2899 = vrot.lane.b32.xlu0 %v2716, 104
        %v2900 = vpop.permute.xlu0 %2899
        %2901 = vrot.lane.b32.xlu0 %v2717, 104
        %v2902 = vpop.permute.xlu0 %2901
        %2903 = vrot.lane.b32.xlu0 %v2718, 104
        %v2904 = vpop.permute.xlu0 %2903
        %2905 = vrot.lane.b32.xlu0 %v2719, 104
        %v2906 = vpop.permute.xlu0 %2905
        %2907 = vrot.lane.b32.xlu0 %v2720, 104
        %v2908 = vpop.permute.xlu0 %2907
        %2909 = vrot.lane.b32.xlu0 %v2721, 104
        %v2910 = vpop.permute.xlu0 %2909
        %2911 = vrot.lane.b32.xlu0 %v2722, 104
        %v2912 = vpop.permute.xlu0 %2911
        %2913 = vrot.lane.b32.xlu0 %v2723, 104
        %v2914 = vpop.permute.xlu0 %2913
        %2915 = vrot.lane.b32.xlu0 %v2724, 104
        %v2916 = vpop.permute.xlu0 %2915
        %2917 = vrot.lane.b32.xlu0 %v2725, 104
        %v2918 = vpop.permute.xlu0 %2917
        %2919 = vrot.lane.b32.xlu0 %v2726, 104
        %v2920 = vpop.permute.xlu0 %2919
        %2921 = vrot.lane.b32.xlu0 %v2727, 104
        %v2922 = vpop.permute.xlu0 %2921
        %2923 = vrot.lane.b32.xlu0 %v2728, 104
        %v2924 = vpop.permute.xlu0 %2923
        %2925 = vrot.lane.b32.xlu0 %v2729, 104
        %v2926 = vpop.permute.xlu0 %2925
        %2927 = vrot.lane.b32.xlu0 %v2730, 104
        %v2928 = vpop.permute.xlu0 %2927
        %v2947 = vmax.f32 %v2875, %v2894
        %v2948 = vmax.f32 %v2876, %v2896
        %v2949 = vmax.f32 %v2877, %v2898
        %v2950 = vmax.f32 %v2878, %v2900
        %v2951 = vmax.f32 %v2879, %v2902
        %v2952 = vmax.f32 %v2880, %v2904
        %v2953 = vmax.f32 %v2881, %v2906
        %v2954 = vmax.f32 %v2882, %v2908
        %v2955 = vmax.f32 %v2883, %v2910
        %v2956 = vmax.f32 %v2884, %v2912
        %v2957 = vmax.f32 %v2885, %v2914
        %v2958 = vmax.f32 %v2886, %v2916
        %v2959 = vmax.f32 %v2887, %v2918
        %v2960 = vmax.f32 %v2888, %v2920
        %v2961 = vmax.f32 %v2889, %v2922
        %v2962 = vmax.f32 %v2890, %v2924
        %v2963 = vmax.f32 %v2891, %v2926
        %v2964 = vmax.f32 %v2892, %v2928
        %2965 = vrot.lane.b32.xlu0 %v2713, 96
        %v2966 = vpop.permute.xlu0 %2965
        %2967 = vrot.lane.b32.xlu0 %v2714, 96
        %v2968 = vpop.permute.xlu0 %2967
        %2969 = vrot.lane.b32.xlu0 %v2715, 96
        %v2970 = vpop.permute.xlu0 %2969
        %2971 = vrot.lane.b32.xlu0 %v2716, 96
        %v2972 = vpop.permute.xlu0 %2971
        %2973 = vrot.lane.b32.xlu0 %v2717, 96
        %v2974 = vpop.permute.xlu0 %2973
        %2975 = vrot.lane.b32.xlu0 %v2718, 96
        %v2976 = vpop.permute.xlu0 %2975
        %2977 = vrot.lane.b32.xlu0 %v2719, 96
        %v2978 = vpop.permute.xlu0 %2977
        %2979 = vrot.lane.b32.xlu0 %v2720, 96
        %v2980 = vpop.permute.xlu0 %2979
        %2981 = vrot.lane.b32.xlu0 %v2721, 96
        %v2982 = vpop.permute.xlu0 %2981
        %2983 = vrot.lane.b32.xlu0 %v2722, 96
        %v2984 = vpop.permute.xlu0 %2983
        %2985 = vrot.lane.b32.xlu0 %v2723, 96
        %v2986 = vpop.permute.xlu0 %2985
        %2987 = vrot.lane.b32.xlu0 %v2724, 96
        %v2988 = vpop.permute.xlu0 %2987
        %2989 = vrot.lane.b32.xlu0 %v2725, 96
        %v2990 = vpop.permute.xlu0 %2989
        %2991 = vrot.lane.b32.xlu0 %v2726, 96
        %v2992 = vpop.permute.xlu0 %2991
        %2993 = vrot.lane.b32.xlu0 %v2727, 96
        %v2994 = vpop.permute.xlu0 %2993
        %2995 = vrot.lane.b32.xlu0 %v2728, 96
        %v2996 = vpop.permute.xlu0 %2995
        %2997 = vrot.lane.b32.xlu0 %v2729, 96
        %v2998 = vpop.permute.xlu0 %2997
        %2999 = vrot.lane.b32.xlu0 %v2730, 96
        %v3000 = vpop.permute.xlu0 %2999
        %v3019 = vmax.f32 %v2947, %v2966
        %v3020 = vmax.f32 %v2948, %v2968
        %v3021 = vmax.f32 %v2949, %v2970
        %v3022 = vmax.f32 %v2950, %v2972
        %v3023 = vmax.f32 %v2951, %v2974
        %v3024 = vmax.f32 %v2952, %v2976
        %v3025 = vmax.f32 %v2953, %v2978
        %v3026 = vmax.f32 %v2954, %v2980
        %v3027 = vmax.f32 %v2955, %v2982
        %v3028 = vmax.f32 %v2956, %v2984
        %v3029 = vmax.f32 %v2957, %v2986
        %v3030 = vmax.f32 %v2958, %v2988
        %v3031 = vmax.f32 %v2959, %v2990
        %v3032 = vmax.f32 %v2960, %v2992
        %v3033 = vmax.f32 %v2961, %v2994
        %v3034 = vmax.f32 %v2962, %v2996
        %v3035 = vmax.f32 %v2963, %v2998
        %v3036 = vmax.f32 %v2964, %v3000
        %3037 = vrot.lane.b32.xlu0 %v2713, 88
        %v3038 = vpop.permute.xlu0 %3037
        %3039 = vrot.lane.b32.xlu0 %v2714, 88
        %v3040 = vpop.permute.xlu0 %3039
        %3041 = vrot.lane.b32.xlu0 %v2715, 88
        %v3042 = vpop.permute.xlu0 %3041
        %3043 = vrot.lane.b32.xlu0 %v2716, 88
        %v3044 = vpop.permute.xlu0 %3043
        %3045 = vrot.lane.b32.xlu0 %v2717, 88
        %v3046 = vpop.permute.xlu0 %3045
        %3047 = vrot.lane.b32.xlu0 %v2718, 88
        %v3048 = vpop.permute.xlu0 %3047
        %3049 = vrot.lane.b32.xlu0 %v2719, 88
        %v3050 = vpop.permute.xlu0 %3049
        %3051 = vrot.lane.b32.xlu0 %v2720, 88
        %v3052 = vpop.permute.xlu0 %3051
        %3053 = vrot.lane.b32.xlu0 %v2721, 88
        %v3054 = vpop.permute.xlu0 %3053
        %3055 = vrot.lane.b32.xlu0 %v2722, 88
        %v3056 = vpop.permute.xlu0 %3055
        %3057 = vrot.lane.b32.xlu0 %v2723, 88
        %v3058 = vpop.permute.xlu0 %3057
        %3059 = vrot.lane.b32.xlu0 %v2724, 88
        %v3060 = vpop.permute.xlu0 %3059
        %3061 = vrot.lane.b32.xlu0 %v2725, 88
        %v3062 = vpop.permute.xlu0 %3061
        %3063 = vrot.lane.b32.xlu0 %v2726, 88
        %v3064 = vpop.permute.xlu0 %3063
        %3065 = vrot.lane.b32.xlu0 %v2727, 88
        %v3066 = vpop.permute.xlu0 %3065
        %3067 = vrot.lane.b32.xlu0 %v2728, 88
        %v3068 = vpop.permute.xlu0 %3067
        %3069 = vrot.lane.b32.xlu0 %v2729, 88
        %v3070 = vpop.permute.xlu0 %3069
        %3071 = vrot.lane.b32.xlu0 %v2730, 88
        %v3072 = vpop.permute.xlu0 %3071
        %v3091 = vmax.f32 %v3019, %v3038
        %v3092 = vmax.f32 %v3020, %v3040
        %v3093 = vmax.f32 %v3021, %v3042
        %v3094 = vmax.f32 %v3022, %v3044
        %v3095 = vmax.f32 %v3023, %v3046
        %v3096 = vmax.f32 %v3024, %v3048
        %v3097 = vmax.f32 %v3025, %v3050
        %v3098 = vmax.f32 %v3026, %v3052
        %v3099 = vmax.f32 %v3027, %v3054
        %v3100 = vmax.f32 %v3028, %v3056
        %v3101 = vmax.f32 %v3029, %v3058
        %v3102 = vmax.f32 %v3030, %v3060
        %v3103 = vmax.f32 %v3031, %v3062
        %v3104 = vmax.f32 %v3032, %v3064
        %v3105 = vmax.f32 %v3033, %v3066
        %v3106 = vmax.f32 %v3034, %v3068
        %v3107 = vmax.f32 %v3035, %v3070
        %v3108 = vmax.f32 %v3036, %v3072
        %3109 = vrot.lane.b32.xlu0 %v2713, 80
        %v3110 = vpop.permute.xlu0 %3109
        %3111 = vrot.lane.b32.xlu0 %v2714, 80
        %v3112 = vpop.permute.xlu0 %3111
        %3113 = vrot.lane.b32.xlu0 %v2715, 80
        %v3114 = vpop.permute.xlu0 %3113
        %3115 = vrot.lane.b32.xlu0 %v2716, 80
        %v3116 = vpop.permute.xlu0 %3115
        %3117 = vrot.lane.b32.xlu0 %v2717, 80
        %v3118 = vpop.permute.xlu0 %3117
        %3119 = vrot.lane.b32.xlu0 %v2718, 80
        %v3120 = vpop.permute.xlu0 %3119
        %3121 = vrot.lane.b32.xlu0 %v2719, 80
        %v3122 = vpop.permute.xlu0 %3121
        %3123 = vrot.lane.b32.xlu0 %v2720, 80
        %v3124 = vpop.permute.xlu0 %3123
        %3125 = vrot.lane.b32.xlu0 %v2721, 80
        %v3126 = vpop.permute.xlu0 %3125
        %3127 = vrot.lane.b32.xlu0 %v2722, 80
        %v3128 = vpop.permute.xlu0 %3127
        %3129 = vrot.lane.b32.xlu0 %v2723, 80
        %v3130 = vpop.permute.xlu0 %3129
        %3131 = vrot.lane.b32.xlu0 %v2724, 80
        %v3132 = vpop.permute.xlu0 %3131
        %3133 = vrot.lane.b32.xlu0 %v2725, 80
        %v3134 = vpop.permute.xlu0 %3133
        %3135 = vrot.lane.b32.xlu0 %v2726, 80
        %v3136 = vpop.permute.xlu0 %3135
        %3137 = vrot.lane.b32.xlu0 %v2727, 80
        %v3138 = vpop.permute.xlu0 %3137
        %3139 = vrot.lane.b32.xlu0 %v2728, 80
        %v3140 = vpop.permute.xlu0 %3139
        %3141 = vrot.lane.b32.xlu0 %v2729, 80
        %v3142 = vpop.permute.xlu0 %3141
        %3143 = vrot.lane.b32.xlu0 %v2730, 80
        %v3144 = vpop.permute.xlu0 %3143
        %v3163 = vmax.f32 %v3091, %v3110
        %v3164 = vmax.f32 %v3092, %v3112
        %v3165 = vmax.f32 %v3093, %v3114
        %v3166 = vmax.f32 %v3094, %v3116
        %v3167 = vmax.f32 %v3095, %v3118
        %v3168 = vmax.f32 %v3096, %v3120
        %v3169 = vmax.f32 %v3097, %v3122
        %v3170 = vmax.f32 %v3098, %v3124
        %v3171 = vmax.f32 %v3099, %v3126
        %v3172 = vmax.f32 %v3100, %v3128
        %v3173 = vmax.f32 %v3101, %v3130
        %v3174 = vmax.f32 %v3102, %v3132
        %v3175 = vmax.f32 %v3103, %v3134
        %v3176 = vmax.f32 %v3104, %v3136
        %v3177 = vmax.f32 %v3105, %v3138
        %v3178 = vmax.f32 %v3106, %v3140
        %v3179 = vmax.f32 %v3107, %v3142
        %v3180 = vmax.f32 %v3108, %v3144
        %3181 = vrot.lane.b32.xlu0 %v2713, 72
        %v3182 = vpop.permute.xlu0 %3181
        %3183 = vrot.lane.b32.xlu0 %v2714, 72
        %v3184 = vpop.permute.xlu0 %3183
        %3185 = vrot.lane.b32.xlu0 %v2715, 72
        %v3186 = vpop.permute.xlu0 %3185
        %3187 = vrot.lane.b32.xlu0 %v2716, 72
        %v3188 = vpop.permute.xlu0 %3187
        %3189 = vrot.lane.b32.xlu0 %v2717, 72
        %v3190 = vpop.permute.xlu0 %3189
        %3191 = vrot.lane.b32.xlu0 %v2718, 72
        %v3192 = vpop.permute.xlu0 %3191
        %3193 = vrot.lane.b32.xlu0 %v2719, 72
        %v3194 = vpop.permute.xlu0 %3193
        %3195 = vrot.lane.b32.xlu0 %v2720, 72
        %v3196 = vpop.permute.xlu0 %3195
        %3197 = vrot.lane.b32.xlu0 %v2721, 72
        %v3198 = vpop.permute.xlu0 %3197
        %3199 = vrot.lane.b32.xlu0 %v2722, 72
        %v3200 = vpop.permute.xlu0 %3199
        %3201 = vrot.lane.b32.xlu0 %v2723, 72
        %v3202 = vpop.permute.xlu0 %3201
        %3203 = vrot.lane.b32.xlu0 %v2724, 72
        %v3204 = vpop.permute.xlu0 %3203
        %3205 = vrot.lane.b32.xlu0 %v2725, 72
        %v3206 = vpop.permute.xlu0 %3205
        %3207 = vrot.lane.b32.xlu0 %v2726, 72
        %v3208 = vpop.permute.xlu0 %3207
        %3209 = vrot.lane.b32.xlu0 %v2727, 72
        %v3210 = vpop.permute.xlu0 %3209
        %3211 = vrot.lane.b32.xlu0 %v2728, 72
        %v3212 = vpop.permute.xlu0 %3211
        %3213 = vrot.lane.b32.xlu0 %v2729, 72
        %v3214 = vpop.permute.xlu0 %3213
        %3215 = vrot.lane.b32.xlu0 %v2730, 72
        %v3216 = vpop.permute.xlu0 %3215
        %v3235 = vmax.f32 %v3163, %v3182
        %v3236 = vmax.f32 %v3164, %v3184
        %v3237 = vmax.f32 %v3165, %v3186
        %v3238 = vmax.f32 %v3166, %v3188
        %v3239 = vmax.f32 %v3167, %v3190
        %v3240 = vmax.f32 %v3168, %v3192
        %v3241 = vmax.f32 %v3169, %v3194
        %v3242 = vmax.f32 %v3170, %v3196
        %v3243 = vmax.f32 %v3171, %v3198
        %v3244 = vmax.f32 %v3172, %v3200
        %v3245 = vmax.f32 %v3173, %v3202
        %v3246 = vmax.f32 %v3174, %v3204
        %v3247 = vmax.f32 %v3175, %v3206
        %v3248 = vmax.f32 %v3176, %v3208
        %v3249 = vmax.f32 %v3177, %v3210
        %v3250 = vmax.f32 %v3178, %v3212
        %v3251 = vmax.f32 %v3179, %v3214
        %v3252 = vmax.f32 %v3180, %v3216
        %3253 = vrot.lane.b32.xlu0 %v2713, 64
        %v3254 = vpop.permute.xlu0 %3253
        %3255 = vrot.lane.b32.xlu0 %v2714, 64
        %v3256 = vpop.permute.xlu0 %3255
        %3257 = vrot.lane.b32.xlu0 %v2715, 64
        %v3258 = vpop.permute.xlu0 %3257
        %3259 = vrot.lane.b32.xlu0 %v2716, 64
        %v3260 = vpop.permute.xlu0 %3259
        %3261 = vrot.lane.b32.xlu0 %v2717, 64
        %v3262 = vpop.permute.xlu0 %3261
        %3263 = vrot.lane.b32.xlu0 %v2718, 64
        %v3264 = vpop.permute.xlu0 %3263
        %3265 = vrot.lane.b32.xlu0 %v2719, 64
        %v3266 = vpop.permute.xlu0 %3265
        %3267 = vrot.lane.b32.xlu0 %v2720, 64
        %v3268 = vpop.permute.xlu0 %3267
        %3269 = vrot.lane.b32.xlu0 %v2721, 64
        %v3270 = vpop.permute.xlu0 %3269
        %3271 = vrot.lane.b32.xlu0 %v2722, 64
        %v3272 = vpop.permute.xlu0 %3271
        %3273 = vrot.lane.b32.xlu0 %v2723, 64
        %v3274 = vpop.permute.xlu0 %3273
        %3275 = vrot.lane.b32.xlu0 %v2724, 64
        %v3276 = vpop.permute.xlu0 %3275
        %3277 = vrot.lane.b32.xlu0 %v2725, 64
        %v3278 = vpop.permute.xlu0 %3277
        %3279 = vrot.lane.b32.xlu0 %v2726, 64
        %v3280 = vpop.permute.xlu0 %3279
        %3281 = vrot.lane.b32.xlu0 %v2727, 64
        %v3282 = vpop.permute.xlu0 %3281
        %3283 = vrot.lane.b32.xlu0 %v2728, 64
        %v3284 = vpop.permute.xlu0 %3283
        %3285 = vrot.lane.b32.xlu0 %v2729, 64
        %v3286 = vpop.permute.xlu0 %3285
        %3287 = vrot.lane.b32.xlu0 %v2730, 64
        %v3288 = vpop.permute.xlu0 %3287
        %v3307 = vmax.f32 %v3235, %v3254
        %v3308 = vmax.f32 %v3236, %v3256
        %v3309 = vmax.f32 %v3237, %v3258
        %v3310 = vmax.f32 %v3238, %v3260
        %v3311 = vmax.f32 %v3239, %v3262
        %v3312 = vmax.f32 %v3240, %v3264
        %v3313 = vmax.f32 %v3241, %v3266
        %v3314 = vmax.f32 %v3242, %v3268
        %v3315 = vmax.f32 %v3243, %v3270
        %v3316 = vmax.f32 %v3244, %v3272
        %v3317 = vmax.f32 %v3245, %v3274
        %v3318 = vmax.f32 %v3246, %v3276
        %v3319 = vmax.f32 %v3247, %v3278
        %v3320 = vmax.f32 %v3248, %v3280
        %v3321 = vmax.f32 %v3249, %v3282
        %v3322 = vmax.f32 %v3250, %v3284
        %v3323 = vmax.f32 %v3251, %v3286
        %v3324 = vmax.f32 %v3252, %v3288
        %v3325 = vsel %vm487, 1, 0
        %v3326 = vsel %vm488, 1, 0
        %v3327 = vsel %vm489, 1, 0
        %v3328 = vsel %vm490, 1, 0
        %v3329 = vsel %vm491, 1, 0
        %v3330 = vsel %vm492, 1, 0
        %v3331 = vsel %vm493, 1, 0
        %v3332 = vsel %vm494, 1, 0
        %v3333 = vsel %vm495, 1, 0
        %v3334 = vsel %vm496, 1, 0
        %v3335 = vsel %vm497, 1, 0
        %v3336 = vsel %vm498, 1, 0
        %v3337 = vsel %vm499, 1, 0
        %v3338 = vsel %vm500, 1, 0
        %v3339 = vsel %vm501, 1, 0
        %v3340 = vsel %vm502, 1, 0
        %v3341 = vsel %vm503, 1, 0
        %v3342 = vsel %vm504, 1, 0
        %3343 = vset.pattern.permute.xlu0 0
        %3344 = vperm.xlu0 %3343, %v3325
        %v3345 = vpop.permute.xlu0 %3344
        %3346 = vset.pattern.permute.xlu0 0
        %3347 = vperm.xlu0 %3346, %v3326
        %v3348 = vpop.permute.xlu0 %3347
        %3349 = vset.pattern.permute.xlu0 0
        %3350 = vperm.xlu0 %3349, %v3327
        %v3351 = vpop.permute.xlu0 %3350
        %3352 = vset.pattern.permute.xlu0 0
        %3353 = vperm.xlu0 %3352, %v3328
        %v3354 = vpop.permute.xlu0 %3353
        %3355 = vset.pattern.permute.xlu0 0
        %3356 = vperm.xlu0 %3355, %v3329
        %v3357 = vpop.permute.xlu0 %3356
        %3358 = vset.pattern.permute.xlu0 0
        %3359 = vperm.xlu0 %3358, %v3330
        %v3360 = vpop.permute.xlu0 %3359
        %3361 = vset.pattern.permute.xlu0 0
        %3362 = vperm.xlu0 %3361, %v3331
        %v3363 = vpop.permute.xlu0 %3362
        %3364 = vset.pattern.permute.xlu0 0
        %3365 = vperm.xlu0 %3364, %v3332
        %v3366 = vpop.permute.xlu0 %3365
        %3367 = vset.pattern.permute.xlu0 0
        %3368 = vperm.xlu0 %3367, %v3333
        %v3369 = vpop.permute.xlu0 %3368
        %3370 = vset.pattern.permute.xlu0 0
        %3371 = vperm.xlu0 %3370, %v3334
        %v3372 = vpop.permute.xlu0 %3371
        %3373 = vset.pattern.permute.xlu0 0
        %3374 = vperm.xlu0 %3373, %v3335
        %v3375 = vpop.permute.xlu0 %3374
        %3376 = vset.pattern.permute.xlu0 0
        %3377 = vperm.xlu0 %3376, %v3336
        %v3378 = vpop.permute.xlu0 %3377
        %3379 = vset.pattern.permute.xlu0 0
        %3380 = vperm.xlu0 %3379, %v3337
        %v3381 = vpop.permute.xlu0 %3380
        %3382 = vset.pattern.permute.xlu0 0
        %3383 = vperm.xlu0 %3382, %v3338
        %v3384 = vpop.permute.xlu0 %3383
        %3385 = vset.pattern.permute.xlu0 0
        %3386 = vperm.xlu0 %3385, %v3339
        %v3387 = vpop.permute.xlu0 %3386
        %3388 = vset.pattern.permute.xlu0 0
        %3389 = vperm.xlu0 %3388, %v3340
        %v3390 = vpop.permute.xlu0 %3389
        %3391 = vset.pattern.permute.xlu0 0
        %3392 = vperm.xlu0 %3391, %v3341
        %v3393 = vpop.permute.xlu0 %3392
        %3394 = vset.pattern.permute.xlu0 0
        %3395 = vperm.xlu0 %3394, %v3342
        %v3396 = vpop.permute.xlu0 %3395
        %vm3397 = vcmp.eq.s32.totalorder %v3345, 1
        %vm3398 = vcmp.eq.s32.totalorder %v3348, 1
        %vm3399 = vcmp.eq.s32.totalorder %v3351, 1
        %vm3400 = vcmp.eq.s32.totalorder %v3354, 1
        %vm3401 = vcmp.eq.s32.totalorder %v3357, 1
        %vm3402 = vcmp.eq.s32.totalorder %v3360, 1
        %vm3403 = vcmp.eq.s32.totalorder %v3363, 1
        %vm3404 = vcmp.eq.s32.totalorder %v3366, 1
        %vm3405 = vcmp.eq.s32.totalorder %v3369, 1
        %vm3406 = vcmp.eq.s32.totalorder %v3372, 1
        %vm3407 = vcmp.eq.s32.totalorder %v3375, 1
        %vm3408 = vcmp.eq.s32.totalorder %v3378, 1
        %vm3409 = vcmp.eq.s32.totalorder %v3381, 1
        %vm3410 = vcmp.eq.s32.totalorder %v3384, 1
        %vm3411 = vcmp.eq.s32.totalorder %v3387, 1
        %vm3412 = vcmp.eq.s32.totalorder %v3390, 1
        %vm3413 = vcmp.eq.s32.totalorder %v3393, 1
        %vm3414 = vcmp.eq.s32.totalorder %v3396, 1
        %v3415 = vsel %vm3397, %v3307, 0.0
        %v3416 = vsel %vm3398, %v3308, 0.0
        %v3417 = vsel %vm3399, %v3309, 0.0
        %v3418 = vsel %vm3400, %v3310, 0.0
        %v3419 = vsel %vm3401, %v3311, 0.0
        %v3420 = vsel %vm3402, %v3312, 0.0
        %v3421 = vsel %vm3403, %v3313, 0.0
        %v3422 = vsel %vm3404, %v3314, 0.0
        %v3423 = vsel %vm3405, %v3315, 0.0
        %v3424 = vsel %vm3406, %v3316, 0.0
        %v3425 = vsel %vm3407, %v3317, 0.0
        %v3426 = vsel %vm3408, %v3318, 0.0
        %v3427 = vsel %vm3409, %v3319, 0.0
        %v3428 = vsel %vm3410, %v3320, 0.0
        %v3429 = vsel %vm3411, %v3321, 0.0
        %v3430 = vsel %vm3412, %v3322, 0.0
        %v3431 = vsel %vm3413, %v3323, 0.0
        %v3432 = vsel %vm3414, %v3324, 0.0
        %3451 = vrot.lane.b32.xlu0 %v3415, 64
        %v3452 = vpop.permute.xlu0 %3451
        %3453 = vrot.lane.b32.xlu0 %v3416, 64
        %v3454 = vpop.permute.xlu0 %3453
        %3455 = vrot.lane.b32.xlu0 %v3417, 64
        %v3456 = vpop.permute.xlu0 %3455
        %3457 = vrot.lane.b32.xlu0 %v3418, 64
        %v3458 = vpop.permute.xlu0 %3457
        %3459 = vrot.lane.b32.xlu0 %v3419, 64
        %v3460 = vpop.permute.xlu0 %3459
        %3461 = vrot.lane.b32.xlu0 %v3420, 64
        %v3462 = vpop.permute.xlu0 %3461
        %3463 = vrot.lane.b32.xlu0 %v3421, 64
        %v3464 = vpop.permute.xlu0 %3463
        %3465 = vrot.lane.b32.xlu0 %v3422, 64
        %v3466 = vpop.permute.xlu0 %3465
        %3467 = vrot.lane.b32.xlu0 %v3423, 64
        %v3468 = vpop.permute.xlu0 %3467
        %3469 = vrot.lane.b32.xlu0 %v3424, 64
        %v3470 = vpop.permute.xlu0 %3469
        %3471 = vrot.lane.b32.xlu0 %v3425, 64
        %v3472 = vpop.permute.xlu0 %3471
        %3473 = vrot.lane.b32.xlu0 %v3426, 64
        %v3474 = vpop.permute.xlu0 %3473
        %3475 = vrot.lane.b32.xlu0 %v3427, 64
        %v3476 = vpop.permute.xlu0 %3475
        %3477 = vrot.lane.b32.xlu0 %v3428, 64
        %v3478 = vpop.permute.xlu0 %3477
        %3479 = vrot.lane.b32.xlu0 %v3429, 64
        %v3480 = vpop.permute.xlu0 %3479
        %3481 = vrot.lane.b32.xlu0 %v3430, 64
        %v3482 = vpop.permute.xlu0 %3481
        %3483 = vrot.lane.b32.xlu0 %v3431, 64
        %v3484 = vpop.permute.xlu0 %3483
        %3485 = vrot.lane.b32.xlu0 %v3432, 64
        %v3486 = vpop.permute.xlu0 %3485
        %vm3505 = vcmask 589312
        %3506 = vst.msk [vmem:[#allocation2 + $0x10] sm:$0xff] %vm3505, %v3452
        %3507 = vst.msk [vmem:[#allocation2 + $0x18] sm:$0xff] %vm3505, %v3454
        %3508 = vst.msk [vmem:[#allocation2 + $0x20] sm:$0xff] %vm3505, %v3456
        %3509 = vst.msk [vmem:[#allocation2 + $0x28] sm:$0xff] %vm3505, %v3458
        %3510 = vst.msk [vmem:[#allocation2 + $0x30] sm:$0xff] %vm3505, %v3460
        %3511 = vst.msk [vmem:[#allocation2 + $0x38] sm:$0xff] %vm3505, %v3462
        %3512 = vst.msk [vmem:[#allocation2 + $0x40] sm:$0xff] %vm3505, %v3464
        %3513 = vst.msk [vmem:[#allocation2 + $0x48] sm:$0xff] %vm3505, %v3466
        %3514 = vst.msk [vmem:[#allocation2 + $0x50] sm:$0xff] %vm3505, %v3468
        %3515 = vst.msk [vmem:[#allocation2 + $0x58] sm:$0xff] %vm3505, %v3470
        %3516 = vst.msk [vmem:[#allocation2 + $0x60] sm:$0xff] %vm3505, %v3472
        %3517 = vst.msk [vmem:[#allocation2 + $0x68] sm:$0xff] %vm3505, %v3474
        %3518 = vst.msk [vmem:[#allocation2 + $0x70] sm:$0xff] %vm3505, %v3476
        %3519 = vst.msk [vmem:[#allocation2 + $0x78] sm:$0xff] %vm3505, %v3478
        %3520 = vst.msk [vmem:[#allocation2 + $0x80] sm:$0xff] %vm3505, %v3480
        %3521 = vst.msk [vmem:[#allocation2 + $0x88] sm:$0xff] %vm3505, %v3482
        %3522 = vst.msk [vmem:[#allocation2 + $0x90] sm:$0xff] %vm3505, %v3484
        %3523 = vst.msk [vmem:[#allocation2 + $0x98] sm:$0xff] %vm3505, %v3486
      $region68: #{conv_lstm_forward.1} parent=55 // pred_fallthru
        _
      %v3524 = vld [vmem:[#allocation2] sm:$0xff]
      %v3525 = vld [vmem:[#allocation2 + $0x8] sm:$0xff]
      %v3526 = vld [vmem:[#allocation2 + $0x10] sm:$0xff]
      %v3527 = vld [vmem:[#allocation2 + $0x18] sm:$0xff]
      %v3528 = vld [vmem:[#allocation2 + $0x20] sm:$0xff]
      %v3529 = vld [vmem:[#allocation2 + $0x28] sm:$0xff]
      %v3530 = vld [vmem:[#allocation2 + $0x30] sm:$0xff]
      %v3531 = vld [vmem:[#allocation2 + $0x38] sm:$0xff]
      %v3532 = vld [vmem:[#allocation2 + $0x40] sm:$0xff]
      %v3533 = vld [vmem:[#allocation2 + $0x48] sm:$0xff]
      %v3534 = vld [vmem:[#allocation2 + $0x50] sm:$0xff]
      %v3535 = vld [vmem:[#allocation2 + $0x58] sm:$0xff]
      %v3536 = vld [vmem:[#allocation2 + $0x60] sm:$0xff]
      %v3537 = vld [vmem:[#allocation2 + $0x68] sm:$0xff]
      %v3538 = vld [vmem:[#allocation2 + $0x70] sm:$0xff]
      %v3539 = vld [vmem:[#allocation2 + $0x78] sm:$0xff]
      %v3540 = vld [vmem:[#allocation2 + $0x80] sm:$0xff]
      %v3541 = vld [vmem:[#allocation2 + $0x88] sm:$0xff]
      %v3542 = vld [vmem:[#allocation2 + $0x90] sm:$0xff]
      %v3543 = vld [vmem:[#allocation2 + $0x98] sm:$0xff]
      %v3544 = vld [vmem:[#allocation2 + $0xa0] sm:$0xff]
      %v3545 = vld [vmem:[#allocation2 + $0xa8] sm:$0xff]
      %v3546 = vpack.c.bf16 %v3525, %v3524
      %v3547 = vpack.c.bf16 %v3527, %v3526
      %v3548 = vpack.c.bf16 %v3529, %v3528
      %v3549 = vpack.c.bf16 %v3531, %v3530
      %v3550 = vpack.c.bf16 %v3533, %v3532
      %v3551 = vpack.c.bf16 %v3535, %v3534
      %v3552 = vpack.c.bf16 %v3537, %v3536
      %v3553 = vpack.c.bf16 %v3539, %v3538
      %v3554 = vpack.c.bf16 %v3541, %v3540
      %v3555 = vpack.c.bf16 %v3543, %v3542
      %v3556 = vpack.c.bf16 %v3545, %v3544
      %v3557 = vld [vmem:[%s2] sm:$0xff]
      %v3558 = vld [vmem:[%s2 + $0x8] sm:$0xff]
      %v3559 = vld [vmem:[%s2 + $0x10] sm:$0xff]
      %v3560 = vld [vmem:[%s2 + $0x18] sm:$0xff]
      %v3561 = vld [vmem:[%s2 + $0x20] sm:$0xff]
      %v3562 = vld [vmem:[%s2 + $0x28] sm:$0xff]
      %v3563 = vld [vmem:[%s2 + $0x30] sm:$0xff]
      %v3564 = vld [vmem:[%s2 + $0x38] sm:$0xff]
      %v3565 = vld [vmem:[%s2 + $0x40] sm:$0xff]
      %v3566 = vld [vmem:[%s2 + $0x48] sm:$0xff]
      %v3567 = vld [vmem:[%s2 + $0x50] sm:$0xff]
      %v3568 = vld [vmem:[%s2 + $0x58] sm:$0xff]
      %v3569 = vld [vmem:[%s2 + $0x60] sm:$0xff]
      %v3570 = vld [vmem:[%s2 + $0x68] sm:$0xff]
      %v3571 = vld [vmem:[%s2 + $0x70] sm:$0xff]
      %v3572 = vld [vmem:[%s2 + $0x78] sm:$0xff]
      %s3573 = scalar_lea.vmem %s2, 128
      %v3574 = vld [vmem:[%s3573] sm:$0xff]
      %v3575 = vld [vmem:[%s3573 + $0x8] sm:$0xff]
      %v3576 = vld [vmem:[%s3573 + $0x10] sm:$0xff]
      %v3577 = vld [vmem:[%s3573 + $0x18] sm:$0xff]
      %v3578 = vld [vmem:[%s3573 + $0x20] sm:$0xff]
      %v3579 = vld [vmem:[%s3573 + $0x28] sm:$0xff]
      %v3580 = vld [vmem:[%s3573 + $0x30] sm:$0xff]
      %v3581 = vld [vmem:[%s3573 + $0x38] sm:$0xff]
      %v3582 = vld [vmem:[%s3573 + $0x40] sm:$0xff]
      %v3583 = vld [vmem:[%s3573 + $0x48] sm:$0xff]
      %v3584 = vld [vmem:[%s3573 + $0x50] sm:$0xff]
      %v3585 = vld [vmem:[%s3573 + $0x58] sm:$0xff]
      %v3586 = vld [vmem:[%s3573 + $0x60] sm:$0xff]
      %v3587 = vld [vmem:[%s3573 + $0x68] sm:$0xff]
      %v3588 = vld [vmem:[%s3573 + $0x70] sm:$0xff]
      %v3589 = vld [vmem:[%s3573 + $0x78] sm:$0xff]
      %vm3600 = vcmask 1045504
      %v3601 = vrot.slane %v3546, 2
      %v3602 = vrot.slane %v3547, 2
      %v3603 = vsel %vm3600, %v3601, %v3602
      %v3604 = vrot.slane %v3548, 2
      %v3605 = vsel %vm3600, %v3602, %v3604
      %v3606 = vrot.slane %v3549, 2
      %v3607 = vsel %vm3600, %v3604, %v3606
      %v3608 = vrot.slane %v3550, 2
      %v3609 = vsel %vm3600, %v3606, %v3608
      %v3610 = vrot.slane %v3551, 2
      %v3611 = vsel %vm3600, %v3608, %v3610
      %v3612 = vrot.slane %v3552, 2
      %v3613 = vsel %vm3600, %v3610, %v3612
      %v3614 = vrot.slane %v3553, 2
      %v3615 = vsel %vm3600, %v3612, %v3614
      %v3616 = vrot.slane %v3554, 2
      %v3617 = vsel %vm3600, %v3614, %v3616
      %v3618 = vrot.slane %v3555, 2
      %v3619 = vsel %vm3600, %v3616, %v3618
      %v3645 = vunpack.c.l.b16 %v3574
      %v3646 = vunpack.c.h.b16 %v3574
      %v3647 = vunpack.c.l.b16 %v3575
      %v3648 = vunpack.c.h.b16 %v3575
      %v3649 = vunpack.c.l.b16 %v3576
      %v3650 = vunpack.c.h.b16 %v3576
      %v3651 = vunpack.c.l.b16 %v3577
      %v3652 = vunpack.c.h.b16 %v3577
      %v3653 = vunpack.c.l.b16 %v3578
      %v3654 = vunpack.c.h.b16 %v3578
      %v3655 = vunpack.c.l.b16 %v3579
      %v3656 = vunpack.c.h.b16 %v3579
      %v3657 = vunpack.c.l.b16 %v3580
      %v3658 = vunpack.c.h.b16 %v3580
      %v3659 = vunpack.c.l.b16 %v3581
      %v3660 = vunpack.c.h.b16 %v3581
      %v3661 = vunpack.c.l.b16 %v3582
      %v3662 = vunpack.c.h.b16 %v3582
      %v3663 = vunpack.c.l.b16 %v3583
      %v3664 = vunpack.c.h.b16 %v3583
      %v3665 = vunpack.c.l.b16 %v3584
      %v3666 = vunpack.c.h.b16 %v3584
      %v3667 = vunpack.c.l.b16 %v3585
      %v3668 = vunpack.c.h.b16 %v3585
      %v3669 = vunpack.c.l.b16 %v3586
      %v3670 = vunpack.c.h.b16 %v3586
      %v3671 = vunpack.c.l.b16 %v3587
      %v3672 = vunpack.c.h.b16 %v3587
      %v3673 = vunpack.c.l.b16 %v3588
      %v3674 = vunpack.c.h.b16 %v3588
      %v3675 = vunpack.c.l.b16 %v3589
      %v3676 = vunpack.c.h.b16 %v3589
      %v3677 = vpack.c.b16 %v3647, %v3645
      %v3678 = vpack.c.b16 %v3648, %v3646
      %v3679 = vpack.c.b16 %v3651, %v3649
      %v3680 = vpack.c.b16 %v3652, %v3650
      %v3681 = vpack.c.b16 %v3655, %v3653
      %v3682 = vpack.c.b16 %v3656, %v3654
      %v3683 = vpack.c.b16 %v3659, %v3657
      %v3684 = vpack.c.b16 %v3660, %v3658
      %v3685 = vpack.c.b16 %v3663, %v3661
      %v3686 = vpack.c.b16 %v3664, %v3662
      %v3687 = vpack.c.b16 %v3667, %v3665
      %v3688 = vpack.c.b16 %v3668, %v3666
      %v3689 = vpack.c.b16 %v3671, %v3669
      %v3690 = vpack.c.b16 %v3672, %v3670
      %v3691 = vpack.c.b16 %v3675, %v3673
      %v3692 = vpack.c.b16 %v3676, %v3674
      %3709 = vmatprep.subr.bf16.mxu0 %v3678
      %3710 = vmatpush1.bf16.msra.mxu0 %v3677
      %3711 = vmatprep.subr.bf16.mxu0 %v3680
      %3712 = vmatpush1.bf16.msra.mxu0 %v3679
      %3713 = vmatprep.subr.bf16.mxu0 %v3682
      %3714 = vmatpush1.bf16.msra.mxu0 %v3681
      %3715 = vmatprep.subr.bf16.mxu0 %v3684
      %3716 = vmatpush1.bf16.msra.mxu0 %v3683
      %3717 = vmatprep.subr.bf16.mxu0 %v3686
      %3718 = vmatpush1.bf16.msra.mxu0 %v3685
      %3719 = vmatprep.subr.bf16.mxu0 %v3688
      %3720 = vmatpush1.bf16.msra.mxu0 %v3687
      %3721 = vmatprep.subr.bf16.mxu0 %v3690
      %3722 = vmatpush1.bf16.msra.mxu0 %v3689
      %3723 = vmatprep.subr.bf16.mxu0 %v3692
      %3724 = vmatpush1.bf16.msra.mxu0 %v3691
      %3725 = vmatprep.subr.bf16.mxu0 0
      %3726 = vmatpush1.bf16.msra.mxu0 0
      %3727 = vmatprep.subr.bf16.mxu0 0
      %3728 = vmatpush1.bf16.msra.mxu0 0
      %3729 = vmatprep.subr.bf16.mxu0 0
      %3730 = vmatpush1.bf16.msra.mxu0 0
      %3731 = vmatprep.subr.bf16.mxu0 0
      %3732 = vmatpush1.bf16.msra.mxu0 0
      %3733 = vmatprep.subr.bf16.mxu0 0
      %3734 = vmatpush1.bf16.msra.mxu0 0
      %3735 = vmatprep.subr.bf16.mxu0 0
      %3736 = vmatpush1.bf16.msra.mxu0 0
      %3737 = vmatprep.subr.bf16.mxu0 0
      %3738 = vmatpush1.bf16.msra.mxu0 0
      %3739 = vmatprep.subr.bf16.mxu0 0
      %3740 = vmatpush1.bf16.msra.mxu0 0
      %3741 = vmatprep.mubr.bf16.mxu0 0
      %3742 = vmatmul.mubr.bf16.gmra.mrb[0].mxu0 %v3603
      %v3743 = vpop.f32.mrb[0].mxu0
      %v3744 = vadd.f32 0.0, %v3743
      %v3745 = vpop.f32.mrb[0].mxu0
      %v3746 = vadd.f32 0.0, %v3745
      %v3747 = vpop.f32.mrb[0].mxu0
      %v3748 = vadd.f32 0.0, %v3747
      %v3749 = vpop.f32.mrb[0].mxu0
      %v3750 = vadd.f32 0.0, %v3749
      %3751 = vmatprep.mubr.bf16.mxu0 0
      %3752 = vmatmul.mubr.bf16.gmra.mrb[0].mxu0 %v3605
      %v3753 = vpop.f32.mrb[0].mxu0
      %v3754 = vadd.f32 0.0, %v3753
      %v3755 = vpop.f32.mrb[0].mxu0
      %v3756 = vadd.f32 0.0, %v3755
      %v3757 = vpop.f32.mrb[0].mxu0
      %v3758 = vadd.f32 0.0, %v3757
      %v3759 = vpop.f32.mrb[0].mxu0
      %v3760 = vadd.f32 0.0, %v3759
      %3761 = vmatprep.mubr.bf16.mxu0 0
      %3762 = vmatmul.mubr.bf16.gmra.mrb[0].mxu0 %v3607
      %v3763 = vpop.f32.mrb[0].mxu0
      %v3764 = vadd.f32 0.0, %v3763
      %v3765 = vpop.f32.mrb[0].mxu0
      %v3766 = vadd.f32 0.0, %v3765
      %v3767 = vpop.f32.mrb[0].mxu0
      %v3768 = vadd.f32 0.0, %v3767
      %v3769 = vpop.f32.mrb[0].mxu0
      %v3770 = vadd.f32 0.0, %v3769
      %3771 = vmatprep.mubr.bf16.mxu0 0
      %3772 = vmatmul.mubr.bf16.gmra.mrb[0].mxu0 %v3609
      %v3773 = vpop.f32.mrb[0].mxu0
      %v3774 = vadd.f32 0.0, %v3773
      %v3775 = vpop.f32.mrb[0].mxu0
      %v3776 = vadd.f32 0.0, %v3775
      %v3777 = vpop.f32.mrb[0].mxu0
      %v3778 = vadd.f32 0.0, %v3777
      %v3779 = vpop.f32.mrb[0].mxu0
      %v3780 = vadd.f32 0.0, %v3779
      %3781 = vmatprep.mubr.bf16.mxu0 0
      %3782 = vmatmul.mubr.bf16.gmra.mrb[0].mxu0 %v3611
      %v3783 = vpop.f32.mrb[0].mxu0
      %v3784 = vadd.f32 0.0, %v3783
      %v3785 = vpop.f32.mrb[0].mxu0
      %v3786 = vadd.f32 0.0, %v3785
      %v3787 = vpop.f32.mrb[0].mxu0
      %v3788 = vadd.f32 0.0, %v3787
      %v3789 = vpop.f32.mrb[0].mxu0
      %v3790 = vadd.f32 0.0, %v3789
      %3791 = vmatprep.mubr.bf16.mxu0 0
      %3792 = vmatmul.mubr.bf16.gmra.mrb[0].mxu0 %v3613
      %v3793 = vpop.f32.mrb[0].mxu0
      %v3794 = vadd.f32 0.0, %v3793
      %v3795 = vpop.f32.mrb[0].mxu0
      %v3796 = vadd.f32 0.0, %v3795
      %v3797 = vpop.f32.mrb[0].mxu0
      %v3798 = vadd.f32 0.0, %v3797
      %v3799 = vpop.f32.mrb[0].mxu0
      %v3800 = vadd.f32 0.0, %v3799
      %3801 = vmatprep.mubr.bf16.mxu0 0
      %3802 = vmatmul.mubr.bf16.gmra.mrb[0].mxu0 %v3615
      %v3803 = vpop.f32.mrb[0].mxu0
      %v3804 = vadd.f32 0.0, %v3803
      %v3805 = vpop.f32.mrb[0].mxu0
      %v3806 = vadd.f32 0.0, %v3805
      %v3807 = vpop.f32.mrb[0].mxu0
      %v3808 = vadd.f32 0.0, %v3807
      %v3809 = vpop.f32.mrb[0].mxu0
      %v3810 = vadd.f32 0.0, %v3809
      %3811 = vmatprep.mubr.bf16.mxu0 0
      %3812 = vmatmul.mubr.bf16.gmra.mrb[0].mxu0 %v3617
      %v3813 = vpop.f32.mrb[0].mxu0
      %v3814 = vadd.f32 0.0, %v3813
      %v3815 = vpop.f32.mrb[0].mxu0
      %v3816 = vadd.f32 0.0, %v3815
      %v3817 = vpop.f32.mrb[0].mxu0
      %v3818 = vadd.f32 0.0, %v3817
      %v3819 = vpop.f32.mrb[0].mxu0
      %v3820 = vadd.f32 0.0, %v3819
      %3821 = vmatprep.mubr.bf16.mxu0 0
      %3822 = vmatmul.mubr.bf16.gmra.mrb[0].mxu0 %v3619
      %v3823 = vpop.f32.mrb[0].mxu0
      %v3824 = vadd.f32 0.0, %v3823
      %v3825 = vpop.f32.mrb[0].mxu0
      %v3826 = vadd.f32 0.0, %v3825
      %v3827 = vpop.f32.mrb[0].mxu0
      %v3828 = vadd.f32 0.0, %v3827
      %v3829 = vpop.f32.mrb[0].mxu0
      %v3830 = vadd.f32 0.0, %v3829
      %3831 = vdwg.mxu0
      %vm3832 = vsmask.f32 6400
      %v3834 = vshrl.u32 %v3546, 16
      %v3836 = vrot.slane %v3834, 1
      %v3837 = vshll.u32 %v3546, 16
      %v3839 = vrot.slane %v3837, 2
      %v3840 = vor.u32 %v3836, %v3839
      %v3842 = vshrl.u32 %v3547, 16
      %v3844 = vrot.slane %v3842, 1
      %v3845 = vshll.u32 %v3547, 16
      %v3847 = vrot.slane %v3845, 2
      %v3848 = vor.u32 %v3844, %v3847
      %v3849 = vsel %vm3832, %v3840, %v3848
      %v3851 = vshrl.u32 %v3548, 16
      %v3853 = vrot.slane %v3851, 1
      %v3854 = vshll.u32 %v3548, 16
      %v3856 = vrot.slane %v3854, 2
      %v3857 = vor.u32 %v3853, %v3856
      %v3858 = vsel %vm3832, %v3848, %v3857
      %v3860 = vshrl.u32 %v3549, 16
      %v3862 = vrot.slane %v3860, 1
      %v3863 = vshll.u32 %v3549, 16
      %v3865 = vrot.slane %v3863, 2
      %v3866 = vor.u32 %v3862, %v3865
      %v3867 = vsel %vm3832, %v3857, %v3866
      %v3869 = vshrl.u32 %v3550, 16
      %v3871 = vrot.slane %v3869, 1
      %v3872 = vshll.u32 %v3550, 16
      %v3874 = vrot.slane %v3872, 2
      %v3875 = vor.u32 %v3871, %v3874
      %v3876 = vsel %vm3832, %v3866, %v3875
      %v3878 = vshrl.u32 %v3551, 16
      %v3880 = vrot.slane %v3878, 1
      %v3881 = vshll.u32 %v3551, 16
      %v3883 = vrot.slane %v3881, 2
      %v3884 = vor.u32 %v3880, %v3883
      %v3885 = vsel %vm3832, %v3875, %v3884
      %v3887 = vshrl.u32 %v3552, 16
      %v3889 = vrot.slane %v3887, 1
      %v3890 = vshll.u32 %v3552, 16
      %v3892 = vrot.slane %v3890, 2
      %v3893 = vor.u32 %v3889, %v3892
      %v3894 = vsel %vm3832, %v3884, %v3893
      %v3896 = vshrl.u32 %v3553, 16
      %v3898 = vrot.slane %v3896, 1
      %v3899 = vshll.u32 %v3553, 16
      %v3901 = vrot.slane %v3899, 2
      %v3902 = vor.u32 %v3898, %v3901
      %v3903 = vsel %vm3832, %v3893, %v3902
      %v3905 = vshrl.u32 %v3554, 16
      %v3907 = vrot.slane %v3905, 1
      %v3908 = vshll.u32 %v3554, 16
      %v3910 = vrot.slane %v3908, 2
      %v3911 = vor.u32 %v3907, %v3910
      %v3912 = vsel %vm3832, %v3902, %v3911
      %v3914 = vshrl.u32 %v3555, 16
      %v3916 = vrot.slane %v3914, 1
      %v3917 = vshll.u32 %v3555, 16
      %v3919 = vrot.slane %v3917, 2
      %v3920 = vor.u32 %v3916, %v3919
      %v3921 = vsel %vm3832, %v3911, %v3920
      %v3947 = vunpack.c.l.b16 %v3557
      %v3948 = vunpack.c.h.b16 %v3557
      %v3949 = vunpack.c.l.b16 %v3558
      %v3950 = vunpack.c.h.b16 %v3558
      %v3951 = vunpack.c.l.b16 %v3559
      %v3952 = vunpack.c.h.b16 %v3559
      %v3953 = vunpack.c.l.b16 %v3560
      %v3954 = vunpack.c.h.b16 %v3560
      %v3955 = vunpack.c.l.b16 %v3561
      %v3956 = vunpack.c.h.b16 %v3561
      %v3957 = vunpack.c.l.b16 %v3562
      %v3958 = vunpack.c.h.b16 %v3562
      %v3959 = vunpack.c.l.b16 %v3563
      %v3960 = vunpack.c.h.b16 %v3563
      %v3961 = vunpack.c.l.b16 %v3564
      %v3962 = vunpack.c.h.b16 %v3564
      %v3963 = vunpack.c.l.b16 %v3565
      %v3964 = vunpack.c.h.b16 %v3565
      %v3965 = vunpack.c.l.b16 %v3566
      %v3966 = vunpack.c.h.b16 %v3566
      %v3967 = vunpack.c.l.b16 %v3567
      %v3968 = vunpack.c.h.b16 %v3567
      %v3969 = vunpack.c.l.b16 %v3568
      %v3970 = vunpack.c.h.b16 %v3568
      %v3971 = vunpack.c.l.b16 %v3569
      %v3972 = vunpack.c.h.b16 %v3569
      %v3973 = vunpack.c.l.b16 %v3570
      %v3974 = vunpack.c.h.b16 %v3570
      %v3975 = vunpack.c.l.b16 %v3571
      %v3976 = vunpack.c.h.b16 %v3571
      %v3977 = vunpack.c.l.b16 %v3572
      %v3978 = vunpack.c.h.b16 %v3572
      %v3979 = vpack.c.b16 %v3949, %v3947
      %v3980 = vpack.c.b16 %v3950, %v3948
      %v3981 = vpack.c.b16 %v3953, %v3951
      %v3982 = vpack.c.b16 %v3954, %v3952
      %v3983 = vpack.c.b16 %v3957, %v3955
      %v3984 = vpack.c.b16 %v3958, %v3956
      %v3985 = vpack.c.b16 %v3961, %v3959
      %v3986 = vpack.c.b16 %v3962, %v3960
      %v3987 = vpack.c.b16 %v3965, %v3963
      %v3988 = vpack.c.b16 %v3966, %v3964
      %v3989 = vpack.c.b16 %v3969, %v3967
      %v3990 = vpack.c.b16 %v3970, %v3968
      %v3991 = vpack.c.b16 %v3973, %v3971
      %v3992 = vpack.c.b16 %v3974, %v3972
      %v3993 = vpack.c.b16 %v3977, %v3975
      %v3994 = vpack.c.b16 %v3978, %v3976
      %4011 = vmatprep.subr.bf16.mxu0 %v3980
      %4012 = vmatpush1.bf16.msra.mxu0 %v3979
      %4013 = vmatprep.subr.bf16.mxu0 %v3982
      %4014 = vmatpush1.bf16.msra.mxu0 %v3981
      %4015 = vmatprep.subr.bf16.mxu0 %v3984
      %4016 = vmatpush1.bf16.msra.mxu0 %v3983
      %4017 = vmatprep.subr.bf16.mxu0 %v3986
      %4018 = vmatpush1.bf16.msra.mxu0 %v3985
      %4019 = vmatprep.subr.bf16.mxu0 %v3988
      %4020 = vmatpush1.bf16.msra.mxu0 %v3987
      %4021 = vmatprep.subr.bf16.mxu0 %v3990
      %4022 = vmatpush1.bf16.msra.mxu0 %v3989
      %4023 = vmatprep.subr.bf16.mxu0 %v3992
      %4024 = vmatpush1.bf16.msra.mxu0 %v3991
      %4025 = vmatprep.subr.bf16.mxu0 %v3994
      %4026 = vmatpush1.bf16.msra.mxu0 %v3993
      %4027 = vmatprep.subr.bf16.mxu0 0
      %4028 = vmatpush1.bf16.msra.mxu0 0
      %4029 = vmatprep.subr.bf16.mxu0 0
      %4030 = vmatpush1.bf16.msra.mxu0 0
      %4031 = vmatprep.subr.bf16.mxu0 0
      %4032 = vmatpush1.bf16.msra.mxu0 0
      %4033 = vmatprep.subr.bf16.mxu0 0
      %4034 = vmatpush1.bf16.msra.mxu0 0
      %4035 = vmatprep.subr.bf16.mxu0 0
      %4036 = vmatpush1.bf16.msra.mxu0 0
      %4037 = vmatprep.subr.bf16.mxu0 0
      %4038 = vmatpush1.bf16.msra.mxu0 0
      %4039 = vmatprep.subr.bf16.mxu0 0
      %4040 = vmatpush1.bf16.msra.mxu0 0
      %4041 = vmatprep.subr.bf16.mxu0 0
      %4042 = vmatpush1.bf16.msra.mxu0 0
      %4043 = vmatprep.mubr.bf16.mxu0 0
      %4044 = vmatmul.mubr.bf16.gmra.mrb[0].mxu0 %v3849
      %v4045 = vpop.f32.mrb[0].mxu0
      %v4046 = vadd.f32 %v3744, %v4045
      %v4047 = vpop.f32.mrb[0].mxu0
      %v4048 = vadd.f32 %v3746, %v4047
      %v4049 = vpop.f32.mrb[0].mxu0
      %v4050 = vadd.f32 %v3748, %v4049
      %v4051 = vpop.f32.mrb[0].mxu0
      %v4052 = vadd.f32 %v3750, %v4051
      %4053 = vmatprep.mubr.bf16.mxu0 0
      %4054 = vmatmul.mubr.bf16.gmra.mrb[0].mxu0 %v3858
      %v4055 = vpop.f32.mrb[0].mxu0
      %v4056 = vadd.f32 %v3754, %v4055
      %v4057 = vpop.f32.mrb[0].mxu0
      %v4058 = vadd.f32 %v3756, %v4057
      %v4059 = vpop.f32.mrb[0].mxu0
      %v4060 = vadd.f32 %v3758, %v4059
      %v4061 = vpop.f32.mrb[0].mxu0
      %v4062 = vadd.f32 %v3760, %v4061
      %4063 = vmatprep.mubr.bf16.mxu0 0
      %4064 = vmatmul.mubr.bf16.gmra.mrb[0].mxu0 %v3867
      %v4065 = vpop.f32.mrb[0].mxu0
      %v4066 = vadd.f32 %v3764, %v4065
      %v4067 = vpop.f32.mrb[0].mxu0
      %v4068 = vadd.f32 %v3766, %v4067
      %v4069 = vpop.f32.mrb[0].mxu0
      %v4070 = vadd.f32 %v3768, %v4069
      %v4071 = vpop.f32.mrb[0].mxu0
      %v4072 = vadd.f32 %v3770, %v4071
      %4073 = vmatprep.mubr.bf16.mxu0 0
      %4074 = vmatmul.mubr.bf16.gmra.mrb[0].mxu0 %v3876
      %v4075 = vpop.f32.mrb[0].mxu0
      %v4076 = vadd.f32 %v3774, %v4075
      %v4077 = vpop.f32.mrb[0].mxu0
      %v4078 = vadd.f32 %v3776, %v4077
      %v4079 = vpop.f32.mrb[0].mxu0
      %v4080 = vadd.f32 %v3778, %v4079
      %v4081 = vpop.f32.mrb[0].mxu0
      %v4082 = vadd.f32 %v3780, %v4081
      %4083 = vmatprep.mubr.bf16.mxu0 0
      %4084 = vmatmul.mubr.bf16.gmra.mrb[0].mxu0 %v3885
      %v4085 = vpop.f32.mrb[0].mxu0
      %v4086 = vadd.f32 %v3784, %v4085
      %v4087 = vpop.f32.mrb[0].mxu0
      %v4088 = vadd.f32 %v3786, %v4087
      %v4089 = vpop.f32.mrb[0].mxu0
      %v4090 = vadd.f32 %v3788, %v4089
      %v4091 = vpop.f32.mrb[0].mxu0
      %v4092 = vadd.f32 %v3790, %v4091
      %4093 = vmatprep.mubr.bf16.mxu0 0
      %4094 = vmatmul.mubr.bf16.gmra.mrb[0].mxu0 %v3894
      %v4095 = vpop.f32.mrb[0].mxu0
      %v4096 = vadd.f32 %v3794, %v4095
      %v4097 = vpop.f32.mrb[0].mxu0
      %v4098 = vadd.f32 %v3796, %v4097
      %v4099 = vpop.f32.mrb[0].mxu0
      %v4100 = vadd.f32 %v3798, %v4099
      %v4101 = vpop.f32.mrb[0].mxu0
      %v4102 = vadd.f32 %v3800, %v4101
      %4103 = vmatprep.mubr.bf16.mxu0 0
      %4104 = vmatmul.mubr.bf16.gmra.mrb[0].mxu0 %v3903
      %v4105 = vpop.f32.mrb[0].mxu0
      %v4106 = vadd.f32 %v3804, %v4105
      %v4107 = vpop.f32.mrb[0].mxu0
      %v4108 = vadd.f32 %v3806, %v4107
      %v4109 = vpop.f32.mrb[0].mxu0
      %v4110 = vadd.f32 %v3808, %v4109
      %v4111 = vpop.f32.mrb[0].mxu0
      %v4112 = vadd.f32 %v3810, %v4111
      %4113 = vmatprep.mubr.bf16.mxu0 0
      %4114 = vmatmul.mubr.bf16.gmra.mrb[0].mxu0 %v3912
      %v4115 = vpop.f32.mrb[0].mxu0
      %v4116 = vadd.f32 %v3814, %v4115
      %v4117 = vpop.f32.mrb[0].mxu0
      %v4118 = vadd.f32 %v3816, %v4117
      %v4119 = vpop.f32.mrb[0].mxu0
      %v4120 = vadd.f32 %v3818, %v4119
      %v4121 = vpop.f32.mrb[0].mxu0
      %v4122 = vadd.f32 %v3820, %v4121
      %4123 = vmatprep.mubr.bf16.mxu0 0
      %4124 = vmatmul.mubr.bf16.gmra.mrb[0].mxu0 %v3921
      %v4125 = vpop.f32.mrb[0].mxu0
      %v4126 = vadd.f32 %v3824, %v4125
      %v4127 = vpop.f32.mrb[0].mxu0
      %v4128 = vadd.f32 %v3826, %v4127
      %v4129 = vpop.f32.mrb[0].mxu0
      %v4130 = vadd.f32 %v3828, %v4129
      %v4131 = vpop.f32.mrb[0].mxu0
      %v4132 = vadd.f32 %v3830, %v4131
      %4133 = vdwg.mxu0
      %s4134 = scalar_lea.vmem %s2, 256
      %v4135 = vld [vmem:[%s4134] sm:$0xff]
      %v4136 = vld [vmem:[%s4134 + $0x8] sm:$0xff]
      %v4137 = vld [vmem:[%s4134 + $0x10] sm:$0xff]
      %v4138 = vld [vmem:[%s4134 + $0x18] sm:$0xff]
      %v4139 = vld [vmem:[%s4134 + $0x20] sm:$0xff]
      %v4140 = vld [vmem:[%s4134 + $0x28] sm:$0xff]
      %v4141 = vld [vmem:[%s4134 + $0x30] sm:$0xff]
      %v4142 = vld [vmem:[%s4134 + $0x38] sm:$0xff]
      %v4143 = vld [vmem:[%s4134 + $0x40] sm:$0xff]
      %v4144 = vld [vmem:[%s4134 + $0x48] sm:$0xff]
      %v4145 = vld [vmem:[%s4134 + $0x50] sm:$0xff]
      %v4146 = vld [vmem:[%s4134 + $0x58] sm:$0xff]
      %v4147 = vld [vmem:[%s4134 + $0x60] sm:$0xff]
      %v4148 = vld [vmem:[%s4134 + $0x68] sm:$0xff]
      %v4149 = vld [vmem:[%s4134 + $0x70] sm:$0xff]
      %v4150 = vld [vmem:[%s4134 + $0x78] sm:$0xff]
      %vm4151 = vsmask.f32 5376
      %v4152 = vrot.slane %v3834, 2
      %v4153 = vrot.slane %v3837, 3
      %v4154 = vor.u32 %v4152, %v4153
      %v4155 = vrot.slane %v3842, 2
      %v4156 = vrot.slane %v3845, 3
      %v4157 = vor.u32 %v4155, %v4156
      %v4158 = vsel %vm4151, %v4154, %v4157
      %v4159 = vrot.slane %v3851, 2
      %v4160 = vrot.slane %v3854, 3
      %v4161 = vor.u32 %v4159, %v4160
      %v4162 = vsel %vm4151, %v4157, %v4161
      %v4163 = vrot.slane %v3860, 2
      %v4164 = vrot.slane %v3863, 3
      %v4165 = vor.u32 %v4163, %v4164
      %v4166 = vsel %vm4151, %v4161, %v4165
      %v4167 = vrot.slane %v3869, 2
      %v4168 = vrot.slane %v3872, 3
      %v4169 = vor.u32 %v4167, %v4168
      %v4170 = vsel %vm4151, %v4165, %v4169
      %v4171 = vrot.slane %v3878, 2
      %v4172 = vrot.slane %v3881, 3
      %v4173 = vor.u32 %v4171, %v4172
      %v4174 = vsel %vm4151, %v4169, %v4173
      %v4175 = vrot.slane %v3887, 2
      %v4176 = vrot.slane %v3890, 3
      %v4177 = vor.u32 %v4175, %v4176
      %v4178 = vsel %vm4151, %v4173, %v4177
      %v4179 = vrot.slane %v3896, 2
      %v4180 = vrot.slane %v3899, 3
      %v4181 = vor.u32 %v4179, %v4180
      %v4182 = vsel %vm4151, %v4177, %v4181
      %v4183 = vrot.slane %v3905, 2
      %v4184 = vrot.slane %v3908, 3
      %v4185 = vor.u32 %v4183, %v4184
      %v4186 = vsel %vm4151, %v4181, %v4185
      %v4187 = vrot.slane %v3914, 2
      %v4188 = vrot.slane %v3917, 3
      %v4189 = vor.u32 %v4187, %v4188
      %v4190 = vsel %vm4151, %v4185, %v4189
      %v4216 = vunpack.c.l.b16 %v4135
      %v4217 = vunpack.c.h.b16 %v4135
      %v4218 = vunpack.c.l.b16 %v4136
      %v4219 = vunpack.c.h.b16 %v4136
      %v4220 = vunpack.c.l.b16 %v4137
      %v4221 = vunpack.c.h.b16 %v4137
      %v4222 = vunpack.c.l.b16 %v4138
      %v4223 = vunpack.c.h.b16 %v4138
      %v4224 = vunpack.c.l.b16 %v4139
      %v4225 = vunpack.c.h.b16 %v4139
      %v4226 = vunpack.c.l.b16 %v4140
      %v4227 = vunpack.c.h.b16 %v4140
      %v4228 = vunpack.c.l.b16 %v4141
      %v4229 = vunpack.c.h.b16 %v4141
      %v4230 = vunpack.c.l.b16 %v4142
      %v4231 = vunpack.c.h.b16 %v4142
      %v4232 = vunpack.c.l.b16 %v4143
      %v4233 = vunpack.c.h.b16 %v4143
      %v4234 = vunpack.c.l.b16 %v4144
      %v4235 = vunpack.c.h.b16 %v4144
      %v4236 = vunpack.c.l.b16 %v4145
      %v4237 = vunpack.c.h.b16 %v4145
      %v4238 = vunpack.c.l.b16 %v4146
      %v4239 = vunpack.c.h.b16 %v4146
      %v4240 = vunpack.c.l.b16 %v4147
      %v4241 = vunpack.c.h.b16 %v4147
      %v4242 = vunpack.c.l.b16 %v4148
      %v4243 = vunpack.c.h.b16 %v4148
      %v4244 = vunpack.c.l.b16 %v4149
      %v4245 = vunpack.c.h.b16 %v4149
      %v4246 = vunpack.c.l.b16 %v4150
      %v4247 = vunpack.c.h.b16 %v4150
      %v4248 = vpack.c.b16 %v4218, %v4216
      %v4249 = vpack.c.b16 %v4219, %v4217
      %v4250 = vpack.c.b16 %v4222, %v4220
      %v4251 = vpack.c.b16 %v4223, %v4221
      %v4252 = vpack.c.b16 %v4226, %v4224
      %v4253 = vpack.c.b16 %v4227, %v4225
      %v4254 = vpack.c.b16 %v4230, %v4228
      %v4255 = vpack.c.b16 %v4231, %v4229
      %v4256 = vpack.c.b16 %v4234, %v4232
      %v4257 = vpack.c.b16 %v4235, %v4233
      %v4258 = vpack.c.b16 %v4238, %v4236
      %v4259 = vpack.c.b16 %v4239, %v4237
      %v4260 = vpack.c.b16 %v4242, %v4240
      %v4261 = vpack.c.b16 %v4243, %v4241
      %v4262 = vpack.c.b16 %v4246, %v4244
      %v4263 = vpack.c.b16 %v4247, %v4245
      %4280 = vmatprep.subr.bf16.mxu0 %v4249
      %4281 = vmatpush1.bf16.msra.mxu0 %v4248
      %4282 = vmatprep.subr.bf16.mxu0 %v4251
      %4283 = vmatpush1.bf16.msra.mxu0 %v4250
      %4284 = vmatprep.subr.bf16.mxu0 %v4253
      %4285 = vmatpush1.bf16.msra.mxu0 %v4252
      %4286 = vmatprep.subr.bf16.mxu0 %v4255
      %4287 = vmatpush1.bf16.msra.mxu0 %v4254
      %4288 = vmatprep.subr.bf16.mxu0 %v4257
      %4289 = vmatpush1.bf16.msra.mxu0 %v4256
      %4290 = vmatprep.subr.bf16.mxu0 %v4259
      %4291 = vmatpush1.bf16.msra.mxu0 %v4258
      %4292 = vmatprep.subr.bf16.mxu0 %v4261
      %4293 = vmatpush1.bf16.msra.mxu0 %v4260
      %4294 = vmatprep.subr.bf16.mxu0 %v4263
      %4295 = vmatpush1.bf16.msra.mxu0 %v4262
      %4296 = vmatprep.subr.bf16.mxu0 0
      %4297 = vmatpush1.bf16.msra.mxu0 0
      %4298 = vmatprep.subr.bf16.mxu0 0
      %4299 = vmatpush1.bf16.msra.mxu0 0
      %4300 = vmatprep.subr.bf16.mxu0 0
      %4301 = vmatpush1.bf16.msra.mxu0 0
      %4302 = vmatprep.subr.bf16.mxu0 0
      %4303 = vmatpush1.bf16.msra.mxu0 0
      %4304 = vmatprep.subr.bf16.mxu0 0
      %4305 = vmatpush1.bf16.msra.mxu0 0
      %4306 = vmatprep.subr.bf16.mxu0 0
      %4307 = vmatpush1.bf16.msra.mxu0 0
      %4308 = vmatprep.subr.bf16.mxu0 0
      %4309 = vmatpush1.bf16.msra.mxu0 0
      %4310 = vmatprep.subr.bf16.mxu0 0
      %4311 = vmatpush1.bf16.msra.mxu0 0
      %4312 = vmatprep.mubr.bf16.mxu0 0
      %4313 = vmatmul.mubr.bf16.gmra.mrb[0].mxu0 %v4158
      %v4314 = vpop.f32.mrb[0].mxu0
      %v4315 = vadd.f32 0.0, %v4314
      %v4316 = vpop.f32.mrb[0].mxu0
      %v4317 = vadd.f32 0.0, %v4316
      %v4318 = vpop.f32.mrb[0].mxu0
      %v4319 = vadd.f32 0.0, %v4318
      %v4320 = vpop.f32.mrb[0].mxu0
      %v4321 = vadd.f32 0.0, %v4320
      %4322 = vmatprep.mubr.bf16.mxu0 0
      %4323 = vmatmul.mubr.bf16.gmra.mrb[0].mxu0 %v4162
      %v4324 = vpop.f32.mrb[0].mxu0
      %v4325 = vadd.f32 0.0, %v4324
      %v4326 = vpop.f32.mrb[0].mxu0
      %v4327 = vadd.f32 0.0, %v4326
      %v4328 = vpop.f32.mrb[0].mxu0
      %v4329 = vadd.f32 0.0, %v4328
      %v4330 = vpop.f32.mrb[0].mxu0
      %v4331 = vadd.f32 0.0, %v4330
      %4332 = vmatprep.mubr.bf16.mxu0 0
      %4333 = vmatmul.mubr.bf16.gmra.mrb[0].mxu0 %v4166
      %v4334 = vpop.f32.mrb[0].mxu0
      %v4335 = vadd.f32 0.0, %v4334
      %v4336 = vpop.f32.mrb[0].mxu0
      %v4337 = vadd.f32 0.0, %v4336
      %v4338 = vpop.f32.mrb[0].mxu0
      %v4339 = vadd.f32 0.0, %v4338
      %v4340 = vpop.f32.mrb[0].mxu0
      %v4341 = vadd.f32 0.0, %v4340
      %4342 = vmatprep.mubr.bf16.mxu0 0
      %4343 = vmatmul.mubr.bf16.gmra.mrb[0].mxu0 %v4170
      %v4344 = vpop.f32.mrb[0].mxu0
      %v4345 = vadd.f32 0.0, %v4344
      %v4346 = vpop.f32.mrb[0].mxu0
      %v4347 = vadd.f32 0.0, %v4346
      %v4348 = vpop.f32.mrb[0].mxu0
      %v4349 = vadd.f32 0.0, %v4348
      %v4350 = vpop.f32.mrb[0].mxu0
      %v4351 = vadd.f32 0.0, %v4350
      %4352 = vmatprep.mubr.bf16.mxu0 0
      %4353 = vmatmul.mubr.bf16.gmra.mrb[0].mxu0 %v4174
      %v4354 = vpop.f32.mrb[0].mxu0
      %v4355 = vadd.f32 0.0, %v4354
      %v4356 = vpop.f32.mrb[0].mxu0
      %v4357 = vadd.f32 0.0, %v4356
      %v4358 = vpop.f32.mrb[0].mxu0
      %v4359 = vadd.f32 0.0, %v4358
      %v4360 = vpop.f32.mrb[0].mxu0
      %v4361 = vadd.f32 0.0, %v4360
      %4362 = vmatprep.mubr.bf16.mxu0 0
      %4363 = vmatmul.mubr.bf16.gmra.mrb[0].mxu0 %v4178
      %v4364 = vpop.f32.mrb[0].mxu0
      %v4365 = vadd.f32 0.0, %v4364
      %v4366 = vpop.f32.mrb[0].mxu0
      %v4367 = vadd.f32 0.0, %v4366
      %v4368 = vpop.f32.mrb[0].mxu0
      %v4369 = vadd.f32 0.0, %v4368
      %v4370 = vpop.f32.mrb[0].mxu0
      %v4371 = vadd.f32 0.0, %v4370
      %4372 = vmatprep.mubr.bf16.mxu0 0
      %4373 = vmatmul.mubr.bf16.gmra.mrb[0].mxu0 %v4182
      %v4374 = vpop.f32.mrb[0].mxu0
      %v4375 = vadd.f32 0.0, %v4374
      %v4376 = vpop.f32.mrb[0].mxu0
      %v4377 = vadd.f32 0.0, %v4376
      %v4378 = vpop.f32.mrb[0].mxu0
      %v4379 = vadd.f32 0.0, %v4378
      %v4380 = vpop.f32.mrb[0].mxu0
      %v4381 = vadd.f32 0.0, %v4380
      %4382 = vmatprep.mubr.bf16.mxu0 0
      %4383 = vmatmul.mubr.bf16.gmra.mrb[0].mxu0 %v4186
      %v4384 = vpop.f32.mrb[0].mxu0
      %v4385 = vadd.f32 0.0, %v4384
      %v4386 = vpop.f32.mrb[0].mxu0
      %v4387 = vadd.f32 0.0, %v4386
      %v4388 = vpop.f32.mrb[0].mxu0
      %v4389 = vadd.f32 0.0, %v4388
      %v4390 = vpop.f32.mrb[0].mxu0
      %v4391 = vadd.f32 0.0, %v4390
      %4392 = vmatprep.mubr.bf16.mxu0 0
      %4393 = vmatmul.mubr.bf16.gmra.mrb[0].mxu0 %v4190
      %v4394 = vpop.f32.mrb[0].mxu0
      %v4395 = vadd.f32 0.0, %v4394
      %v4396 = vpop.f32.mrb[0].mxu0
      %v4397 = vadd.f32 0.0, %v4396
      %v4398 = vpop.f32.mrb[0].mxu0
      %v4399 = vadd.f32 0.0, %v4398
      %v4400 = vpop.f32.mrb[0].mxu0
      %v4401 = vadd.f32 0.0, %v4400
      %4402 = vdwg.mxu0
      %v4403 = vadd.f32 %v4046, %v4315
      %v4404 = vadd.f32 %v4048, %v4317
      %v4405 = vadd.f32 %v4050, %v4319
      %v4406 = vadd.f32 %v4052, %v4321
      %v4407 = vadd.f32 %v4056, %v4325
      %v4408 = vadd.f32 %v4058, %v4327
      %v4409 = vadd.f32 %v4060, %v4329
      %v4410 = vadd.f32 %v4062, %v4331
      %v4411 = vadd.f32 %v4066, %v4335
      %v4412 = vadd.f32 %v4068, %v4337
      %v4413 = vadd.f32 %v4070, %v4339
      %v4414 = vadd.f32 %v4072, %v4341
      %v4415 = vadd.f32 %v4076, %v4345
      %v4416 = vadd.f32 %v4078, %v4347
      %v4417 = vadd.f32 %v4080, %v4349
      %v4418 = vadd.f32 %v4082, %v4351
      %v4419 = vadd.f32 %v4086, %v4355
      %v4420 = vadd.f32 %v4088, %v4357
      %v4421 = vadd.f32 %v4090, %v4359
      %v4422 = vadd.f32 %v4092, %v4361
      %v4423 = vadd.f32 %v4096, %v4365
      %v4424 = vadd.f32 %v4098, %v4367
      %v4425 = vadd.f32 %v4100, %v4369
      %v4426 = vadd.f32 %v4102, %v4371
      %v4427 = vadd.f32 %v4106, %v4375
      %v4428 = vadd.f32 %v4108, %v4377
      %v4429 = vadd.f32 %v4110, %v4379
      %v4430 = vadd.f32 %v4112, %v4381
      %v4431 = vadd.f32 %v4116, %v4385
      %v4432 = vadd.f32 %v4118, %v4387
      %v4433 = vadd.f32 %v4120, %v4389
      %v4434 = vadd.f32 %v4122, %v4391
      %v4435 = vadd.f32 %v4126, %v4395
      %v4436 = vadd.f32 %v4128, %v4397
      %v4437 = vadd.f32 %v4130, %v4399
      %v4438 = vadd.f32 %v4132, %v4401
      %s4439 = scalar_lea.vmem %s2, 384
      %v4440 = vld [vmem:[%s4439] sm:$0xff]
      %v4441 = vld [vmem:[%s4439 + $0x8] sm:$0xff]
      %v4442 = vld [vmem:[%s4439 + $0x10] sm:$0xff]
      %v4443 = vld [vmem:[%s4439 + $0x18] sm:$0xff]
      %v4444 = vld [vmem:[%s4439 + $0x20] sm:$0xff]
      %v4445 = vld [vmem:[%s4439 + $0x28] sm:$0xff]
      %v4446 = vld [vmem:[%s4439 + $0x30] sm:$0xff]
      %v4447 = vld [vmem:[%s4439 + $0x38] sm:$0xff]
      %v4448 = vld [vmem:[%s4439 + $0x40] sm:$0xff]
      %v4449 = vld [vmem:[%s4439 + $0x48] sm:$0xff]
      %v4450 = vld [vmem:[%s4439 + $0x50] sm:$0xff]
      %v4451 = vld [vmem:[%s4439 + $0x58] sm:$0xff]
      %v4452 = vld [vmem:[%s4439 + $0x60] sm:$0xff]
      %v4453 = vld [vmem:[%s4439 + $0x68] sm:$0xff]
      %v4454 = vld [vmem:[%s4439 + $0x70] sm:$0xff]
      %v4455 = vld [vmem:[%s4439 + $0x78] sm:$0xff]
      %vm4456 = vsmask.f32 256
      %v4457 = vrot.slane %v3834, 7
      %v4458 = vrot.slane %v3842, 7
      %v4459 = vor.u32 %v4458, %v3845
      %v4460 = vsel %vm4456, %v4457, %v4459
      %v4461 = vrot.slane %v3851, 7
      %v4462 = vor.u32 %v4461, %v3854
      %v4463 = vsel %vm4456, %v4458, %v4462
      %v4464 = vrot.slane %v3860, 7
      %v4465 = vor.u32 %v4464, %v3863
      %v4466 = vsel %vm4456, %v4461, %v4465
      %v4467 = vrot.slane %v3869, 7
      %v4468 = vor.u32 %v4467, %v3872
      %v4469 = vsel %vm4456, %v4464, %v4468
      %v4470 = vrot.slane %v3878, 7
      %v4471 = vor.u32 %v4470, %v3881
      %v4472 = vsel %vm4456, %v4467, %v4471
      %v4473 = vrot.slane %v3887, 7
      %v4474 = vor.u32 %v4473, %v3890
      %v4475 = vsel %vm4456, %v4470, %v4474
      %v4476 = vrot.slane %v3896, 7
      %v4477 = vor.u32 %v4476, %v3899
      %v4478 = vsel %vm4456, %v4473, %v4477
      %v4479 = vrot.slane %v3905, 7
      %v4480 = vor.u32 %v4479, %v3908
      %v4481 = vsel %vm4456, %v4476, %v4480
      %v4482 = vrot.slane %v3914, 7
      %v4483 = vor.u32 %v4482, %v3917
      %v4484 = vsel %vm4456, %v4479, %v4483
      %v4510 = vunpack.c.l.b16 %v4440
      %v4511 = vunpack.c.h.b16 %v4440
      %v4512 = vunpack.c.l.b16 %v4441
      %v4513 = vunpack.c.h.b16 %v4441
      %v4514 = vunpack.c.l.b16 %v4442
      %v4515 = vunpack.c.h.b16 %v4442
      %v4516 = vunpack.c.l.b16 %v4443
      %v4517 = vunpack.c.h.b16 %v4443
      %v4518 = vunpack.c.l.b16 %v4444
      %v4519 = vunpack.c.h.b16 %v4444
      %v4520 = vunpack.c.l.b16 %v4445
      %v4521 = vunpack.c.h.b16 %v4445
      %v4522 = vunpack.c.l.b16 %v4446
      %v4523 = vunpack.c.h.b16 %v4446
      %v4524 = vunpack.c.l.b16 %v4447
      %v4525 = vunpack.c.h.b16 %v4447
      %v4526 = vunpack.c.l.b16 %v4448
      %v4527 = vunpack.c.h.b16 %v4448
      %v4528 = vunpack.c.l.b16 %v4449
      %v4529 = vunpack.c.h.b16 %v4449
      %v4530 = vunpack.c.l.b16 %v4450
      %v4531 = vunpack.c.h.b16 %v4450
      %v4532 = vunpack.c.l.b16 %v4451
      %v4533 = vunpack.c.h.b16 %v4451
      %v4534 = vunpack.c.l.b16 %v4452
      %v4535 = vunpack.c.h.b16 %v4452
      %v4536 = vunpack.c.l.b16 %v4453
      %v4537 = vunpack.c.h.b16 %v4453
      %v4538 = vunpack.c.l.b16 %v4454
      %v4539 = vunpack.c.h.b16 %v4454
      %v4540 = vunpack.c.l.b16 %v4455
      %v4541 = vunpack.c.h.b16 %v4455
      %v4542 = vpack.c.b16 %v4512, %v4510
      %v4543 = vpack.c.b16 %v4513, %v4511
      %v4544 = vpack.c.b16 %v4516, %v4514
      %v4545 = vpack.c.b16 %v4517, %v4515
      %v4546 = vpack.c.b16 %v4520, %v4518
      %v4547 = vpack.c.b16 %v4521, %v4519
      %v4548 = vpack.c.b16 %v4524, %v4522
      %v4549 = vpack.c.b16 %v4525, %v4523
      %v4550 = vpack.c.b16 %v4528, %v4526
      %v4551 = vpack.c.b16 %v4529, %v4527
      %v4552 = vpack.c.b16 %v4532, %v4530
      %v4553 = vpack.c.b16 %v4533, %v4531
      %v4554 = vpack.c.b16 %v4536, %v4534
      %v4555 = vpack.c.b16 %v4537, %v4535
      %v4556 = vpack.c.b16 %v4540, %v4538
      %v4557 = vpack.c.b16 %v4541, %v4539
      %4574 = vmatprep.subr.bf16.mxu0 %v4543
      %4575 = vmatpush1.bf16.msra.mxu0 %v4542
      %4576 = vmatprep.subr.bf16.mxu0 %v4545
      %4577 = vmatpush1.bf16.msra.mxu0 %v4544
      %4578 = vmatprep.subr.bf16.mxu0 %v4547
      %4579 = vmatpush1.bf16.msra.mxu0 %v4546
      %4580 = vmatprep.subr.bf16.mxu0 %v4549
      %4581 = vmatpush1.bf16.msra.mxu0 %v4548
      %4582 = vmatprep.subr.bf16.mxu0 %v4551
      %4583 = vmatpush1.bf16.msra.mxu0 %v4550
      %4584 = vmatprep.subr.bf16.mxu0 %v4553
      %4585 = vmatpush1.bf16.msra.mxu0 %v4552
      %4586 = vmatprep.subr.bf16.mxu0 %v4555
      %4587 = vmatpush1.bf16.msra.mxu0 %v4554
      %4588 = vmatprep.subr.bf16.mxu0 %v4557
      %4589 = vmatpush1.bf16.msra.mxu0 %v4556
      %4590 = vmatprep.subr.bf16.mxu0 0
      %4591 = vmatpush1.bf16.msra.mxu0 0
      %4592 = vmatprep.subr.bf16.mxu0 0
      %4593 = vmatpush1.bf16.msra.mxu0 0
      %4594 = vmatprep.subr.bf16.mxu0 0
      %4595 = vmatpush1.bf16.msra.mxu0 0
      %4596 = vmatprep.subr.bf16.mxu0 0
      %4597 = vmatpush1.bf16.msra.mxu0 0
      %4598 = vmatprep.subr.bf16.mxu0 0
      %4599 = vmatpush1.bf16.msra.mxu0 0
      %4600 = vmatprep.subr.bf16.mxu0 0
      %4601 = vmatpush1.bf16.msra.mxu0 0
      %4602 = vmatprep.subr.bf16.mxu0 0
      %4603 = vmatpush1.bf16.msra.mxu0 0
      %4604 = vmatprep.subr.bf16.mxu0 0
      %4605 = vmatpush1.bf16.msra.mxu0 0
      %4606 = vmatprep.mubr.bf16.mxu0 0
      %4607 = vmatmul.mubr.bf16.gmra.mrb[0].mxu0 %v4460
      %v4608 = vpop.f32.mrb[0].mxu0
      %v4609 = vadd.f32 0.0, %v4608
      %v4610 = vpop.f32.mrb[0].mxu0
      %v4611 = vadd.f32 0.0, %v4610
      %v4612 = vpop.f32.mrb[0].mxu0
      %v4613 = vadd.f32 0.0, %v4612
      %v4614 = vpop.f32.mrb[0].mxu0
      %v4615 = vadd.f32 0.0, %v4614
      %4616 = vmatprep.mubr.bf16.mxu0 0
      %4617 = vmatmul.mubr.bf16.gmra.mrb[0].mxu0 %v4463
      %v4618 = vpop.f32.mrb[0].mxu0
      %v4619 = vadd.f32 0.0, %v4618
      %v4620 = vpop.f32.mrb[0].mxu0
      %v4621 = vadd.f32 0.0, %v4620
      %v4622 = vpop.f32.mrb[0].mxu0
      %v4623 = vadd.f32 0.0, %v4622
      %v4624 = vpop.f32.mrb[0].mxu0
      %v4625 = vadd.f32 0.0, %v4624
      %4626 = vmatprep.mubr.bf16.mxu0 0
      %4627 = vmatmul.mubr.bf16.gmra.mrb[0].mxu0 %v4466
      %v4628 = vpop.f32.mrb[0].mxu0
      %v4629 = vadd.f32 0.0, %v4628
      %v4630 = vpop.f32.mrb[0].mxu0
      %v4631 = vadd.f32 0.0, %v4630
      %v4632 = vpop.f32.mrb[0].mxu0
      %v4633 = vadd.f32 0.0, %v4632
      %v4634 = vpop.f32.mrb[0].mxu0
      %v4635 = vadd.f32 0.0, %v4634
      %4636 = vmatprep.mubr.bf16.mxu0 0
      %4637 = vmatmul.mubr.bf16.gmra.mrb[0].mxu0 %v4469
      %v4638 = vpop.f32.mrb[0].mxu0
      %v4639 = vadd.f32 0.0, %v4638
      %v4640 = vpop.f32.mrb[0].mxu0
      %v4641 = vadd.f32 0.0, %v4640
      %v4642 = vpop.f32.mrb[0].mxu0
      %v4643 = vadd.f32 0.0, %v4642
      %v4644 = vpop.f32.mrb[0].mxu0
      %v4645 = vadd.f32 0.0, %v4644
      %4646 = vmatprep.mubr.bf16.mxu0 0
      %4647 = vmatmul.mubr.bf16.gmra.mrb[0].mxu0 %v4472
      %v4648 = vpop.f32.mrb[0].mxu0
      %v4649 = vadd.f32 0.0, %v4648
      %v4650 = vpop.f32.mrb[0].mxu0
      %v4651 = vadd.f32 0.0, %v4650
      %v4652 = vpop.f32.mrb[0].mxu0
      %v4653 = vadd.f32 0.0, %v4652
      %v4654 = vpop.f32.mrb[0].mxu0
      %v4655 = vadd.f32 0.0, %v4654
      %4656 = vmatprep.mubr.bf16.mxu0 0
      %4657 = vmatmul.mubr.bf16.gmra.mrb[0].mxu0 %v4475
      %v4658 = vpop.f32.mrb[0].mxu0
      %v4659 = vadd.f32 0.0, %v4658
      %v4660 = vpop.f32.mrb[0].mxu0
      %v4661 = vadd.f32 0.0, %v4660
      %v4662 = vpop.f32.mrb[0].mxu0
      %v4663 = vadd.f32 0.0, %v4662
      %v4664 = vpop.f32.mrb[0].mxu0
      %v4665 = vadd.f32 0.0, %v4664
      %4666 = vmatprep.mubr.bf16.mxu0 0
      %4667 = vmatmul.mubr.bf16.gmra.mrb[0].mxu0 %v4478
      %v4668 = vpop.f32.mrb[0].mxu0
      %v4669 = vadd.f32 0.0, %v4668
      %v4670 = vpop.f32.mrb[0].mxu0
      %v4671 = vadd.f32 0.0, %v4670
      %v4672 = vpop.f32.mrb[0].mxu0
      %v4673 = vadd.f32 0.0, %v4672
      %v4674 = vpop.f32.mrb[0].mxu0
      %v4675 = vadd.f32 0.0, %v4674
      %4676 = vmatprep.mubr.bf16.mxu0 0
      %4677 = vmatmul.mubr.bf16.gmra.mrb[0].mxu0 %v4481
      %v4678 = vpop.f32.mrb[0].mxu0
      %v4679 = vadd.f32 0.0, %v4678
      %v4680 = vpop.f32.mrb[0].mxu0
      %v4681 = vadd.f32 0.0, %v4680
      %v4682 = vpop.f32.mrb[0].mxu0
      %v4683 = vadd.f32 0.0, %v4682
      %v4684 = vpop.f32.mrb[0].mxu0
      %v4685 = vadd.f32 0.0, %v4684
      %4686 = vmatprep.mubr.bf16.mxu0 0
      %4687 = vmatmul.mubr.bf16.gmra.mrb[0].mxu0 %v4484
      %v4688 = vpop.f32.mrb[0].mxu0
      %v4689 = vadd.f32 0.0, %v4688
      %v4690 = vpop.f32.mrb[0].mxu0
      %v4691 = vadd.f32 0.0, %v4690
      %v4692 = vpop.f32.mrb[0].mxu0
      %v4693 = vadd.f32 0.0, %v4692
      %v4694 = vpop.f32.mrb[0].mxu0
      %v4695 = vadd.f32 0.0, %v4694
      %4696 = vdwg.mxu0
      %v4697 = vadd.f32 %v4403, %v4609
      %v4698 = vadd.f32 %v4404, %v4611
      %v4699 = vadd.f32 %v4405, %v4613
      %v4700 = vadd.f32 %v4406, %v4615
      %v4701 = vadd.f32 %v4407, %v4619
      %v4702 = vadd.f32 %v4408, %v4621
      %v4703 = vadd.f32 %v4409, %v4623
      %v4704 = vadd.f32 %v4410, %v4625
      %v4705 = vadd.f32 %v4411, %v4629
      %v4706 = vadd.f32 %v4412, %v4631
      %v4707 = vadd.f32 %v4413, %v4633
      %v4708 = vadd.f32 %v4414, %v4635
      %v4709 = vadd.f32 %v4415, %v4639
      %v4710 = vadd.f32 %v4416, %v4641
      %v4711 = vadd.f32 %v4417, %v4643
      %v4712 = vadd.f32 %v4418, %v4645
      %v4713 = vadd.f32 %v4419, %v4649
      %v4714 = vadd.f32 %v4420, %v4651
      %v4715 = vadd.f32 %v4421, %v4653
      %v4716 = vadd.f32 %v4422, %v4655
      %v4717 = vadd.f32 %v4423, %v4659
      %v4718 = vadd.f32 %v4424, %v4661
      %v4719 = vadd.f32 %v4425, %v4663
      %v4720 = vadd.f32 %v4426, %v4665
      %v4721 = vadd.f32 %v4427, %v4669
      %v4722 = vadd.f32 %v4428, %v4671
      %v4723 = vadd.f32 %v4429, %v4673
      %v4724 = vadd.f32 %v4430, %v4675
      %v4725 = vadd.f32 %v4431, %v4679
      %v4726 = vadd.f32 %v4432, %v4681
      %v4727 = vadd.f32 %v4433, %v4683
      %v4728 = vadd.f32 %v4434, %v4685
      %v4729 = vadd.f32 %v4435, %v4689
      %v4730 = vadd.f32 %v4436, %v4691
      %v4731 = vadd.f32 %v4437, %v4693
      %v4732 = vadd.f32 %v4438, %v4695
      %s4733 = scalar_lea.vmem %s2, 512
      %v4734 = vld [vmem:[%s4733] sm:$0xff]
      %v4735 = vld [vmem:[%s4733 + $0x8] sm:$0xff]
      %v4736 = vld [vmem:[%s4733 + $0x10] sm:$0xff]
      %v4737 = vld [vmem:[%s4733 + $0x18] sm:$0xff]
      %v4738 = vld [vmem:[%s4733 + $0x20] sm:$0xff]
      %v4739 = vld [vmem:[%s4733 + $0x28] sm:$0xff]
      %v4740 = vld [vmem:[%s4733 + $0x30] sm:$0xff]
      %v4741 = vld [vmem:[%s4733 + $0x38] sm:$0xff]
      %v4742 = vld [vmem:[%s4733 + $0x40] sm:$0xff]
      %v4743 = vld [vmem:[%s4733 + $0x48] sm:$0xff]
      %v4744 = vld [vmem:[%s4733 + $0x50] sm:$0xff]
      %v4745 = vld [vmem:[%s4733 + $0x58] sm:$0xff]
      %v4746 = vld [vmem:[%s4733 + $0x60] sm:$0xff]
      %v4747 = vld [vmem:[%s4733 + $0x68] sm:$0xff]
      %v4748 = vld [vmem:[%s4733 + $0x70] sm:$0xff]
      %v4749 = vld [vmem:[%s4733 + $0x78] sm:$0xff]
      %v4766 = vunpack.c.l.b16 %v4734
      %v4767 = vunpack.c.h.b16 %v4734
      %v4768 = vunpack.c.l.b16 %v4735
      %v4769 = vunpack.c.h.b16 %v4735
      %v4770 = vunpack.c.l.b16 %v4736
      %v4771 = vunpack.c.h.b16 %v4736
      %v4772 = vunpack.c.l.b16 %v4737
      %v4773 = vunpack.c.h.b16 %v4737
      %v4774 = vunpack.c.l.b16 %v4738
      %v4775 = vunpack.c.h.b16 %v4738
      %v4776 = vunpack.c.l.b16 %v4739
      %v4777 = vunpack.c.h.b16 %v4739
      %v4778 = vunpack.c.l.b16 %v4740
      %v4779 = vunpack.c.h.b16 %v4740
      %v4780 = vunpack.c.l.b16 %v4741
      %v4781 = vunpack.c.h.b16 %v4741
      %v4782 = vunpack.c.l.b16 %v4742
      %v4783 = vunpack.c.h.b16 %v4742
      %v4784 = vunpack.c.l.b16 %v4743
      %v4785 = vunpack.c.h.b16 %v4743
      %v4786 = vunpack.c.l.b16 %v4744
      %v4787 = vunpack.c.h.b16 %v4744
      %v4788 = vunpack.c.l.b16 %v4745
      %v4789 = vunpack.c.h.b16 %v4745
      %v4790 = vunpack.c.l.b16 %v4746
      %v4791 = vunpack.c.h.b16 %v4746
      %v4792 = vunpack.c.l.b16 %v4747
      %v4793 = vunpack.c.h.b16 %v4747
      %v4794 = vunpack.c.l.b16 %v4748
      %v4795 = vunpack.c.h.b16 %v4748
      %v4796 = vunpack.c.l.b16 %v4749
      %v4797 = vunpack.c.h.b16 %v4749
      %v4798 = vpack.c.b16 %v4768, %v4766
      %v4799 = vpack.c.b16 %v4769, %v4767
      %v4800 = vpack.c.b16 %v4772, %v4770
      %v4801 = vpack.c.b16 %v4773, %v4771
      %v4802 = vpack.c.b16 %v4776, %v4774
      %v4803 = vpack.c.b16 %v4777, %v4775
      %v4804 = vpack.c.b16 %v4780, %v4778
      %v4805 = vpack.c.b16 %v4781, %v4779
      %v4806 = vpack.c.b16 %v4784, %v4782
      %v4807 = vpack.c.b16 %v4785, %v4783
      %v4808 = vpack.c.b16 %v4788, %v4786
      %v4809 = vpack.c.b16 %v4789, %v4787
      %v4810 = vpack.c.b16 %v4792, %v4790
      %v4811 = vpack.c.b16 %v4793, %v4791
      %v4812 = vpack.c.b16 %v4796, %v4794
      %v4813 = vpack.c.b16 %v4797, %v4795
      %4830 = vmatprep.subr.bf16.mxu0 %v4799
      %4831 = vmatpush1.bf16.msra.mxu0 %v4798
      %4832 = vmatprep.subr.bf16.mxu0 %v4801
      %4833 = vmatpush1.bf16.msra.mxu0 %v4800
      %4834 = vmatprep.subr.bf16.mxu0 %v4803
      %4835 = vmatpush1.bf16.msra.mxu0 %v4802
      %4836 = vmatprep.subr.bf16.mxu0 %v4805
      %4837 = vmatpush1.bf16.msra.mxu0 %v4804
      %4838 = vmatprep.subr.bf16.mxu0 %v4807
      %4839 = vmatpush1.bf16.msra.mxu0 %v4806
      %4840 = vmatprep.subr.bf16.mxu0 %v4809
      %4841 = vmatpush1.bf16.msra.mxu0 %v4808
      %4842 = vmatprep.subr.bf16.mxu0 %v4811
      %4843 = vmatpush1.bf16.msra.mxu0 %v4810
      %4844 = vmatprep.subr.bf16.mxu0 %v4813
      %4845 = vmatpush1.bf16.msra.mxu0 %v4812
      %4846 = vmatprep.subr.bf16.mxu0 0
      %4847 = vmatpush1.bf16.msra.mxu0 0
      %4848 = vmatprep.subr.bf16.mxu0 0
      %4849 = vmatpush1.bf16.msra.mxu0 0
      %4850 = vmatprep.subr.bf16.mxu0 0
      %4851 = vmatpush1.bf16.msra.mxu0 0
      %4852 = vmatprep.subr.bf16.mxu0 0
      %4853 = vmatpush1.bf16.msra.mxu0 0
      %4854 = vmatprep.subr.bf16.mxu0 0
      %4855 = vmatpush1.bf16.msra.mxu0 0
      %4856 = vmatprep.subr.bf16.mxu0 0
      %4857 = vmatpush1.bf16.msra.mxu0 0
      %4858 = vmatprep.subr.bf16.mxu0 0
      %4859 = vmatpush1.bf16.msra.mxu0 0
      %4860 = vmatprep.subr.bf16.mxu0 0
      %4861 = vmatpush1.bf16.msra.mxu0 0
      %4862 = vmatprep.mubr.bf16.mxu0 0
      %4863 = vmatmul.mubr.bf16.gmra.mrb[0].mxu0 %v3547
      %v4864 = vpop.f32.mrb[0].mxu0
      %v4865 = vadd.f32 0.0, %v4864
      %v4866 = vpop.f32.mrb[0].mxu0
      %v4867 = vadd.f32 0.0, %v4866
      %v4868 = vpop.f32.mrb[0].mxu0
      %v4869 = vadd.f32 0.0, %v4868
      %v4870 = vpop.f32.mrb[0].mxu0
      %v4871 = vadd.f32 0.0, %v4870
      %4872 = vmatprep.mubr.bf16.mxu0 0
      %4873 = vmatmul.mubr.bf16.gmra.mrb[0].mxu0 %v3548
      %v4874 = vpop.f32.mrb[0].mxu0
      %v4875 = vadd.f32 0.0, %v4874
      %v4876 = vpop.f32.mrb[0].mxu0
      %v4877 = vadd.f32 0.0, %v4876
      %v4878 = vpop.f32.mrb[0].mxu0
      %v4879 = vadd.f32 0.0, %v4878
      %v4880 = vpop.f32.mrb[0].mxu0
      %v4881 = vadd.f32 0.0, %v4880
      %4882 = vmatprep.mubr.bf16.mxu0 0
      %4883 = vmatmul.mubr.bf16.gmra.mrb[0].mxu0 %v3549
      %v4884 = vpop.f32.mrb[0].mxu0
      %v4885 = vadd.f32 0.0, %v4884
      %v4886 = vpop.f32.mrb[0].mxu0
      %v4887 = vadd.f32 0.0, %v4886
      %v4888 = vpop.f32.mrb[0].mxu0
      %v4889 = vadd.f32 0.0, %v4888
      %v4890 = vpop.f32.mrb[0].mxu0
      %v4891 = vadd.f32 0.0, %v4890
      %4892 = vmatprep.mubr.bf16.mxu0 0
      %4893 = vmatmul.mubr.bf16.gmra.mrb[0].mxu0 %v3550
      %v4894 = vpop.f32.mrb[0].mxu0
      %v4895 = vadd.f32 0.0, %v4894
      %v4896 = vpop.f32.mrb[0].mxu0
      %v4897 = vadd.f32 0.0, %v4896
      %v4898 = vpop.f32.mrb[0].mxu0
      %v4899 = vadd.f32 0.0, %v4898
      %v4900 = vpop.f32.mrb[0].mxu0
      %v4901 = vadd.f32 0.0, %v4900
      %4902 = vmatprep.mubr.bf16.mxu0 0
      %4903 = vmatmul.mubr.bf16.gmra.mrb[0].mxu0 %v3551
      %v4904 = vpop.f32.mrb[0].mxu0
      %v4905 = vadd.f32 0.0, %v4904
      %v4906 = vpop.f32.mrb[0].mxu0
      %v4907 = vadd.f32 0.0, %v4906
      %v4908 = vpop.f32.mrb[0].mxu0
      %v4909 = vadd.f32 0.0, %v4908
      %v4910 = vpop.f32.mrb[0].mxu0
      %v4911 = vadd.f32 0.0, %v4910
      %4912 = vmatprep.mubr.bf16.mxu0 0
      %4913 = vmatmul.mubr.bf16.gmra.mrb[0].mxu0 %v3552
      %v4914 = vpop.f32.mrb[0].mxu0
      %v4915 = vadd.f32 0.0, %v4914
      %v4916 = vpop.f32.mrb[0].mxu0
      %v4917 = vadd.f32 0.0, %v4916
      %v4918 = vpop.f32.mrb[0].mxu0
      %v4919 = vadd.f32 0.0, %v4918
      %v4920 = vpop.f32.mrb[0].mxu0
      %v4921 = vadd.f32 0.0, %v4920
      %4922 = vmatprep.mubr.bf16.mxu0 0
      %4923 = vmatmul.mubr.bf16.gmra.mrb[0].mxu0 %v3553
      %v4924 = vpop.f32.mrb[0].mxu0
      %v4925 = vadd.f32 0.0, %v4924
      %v4926 = vpop.f32.mrb[0].mxu0
      %v4927 = vadd.f32 0.0, %v4926
      %v4928 = vpop.f32.mrb[0].mxu0
      %v4929 = vadd.f32 0.0, %v4928
      %v4930 = vpop.f32.mrb[0].mxu0
      %v4931 = vadd.f32 0.0, %v4930
      %4932 = vmatprep.mubr.bf16.mxu0 0
      %4933 = vmatmul.mubr.bf16.gmra.mrb[0].mxu0 %v3554
      %v4934 = vpop.f32.mrb[0].mxu0
      %v4935 = vadd.f32 0.0, %v4934
      %v4936 = vpop.f32.mrb[0].mxu0
      %v4937 = vadd.f32 0.0, %v4936
      %v4938 = vpop.f32.mrb[0].mxu0
      %v4939 = vadd.f32 0.0, %v4938
      %v4940 = vpop.f32.mrb[0].mxu0
      %v4941 = vadd.f32 0.0, %v4940
      %4942 = vmatprep.mubr.bf16.mxu0 0
      %4943 = vmatmul.mubr.bf16.gmra.mrb[0].mxu0 %v3555
      %v4944 = vpop.f32.mrb[0].mxu0
      %v4945 = vadd.f32 0.0, %v4944
      %v4946 = vpop.f32.mrb[0].mxu0
      %v4947 = vadd.f32 0.0, %v4946
      %v4948 = vpop.f32.mrb[0].mxu0
      %v4949 = vadd.f32 0.0, %v4948
      %v4950 = vpop.f32.mrb[0].mxu0
      %v4951 = vadd.f32 0.0, %v4950
      %4952 = vdwg.mxu0
      %v4953 = vadd.f32 %v4697, %v4865
      %v4954 = vadd.f32 %v4698, %v4867
      %v4955 = vadd.f32 %v4699, %v4869
      %v4956 = vadd.f32 %v4700, %v4871
      %v4957 = vadd.f32 %v4701, %v4875
      %v4958 = vadd.f32 %v4702, %v4877
      %v4959 = vadd.f32 %v4703, %v4879
      %v4960 = vadd.f32 %v4704, %v4881
      %v4961 = vadd.f32 %v4705, %v4885
      %v4962 = vadd.f32 %v4706, %v4887
      %v4963 = vadd.f32 %v4707, %v4889
      %v4964 = vadd.f32 %v4708, %v4891
      %v4965 = vadd.f32 %v4709, %v4895
      %v4966 = vadd.f32 %v4710, %v4897
      %v4967 = vadd.f32 %v4711, %v4899
      %v4968 = vadd.f32 %v4712, %v4901
      %v4969 = vadd.f32 %v4713, %v4905
      %v4970 = vadd.f32 %v4714, %v4907
      %v4971 = vadd.f32 %v4715, %v4909
      %v4972 = vadd.f32 %v4716, %v4911
      %v4973 = vadd.f32 %v4717, %v4915
      %v4974 = vadd.f32 %v4718, %v4917
      %v4975 = vadd.f32 %v4719, %v4919
      %v4976 = vadd.f32 %v4720, %v4921
      %v4977 = vadd.f32 %v4721, %v4925
      %v4978 = vadd.f32 %v4722, %v4927
      %v4979 = vadd.f32 %v4723, %v4929
      %v4980 = vadd.f32 %v4724, %v4931
      %v4981 = vadd.f32 %v4725, %v4935
      %v4982 = vadd.f32 %v4726, %v4937
      %v4983 = vadd.f32 %v4727, %v4939
      %v4984 = vadd.f32 %v4728, %v4941
      %v4985 = vadd.f32 %v4729, %v4945
      %v4986 = vadd.f32 %v4730, %v4947
      %v4987 = vadd.f32 %v4731, %v4949
      %v4988 = vadd.f32 %v4732, %v4951
      %s4989 = scalar_lea.vmem %s2, 640
      %v4990 = vld [vmem:[%s4989] sm:$0xff]
      %v4991 = vld [vmem:[%s4989 + $0x8] sm:$0xff]
      %v4992 = vld [vmem:[%s4989 + $0x10] sm:$0xff]
      %v4993 = vld [vmem:[%s4989 + $0x18] sm:$0xff]
      %v4994 = vld [vmem:[%s4989 + $0x20] sm:$0xff]
      %v4995 = vld [vmem:[%s4989 + $0x28] sm:$0xff]
      %v4996 = vld [vmem:[%s4989 + $0x30] sm:$0xff]
      %v4997 = vld [vmem:[%s4989 + $0x38] sm:$0xff]
      %v4998 = vld [vmem:[%s4989 + $0x40] sm:$0xff]
      %v4999 = vld [vmem:[%s4989 + $0x48] sm:$0xff]
      %v5000 = vld [vmem:[%s4989 + $0x50] sm:$0xff]
      %v5001 = vld [vmem:[%s4989 + $0x58] sm:$0xff]
      %v5002 = vld [vmem:[%s4989 + $0x60] sm:$0xff]
      %v5003 = vld [vmem:[%s4989 + $0x68] sm:$0xff]
      %v5004 = vld [vmem:[%s4989 + $0x70] sm:$0xff]
      %v5005 = vld [vmem:[%s4989 + $0x78] sm:$0xff]
      %vm5006 = vsmask.f32 7424
      %v5007 = vrot.slane %v3845, 1
      %v5008 = vor.u32 %v3842, %v5007
      %v5009 = vrot.slane %v3854, 1
      %v5010 = vsel %vm5006, %v5008, %v5009
      %v5011 = vor.u32 %v3851, %v5009
      %v5012 = vrot.slane %v3863, 1
      %v5013 = vsel %vm5006, %v5011, %v5012
      %v5014 = vor.u32 %v3860, %v5012
      %v5015 = vrot.slane %v3872, 1
      %v5016 = vsel %vm5006, %v5014, %v5015
      %v5017 = vor.u32 %v3869, %v5015
      %v5018 = vrot.slane %v3881, 1
      %v5019 = vsel %vm5006, %v5017, %v5018
      %v5020 = vor.u32 %v3878, %v5018
      %v5021 = vrot.slane %v3890, 1
      %v5022 = vsel %vm5006, %v5020, %v5021
      %v5023 = vor.u32 %v3887, %v5021
      %v5024 = vrot.slane %v3899, 1
      %v5025 = vsel %vm5006, %v5023, %v5024
      %v5026 = vor.u32 %v3896, %v5024
      %v5027 = vrot.slane %v3908, 1
      %v5028 = vsel %vm5006, %v5026, %v5027
      %v5029 = vor.u32 %v3905, %v5027
      %v5030 = vrot.slane %v3917, 1
      %v5031 = vsel %vm5006, %v5029, %v5030
      %v5032 = vor.u32 %v3914, %v5030
      %v5034 = vshll.u32 %v3556, 16
      %v5036 = vrot.slane %v5034, 1
      %v5037 = vsel %vm5006, %v5032, %v5036
      %v5063 = vunpack.c.l.b16 %v4990
      %v5064 = vunpack.c.h.b16 %v4990
      %v5065 = vunpack.c.l.b16 %v4991
      %v5066 = vunpack.c.h.b16 %v4991
      %v5067 = vunpack.c.l.b16 %v4992
      %v5068 = vunpack.c.h.b16 %v4992
      %v5069 = vunpack.c.l.b16 %v4993
      %v5070 = vunpack.c.h.b16 %v4993
      %v5071 = vunpack.c.l.b16 %v4994
      %v5072 = vunpack.c.h.b16 %v4994
      %v5073 = vunpack.c.l.b16 %v4995
      %v5074 = vunpack.c.h.b16 %v4995
      %v5075 = vunpack.c.l.b16 %v4996
      %v5076 = vunpack.c.h.b16 %v4996
      %v5077 = vunpack.c.l.b16 %v4997
      %v5078 = vunpack.c.h.b16 %v4997
      %v5079 = vunpack.c.l.b16 %v4998
      %v5080 = vunpack.c.h.b16 %v4998
      %v5081 = vunpack.c.l.b16 %v4999
      %v5082 = vunpack.c.h.b16 %v4999
      %v5083 = vunpack.c.l.b16 %v5000
      %v5084 = vunpack.c.h.b16 %v5000
      %v5085 = vunpack.c.l.b16 %v5001
      %v5086 = vunpack.c.h.b16 %v5001
      %v5087 = vunpack.c.l.b16 %v5002
      %v5088 = vunpack.c.h.b16 %v5002
      %v5089 = vunpack.c.l.b16 %v5003
      %v5090 = vunpack.c.h.b16 %v5003
      %v5091 = vunpack.c.l.b16 %v5004
      %v5092 = vunpack.c.h.b16 %v5004
      %v5093 = vunpack.c.l.b16 %v5005
      %v5094 = vunpack.c.h.b16 %v5005
      %v5095 = vpack.c.b16 %v5065, %v5063
      %v5096 = vpack.c.b16 %v5066, %v5064
      %v5097 = vpack.c.b16 %v5069, %v5067
      %v5098 = vpack.c.b16 %v5070, %v5068
      %v5099 = vpack.c.b16 %v5073, %v5071
      %v5100 = vpack.c.b16 %v5074, %v5072
      %v5101 = vpack.c.b16 %v5077, %v5075
      %v5102 = vpack.c.b16 %v5078, %v5076
      %v5103 = vpack.c.b16 %v5081, %v5079
      %v5104 = vpack.c.b16 %v5082, %v5080
      %v5105 = vpack.c.b16 %v5085, %v5083
      %v5106 = vpack.c.b16 %v5086, %v5084
      %v5107 = vpack.c.b16 %v5089, %v5087
      %v5108 = vpack.c.b16 %v5090, %v5088
      %v5109 = vpack.c.b16 %v5093, %v5091
      %v5110 = vpack.c.b16 %v5094, %v5092
      %5127 = vmatprep.subr.bf16.mxu0 %v5096
      %5128 = vmatpush1.bf16.msra.mxu0 %v5095
      %5129 = vmatprep.subr.bf16.mxu0 %v5098
      %5130 = vmatpush1.bf16.msra.mxu0 %v5097
      %5131 = vmatprep.subr.bf16.mxu0 %v5100
      %5132 = vmatpush1.bf16.msra.mxu0 %v5099
      %5133 = vmatprep.subr.bf16.mxu0 %v5102
      %5134 = vmatpush1.bf16.msra.mxu0 %v5101
      %5135 = vmatprep.subr.bf16.mxu0 %v5104
      %5136 = vmatpush1.bf16.msra.mxu0 %v5103
      %5137 = vmatprep.subr.bf16.mxu0 %v5106
      %5138 = vmatpush1.bf16.msra.mxu0 %v5105
      %5139 = vmatprep.subr.bf16.mxu0 %v5108
      %5140 = vmatpush1.bf16.msra.mxu0 %v5107
      %5141 = vmatprep.subr.bf16.mxu0 %v5110
      %5142 = vmatpush1.bf16.msra.mxu0 %v5109
      %5143 = vmatprep.subr.bf16.mxu0 0
      %5144 = vmatpush1.bf16.msra.mxu0 0
      %5145 = vmatprep.subr.bf16.mxu0 0
      %5146 = vmatpush1.bf16.msra.mxu0 0
      %5147 = vmatprep.subr.bf16.mxu0 0
      %5148 = vmatpush1.bf16.msra.mxu0 0
      %5149 = vmatprep.subr.bf16.mxu0 0
      %5150 = vmatpush1.bf16.msra.mxu0 0
      %5151 = vmatprep.subr.bf16.mxu0 0
      %5152 = vmatpush1.bf16.msra.mxu0 0
      %5153 = vmatprep.subr.bf16.mxu0 0
      %5154 = vmatpush1.bf16.msra.mxu0 0
      %5155 = vmatprep.subr.bf16.mxu0 0
      %5156 = vmatpush1.bf16.msra.mxu0 0
      %5157 = vmatprep.subr.bf16.mxu0 0
      %5158 = vmatpush1.bf16.msra.mxu0 0
      %5159 = vmatprep.mubr.bf16.mxu0 0
      %5160 = vmatmul.mubr.bf16.gmra.mrb[0].mxu0 %v5010
      %v5161 = vpop.f32.mrb[0].mxu0
      %v5162 = vadd.f32 0.0, %v5161
      %v5163 = vpop.f32.mrb[0].mxu0
      %v5164 = vadd.f32 0.0, %v5163
      %v5165 = vpop.f32.mrb[0].mxu0
      %v5166 = vadd.f32 0.0, %v5165
      %v5167 = vpop.f32.mrb[0].mxu0
      %v5168 = vadd.f32 0.0, %v5167
      %5169 = vmatprep.mubr.bf16.mxu0 0
      %5170 = vmatmul.mubr.bf16.gmra.mrb[0].mxu0 %v5013
      %v5171 = vpop.f32.mrb[0].mxu0
      %v5172 = vadd.f32 0.0, %v5171
      %v5173 = vpop.f32.mrb[0].mxu0
      %v5174 = vadd.f32 0.0, %v5173
      %v5175 = vpop.f32.mrb[0].mxu0
      %v5176 = vadd.f32 0.0, %v5175
      %v5177 = vpop.f32.mrb[0].mxu0
      %v5178 = vadd.f32 0.0, %v5177
      %5179 = vmatprep.mubr.bf16.mxu0 0
      %5180 = vmatmul.mubr.bf16.gmra.mrb[0].mxu0 %v5016
      %v5181 = vpop.f32.mrb[0].mxu0
      %v5182 = vadd.f32 0.0, %v5181
      %v5183 = vpop.f32.mrb[0].mxu0
      %v5184 = vadd.f32 0.0, %v5183
      %v5185 = vpop.f32.mrb[0].mxu0
      %v5186 = vadd.f32 0.0, %v5185
      %v5187 = vpop.f32.mrb[0].mxu0
      %v5188 = vadd.f32 0.0, %v5187
      %5189 = vmatprep.mubr.bf16.mxu0 0
      %5190 = vmatmul.mubr.bf16.gmra.mrb[0].mxu0 %v5019
      %v5191 = vpop.f32.mrb[0].mxu0
      %v5192 = vadd.f32 0.0, %v5191
      %v5193 = vpop.f32.mrb[0].mxu0
      %v5194 = vadd.f32 0.0, %v5193
      %v5195 = vpop.f32.mrb[0].mxu0
      %v5196 = vadd.f32 0.0, %v5195
      %v5197 = vpop.f32.mrb[0].mxu0
      %v5198 = vadd.f32 0.0, %v5197
      %5199 = vmatprep.mubr.bf16.mxu0 0
      %5200 = vmatmul.mubr.bf16.gmra.mrb[0].mxu0 %v5022
      %v5201 = vpop.f32.mrb[0].mxu0
      %v5202 = vadd.f32 0.0, %v5201
      %v5203 = vpop.f32.mrb[0].mxu0
      %v5204 = vadd.f32 0.0, %v5203
      %v5205 = vpop.f32.mrb[0].mxu0
      %v5206 = vadd.f32 0.0, %v5205
      %v5207 = vpop.f32.mrb[0].mxu0
      %v5208 = vadd.f32 0.0, %v5207
      %5209 = vmatprep.mubr.bf16.mxu0 0
      %5210 = vmatmul.mubr.bf16.gmra.mrb[0].mxu0 %v5025
      %v5211 = vpop.f32.mrb[0].mxu0
      %v5212 = vadd.f32 0.0, %v5211
      %v5213 = vpop.f32.mrb[0].mxu0
      %v5214 = vadd.f32 0.0, %v5213
      %v5215 = vpop.f32.mrb[0].mxu0
      %v5216 = vadd.f32 0.0, %v5215
      %v5217 = vpop.f32.mrb[0].mxu0
      %v5218 = vadd.f32 0.0, %v5217
      %5219 = vmatprep.mubr.bf16.mxu0 0
      %5220 = vmatmul.mubr.bf16.gmra.mrb[0].mxu0 %v5028
      %v5221 = vpop.f32.mrb[0].mxu0
      %v5222 = vadd.f32 0.0, %v5221
      %v5223 = vpop.f32.mrb[0].mxu0
      %v5224 = vadd.f32 0.0, %v5223
      %v5225 = vpop.f32.mrb[0].mxu0
      %v5226 = vadd.f32 0.0, %v5225
      %v5227 = vpop.f32.mrb[0].mxu0
      %v5228 = vadd.f32 0.0, %v5227
      %5229 = vmatprep.mubr.bf16.mxu0 0
      %5230 = vmatmul.mubr.bf16.gmra.mrb[0].mxu0 %v5031
      %v5231 = vpop.f32.mrb[0].mxu0
      %v5232 = vadd.f32 0.0, %v5231
      %v5233 = vpop.f32.mrb[0].mxu0
      %v5234 = vadd.f32 0.0, %v5233
      %v5235 = vpop.f32.mrb[0].mxu0
      %v5236 = vadd.f32 0.0, %v5235
      %v5237 = vpop.f32.mrb[0].mxu0
      %v5238 = vadd.f32 0.0, %v5237
      %5239 = vmatprep.mubr.bf16.mxu0 0
      %5240 = vmatmul.mubr.bf16.gmra.mrb[0].mxu0 %v5037
      %v5241 = vpop.f32.mrb[0].mxu0
      %v5242 = vadd.f32 0.0, %v5241
      %v5243 = vpop.f32.mrb[0].mxu0
      %v5244 = vadd.f32 0.0, %v5243
      %v5245 = vpop.f32.mrb[0].mxu0
      %v5246 = vadd.f32 0.0, %v5245
      %v5247 = vpop.f32.mrb[0].mxu0
      %v5248 = vadd.f32 0.0, %v5247
      %5249 = vdwg.mxu0
      %v5250 = vadd.f32 %v4953, %v5162
      %v5251 = vadd.f32 %v4954, %v5164
      %v5252 = vadd.f32 %v4955, %v5166
      %v5253 = vadd.f32 %v4956, %v5168
      %v5254 = vadd.f32 %v4957, %v5172
      %v5255 = vadd.f32 %v4958, %v5174
      %v5256 = vadd.f32 %v4959, %v5176
      %v5257 = vadd.f32 %v4960, %v5178
      %v5258 = vadd.f32 %v4961, %v5182
      %v5259 = vadd.f32 %v4962, %v5184
      %v5260 = vadd.f32 %v4963, %v5186
      %v5261 = vadd.f32 %v4964, %v5188
      %v5262 = vadd.f32 %v4965, %v5192
      %v5263 = vadd.f32 %v4966, %v5194
      %v5264 = vadd.f32 %v4967, %v5196
      %v5265 = vadd.f32 %v4968, %v5198
      %v5266 = vadd.f32 %v4969, %v5202
      %v5267 = vadd.f32 %v4970, %v5204
      %v5268 = vadd.f32 %v4971, %v5206
      %v5269 = vadd.f32 %v4972, %v5208
      %v5270 = vadd.f32 %v4973, %v5212
      %v5271 = vadd.f32 %v4974, %v5214
      %v5272 = vadd.f32 %v4975, %v5216
      %v5273 = vadd.f32 %v4976, %v5218
      %v5274 = vadd.f32 %v4977, %v5222
      %v5275 = vadd.f32 %v4978, %v5224
      %v5276 = vadd.f32 %v4979, %v5226
      %v5277 = vadd.f32 %v4980, %v5228
      %v5278 = vadd.f32 %v4981, %v5232
      %v5279 = vadd.f32 %v4982, %v5234
      %v5280 = vadd.f32 %v4983, %v5236
      %v5281 = vadd.f32 %v4984, %v5238
      %v5282 = vadd.f32 %v4985, %v5242
      %v5283 = vadd.f32 %v4986, %v5244
      %v5284 = vadd.f32 %v4987, %v5246
      %v5285 = vadd.f32 %v4988, %v5248
      %s5286 = scalar_lea.vmem %s2, 768
      %v5287 = vld [vmem:[%s5286] sm:$0xff]
      %v5288 = vld [vmem:[%s5286 + $0x8] sm:$0xff]
      %v5289 = vld [vmem:[%s5286 + $0x10] sm:$0xff]
      %v5290 = vld [vmem:[%s5286 + $0x18] sm:$0xff]
      %v5291 = vld [vmem:[%s5286 + $0x20] sm:$0xff]
      %v5292 = vld [vmem:[%s5286 + $0x28] sm:$0xff]
      %v5293 = vld [vmem:[%s5286 + $0x30] sm:$0xff]
      %v5294 = vld [vmem:[%s5286 + $0x38] sm:$0xff]
      %v5295 = vld [vmem:[%s5286 + $0x40] sm:$0xff]
      %v5296 = vld [vmem:[%s5286 + $0x48] sm:$0xff]
      %v5297 = vld [vmem:[%s5286 + $0x50] sm:$0xff]
      %v5298 = vld [vmem:[%s5286 + $0x58] sm:$0xff]
      %v5299 = vld [vmem:[%s5286 + $0x60] sm:$0xff]
      %v5300 = vld [vmem:[%s5286 + $0x68] sm:$0xff]
      %v5301 = vld [vmem:[%s5286 + $0x70] sm:$0xff]
      %v5302 = vld [vmem:[%s5286 + $0x78] sm:$0xff]
      %vm5303 = vsmask.f32 2304
      %v5304 = vrot.slane %v3842, 5
      %v5305 = vrot.slane %v3845, 6
      %v5306 = vor.u32 %v5304, %v5305
      %v5307 = vrot.slane %v3851, 5
      %v5308 = vrot.slane %v3854, 6
      %v5309 = vor.u32 %v5307, %v5308
      %v5310 = vsel %vm5303, %v5306, %v5309
      %v5311 = vrot.slane %v3860, 5
      %v5312 = vrot.slane %v3863, 6
      %v5313 = vor.u32 %v5311, %v5312
      %v5314 = vsel %vm5303, %v5309, %v5313
      %v5315 = vrot.slane %v3869, 5
      %v5316 = vrot.slane %v3872, 6
      %v5317 = vor.u32 %v5315, %v5316
      %v5318 = vsel %vm5303, %v5313, %v5317
      %v5319 = vrot.slane %v3878, 5
      %v5320 = vrot.slane %v3881, 6
      %v5321 = vor.u32 %v5319, %v5320
      %v5322 = vsel %vm5303, %v5317, %v5321
      %v5323 = vrot.slane %v3887, 5
      %v5324 = vrot.slane %v3890, 6
      %v5325 = vor.u32 %v5323, %v5324
      %v5326 = vsel %vm5303, %v5321, %v5325
      %v5327 = vrot.slane %v3896, 5
      %v5328 = vrot.slane %v3899, 6
      %v5329 = vor.u32 %v5327, %v5328
      %v5330 = vsel %vm5303, %v5325, %v5329
      %v5331 = vrot.slane %v3905, 5
      %v5332 = vrot.slane %v3908, 6
      %v5333 = vor.u32 %v5331, %v5332
      %v5334 = vsel %vm5303, %v5329, %v5333
      %v5335 = vrot.slane %v3914, 5
      %v5336 = vrot.slane %v3917, 6
      %v5337 = vor.u32 %v5335, %v5336
      %v5338 = vsel %vm5303, %v5333, %v5337
      %v5339 = vshrl.u32 %v3556, 16
      %v5341 = vrot.slane %v5339, 5
      %v5342 = vrot.slane %v5034, 6
      %v5343 = vor.u32 %v5341, %v5342
      %v5344 = vsel %vm5303, %v5337, %v5343
      %v5370 = vunpack.c.l.b16 %v5287
      %v5371 = vunpack.c.h.b16 %v5287
      %v5372 = vunpack.c.l.b16 %v5288
      %v5373 = vunpack.c.h.b16 %v5288
      %v5374 = vunpack.c.l.b16 %v5289
      %v5375 = vunpack.c.h.b16 %v5289
      %v5376 = vunpack.c.l.b16 %v5290
      %v5377 = vunpack.c.h.b16 %v5290
      %v5378 = vunpack.c.l.b16 %v5291
      %v5379 = vunpack.c.h.b16 %v5291
      %v5380 = vunpack.c.l.b16 %v5292
      %v5381 = vunpack.c.h.b16 %v5292
      %v5382 = vunpack.c.l.b16 %v5293
      %v5383 = vunpack.c.h.b16 %v5293
      %v5384 = vunpack.c.l.b16 %v5294
      %v5385 = vunpack.c.h.b16 %v5294
      %v5386 = vunpack.c.l.b16 %v5295
      %v5387 = vunpack.c.h.b16 %v5295
      %v5388 = vunpack.c.l.b16 %v5296
      %v5389 = vunpack.c.h.b16 %v5296
      %v5390 = vunpack.c.l.b16 %v5297
      %v5391 = vunpack.c.h.b16 %v5297
      %v5392 = vunpack.c.l.b16 %v5298
      %v5393 = vunpack.c.h.b16 %v5298
      %v5394 = vunpack.c.l.b16 %v5299
      %v5395 = vunpack.c.h.b16 %v5299
      %v5396 = vunpack.c.l.b16 %v5300
      %v5397 = vunpack.c.h.b16 %v5300
      %v5398 = vunpack.c.l.b16 %v5301
      %v5399 = vunpack.c.h.b16 %v5301
      %v5400 = vunpack.c.l.b16 %v5302
      %v5401 = vunpack.c.h.b16 %v5302
      %v5402 = vpack.c.b16 %v5372, %v5370
      %v5403 = vpack.c.b16 %v5373, %v5371
      %v5404 = vpack.c.b16 %v5376, %v5374
      %v5405 = vpack.c.b16 %v5377, %v5375
      %v5406 = vpack.c.b16 %v5380, %v5378
      %v5407 = vpack.c.b16 %v5381, %v5379
      %v5408 = vpack.c.b16 %v5384, %v5382
      %v5409 = vpack.c.b16 %v5385, %v5383
      %v5410 = vpack.c.b16 %v5388, %v5386
      %v5411 = vpack.c.b16 %v5389, %v5387
      %v5412 = vpack.c.b16 %v5392, %v5390
      %v5413 = vpack.c.b16 %v5393, %v5391
      %v5414 = vpack.c.b16 %v5396, %v5394
      %v5415 = vpack.c.b16 %v5397, %v5395
      %v5416 = vpack.c.b16 %v5400, %v5398
      %v5417 = vpack.c.b16 %v5401, %v5399
      %5434 = vmatprep.subr.bf16.mxu0 %v5403
      %5435 = vmatpush1.bf16.msra.mxu0 %v5402
      %5436 = vmatprep.subr.bf16.mxu0 %v5405
      %5437 = vmatpush1.bf16.msra.mxu0 %v5404
      %5438 = vmatprep.subr.bf16.mxu0 %v5407
      %5439 = vmatpush1.bf16.msra.mxu0 %v5406
      %5440 = vmatprep.subr.bf16.mxu0 %v5409
      %5441 = vmatpush1.bf16.msra.mxu0 %v5408
      %5442 = vmatprep.subr.bf16.mxu0 %v5411
      %5443 = vmatpush1.bf16.msra.mxu0 %v5410
      %5444 = vmatprep.subr.bf16.mxu0 %v5413
      %5445 = vmatpush1.bf16.msra.mxu0 %v5412
      %5446 = vmatprep.subr.bf16.mxu0 %v5415
      %5447 = vmatpush1.bf16.msra.mxu0 %v5414
      %5448 = vmatprep.subr.bf16.mxu0 %v5417
      %5449 = vmatpush1.bf16.msra.mxu0 %v5416
      %5450 = vmatprep.subr.bf16.mxu0 0
      %5451 = vmatpush1.bf16.msra.mxu0 0
      %5452 = vmatprep.subr.bf16.mxu0 0
      %5453 = vmatpush1.bf16.msra.mxu0 0
      %5454 = vmatprep.subr.bf16.mxu0 0
      %5455 = vmatpush1.bf16.msra.mxu0 0
      %5456 = vmatprep.subr.bf16.mxu0 0
      %5457 = vmatpush1.bf16.msra.mxu0 0
      %5458 = vmatprep.subr.bf16.mxu0 0
      %5459 = vmatpush1.bf16.msra.mxu0 0
      %5460 = vmatprep.subr.bf16.mxu0 0
      %5461 = vmatpush1.bf16.msra.mxu0 0
      %5462 = vmatprep.subr.bf16.mxu0 0
      %5463 = vmatpush1.bf16.msra.mxu0 0
      %5464 = vmatprep.subr.bf16.mxu0 0
      %5465 = vmatpush1.bf16.msra.mxu0 0
      %5466 = vmatprep.mubr.bf16.mxu0 0
      %5467 = vmatmul.mubr.bf16.gmra.mrb[0].mxu0 %v5310
      %v5468 = vpop.f32.mrb[0].mxu0
      %v5469 = vadd.f32 0.0, %v5468
      %v5470 = vpop.f32.mrb[0].mxu0
      %v5471 = vadd.f32 0.0, %v5470
      %v5472 = vpop.f32.mrb[0].mxu0
      %v5473 = vadd.f32 0.0, %v5472
      %v5474 = vpop.f32.mrb[0].mxu0
      %v5475 = vadd.f32 0.0, %v5474
      %5476 = vmatprep.mubr.bf16.mxu0 0
      %5477 = vmatmul.mubr.bf16.gmra.mrb[0].mxu0 %v5314
      %v5478 = vpop.f32.mrb[0].mxu0
      %v5479 = vadd.f32 0.0, %v5478
      %v5480 = vpop.f32.mrb[0].mxu0
      %v5481 = vadd.f32 0.0, %v5480
      %v5482 = vpop.f32.mrb[0].mxu0
      %v5483 = vadd.f32 0.0, %v5482
      %v5484 = vpop.f32.mrb[0].mxu0
      %v5485 = vadd.f32 0.0, %v5484
      %5486 = vmatprep.mubr.bf16.mxu0 0
      %5487 = vmatmul.mubr.bf16.gmra.mrb[0].mxu0 %v5318
      %v5488 = vpop.f32.mrb[0].mxu0
      %v5489 = vadd.f32 0.0, %v5488
      %v5490 = vpop.f32.mrb[0].mxu0
      %v5491 = vadd.f32 0.0, %v5490
      %v5492 = vpop.f32.mrb[0].mxu0
      %v5493 = vadd.f32 0.0, %v5492
      %v5494 = vpop.f32.mrb[0].mxu0
      %v5495 = vadd.f32 0.0, %v5494
      %5496 = vmatprep.mubr.bf16.mxu0 0
      %5497 = vmatmul.mubr.bf16.gmra.mrb[0].mxu0 %v5322
      %v5498 = vpop.f32.mrb[0].mxu0
      %v5499 = vadd.f32 0.0, %v5498
      %v5500 = vpop.f32.mrb[0].mxu0
      %v5501 = vadd.f32 0.0, %v5500
      %v5502 = vpop.f32.mrb[0].mxu0
      %v5503 = vadd.f32 0.0, %v5502
      %v5504 = vpop.f32.mrb[0].mxu0
      %v5505 = vadd.f32 0.0, %v5504
      %5506 = vmatprep.mubr.bf16.mxu0 0
      %5507 = vmatmul.mubr.bf16.gmra.mrb[0].mxu0 %v5326
      %v5508 = vpop.f32.mrb[0].mxu0
      %v5509 = vadd.f32 0.0, %v5508
      %v5510 = vpop.f32.mrb[0].mxu0
      %v5511 = vadd.f32 0.0, %v5510
      %v5512 = vpop.f32.mrb[0].mxu0
      %v5513 = vadd.f32 0.0, %v5512
      %v5514 = vpop.f32.mrb[0].mxu0
      %v5515 = vadd.f32 0.0, %v5514
      %5516 = vmatprep.mubr.bf16.mxu0 0
      %5517 = vmatmul.mubr.bf16.gmra.mrb[0].mxu0 %v5330
      %v5518 = vpop.f32.mrb[0].mxu0
      %v5519 = vadd.f32 0.0, %v5518
      %v5520 = vpop.f32.mrb[0].mxu0
      %v5521 = vadd.f32 0.0, %v5520
      %v5522 = vpop.f32.mrb[0].mxu0
      %v5523 = vadd.f32 0.0, %v5522
      %v5524 = vpop.f32.mrb[0].mxu0
      %v5525 = vadd.f32 0.0, %v5524
      %5526 = vmatprep.mubr.bf16.mxu0 0
      %5527 = vmatmul.mubr.bf16.gmra.mrb[0].mxu0 %v5334
      %v5528 = vpop.f32.mrb[0].mxu0
      %v5529 = vadd.f32 0.0, %v5528
      %v5530 = vpop.f32.mrb[0].mxu0
      %v5531 = vadd.f32 0.0, %v5530
      %v5532 = vpop.f32.mrb[0].mxu0
      %v5533 = vadd.f32 0.0, %v5532
      %v5534 = vpop.f32.mrb[0].mxu0
      %v5535 = vadd.f32 0.0, %v5534
      %5536 = vmatprep.mubr.bf16.mxu0 0
      %5537 = vmatmul.mubr.bf16.gmra.mrb[0].mxu0 %v5338
      %v5538 = vpop.f32.mrb[0].mxu0
      %v5539 = vadd.f32 0.0, %v5538
      %v5540 = vpop.f32.mrb[0].mxu0
      %v5541 = vadd.f32 0.0, %v5540
      %v5542 = vpop.f32.mrb[0].mxu0
      %v5543 = vadd.f32 0.0, %v5542
      %v5544 = vpop.f32.mrb[0].mxu0
      %v5545 = vadd.f32 0.0, %v5544
      %5546 = vmatprep.mubr.bf16.mxu0 0
      %5547 = vmatmul.mubr.bf16.gmra.mrb[0].mxu0 %v5344
      %v5548 = vpop.f32.mrb[0].mxu0
      %v5549 = vadd.f32 0.0, %v5548
      %v5550 = vpop.f32.mrb[0].mxu0
      %v5551 = vadd.f32 0.0, %v5550
      %v5552 = vpop.f32.mrb[0].mxu0
      %v5553 = vadd.f32 0.0, %v5552
      %v5554 = vpop.f32.mrb[0].mxu0
      %v5555 = vadd.f32 0.0, %v5554
      %5556 = vdwg.mxu0
      %v5557 = vadd.f32 %v5250, %v5469
      %v5558 = vadd.f32 %v5251, %v5471
      %v5559 = vadd.f32 %v5252, %v5473
      %v5560 = vadd.f32 %v5253, %v5475
      %v5561 = vadd.f32 %v5254, %v5479
      %v5562 = vadd.f32 %v5255, %v5481
      %v5563 = vadd.f32 %v5256, %v5483
      %v5564 = vadd.f32 %v5257, %v5485
      %v5565 = vadd.f32 %v5258, %v5489
      %v5566 = vadd.f32 %v5259, %v5491
      %v5567 = vadd.f32 %v5260, %v5493
      %v5568 = vadd.f32 %v5261, %v5495
      %v5569 = vadd.f32 %v5262, %v5499
      %v5570 = vadd.f32 %v5263, %v5501
      %v5571 = vadd.f32 %v5264, %v5503
      %v5572 = vadd.f32 %v5265, %v5505
      %v5573 = vadd.f32 %v5266, %v5509
      %v5574 = vadd.f32 %v5267, %v5511
      %v5575 = vadd.f32 %v5268, %v5513
      %v5576 = vadd.f32 %v5269, %v5515
      %v5577 = vadd.f32 %v5270, %v5519
      %v5578 = vadd.f32 %v5271, %v5521
      %v5579 = vadd.f32 %v5272, %v5523
      %v5580 = vadd.f32 %v5273, %v5525
      %v5581 = vadd.f32 %v5274, %v5529
      %v5582 = vadd.f32 %v5275, %v5531
      %v5583 = vadd.f32 %v5276, %v5533
      %v5584 = vadd.f32 %v5277, %v5535
      %v5585 = vadd.f32 %v5278, %v5539
      %v5586 = vadd.f32 %v5279, %v5541
      %v5587 = vadd.f32 %v5280, %v5543
      %v5588 = vadd.f32 %v5281, %v5545
      %v5589 = vadd.f32 %v5282, %v5549
      %v5590 = vadd.f32 %v5283, %v5551
      %v5591 = vadd.f32 %v5284, %v5553
      %v5592 = vadd.f32 %v5285, %v5555
      %s5593 = scalar_lea.vmem %s2, 896
      %v5594 = vld [vmem:[%s5593] sm:$0xff]
      %v5595 = vld [vmem:[%s5593 + $0x8] sm:$0xff]
      %v5596 = vld [vmem:[%s5593 + $0x10] sm:$0xff]
      %v5597 = vld [vmem:[%s5593 + $0x18] sm:$0xff]
      %v5598 = vld [vmem:[%s5593 + $0x20] sm:$0xff]
      %v5599 = vld [vmem:[%s5593 + $0x28] sm:$0xff]
      %v5600 = vld [vmem:[%s5593 + $0x30] sm:$0xff]
      %v5601 = vld [vmem:[%s5593 + $0x38] sm:$0xff]
      %v5602 = vld [vmem:[%s5593 + $0x40] sm:$0xff]
      %v5603 = vld [vmem:[%s5593 + $0x48] sm:$0xff]
      %v5604 = vld [vmem:[%s5593 + $0x50] sm:$0xff]
      %v5605 = vld [vmem:[%s5593 + $0x58] sm:$0xff]
      %v5606 = vld [vmem:[%s5593 + $0x60] sm:$0xff]
      %v5607 = vld [vmem:[%s5593 + $0x68] sm:$0xff]
      %v5608 = vld [vmem:[%s5593 + $0x70] sm:$0xff]
      %v5609 = vld [vmem:[%s5593 + $0x78] sm:$0xff]
      %vm5611 = vcmask 1041408
      %v5612 = vrot.slane %v3547, 6
      %v5613 = vrot.slane %v3548, 6
      %v5614 = vsel %vm5611, %v5612, %v5613
      %v5615 = vrot.slane %v3549, 6
      %v5616 = vsel %vm5611, %v5613, %v5615
      %v5617 = vrot.slane %v3550, 6
      %v5618 = vsel %vm5611, %v5615, %v5617
      %v5619 = vrot.slane %v3551, 6
      %v5620 = vsel %vm5611, %v5617, %v5619
      %v5621 = vrot.slane %v3552, 6
      %v5622 = vsel %vm5611, %v5619, %v5621
      %v5623 = vrot.slane %v3553, 6
      %v5624 = vsel %vm5611, %v5621, %v5623
      %v5625 = vrot.slane %v3554, 6
      %v5626 = vsel %vm5611, %v5623, %v5625
      %v5627 = vrot.slane %v3555, 6
      %v5628 = vsel %vm5611, %v5625, %v5627
      %v5629 = vrot.slane %v3556, 6
      %v5630 = vsel %vm5611, %v5627, %v5629
      %v5656 = vunpack.c.l.b16 %v5594
      %v5657 = vunpack.c.h.b16 %v5594
      %v5658 = vunpack.c.l.b16 %v5595
      %v5659 = vunpack.c.h.b16 %v5595
      %v5660 = vunpack.c.l.b16 %v5596
      %v5661 = vunpack.c.h.b16 %v5596
      %v5662 = vunpack.c.l.b16 %v5597
      %v5663 = vunpack.c.h.b16 %v5597
      %v5664 = vunpack.c.l.b16 %v5598
      %v5665 = vunpack.c.h.b16 %v5598
      %v5666 = vunpack.c.l.b16 %v5599
      %v5667 = vunpack.c.h.b16 %v5599
      %v5668 = vunpack.c.l.b16 %v5600
      %v5669 = vunpack.c.h.b16 %v5600
      %v5670 = vunpack.c.l.b16 %v5601
      %v5671 = vunpack.c.h.b16 %v5601
      %v5672 = vunpack.c.l.b16 %v5602
      %v5673 = vunpack.c.h.b16 %v5602
      %v5674 = vunpack.c.l.b16 %v5603
      %v5675 = vunpack.c.h.b16 %v5603
      %v5676 = vunpack.c.l.b16 %v5604
      %v5677 = vunpack.c.h.b16 %v5604
      %v5678 = vunpack.c.l.b16 %v5605
      %v5679 = vunpack.c.h.b16 %v5605
      %v5680 = vunpack.c.l.b16 %v5606
      %v5681 = vunpack.c.h.b16 %v5606
      %v5682 = vunpack.c.l.b16 %v5607
      %v5683 = vunpack.c.h.b16 %v5607
      %v5684 = vunpack.c.l.b16 %v5608
      %v5685 = vunpack.c.h.b16 %v5608
      %v5686 = vunpack.c.l.b16 %v5609
      %v5687 = vunpack.c.h.b16 %v5609
      %v5688 = vpack.c.b16 %v5658, %v5656
      %v5689 = vpack.c.b16 %v5659, %v5657
      %v5690 = vpack.c.b16 %v5662, %v5660
      %v5691 = vpack.c.b16 %v5663, %v5661
      %v5692 = vpack.c.b16 %v5666, %v5664
      %v5693 = vpack.c.b16 %v5667, %v5665
      %v5694 = vpack.c.b16 %v5670, %v5668
      %v5695 = vpack.c.b16 %v5671, %v5669
      %v5696 = vpack.c.b16 %v5674, %v5672
      %v5697 = vpack.c.b16 %v5675, %v5673
      %v5698 = vpack.c.b16 %v5678, %v5676
      %v5699 = vpack.c.b16 %v5679, %v5677
      %v5700 = vpack.c.b16 %v5682, %v5680
      %v5701 = vpack.c.b16 %v5683, %v5681
      %v5702 = vpack.c.b16 %v5686, %v5684
      %v5703 = vpack.c.b16 %v5687, %v5685
      %5720 = vmatprep.subr.bf16.mxu0 %v5689
      %5721 = vmatpush1.bf16.msra.mxu0 %v5688
      %5722 = vmatprep.subr.bf16.mxu0 %v5691
      %5723 = vmatpush1.bf16.msra.mxu0 %v5690
      %5724 = vmatprep.subr.bf16.mxu0 %v5693
      %5725 = vmatpush1.bf16.msra.mxu0 %v5692
      %5726 = vmatprep.subr.bf16.mxu0 %v5695
      %5727 = vmatpush1.bf16.msra.mxu0 %v5694
      %5728 = vmatprep.subr.bf16.mxu0 %v5697
      %5729 = vmatpush1.bf16.msra.mxu0 %v5696
      %5730 = vmatprep.subr.bf16.mxu0 %v5699
      %5731 = vmatpush1.bf16.msra.mxu0 %v5698
      %5732 = vmatprep.subr.bf16.mxu0 %v5701
      %5733 = vmatpush1.bf16.msra.mxu0 %v5700
      %5734 = vmatprep.subr.bf16.mxu0 %v5703
      %5735 = vmatpush1.bf16.msra.mxu0 %v5702
      %5736 = vmatprep.subr.bf16.mxu0 0
      %5737 = vmatpush1.bf16.msra.mxu0 0
      %5738 = vmatprep.subr.bf16.mxu0 0
      %5739 = vmatpush1.bf16.msra.mxu0 0
      %5740 = vmatprep.subr.bf16.mxu0 0
      %5741 = vmatpush1.bf16.msra.mxu0 0
      %5742 = vmatprep.subr.bf16.mxu0 0
      %5743 = vmatpush1.bf16.msra.mxu0 0
      %5744 = vmatprep.subr.bf16.mxu0 0
      %5745 = vmatpush1.bf16.msra.mxu0 0
      %5746 = vmatprep.subr.bf16.mxu0 0
      %5747 = vmatpush1.bf16.msra.mxu0 0
      %5748 = vmatprep.subr.bf16.mxu0 0
      %5749 = vmatpush1.bf16.msra.mxu0 0
      %5750 = vmatprep.subr.bf16.mxu0 0
      %5751 = vmatpush1.bf16.msra.mxu0 0
      %5752 = vmatprep.mubr.bf16.mxu0 0
      %5753 = vmatmul.mubr.bf16.gmra.mrb[0].mxu0 %v5614
      %v5754 = vpop.f32.mrb[0].mxu0
      %v5755 = vadd.f32 0.0, %v5754
      %v5756 = vpop.f32.mrb[0].mxu0
      %v5757 = vadd.f32 0.0, %v5756
      %v5758 = vpop.f32.mrb[0].mxu0
      %v5759 = vadd.f32 0.0, %v5758
      %v5760 = vpop.f32.mrb[0].mxu0
      %v5761 = vadd.f32 0.0, %v5760
      %5762 = vmatprep.mubr.bf16.mxu0 0
      %5763 = vmatmul.mubr.bf16.gmra.mrb[0].mxu0 %v5616
      %v5764 = vpop.f32.mrb[0].mxu0
      %v5765 = vadd.f32 0.0, %v5764
      %v5766 = vpop.f32.mrb[0].mxu0
      %v5767 = vadd.f32 0.0, %v5766
      %v5768 = vpop.f32.mrb[0].mxu0
      %v5769 = vadd.f32 0.0, %v5768
      %v5770 = vpop.f32.mrb[0].mxu0
      %v5771 = vadd.f32 0.0, %v5770
      %5772 = vmatprep.mubr.bf16.mxu0 0
      %5773 = vmatmul.mubr.bf16.gmra.mrb[0].mxu0 %v5618
      %v5774 = vpop.f32.mrb[0].mxu0
      %v5775 = vadd.f32 0.0, %v5774
      %v5776 = vpop.f32.mrb[0].mxu0
      %v5777 = vadd.f32 0.0, %v5776
      %v5778 = vpop.f32.mrb[0].mxu0
      %v5779 = vadd.f32 0.0, %v5778
      %v5780 = vpop.f32.mrb[0].mxu0
      %v5781 = vadd.f32 0.0, %v5780
      %5782 = vmatprep.mubr.bf16.mxu0 0
      %5783 = vmatmul.mubr.bf16.gmra.mrb[0].mxu0 %v5620
      %v5784 = vpop.f32.mrb[0].mxu0
      %v5785 = vadd.f32 0.0, %v5784
      %v5786 = vpop.f32.mrb[0].mxu0
      %v5787 = vadd.f32 0.0, %v5786
      %v5788 = vpop.f32.mrb[0].mxu0
      %v5789 = vadd.f32 0.0, %v5788
      %v5790 = vpop.f32.mrb[0].mxu0
      %v5791 = vadd.f32 0.0, %v5790
      %5792 = vmatprep.mubr.bf16.mxu0 0
      %5793 = vmatmul.mubr.bf16.gmra.mrb[0].mxu0 %v5622
      %v5794 = vpop.f32.mrb[0].mxu0
      %v5795 = vadd.f32 0.0, %v5794
      %v5796 = vpop.f32.mrb[0].mxu0
      %v5797 = vadd.f32 0.0, %v5796
      %v5798 = vpop.f32.mrb[0].mxu0
      %v5799 = vadd.f32 0.0, %v5798
      %v5800 = vpop.f32.mrb[0].mxu0
      %v5801 = vadd.f32 0.0, %v5800
      %5802 = vmatprep.mubr.bf16.mxu0 0
      %5803 = vmatmul.mubr.bf16.gmra.mrb[0].mxu0 %v5624
      %v5804 = vpop.f32.mrb[0].mxu0
      %v5805 = vadd.f32 0.0, %v5804
      %v5806 = vpop.f32.mrb[0].mxu0
      %v5807 = vadd.f32 0.0, %v5806
      %v5808 = vpop.f32.mrb[0].mxu0
      %v5809 = vadd.f32 0.0, %v5808
      %v5810 = vpop.f32.mrb[0].mxu0
      %v5811 = vadd.f32 0.0, %v5810
      %5812 = vmatprep.mubr.bf16.mxu0 0
      %5813 = vmatmul.mubr.bf16.gmra.mrb[0].mxu0 %v5626
      %v5814 = vpop.f32.mrb[0].mxu0
      %v5815 = vadd.f32 0.0, %v5814
      %v5816 = vpop.f32.mrb[0].mxu0
      %v5817 = vadd.f32 0.0, %v5816
      %v5818 = vpop.f32.mrb[0].mxu0
      %v5819 = vadd.f32 0.0, %v5818
      %v5820 = vpop.f32.mrb[0].mxu0
      %v5821 = vadd.f32 0.0, %v5820
      %5822 = vmatprep.mubr.bf16.mxu0 0
      %5823 = vmatmul.mubr.bf16.gmra.mrb[0].mxu0 %v5628
      %v5824 = vpop.f32.mrb[0].mxu0
      %v5825 = vadd.f32 0.0, %v5824
      %v5826 = vpop.f32.mrb[0].mxu0
      %v5827 = vadd.f32 0.0, %v5826
      %v5828 = vpop.f32.mrb[0].mxu0
      %v5829 = vadd.f32 0.0, %v5828
      %v5830 = vpop.f32.mrb[0].mxu0
      %v5831 = vadd.f32 0.0, %v5830
      %5832 = vmatprep.mubr.bf16.mxu0 0
      %5833 = vmatmul.mubr.bf16.gmra.mrb[0].mxu0 %v5630
      %v5834 = vpop.f32.mrb[0].mxu0
      %v5835 = vadd.f32 0.0, %v5834
      %v5836 = vpop.f32.mrb[0].mxu0
      %v5837 = vadd.f32 0.0, %v5836
      %v5838 = vpop.f32.mrb[0].mxu0
      %v5839 = vadd.f32 0.0, %v5838
      %v5840 = vpop.f32.mrb[0].mxu0
      %v5841 = vadd.f32 0.0, %v5840
      %5842 = vdwg.mxu0
      %v5843 = vadd.f32 %v5557, %v5755
      %v5844 = vadd.f32 %v5558, %v5757
      %v5845 = vadd.f32 %v5559, %v5759
      %v5846 = vadd.f32 %v5560, %v5761
      %v5847 = vadd.f32 %v5561, %v5765
      %v5848 = vadd.f32 %v5562, %v5767
      %v5849 = vadd.f32 %v5563, %v5769
      %v5850 = vadd.f32 %v5564, %v5771
      %v5851 = vadd.f32 %v5565, %v5775
      %v5852 = vadd.f32 %v5566, %v5777
      %v5853 = vadd.f32 %v5567, %v5779
      %v5854 = vadd.f32 %v5568, %v5781
      %v5855 = vadd.f32 %v5569, %v5785
      %v5856 = vadd.f32 %v5570, %v5787
      %v5857 = vadd.f32 %v5571, %v5789
      %v5858 = vadd.f32 %v5572, %v5791
      %v5859 = vadd.f32 %v5573, %v5795
      %v5860 = vadd.f32 %v5574, %v5797
      %v5861 = vadd.f32 %v5575, %v5799
      %v5862 = vadd.f32 %v5576, %v5801
      %v5863 = vadd.f32 %v5577, %v5805
      %v5864 = vadd.f32 %v5578, %v5807
      %v5865 = vadd.f32 %v5579, %v5809
      %v5866 = vadd.f32 %v5580, %v5811
      %v5867 = vadd.f32 %v5581, %v5815
      %v5868 = vadd.f32 %v5582, %v5817
      %v5869 = vadd.f32 %v5583, %v5819
      %v5870 = vadd.f32 %v5584, %v5821
      %v5871 = vadd.f32 %v5585, %v5825
      %v5872 = vadd.f32 %v5586, %v5827
      %v5873 = vadd.f32 %v5587, %v5829
      %v5874 = vadd.f32 %v5588, %v5831
      %v5875 = vadd.f32 %v5589, %v5835
      %v5876 = vadd.f32 %v5590, %v5837
      %v5877 = vadd.f32 %v5591, %v5839
      %v5878 = vadd.f32 %v5592, %v5841
      %s5879 = scalar_lea.vmem %s2, 1024
      %v5880 = vld [vmem:[%s5879] sm:$0xff]
      %v5881 = vld [vmem:[%s5879 + $0x8] sm:$0xff]
      %v5882 = vld [vmem:[%s5879 + $0x10] sm:$0xff]
      %v5883 = vld [vmem:[%s5879 + $0x18] sm:$0xff]
      %v5884 = vld [vmem:[%s5879 + $0x20] sm:$0xff]
      %v5885 = vld [vmem:[%s5879 + $0x28] sm:$0xff]
      %v5886 = vld [vmem:[%s5879 + $0x30] sm:$0xff]
      %v5887 = vld [vmem:[%s5879 + $0x38] sm:$0xff]
      %v5888 = vld [vmem:[%s5879 + $0x40] sm:$0xff]
      %v5889 = vld [vmem:[%s5879 + $0x48] sm:$0xff]
      %v5890 = vld [vmem:[%s5879 + $0x50] sm:$0xff]
      %v5891 = vld [vmem:[%s5879 + $0x58] sm:$0xff]
      %v5892 = vld [vmem:[%s5879 + $0x60] sm:$0xff]
      %v5893 = vld [vmem:[%s5879 + $0x68] sm:$0xff]
      %v5894 = vld [vmem:[%s5879 + $0x70] sm:$0xff]
      %v5895 = vld [vmem:[%s5879 + $0x78] sm:$0xff]
      %vm5896 = vsmask.f32 1280
      %v5897 = vrot.slane %v3842, 6
      %v5898 = vrot.slane %v3845, 7
      %v5899 = vor.u32 %v5897, %v5898
      %v5900 = vrot.slane %v3851, 6
      %v5901 = vrot.slane %v3854, 7
      %v5902 = vor.u32 %v5900, %v5901
      %v5903 = vsel %vm5896, %v5899, %v5902
      %v5904 = vrot.slane %v3860, 6
      %v5905 = vrot.slane %v3863, 7
      %v5906 = vor.u32 %v5904, %v5905
      %v5907 = vsel %vm5896, %v5902, %v5906
      %v5908 = vrot.slane %v3869, 6
      %v5909 = vrot.slane %v3872, 7
      %v5910 = vor.u32 %v5908, %v5909
      %v5911 = vsel %vm5896, %v5906, %v5910
      %v5912 = vrot.slane %v3878, 6
      %v5913 = vrot.slane %v3881, 7
      %v5914 = vor.u32 %v5912, %v5913
      %v5915 = vsel %vm5896, %v5910, %v5914
      %v5916 = vrot.slane %v3887, 6
      %v5917 = vrot.slane %v3890, 7
      %v5918 = vor.u32 %v5916, %v5917
      %v5919 = vsel %vm5896, %v5914, %v5918
      %v5920 = vrot.slane %v3896, 6
      %v5921 = vrot.slane %v3899, 7
      %v5922 = vor.u32 %v5920, %v5921
      %v5923 = vsel %vm5896, %v5918, %v5922
      %v5924 = vrot.slane %v3905, 6
      %v5925 = vrot.slane %v3908, 7
      %v5926 = vor.u32 %v5924, %v5925
      %v5927 = vsel %vm5896, %v5922, %v5926
      %v5928 = vrot.slane %v3914, 6
      %v5929 = vrot.slane %v3917, 7
      %v5930 = vor.u32 %v5928, %v5929
      %v5931 = vsel %vm5896, %v5926, %v5930
      %v5932 = vrot.slane %v5339, 6
      %v5933 = vrot.slane %v5034, 7
      %v5934 = vor.u32 %v5932, %v5933
      %v5935 = vsel %vm5896, %v5930, %v5934
      %v5961 = vunpack.c.l.b16 %v5880
      %v5962 = vunpack.c.h.b16 %v5880
      %v5963 = vunpack.c.l.b16 %v5881
      %v5964 = vunpack.c.h.b16 %v5881
      %v5965 = vunpack.c.l.b16 %v5882
      %v5966 = vunpack.c.h.b16 %v5882
      %v5967 = vunpack.c.l.b16 %v5883
      %v5968 = vunpack.c.h.b16 %v5883
      %v5969 = vunpack.c.l.b16 %v5884
      %v5970 = vunpack.c.h.b16 %v5884
      %v5971 = vunpack.c.l.b16 %v5885
      %v5972 = vunpack.c.h.b16 %v5885
      %v5973 = vunpack.c.l.b16 %v5886
      %v5974 = vunpack.c.h.b16 %v5886
      %v5975 = vunpack.c.l.b16 %v5887
      %v5976 = vunpack.c.h.b16 %v5887
      %v5977 = vunpack.c.l.b16 %v5888
      %v5978 = vunpack.c.h.b16 %v5888
      %v5979 = vunpack.c.l.b16 %v5889
      %v5980 = vunpack.c.h.b16 %v5889
      %v5981 = vunpack.c.l.b16 %v5890
      %v5982 = vunpack.c.h.b16 %v5890
      %v5983 = vunpack.c.l.b16 %v5891
      %v5984 = vunpack.c.h.b16 %v5891
      %v5985 = vunpack.c.l.b16 %v5892
      %v5986 = vunpack.c.h.b16 %v5892
      %v5987 = vunpack.c.l.b16 %v5893
      %v5988 = vunpack.c.h.b16 %v5893
      %v5989 = vunpack.c.l.b16 %v5894
      %v5990 = vunpack.c.h.b16 %v5894
      %v5991 = vunpack.c.l.b16 %v5895
      %v5992 = vunpack.c.h.b16 %v5895
      %v5993 = vpack.c.b16 %v5963, %v5961
      %v5994 = vpack.c.b16 %v5964, %v5962
      %v5995 = vpack.c.b16 %v5967, %v5965
      %v5996 = vpack.c.b16 %v5968, %v5966
      %v5997 = vpack.c.b16 %v5971, %v5969
      %v5998 = vpack.c.b16 %v5972, %v5970
      %v5999 = vpack.c.b16 %v5975, %v5973
      %v6000 = vpack.c.b16 %v5976, %v5974
      %v6001 = vpack.c.b16 %v5979, %v5977
      %v6002 = vpack.c.b16 %v5980, %v5978
      %v6003 = vpack.c.b16 %v5983, %v5981
      %v6004 = vpack.c.b16 %v5984, %v5982
      %v6005 = vpack.c.b16 %v5987, %v5985
      %v6006 = vpack.c.b16 %v5988, %v5986
      %v6007 = vpack.c.b16 %v5991, %v5989
      %v6008 = vpack.c.b16 %v5992, %v5990
      %6025 = vmatprep.subr.bf16.mxu0 %v5994
      %6026 = vmatpush1.bf16.msra.mxu0 %v5993
      %6027 = vmatprep.subr.bf16.mxu0 %v5996
      %6028 = vmatpush1.bf16.msra.mxu0 %v5995
      %6029 = vmatprep.subr.bf16.mxu0 %v5998
      %6030 = vmatpush1.bf16.msra.mxu0 %v5997
      %6031 = vmatprep.subr.bf16.mxu0 %v6000
      %6032 = vmatpush1.bf16.msra.mxu0 %v5999
      %6033 = vmatprep.subr.bf16.mxu0 %v6002
      %6034 = vmatpush1.bf16.msra.mxu0 %v6001
      %6035 = vmatprep.subr.bf16.mxu0 %v6004
      %6036 = vmatpush1.bf16.msra.mxu0 %v6003
      %6037 = vmatprep.subr.bf16.mxu0 %v6006
      %6038 = vmatpush1.bf16.msra.mxu0 %v6005
      %6039 = vmatprep.subr.bf16.mxu0 %v6008
      %6040 = vmatpush1.bf16.msra.mxu0 %v6007
      %6041 = vmatprep.subr.bf16.mxu0 0
      %6042 = vmatpush1.bf16.msra.mxu0 0
      %6043 = vmatprep.subr.bf16.mxu0 0
      %6044 = vmatpush1.bf16.msra.mxu0 0
      %6045 = vmatprep.subr.bf16.mxu0 0
      %6046 = vmatpush1.bf16.msra.mxu0 0
      %6047 = vmatprep.subr.bf16.mxu0 0
      %6048 = vmatpush1.bf16.msra.mxu0 0
      %6049 = vmatprep.subr.bf16.mxu0 0
      %6050 = vmatpush1.bf16.msra.mxu0 0
      %6051 = vmatprep.subr.bf16.mxu0 0
      %6052 = vmatpush1.bf16.msra.mxu0 0
      %6053 = vmatprep.subr.bf16.mxu0 0
      %6054 = vmatpush1.bf16.msra.mxu0 0
      %6055 = vmatprep.subr.bf16.mxu0 0
      %6056 = vmatpush1.bf16.msra.mxu0 0
      %6057 = vmatprep.mubr.bf16.mxu0 0
      %6058 = vmatmul.mubr.bf16.gmra.mrb[0].mxu0 %v5903
      %v6059 = vpop.f32.mrb[0].mxu0
      %v6060 = vadd.f32 0.0, %v6059
      %v6061 = vpop.f32.mrb[0].mxu0
      %v6062 = vadd.f32 0.0, %v6061
      %v6063 = vpop.f32.mrb[0].mxu0
      %v6064 = vadd.f32 0.0, %v6063
      %v6065 = vpop.f32.mrb[0].mxu0
      %v6066 = vadd.f32 0.0, %v6065
      %6067 = vmatprep.mubr.bf16.mxu0 0
      %6068 = vmatmul.mubr.bf16.gmra.mrb[0].mxu0 %v5907
      %v6069 = vpop.f32.mrb[0].mxu0
      %v6070 = vadd.f32 0.0, %v6069
      %v6071 = vpop.f32.mrb[0].mxu0
      %v6072 = vadd.f32 0.0, %v6071
      %v6073 = vpop.f32.mrb[0].mxu0
      %v6074 = vadd.f32 0.0, %v6073
      %v6075 = vpop.f32.mrb[0].mxu0
      %v6076 = vadd.f32 0.0, %v6075
      %6077 = vmatprep.mubr.bf16.mxu0 0
      %6078 = vmatmul.mubr.bf16.gmra.mrb[0].mxu0 %v5911
      %v6079 = vpop.f32.mrb[0].mxu0
      %v6080 = vadd.f32 0.0, %v6079
      %v6081 = vpop.f32.mrb[0].mxu0
      %v6082 = vadd.f32 0.0, %v6081
      %v6083 = vpop.f32.mrb[0].mxu0
      %v6084 = vadd.f32 0.0, %v6083
      %v6085 = vpop.f32.mrb[0].mxu0
      %v6086 = vadd.f32 0.0, %v6085
      %6087 = vmatprep.mubr.bf16.mxu0 0
      %6088 = vmatmul.mubr.bf16.gmra.mrb[0].mxu0 %v5915
      %v6089 = vpop.f32.mrb[0].mxu0
      %v6090 = vadd.f32 0.0, %v6089
      %v6091 = vpop.f32.mrb[0].mxu0
      %v6092 = vadd.f32 0.0, %v6091
      %v6093 = vpop.f32.mrb[0].mxu0
      %v6094 = vadd.f32 0.0, %v6093
      %v6095 = vpop.f32.mrb[0].mxu0
      %v6096 = vadd.f32 0.0, %v6095
      %6097 = vmatprep.mubr.bf16.mxu0 0
      %6098 = vmatmul.mubr.bf16.gmra.mrb[0].mxu0 %v5919
      %v6099 = vpop.f32.mrb[0].mxu0
      %v6100 = vadd.f32 0.0, %v6099
      %v6101 = vpop.f32.mrb[0].mxu0
      %v6102 = vadd.f32 0.0, %v6101
      %v6103 = vpop.f32.mrb[0].mxu0
      %v6104 = vadd.f32 0.0, %v6103
      %v6105 = vpop.f32.mrb[0].mxu0
      %v6106 = vadd.f32 0.0, %v6105
      %6107 = vmatprep.mubr.bf16.mxu0 0
      %6108 = vmatmul.mubr.bf16.gmra.mrb[0].mxu0 %v5923
      %v6109 = vpop.f32.mrb[0].mxu0
      %v6110 = vadd.f32 0.0, %v6109
      %v6111 = vpop.f32.mrb[0].mxu0
      %v6112 = vadd.f32 0.0, %v6111
      %v6113 = vpop.f32.mrb[0].mxu0
      %v6114 = vadd.f32 0.0, %v6113
      %v6115 = vpop.f32.mrb[0].mxu0
      %v6116 = vadd.f32 0.0, %v6115
      %6117 = vmatprep.mubr.bf16.mxu0 0
      %6118 = vmatmul.mubr.bf16.gmra.mrb[0].mxu0 %v5927
      %v6119 = vpop.f32.mrb[0].mxu0
      %v6120 = vadd.f32 0.0, %v6119
      %v6121 = vpop.f32.mrb[0].mxu0
      %v6122 = vadd.f32 0.0, %v6121
      %v6123 = vpop.f32.mrb[0].mxu0
      %v6124 = vadd.f32 0.0, %v6123
      %v6125 = vpop.f32.mrb[0].mxu0
      %v6126 = vadd.f32 0.0, %v6125
      %6127 = vmatprep.mubr.bf16.mxu0 0
      %6128 = vmatmul.mubr.bf16.gmra.mrb[0].mxu0 %v5931
      %v6129 = vpop.f32.mrb[0].mxu0
      %v6130 = vadd.f32 0.0, %v6129
      %v6131 = vpop.f32.mrb[0].mxu0
      %v6132 = vadd.f32 0.0, %v6131
      %v6133 = vpop.f32.mrb[0].mxu0
      %v6134 = vadd.f32 0.0, %v6133
      %v6135 = vpop.f32.mrb[0].mxu0
      %v6136 = vadd.f32 0.0, %v6135
      %6137 = vmatprep.mubr.bf16.mxu0 0
      %6138 = vmatmul.mubr.bf16.gmra.mrb[0].mxu0 %v5935
      %v6139 = vpop.f32.mrb[0].mxu0
      %v6140 = vadd.f32 0.0, %v6139
      %v6141 = vpop.f32.mrb[0].mxu0
      %v6142 = vadd.f32 0.0, %v6141
      %v6143 = vpop.f32.mrb[0].mxu0
      %v6144 = vadd.f32 0.0, %v6143
      %v6145 = vpop.f32.mrb[0].mxu0
      %v6146 = vadd.f32 0.0, %v6145
      %6147 = vdwg.mxu0
      %v6148 = vadd.f32 %v5843, %v6060
      %v6149 = vadd.f32 %v5844, %v6062
      %v6150 = vadd.f32 %v5845, %v6064
      %v6151 = vadd.f32 %v5846, %v6066
      %v6152 = vadd.f32 %v5847, %v6070
      %v6153 = vadd.f32 %v5848, %v6072
      %v6154 = vadd.f32 %v5849, %v6074
      %v6155 = vadd.f32 %v5850, %v6076
      %v6156 = vadd.f32 %v5851, %v6080
      %v6157 = vadd.f32 %v5852, %v6082
      %v6158 = vadd.f32 %v5853, %v6084
      %v6159 = vadd.f32 %v5854, %v6086
      %v6160 = vadd.f32 %v5855, %v6090
      %v6161 = vadd.f32 %v5856, %v6092
      %v6162 = vadd.f32 %v5857, %v6094
      %v6163 = vadd.f32 %v5858, %v6096
      %v6164 = vadd.f32 %v5859, %v6100
      %v6165 = vadd.f32 %v5860, %v6102
      %v6166 = vadd.f32 %v5861, %v6104
      %v6167 = vadd.f32 %v5862, %v6106
      %v6168 = vadd.f32 %v5863, %v6110
      %v6169 = vadd.f32 %v5864, %v6112
      %v6170 = vadd.f32 %v5865, %v6114
      %v6171 = vadd.f32 %v5866, %v6116
      %v6172 = vadd.f32 %v5867, %v6120
      %v6173 = vadd.f32 %v5868, %v6122
      %v6174 = vadd.f32 %v5869, %v6124
      %v6175 = vadd.f32 %v5870, %v6126
      %v6176 = vadd.f32 %v5871, %v6130
      %v6177 = vadd.f32 %v5872, %v6132
      %v6178 = vadd.f32 %v5873, %v6134
      %v6179 = vadd.f32 %v5874, %v6136
      %v6180 = vadd.f32 %v5875, %v6140
      %v6181 = vadd.f32 %v5876, %v6142
      %v6182 = vadd.f32 %v5877, %v6144
      %v6183 = vadd.f32 %v5878, %v6146
      %v6184 = vld [vmem:[%s3] sm:$0x3]
      %v6186 = vlaneseq
      %v6187 = vshrl.u32 %v6186, 7
      %v6188 = vsub.s32 0, %v6187
      %v6189 = vrot.slane %v6184, %v6188
      %v6190 = vlaneseq
      %v6191 = vshrl.u32 %v6190, 7
      %v6192 = vsub.s32 1, %v6191
      %v6193 = vrot.slane %v6184, %v6192
      %v6196 = vadd.f32 %v6148, %v6189
      %v6197 = vadd.f32 %v6149, %v6193
      %v6198 = vadd.f32 %v6150, %v6189
      %v6199 = vadd.f32 %v6151, %v6193
      %v6200 = vadd.f32 %v6152, %v6189
      %v6201 = vadd.f32 %v6153, %v6193
      %v6202 = vadd.f32 %v6154, %v6189
      %v6203 = vadd.f32 %v6155, %v6193
      %v6204 = vadd.f32 %v6156, %v6189
      %v6205 = vadd.f32 %v6157, %v6193
      %v6206 = vadd.f32 %v6158, %v6189
      %v6207 = vadd.f32 %v6159, %v6193
      %v6208 = vadd.f32 %v6160, %v6189
      %v6209 = vadd.f32 %v6161, %v6193
      %v6210 = vadd.f32 %v6162, %v6189
      %v6211 = vadd.f32 %v6163, %v6193
      %v6212 = vadd.f32 %v6164, %v6189
      %v6213 = vadd.f32 %v6165, %v6193
      %v6214 = vadd.f32 %v6166, %v6189
      %v6215 = vadd.f32 %v6167, %v6193
      %v6216 = vadd.f32 %v6168, %v6189
      %v6217 = vadd.f32 %v6169, %v6193
      %v6218 = vadd.f32 %v6170, %v6189
      %v6219 = vadd.f32 %v6171, %v6193
      %v6220 = vadd.f32 %v6172, %v6189
      %v6221 = vadd.f32 %v6173, %v6193
      %v6222 = vadd.f32 %v6174, %v6189
      %v6223 = vadd.f32 %v6175, %v6193
      %v6224 = vadd.f32 %v6176, %v6189
      %v6225 = vadd.f32 %v6177, %v6193
      %v6226 = vadd.f32 %v6178, %v6189
      %v6227 = vadd.f32 %v6179, %v6193
      %v6228 = vadd.f32 %v6180, %v6189
      %v6229 = vadd.f32 %v6181, %v6193
      %v6230 = vadd.f32 %v6182, %v6189
      %v6231 = vadd.f32 %v6183, %v6193
      %v6232 = vxor.u32 %v6196, 2147483648
      %v6233 = vxor.u32 %v6197, 2147483648
      %v6234 = vxor.u32 %v6198, 2147483648
      %v6235 = vxor.u32 %v6199, 2147483648
      %v6236 = vxor.u32 %v6200, 2147483648
      %v6237 = vxor.u32 %v6201, 2147483648
      %v6238 = vxor.u32 %v6202, 2147483648
      %v6239 = vxor.u32 %v6203, 2147483648
      %v6240 = vxor.u32 %v6204, 2147483648
      %v6241 = vxor.u32 %v6205, 2147483648
      %v6242 = vxor.u32 %v6206, 2147483648
      %v6243 = vxor.u32 %v6207, 2147483648
      %v6244 = vxor.u32 %v6208, 2147483648
      %v6245 = vxor.u32 %v6209, 2147483648
      %v6246 = vxor.u32 %v6210, 2147483648
      %v6247 = vxor.u32 %v6211, 2147483648
      %v6248 = vxor.u32 %v6212, 2147483648
      %v6249 = vxor.u32 %v6213, 2147483648
      %v6250 = vxor.u32 %v6214, 2147483648
      %v6251 = vxor.u32 %v6215, 2147483648
      %v6252 = vxor.u32 %v6216, 2147483648
      %v6253 = vxor.u32 %v6217, 2147483648
      %v6254 = vxor.u32 %v6218, 2147483648
      %v6255 = vxor.u32 %v6219, 2147483648
      %v6256 = vxor.u32 %v6220, 2147483648
      %v6257 = vxor.u32 %v6221, 2147483648
      %v6258 = vxor.u32 %v6222, 2147483648
      %v6259 = vxor.u32 %v6223, 2147483648
      %v6260 = vxor.u32 %v6224, 2147483648
      %v6261 = vxor.u32 %v6225, 2147483648
      %v6262 = vxor.u32 %v6226, 2147483648
      %v6263 = vxor.u32 %v6227, 2147483648
      %v6264 = vxor.u32 %v6228, 2147483648
      %v6265 = vxor.u32 %v6229, 2147483648
      %v6266 = vxor.u32 %v6230, 2147483648
      %v6267 = vxor.u32 %v6231, 2147483648
      %v6268 = vmul.f32 %v6232, 1.442695
      %v6269 = vpow.pop %v6268
      %v6270 = vmul.f32 %v6233, 1.442695
      %v6271 = vpow.pop %v6270
      %v6272 = vmul.f32 %v6234, 1.442695
      %v6273 = vpow.pop %v6272
      %v6274 = vmul.f32 %v6235, 1.442695
      %v6275 = vpow.pop %v6274
      %v6276 = vmul.f32 %v6236, 1.442695
      %v6277 = vpow.pop %v6276
      %v6278 = vmul.f32 %v6237, 1.442695
      %v6279 = vpow.pop %v6278
      %v6280 = vmul.f32 %v6238, 1.442695
      %v6281 = vpow.pop %v6280
      %v6282 = vmul.f32 %v6239, 1.442695
      %v6283 = vpow.pop %v6282
      %v6284 = vmul.f32 %v6240, 1.442695
      %v6285 = vpow.pop %v6284
      %v6286 = vmul.f32 %v6241, 1.442695
      %v6287 = vpow.pop %v6286
      %v6288 = vmul.f32 %v6242, 1.442695
      %v6289 = vpow.pop %v6288
      %v6290 = vmul.f32 %v6243, 1.442695
      %v6291 = vpow.pop %v6290
      %v6292 = vmul.f32 %v6244, 1.442695
      %v6293 = vpow.pop %v6292
      %v6294 = vmul.f32 %v6245, 1.442695
      %v6295 = vpow.pop %v6294
      %v6296 = vmul.f32 %v6246, 1.442695
      %v6297 = vpow.pop %v6296
      %v6298 = vmul.f32 %v6247, 1.442695
      %v6299 = vpow.pop %v6298
      %v6300 = vmul.f32 %v6248, 1.442695
      %v6301 = vpow.pop %v6300
      %v6302 = vmul.f32 %v6249, 1.442695
      %v6303 = vpow.pop %v6302
      %v6304 = vmul.f32 %v6250, 1.442695
      %v6305 = vpow.pop %v6304
      %v6306 = vmul.f32 %v6251, 1.442695
      %v6307 = vpow.pop %v6306
      %v6308 = vmul.f32 %v6252, 1.442695
      %v6309 = vpow.pop %v6308
      %v6310 = vmul.f32 %v6253, 1.442695
      %v6311 = vpow.pop %v6310
      %v6312 = vmul.f32 %v6254, 1.442695
      %v6313 = vpow.pop %v6312
      %v6314 = vmul.f32 %v6255, 1.442695
      %v6315 = vpow.pop %v6314
      %v6316 = vmul.f32 %v6256, 1.442695
      %v6317 = vpow.pop %v6316
      %v6318 = vmul.f32 %v6257, 1.442695
      %v6319 = vpow.pop %v6318
      %v6320 = vmul.f32 %v6258, 1.442695
      %v6321 = vpow.pop %v6320
      %v6322 = vmul.f32 %v6259, 1.442695
      %v6323 = vpow.pop %v6322
      %v6324 = vmul.f32 %v6260, 1.442695
      %v6325 = vpow.pop %v6324
      %v6326 = vmul.f32 %v6261, 1.442695
      %v6327 = vpow.pop %v6326
      %v6328 = vmul.f32 %v6262, 1.442695
      %v6329 = vpow.pop %v6328
      %v6330 = vmul.f32 %v6263, 1.442695
      %v6331 = vpow.pop %v6330
      %v6332 = vmul.f32 %v6264, 1.442695
      %v6333 = vpow.pop %v6332
      %v6334 = vmul.f32 %v6265, 1.442695
      %v6335 = vpow.pop %v6334
      %v6336 = vmul.f32 %v6266, 1.442695
      %v6337 = vpow.pop %v6336
      %v6338 = vmul.f32 %v6267, 1.442695
      %v6339 = vpow.pop %v6338
      %v6340 = vadd.f32 %v6269, 1.0
      %v6341 = vadd.f32 %v6271, 1.0
      %v6342 = vadd.f32 %v6273, 1.0
      %v6343 = vadd.f32 %v6275, 1.0
      %v6344 = vadd.f32 %v6277, 1.0
      %v6345 = vadd.f32 %v6279, 1.0
      %v6346 = vadd.f32 %v6281, 1.0
      %v6347 = vadd.f32 %v6283, 1.0
      %v6348 = vadd.f32 %v6285, 1.0
      %v6349 = vadd.f32 %v6287, 1.0
      %v6350 = vadd.f32 %v6289, 1.0
      %v6351 = vadd.f32 %v6291, 1.0
      %v6352 = vadd.f32 %v6293, 1.0
      %v6353 = vadd.f32 %v6295, 1.0
      %v6354 = vadd.f32 %v6297, 1.0
      %v6355 = vadd.f32 %v6299, 1.0
      %v6356 = vadd.f32 %v6301, 1.0
      %v6357 = vadd.f32 %v6303, 1.0
      %v6358 = vadd.f32 %v6305, 1.0
      %v6359 = vadd.f32 %v6307, 1.0
      %v6360 = vadd.f32 %v6309, 1.0
      %v6361 = vadd.f32 %v6311, 1.0
      %v6362 = vadd.f32 %v6313, 1.0
      %v6363 = vadd.f32 %v6315, 1.0
      %v6364 = vadd.f32 %v6317, 1.0
      %v6365 = vadd.f32 %v6319, 1.0
      %v6366 = vadd.f32 %v6321, 1.0
      %v6367 = vadd.f32 %v6323, 1.0
      %v6368 = vadd.f32 %v6325, 1.0
      %v6369 = vadd.f32 %v6327, 1.0
      %v6370 = vadd.f32 %v6329, 1.0
      %v6371 = vadd.f32 %v6331, 1.0
      %v6372 = vadd.f32 %v6333, 1.0
      %v6373 = vadd.f32 %v6335, 1.0
      %v6374 = vadd.f32 %v6337, 1.0
      %v6375 = vadd.f32 %v6339, 1.0
      %v6376 = vrcp.pop %v6340
      %v6377 = vmul.f32 1.0, %v6376
      %v6378 = vrcp.pop %v6341
      %v6379 = vmul.f32 1.0, %v6378
      %v6380 = vrcp.pop %v6342
      %v6381 = vmul.f32 1.0, %v6380
      %v6382 = vrcp.pop %v6343
      %v6383 = vmul.f32 1.0, %v6382
      %v6384 = vrcp.pop %v6344
      %v6385 = vmul.f32 1.0, %v6384
      %v6386 = vrcp.pop %v6345
      %v6387 = vmul.f32 1.0, %v6386
      %v6388 = vrcp.pop %v6346
      %v6389 = vmul.f32 1.0, %v6388
      %v6390 = vrcp.pop %v6347
      %v6391 = vmul.f32 1.0, %v6390
      %v6392 = vrcp.pop %v6348
      %v6393 = vmul.f32 1.0, %v6392
      %v6394 = vrcp.pop %v6349
      %v6395 = vmul.f32 1.0, %v6394
      %v6396 = vrcp.pop %v6350
      %v6397 = vmul.f32 1.0, %v6396
      %v6398 = vrcp.pop %v6351
      %v6399 = vmul.f32 1.0, %v6398
      %v6400 = vrcp.pop %v6352
      %v6401 = vmul.f32 1.0, %v6400
      %v6402 = vrcp.pop %v6353
      %v6403 = vmul.f32 1.0, %v6402
      %v6404 = vrcp.pop %v6354
      %v6405 = vmul.f32 1.0, %v6404
      %v6406 = vrcp.pop %v6355
      %v6407 = vmul.f32 1.0, %v6406
      %v6408 = vrcp.pop %v6356
      %v6409 = vmul.f32 1.0, %v6408
      %v6410 = vrcp.pop %v6357
      %v6411 = vmul.f32 1.0, %v6410
      %v6412 = vrcp.pop %v6358
      %v6413 = vmul.f32 1.0, %v6412
      %v6414 = vrcp.pop %v6359
      %v6415 = vmul.f32 1.0, %v6414
      %v6416 = vrcp.pop %v6360
      %v6417 = vmul.f32 1.0, %v6416
      %v6418 = vrcp.pop %v6361
      %v6419 = vmul.f32 1.0, %v6418
      %v6420 = vrcp.pop %v6362
      %v6421 = vmul.f32 1.0, %v6420
      %v6422 = vrcp.pop %v6363
      %v6423 = vmul.f32 1.0, %v6422
      %v6424 = vrcp.pop %v6364
      %v6425 = vmul.f32 1.0, %v6424
      %v6426 = vrcp.pop %v6365
      %v6427 = vmul.f32 1.0, %v6426
      %v6428 = vrcp.pop %v6366
      %v6429 = vmul.f32 1.0, %v6428
      %v6430 = vrcp.pop %v6367
      %v6431 = vmul.f32 1.0, %v6430
      %v6432 = vrcp.pop %v6368
      %v6433 = vmul.f32 1.0, %v6432
      %v6434 = vrcp.pop %v6369
      %v6435 = vmul.f32 1.0, %v6434
      %v6436 = vrcp.pop %v6370
      %v6437 = vmul.f32 1.0, %v6436
      %v6438 = vrcp.pop %v6371
      %v6439 = vmul.f32 1.0, %v6438
      %v6440 = vrcp.pop %v6372
      %v6441 = vmul.f32 1.0, %v6440
      %v6442 = vrcp.pop %v6373
      %v6443 = vmul.f32 1.0, %v6442
      %v6444 = vrcp.pop %v6374
      %v6445 = vmul.f32 1.0, %v6444
      %v6446 = vrcp.pop %v6375
      %v6447 = vmul.f32 1.0, %v6446
      %v6448 = vtanh.pop %v6197
      %v6449 = vtanh.pop %v6199
      %v6450 = vtanh.pop %v6201
      %v6451 = vtanh.pop %v6203
      %v6452 = vtanh.pop %v6205
      %v6453 = vtanh.pop %v6207
      %v6454 = vtanh.pop %v6209
      %v6455 = vtanh.pop %v6211
      %v6456 = vtanh.pop %v6213
      %v6457 = vtanh.pop %v6215
      %v6458 = vtanh.pop %v6217
      %v6459 = vtanh.pop %v6219
      %v6460 = vtanh.pop %v6221
      %v6461 = vtanh.pop %v6223
      %v6462 = vtanh.pop %v6225
      %v6463 = vtanh.pop %v6227
      %v6464 = vtanh.pop %v6229
      %v6465 = vtanh.pop %v6231
      %v6466 = vld [vmem:[#allocation4] sm:$0xff]
      %v6467 = vld [vmem:[#allocation4 + $0x8] sm:$0xff]
      %v6468 = vld [vmem:[#allocation4 + $0x10] sm:$0xff]
      %v6469 = vld [vmem:[#allocation4 + $0x18] sm:$0xff]
      %v6470 = vld [vmem:[#allocation4 + $0x20] sm:$0xff]
      %v6471 = vld [vmem:[#allocation4 + $0x28] sm:$0xff]
      %v6472 = vld [vmem:[#allocation4 + $0x30] sm:$0xff]
      %v6473 = vld [vmem:[#allocation4 + $0x38] sm:$0xff]
      %v6474 = vld [vmem:[#allocation4 + $0x40] sm:$0xff]
      %v6475 = vld [vmem:[#allocation4 + $0x48] sm:$0xff]
      %v6476 = vld [vmem:[#allocation4 + $0x50] sm:$0xff]
      %v6477 = vld [vmem:[#allocation4 + $0x58] sm:$0xff]
      %v6478 = vld [vmem:[#allocation4 + $0x60] sm:$0xff]
      %v6479 = vld [vmem:[#allocation4 + $0x68] sm:$0xff]
      %v6480 = vld [vmem:[#allocation4 + $0x70] sm:$0xff]
      %v6481 = vld [vmem:[#allocation4 + $0x78] sm:$0xff]
      %v6482 = vld [vmem:[#allocation4 + $0x80] sm:$0xff]
      %v6483 = vld [vmem:[#allocation4 + $0x88] sm:$0xff]
      %6502 = vrot.lane.b32.xlu0 %v6466, 64
      %v6503 = vpop.permute.xlu0 %6502
      %6504 = vrot.lane.b32.xlu0 %v6467, 64
      %v6505 = vpop.permute.xlu0 %6504
      %6506 = vrot.lane.b32.xlu0 %v6468, 64
      %v6507 = vpop.permute.xlu0 %6506
      %6508 = vrot.lane.b32.xlu0 %v6469, 64
      %v6509 = vpop.permute.xlu0 %6508
      %6510 = vrot.lane.b32.xlu0 %v6470, 64
      %v6511 = vpop.permute.xlu0 %6510
      %6512 = vrot.lane.b32.xlu0 %v6471, 64
      %v6513 = vpop.permute.xlu0 %6512
      %6514 = vrot.lane.b32.xlu0 %v6472, 64
      %v6515 = vpop.permute.xlu0 %6514
      %6516 = vrot.lane.b32.xlu0 %v6473, 64
      %v6517 = vpop.permute.xlu0 %6516
      %6518 = vrot.lane.b32.xlu0 %v6474, 64
      %v6519 = vpop.permute.xlu0 %6518
      %6520 = vrot.lane.b32.xlu0 %v6475, 64
      %v6521 = vpop.permute.xlu0 %6520
      %6522 = vrot.lane.b32.xlu0 %v6476, 64
      %v6523 = vpop.permute.xlu0 %6522
      %6524 = vrot.lane.b32.xlu0 %v6477, 64
      %v6525 = vpop.permute.xlu0 %6524
      %6526 = vrot.lane.b32.xlu0 %v6478, 64
      %v6527 = vpop.permute.xlu0 %6526
      %6528 = vrot.lane.b32.xlu0 %v6479, 64
      %v6529 = vpop.permute.xlu0 %6528
      %6530 = vrot.lane.b32.xlu0 %v6480, 64
      %v6531 = vpop.permute.xlu0 %6530
      %6532 = vrot.lane.b32.xlu0 %v6481, 64
      %v6533 = vpop.permute.xlu0 %6532
      %6534 = vrot.lane.b32.xlu0 %v6482, 64
      %v6535 = vpop.permute.xlu0 %6534
      %6536 = vrot.lane.b32.xlu0 %v6483, 64
      %v6537 = vpop.permute.xlu0 %6536
      %v6556 = vmul.f32 %v6377, %v6503
      %v6557 = vmul.f32 %v6381, %v6505
      %v6558 = vmul.f32 %v6385, %v6507
      %v6559 = vmul.f32 %v6389, %v6509
      %v6560 = vmul.f32 %v6393, %v6511
      %v6561 = vmul.f32 %v6397, %v6513
      %v6562 = vmul.f32 %v6401, %v6515
      %v6563 = vmul.f32 %v6405, %v6517
      %v6564 = vmul.f32 %v6409, %v6519
      %v6565 = vmul.f32 %v6413, %v6521
      %v6566 = vmul.f32 %v6417, %v6523
      %v6567 = vmul.f32 %v6421, %v6525
      %v6568 = vmul.f32 %v6425, %v6527
      %v6569 = vmul.f32 %v6429, %v6529
      %v6570 = vmul.f32 %v6433, %v6531
      %v6571 = vmul.f32 %v6437, %v6533
      %v6572 = vmul.f32 %v6441, %v6535
      %v6573 = vmul.f32 %v6445, %v6537
      %6592 = vrot.lane.b32.xlu0 %v6448, 64
      %v6593 = vpop.permute.xlu0 %6592
      %6594 = vrot.lane.b32.xlu0 %v6449, 64
      %v6595 = vpop.permute.xlu0 %6594
      %6596 = vrot.lane.b32.xlu0 %v6450, 64
      %v6597 = vpop.permute.xlu0 %6596
      %6598 = vrot.lane.b32.xlu0 %v6451, 64
      %v6599 = vpop.permute.xlu0 %6598
      %6600 = vrot.lane.b32.xlu0 %v6452, 64
      %v6601 = vpop.permute.xlu0 %6600
      %6602 = vrot.lane.b32.xlu0 %v6453, 64
      %v6603 = vpop.permute.xlu0 %6602
      %6604 = vrot.lane.b32.xlu0 %v6454, 64
      %v6605 = vpop.permute.xlu0 %6604
      %6606 = vrot.lane.b32.xlu0 %v6455, 64
      %v6607 = vpop.permute.xlu0 %6606
      %6608 = vrot.lane.b32.xlu0 %v6456, 64
      %v6609 = vpop.permute.xlu0 %6608
      %6610 = vrot.lane.b32.xlu0 %v6457, 64
      %v6611 = vpop.permute.xlu0 %6610
      %6612 = vrot.lane.b32.xlu0 %v6458, 64
      %v6613 = vpop.permute.xlu0 %6612
      %6614 = vrot.lane.b32.xlu0 %v6459, 64
      %v6615 = vpop.permute.xlu0 %6614
      %6616 = vrot.lane.b32.xlu0 %v6460, 64
      %v6617 = vpop.permute.xlu0 %6616
      %6618 = vrot.lane.b32.xlu0 %v6461, 64
      %v6619 = vpop.permute.xlu0 %6618
      %6620 = vrot.lane.b32.xlu0 %v6462, 64
      %v6621 = vpop.permute.xlu0 %6620
      %6622 = vrot.lane.b32.xlu0 %v6463, 64
      %v6623 = vpop.permute.xlu0 %6622
      %6624 = vrot.lane.b32.xlu0 %v6464, 64
      %v6625 = vpop.permute.xlu0 %6624
      %6626 = vrot.lane.b32.xlu0 %v6465, 64
      %v6627 = vpop.permute.xlu0 %6626
      %v6646 = vmul.f32 %v6377, %v6593
      %v6647 = vmul.f32 %v6381, %v6595
      %v6648 = vmul.f32 %v6385, %v6597
      %v6649 = vmul.f32 %v6389, %v6599
      %v6650 = vmul.f32 %v6393, %v6601
      %v6651 = vmul.f32 %v6397, %v6603
      %v6652 = vmul.f32 %v6401, %v6605
      %v6653 = vmul.f32 %v6405, %v6607
      %v6654 = vmul.f32 %v6409, %v6609
      %v6655 = vmul.f32 %v6413, %v6611
      %v6656 = vmul.f32 %v6417, %v6613
      %v6657 = vmul.f32 %v6421, %v6615
      %v6658 = vmul.f32 %v6425, %v6617
      %v6659 = vmul.f32 %v6429, %v6619
      %v6660 = vmul.f32 %v6433, %v6621
      %v6661 = vmul.f32 %v6437, %v6623
      %v6662 = vmul.f32 %v6441, %v6625
      %v6663 = vmul.f32 %v6445, %v6627
      %6682 = vrot.lane.b32.xlu0 %v6646, 64
      %v6683 = vpop.permute.xlu0 %6682
      %6684 = vrot.lane.b32.xlu0 %v6647, 64
      %v6685 = vpop.permute.xlu0 %6684
      %6686 = vrot.lane.b32.xlu0 %v6648, 64
      %v6687 = vpop.permute.xlu0 %6686
      %6688 = vrot.lane.b32.xlu0 %v6649, 64
      %v6689 = vpop.permute.xlu0 %6688
      %6690 = vrot.lane.b32.xlu0 %v6650, 64
      %v6691 = vpop.permute.xlu0 %6690
      %6692 = vrot.lane.b32.xlu0 %v6651, 64
      %v6693 = vpop.permute.xlu0 %6692
      %6694 = vrot.lane.b32.xlu0 %v6652, 64
      %v6695 = vpop.permute.xlu0 %6694
      %6696 = vrot.lane.b32.xlu0 %v6653, 64
      %v6697 = vpop.permute.xlu0 %6696
      %6698 = vrot.lane.b32.xlu0 %v6654, 64
      %v6699 = vpop.permute.xlu0 %6698
      %6700 = vrot.lane.b32.xlu0 %v6655, 64
      %v6701 = vpop.permute.xlu0 %6700
      %6702 = vrot.lane.b32.xlu0 %v6656, 64
      %v6703 = vpop.permute.xlu0 %6702
      %6704 = vrot.lane.b32.xlu0 %v6657, 64
      %v6705 = vpop.permute.xlu0 %6704
      %6706 = vrot.lane.b32.xlu0 %v6658, 64
      %v6707 = vpop.permute.xlu0 %6706
      %6708 = vrot.lane.b32.xlu0 %v6659, 64
      %v6709 = vpop.permute.xlu0 %6708
      %6710 = vrot.lane.b32.xlu0 %v6660, 64
      %v6711 = vpop.permute.xlu0 %6710
      %6712 = vrot.lane.b32.xlu0 %v6661, 64
      %v6713 = vpop.permute.xlu0 %6712
      %6714 = vrot.lane.b32.xlu0 %v6662, 64
      %v6715 = vpop.permute.xlu0 %6714
      %6716 = vrot.lane.b32.xlu0 %v6663, 64
      %v6717 = vpop.permute.xlu0 %6716
      %v6736 = vadd.f32 %v6556, %v6683
      %v6737 = vadd.f32 %v6557, %v6685
      %v6738 = vadd.f32 %v6558, %v6687
      %v6739 = vadd.f32 %v6559, %v6689
      %v6740 = vadd.f32 %v6560, %v6691
      %v6741 = vadd.f32 %v6561, %v6693
      %v6742 = vadd.f32 %v6562, %v6695
      %v6743 = vadd.f32 %v6563, %v6697
      %v6744 = vadd.f32 %v6564, %v6699
      %v6745 = vadd.f32 %v6565, %v6701
      %v6746 = vadd.f32 %v6566, %v6703
      %v6747 = vadd.f32 %v6567, %v6705
      %v6748 = vadd.f32 %v6568, %v6707
      %v6749 = vadd.f32 %v6569, %v6709
      %v6750 = vadd.f32 %v6570, %v6711
      %v6751 = vadd.f32 %v6571, %v6713
      %v6752 = vadd.f32 %v6572, %v6715
      %v6753 = vadd.f32 %v6573, %v6717
      %v6754 = vtanh.pop %v6736
      %v6755 = vtanh.pop %v6737
      %v6756 = vtanh.pop %v6738
      %v6757 = vtanh.pop %v6739
      %v6758 = vtanh.pop %v6740
      %v6759 = vtanh.pop %v6741
      %v6760 = vtanh.pop %v6742
      %v6761 = vtanh.pop %v6743
      %v6762 = vtanh.pop %v6744
      %v6763 = vtanh.pop %v6745
      %v6764 = vtanh.pop %v6746
      %v6765 = vtanh.pop %v6747
      %v6766 = vtanh.pop %v6748
      %v6767 = vtanh.pop %v6749
      %v6768 = vtanh.pop %v6750
      %v6769 = vtanh.pop %v6751
      %v6770 = vtanh.pop %v6752
      %v6771 = vtanh.pop %v6753
      %6790 = vrot.lane.b32.xlu0 %v6754, 64
      %v6791 = vpop.permute.xlu0 %6790
      %6792 = vrot.lane.b32.xlu0 %v6755, 64
      %v6793 = vpop.permute.xlu0 %6792
      %6794 = vrot.lane.b32.xlu0 %v6756, 64
      %v6795 = vpop.permute.xlu0 %6794
      %6796 = vrot.lane.b32.xlu0 %v6757, 64
      %v6797 = vpop.permute.xlu0 %6796
      %6798 = vrot.lane.b32.xlu0 %v6758, 64
      %v6799 = vpop.permute.xlu0 %6798
      %6800 = vrot.lane.b32.xlu0 %v6759, 64
      %v6801 = vpop.permute.xlu0 %6800
      %6802 = vrot.lane.b32.xlu0 %v6760, 64
      %v6803 = vpop.permute.xlu0 %6802
      %6804 = vrot.lane.b32.xlu0 %v6761, 64
      %v6805 = vpop.permute.xlu0 %6804
      %6806 = vrot.lane.b32.xlu0 %v6762, 64
      %v6807 = vpop.permute.xlu0 %6806
      %6808 = vrot.lane.b32.xlu0 %v6763, 64
      %v6809 = vpop.permute.xlu0 %6808
      %6810 = vrot.lane.b32.xlu0 %v6764, 64
      %v6811 = vpop.permute.xlu0 %6810
      %6812 = vrot.lane.b32.xlu0 %v6765, 64
      %v6813 = vpop.permute.xlu0 %6812
      %6814 = vrot.lane.b32.xlu0 %v6766, 64
      %v6815 = vpop.permute.xlu0 %6814
      %6816 = vrot.lane.b32.xlu0 %v6767, 64
      %v6817 = vpop.permute.xlu0 %6816
      %6818 = vrot.lane.b32.xlu0 %v6768, 64
      %v6819 = vpop.permute.xlu0 %6818
      %6820 = vrot.lane.b32.xlu0 %v6769, 64
      %v6821 = vpop.permute.xlu0 %6820
      %6822 = vrot.lane.b32.xlu0 %v6770, 64
      %v6823 = vpop.permute.xlu0 %6822
      %6824 = vrot.lane.b32.xlu0 %v6771, 64
      %v6825 = vpop.permute.xlu0 %6824
      %v6844 = vmul.f32 %v6379, %v6791
      %v6845 = vmul.f32 %v6383, %v6793
      %v6846 = vmul.f32 %v6387, %v6795
      %v6847 = vmul.f32 %v6391, %v6797
      %v6848 = vmul.f32 %v6395, %v6799
      %v6849 = vmul.f32 %v6399, %v6801
      %v6850 = vmul.f32 %v6403, %v6803
      %v6851 = vmul.f32 %v6407, %v6805
      %v6852 = vmul.f32 %v6411, %v6807
      %v6853 = vmul.f32 %v6415, %v6809
      %v6854 = vmul.f32 %v6419, %v6811
      %v6855 = vmul.f32 %v6423, %v6813
      %v6856 = vmul.f32 %v6427, %v6815
      %v6857 = vmul.f32 %v6431, %v6817
      %v6858 = vmul.f32 %v6435, %v6819
      %v6859 = vmul.f32 %v6439, %v6821
      %v6860 = vmul.f32 %v6443, %v6823
      %v6861 = vmul.f32 %v6447, %v6825
      %v6862 = vsel %vm487, 1, 0
      %v6863 = vsel %vm488, 1, 0
      %v6864 = vsel %vm489, 1, 0
      %v6865 = vsel %vm490, 1, 0
      %v6866 = vsel %vm491, 1, 0
      %v6867 = vsel %vm492, 1, 0
      %v6868 = vsel %vm493, 1, 0
      %v6869 = vsel %vm494, 1, 0
      %v6870 = vsel %vm495, 1, 0
      %v6871 = vsel %vm496, 1, 0
      %v6872 = vsel %vm497, 1, 0
      %v6873 = vsel %vm498, 1, 0
      %v6874 = vsel %vm499, 1, 0
      %v6875 = vsel %vm500, 1, 0
      %v6876 = vsel %vm501, 1, 0
      %v6877 = vsel %vm502, 1, 0
      %v6878 = vsel %vm503, 1, 0
      %v6879 = vsel %vm504, 1, 0
      %6880 = vset.pattern.permute.xlu0 0
      %6881 = vperm.xlu0 %6880, %v6862
      %v6882 = vpop.permute.xlu0 %6881
      %6883 = vset.pattern.permute.xlu0 0
      %6884 = vperm.xlu0 %6883, %v6863
      %v6885 = vpop.permute.xlu0 %6884
      %6886 = vset.pattern.permute.xlu0 0
      %6887 = vperm.xlu0 %6886, %v6864
      %v6888 = vpop.permute.xlu0 %6887
      %6889 = vset.pattern.permute.xlu0 0
      %6890 = vperm.xlu0 %6889, %v6865
      %v6891 = vpop.permute.xlu0 %6890
      %6892 = vset.pattern.permute.xlu0 0
      %6893 = vperm.xlu0 %6892, %v6866
      %v6894 = vpop.permute.xlu0 %6893
      %6895 = vset.pattern.permute.xlu0 0
      %6896 = vperm.xlu0 %6895, %v6867
      %v6897 = vpop.permute.xlu0 %6896
      %6898 = vset.pattern.permute.xlu0 0
      %6899 = vperm.xlu0 %6898, %v6868
      %v6900 = vpop.permute.xlu0 %6899
      %6901 = vset.pattern.permute.xlu0 0
      %6902 = vperm.xlu0 %6901, %v6869
      %v6903 = vpop.permute.xlu0 %6902
      %6904 = vset.pattern.permute.xlu0 0
      %6905 = vperm.xlu0 %6904, %v6870
      %v6906 = vpop.permute.xlu0 %6905
      %6907 = vset.pattern.permute.xlu0 0
      %6908 = vperm.xlu0 %6907, %v6871
      %v6909 = vpop.permute.xlu0 %6908
      %6910 = vset.pattern.permute.xlu0 0
      %6911 = vperm.xlu0 %6910, %v6872
      %v6912 = vpop.permute.xlu0 %6911
      %6913 = vset.pattern.permute.xlu0 0
      %6914 = vperm.xlu0 %6913, %v6873
      %v6915 = vpop.permute.xlu0 %6914
      %6916 = vset.pattern.permute.xlu0 0
      %6917 = vperm.xlu0 %6916, %v6874
      %v6918 = vpop.permute.xlu0 %6917
      %6919 = vset.pattern.permute.xlu0 0
      %6920 = vperm.xlu0 %6919, %v6875
      %v6921 = vpop.permute.xlu0 %6920
      %6922 = vset.pattern.permute.xlu0 0
      %6923 = vperm.xlu0 %6922, %v6876
      %v6924 = vpop.permute.xlu0 %6923
      %6925 = vset.pattern.permute.xlu0 0
      %6926 = vperm.xlu0 %6925, %v6877
      %v6927 = vpop.permute.xlu0 %6926
      %6928 = vset.pattern.permute.xlu0 0
      %6929 = vperm.xlu0 %6928, %v6878
      %v6930 = vpop.permute.xlu0 %6929
      %6931 = vset.pattern.permute.xlu0 0
      %6932 = vperm.xlu0 %6931, %v6879
      %v6933 = vpop.permute.xlu0 %6932
      %vm6934 = vcmp.eq.s32.totalorder %v6882, 1
      %vm6935 = vcmp.eq.s32.totalorder %v6885, 1
      %vm6936 = vcmp.eq.s32.totalorder %v6888, 1
      %vm6937 = vcmp.eq.s32.totalorder %v6891, 1
      %vm6938 = vcmp.eq.s32.totalorder %v6894, 1
      %vm6939 = vcmp.eq.s32.totalorder %v6897, 1
      %vm6940 = vcmp.eq.s32.totalorder %v6900, 1
      %vm6941 = vcmp.eq.s32.totalorder %v6903, 1
      %vm6942 = vcmp.eq.s32.totalorder %v6906, 1
      %vm6943 = vcmp.eq.s32.totalorder %v6909, 1
      %vm6944 = vcmp.eq.s32.totalorder %v6912, 1
      %vm6945 = vcmp.eq.s32.totalorder %v6915, 1
      %vm6946 = vcmp.eq.s32.totalorder %v6918, 1
      %vm6947 = vcmp.eq.s32.totalorder %v6921, 1
      %vm6948 = vcmp.eq.s32.totalorder %v6924, 1
      %vm6949 = vcmp.eq.s32.totalorder %v6927, 1
      %vm6950 = vcmp.eq.s32.totalorder %v6930, 1
      %vm6951 = vcmp.eq.s32.totalorder %v6933, 1
      %v6952 = vsel %vm6934, %v6736, 0.0
      %v6953 = vsel %vm6935, %v6737, 0.0
      %v6954 = vsel %vm6936, %v6738, 0.0
      %v6955 = vsel %vm6937, %v6739, 0.0
      %v6956 = vsel %vm6938, %v6740, 0.0
      %v6957 = vsel %vm6939, %v6741, 0.0
      %v6958 = vsel %vm6940, %v6742, 0.0
      %v6959 = vsel %vm6941, %v6743, 0.0
      %v6960 = vsel %vm6942, %v6744, 0.0
      %v6961 = vsel %vm6943, %v6745, 0.0
      %v6962 = vsel %vm6944, %v6746, 0.0
      %v6963 = vsel %vm6945, %v6747, 0.0
      %v6964 = vsel %vm6946, %v6748, 0.0
      %v6965 = vsel %vm6947, %v6749, 0.0
      %v6966 = vsel %vm6948, %v6750, 0.0
      %v6967 = vsel %vm6949, %v6751, 0.0
      %v6968 = vsel %vm6950, %v6752, 0.0
      %v6969 = vsel %vm6951, %v6753, 0.0
      %6988 = vrot.lane.b32.xlu0 %v6952, 64
      %v6989 = vpop.permute.xlu0 %6988
      %6990 = vrot.lane.b32.xlu0 %v6953, 64
      %v6991 = vpop.permute.xlu0 %6990
      %6992 = vrot.lane.b32.xlu0 %v6954, 64
      %v6993 = vpop.permute.xlu0 %6992
      %6994 = vrot.lane.b32.xlu0 %v6955, 64
      %v6995 = vpop.permute.xlu0 %6994
      %6996 = vrot.lane.b32.xlu0 %v6956, 64
      %v6997 = vpop.permute.xlu0 %6996
      %6998 = vrot.lane.b32.xlu0 %v6957, 64
      %v6999 = vpop.permute.xlu0 %6998
      %7000 = vrot.lane.b32.xlu0 %v6958, 64
      %v7001 = vpop.permute.xlu0 %7000
      %7002 = vrot.lane.b32.xlu0 %v6959, 64
      %v7003 = vpop.permute.xlu0 %7002
      %7004 = vrot.lane.b32.xlu0 %v6960, 64
      %v7005 = vpop.permute.xlu0 %7004
      %7006 = vrot.lane.b32.xlu0 %v6961, 64
      %v7007 = vpop.permute.xlu0 %7006
      %7008 = vrot.lane.b32.xlu0 %v6962, 64
      %v7009 = vpop.permute.xlu0 %7008
      %7010 = vrot.lane.b32.xlu0 %v6963, 64
      %v7011 = vpop.permute.xlu0 %7010
      %7012 = vrot.lane.b32.xlu0 %v6964, 64
      %v7013 = vpop.permute.xlu0 %7012
      %7014 = vrot.lane.b32.xlu0 %v6965, 64
      %v7015 = vpop.permute.xlu0 %7014
      %7016 = vrot.lane.b32.xlu0 %v6966, 64
      %v7017 = vpop.permute.xlu0 %7016
      %7018 = vrot.lane.b32.xlu0 %v6967, 64
      %v7019 = vpop.permute.xlu0 %7018
      %7020 = vrot.lane.b32.xlu0 %v6968, 64
      %v7021 = vpop.permute.xlu0 %7020
      %7022 = vrot.lane.b32.xlu0 %v6969, 64
      %v7023 = vpop.permute.xlu0 %7022
      %vm7042 = vcmask 523264
      %7043 = vst.msk [vmem:[#allocation4] sm:$0xff] %vm7042, %v6989
      %7044 = vst.msk [vmem:[#allocation4 + $0x8] sm:$0xff] %vm7042, %v6991
      %7045 = vst.msk [vmem:[#allocation4 + $0x10] sm:$0xff] %vm7042, %v6993
      %7046 = vst.msk [vmem:[#allocation4 + $0x18] sm:$0xff] %vm7042, %v6995
      %7047 = vst.msk [vmem:[#allocation4 + $0x20] sm:$0xff] %vm7042, %v6997
      %7048 = vst.msk [vmem:[#allocation4 + $0x28] sm:$0xff] %vm7042, %v6999
      %7049 = vst.msk [vmem:[#allocation4 + $0x30] sm:$0xff] %vm7042, %v7001
      %7050 = vst.msk [vmem:[#allocation4 + $0x38] sm:$0xff] %vm7042, %v7003
      %7051 = vst.msk [vmem:[#allocation4 + $0x40] sm:$0xff] %vm7042, %v7005
      %7052 = vst.msk [vmem:[#allocation4 + $0x48] sm:$0xff] %vm7042, %v7007
      %7053 = vst.msk [vmem:[#allocation4 + $0x50] sm:$0xff] %vm7042, %v7009
      %7054 = vst.msk [vmem:[#allocation4 + $0x58] sm:$0xff] %vm7042, %v7011
      %7055 = vst.msk [vmem:[#allocation4 + $0x60] sm:$0xff] %vm7042, %v7013
      %7056 = vst.msk [vmem:[#allocation4 + $0x68] sm:$0xff] %vm7042, %v7015
      %7057 = vst.msk [vmem:[#allocation4 + $0x70] sm:$0xff] %vm7042, %v7017
      %7058 = vst.msk [vmem:[#allocation4 + $0x78] sm:$0xff] %vm7042, %v7019
      %7059 = vst.msk [vmem:[#allocation4 + $0x80] sm:$0xff] %vm7042, %v7021
      %7060 = vst.msk [vmem:[#allocation4 + $0x88] sm:$0xff] %vm7042, %v7023
      %v7061 = vsel %vm6934, %v6844, 0.0
      %v7062 = vsel %vm6935, %v6845, 0.0
      %v7063 = vsel %vm6936, %v6846, 0.0
      %v7064 = vsel %vm6937, %v6847, 0.0
      %v7065 = vsel %vm6938, %v6848, 0.0
      %v7066 = vsel %vm6939, %v6849, 0.0
      %v7067 = vsel %vm6940, %v6850, 0.0
      %v7068 = vsel %vm6941, %v6851, 0.0
      %v7069 = vsel %vm6942, %v6852, 0.0
      %v7070 = vsel %vm6943, %v6853, 0.0
      %v7071 = vsel %vm6944, %v6854, 0.0
      %v7072 = vsel %vm6945, %v6855, 0.0
      %v7073 = vsel %vm6946, %v6856, 0.0
      %v7074 = vsel %vm6947, %v6857, 0.0
      %v7075 = vsel %vm6948, %v6858, 0.0
      %v7076 = vsel %vm6949, %v6859, 0.0
      %v7077 = vsel %vm6950, %v6860, 0.0
      %v7078 = vsel %vm6951, %v6861, 0.0
      %7079 = vst.msk [vmem:[#allocation2 + $0x10] sm:$0xff] %vm7042, %v7061
      %7080 = vst.msk [vmem:[#allocation2 + $0x18] sm:$0xff] %vm7042, %v7062
      %7081 = vst.msk [vmem:[#allocation2 + $0x20] sm:$0xff] %vm7042, %v7063
      %7082 = vst.msk [vmem:[#allocation2 + $0x28] sm:$0xff] %vm7042, %v7064
      %7083 = vst.msk [vmem:[#allocation2 + $0x30] sm:$0xff] %vm7042, %v7065
      %7084 = vst.msk [vmem:[#allocation2 + $0x38] sm:$0xff] %vm7042, %v7066
      %7085 = vst.msk [vmem:[#allocation2 + $0x40] sm:$0xff] %vm7042, %v7067
      %7086 = vst.msk [vmem:[#allocation2 + $0x48] sm:$0xff] %vm7042, %v7068
      %7087 = vst.msk [vmem:[#allocation2 + $0x50] sm:$0xff] %vm7042, %v7069
      %7088 = vst.msk [vmem:[#allocation2 + $0x58] sm:$0xff] %vm7042, %v7070
      %7089 = vst.msk [vmem:[#allocation2 + $0x60] sm:$0xff] %vm7042, %v7071
      %7090 = vst.msk [vmem:[#allocation2 + $0x68] sm:$0xff] %vm7042, %v7072
      %7091 = vst.msk [vmem:[#allocation2 + $0x70] sm:$0xff] %vm7042, %v7073
      %7092 = vst.msk [vmem:[#allocation2 + $0x78] sm:$0xff] %vm7042, %v7074
      %7093 = vst.msk [vmem:[#allocation2 + $0x80] sm:$0xff] %vm7042, %v7075
      %7094 = vst.msk [vmem:[#allocation2 + $0x88] sm:$0xff] %vm7042, %v7076
      %7095 = vst.msk [vmem:[#allocation2 + $0x90] sm:$0xff] %vm7042, %v7077
      %7096 = vst.msk [vmem:[#allocation2 + $0x98] sm:$0xff] %vm7042, %v7078
      %7097 = vst.msk [vmem:[#allocation3 + $0x10] sm:$0xff] %vm7042, %v7061
      %7098 = vst.msk [vmem:[#allocation3 + $0x18] sm:$0xff] %vm7042, %v7062
      %7099 = vst.msk [vmem:[#allocation3 + $0x20] sm:$0xff] %vm7042, %v7063
      %7100 = vst.msk [vmem:[#allocation3 + $0x28] sm:$0xff] %vm7042, %v7064
      %7101 = vst.msk [vmem:[#allocation3 + $0x30] sm:$0xff] %vm7042, %v7065
      %7102 = vst.msk [vmem:[#allocation3 + $0x38] sm:$0xff] %vm7042, %v7066
      %7103 = vst.msk [vmem:[#allocation3 + $0x40] sm:$0xff] %vm7042, %v7067
      %7104 = vst.msk [vmem:[#allocation3 + $0x48] sm:$0xff] %vm7042, %v7068
      %7105 = vst.msk [vmem:[#allocation3 + $0x50] sm:$0xff] %vm7042, %v7069
      %7106 = vst.msk [vmem:[#allocation3 + $0x58] sm:$0xff] %vm7042, %v7070
      %7107 = vst.msk [vmem:[#allocation3 + $0x60] sm:$0xff] %vm7042, %v7071
      %7108 = vst.msk [vmem:[#allocation3 + $0x68] sm:$0xff] %vm7042, %v7072
      %7109 = vst.msk [vmem:[#allocation3 + $0x70] sm:$0xff] %vm7042, %v7073
      %7110 = vst.msk [vmem:[#allocation3 + $0x78] sm:$0xff] %vm7042, %v7074
      %7111 = vst.msk [vmem:[#allocation3 + $0x80] sm:$0xff] %vm7042, %v7075
      %7112 = vst.msk [vmem:[#allocation3 + $0x88] sm:$0xff] %vm7042, %v7076
      %7113 = vst.msk [vmem:[#allocation3 + $0x90] sm:$0xff] %vm7042, %v7077
      %7114 = vst.msk [vmem:[#allocation3 + $0x98] sm:$0xff] %vm7042, %v7078
      %v7115 = vld [vmem:[#allocation3] sm:$0xff]
      %v7116 = vld [vmem:[#allocation3 + $0x8] sm:$0xff]
      %v7117 = vld [vmem:[#allocation3 + $0x10] sm:$0xff]
      %v7118 = vld [vmem:[#allocation3 + $0x18] sm:$0xff]
      %v7119 = vld [vmem:[#allocation3 + $0x20] sm:$0xff]
      %v7120 = vld [vmem:[#allocation3 + $0x28] sm:$0xff]
      %v7121 = vld [vmem:[#allocation3 + $0x30] sm:$0xff]
      %v7122 = vld [vmem:[#allocation3 + $0x38] sm:$0xff]
      %v7123 = vld [vmem:[#allocation3 + $0x40] sm:$0xff]
      %v7124 = vld [vmem:[#allocation3 + $0x48] sm:$0xff]
      %v7125 = vld [vmem:[#allocation3 + $0x50] sm:$0xff]
      %v7126 = vld [vmem:[#allocation3 + $0x58] sm:$0xff]
      %v7127 = vld [vmem:[#allocation3 + $0x60] sm:$0xff]
      %v7128 = vld [vmem:[#allocation3 + $0x68] sm:$0xff]
      %v7129 = vld [vmem:[#allocation3 + $0x70] sm:$0xff]
      %v7130 = vld [vmem:[#allocation3 + $0x78] sm:$0xff]
      %v7131 = vld [vmem:[#allocation3 + $0x80] sm:$0xff]
      %v7132 = vld [vmem:[#allocation3 + $0x88] sm:$0xff]
      %v7133 = vld [vmem:[#allocation3 + $0x90] sm:$0xff]
      %v7134 = vld [vmem:[#allocation3 + $0x98] sm:$0xff]
      %v7135 = vld [vmem:[#allocation3 + $0xa0] sm:$0xff]
      %v7136 = vld [vmem:[#allocation3 + $0xa8] sm:$0xff]
      %v7137 = vpack.c.bf16 %v7116, %v7115
      %v7138 = vpack.c.bf16 %v7118, %v7117
      %v7139 = vpack.c.bf16 %v7120, %v7119
      %v7140 = vpack.c.bf16 %v7122, %v7121
      %v7141 = vpack.c.bf16 %v7124, %v7123
      %v7142 = vpack.c.bf16 %v7126, %v7125
      %v7143 = vpack.c.bf16 %v7128, %v7127
      %v7144 = vpack.c.bf16 %v7130, %v7129
      %v7145 = vpack.c.bf16 %v7132, %v7131
      %v7146 = vpack.c.bf16 %v7134, %v7133
      %v7147 = vpack.c.bf16 %v7136, %v7135
      %v7148 = vld [vmem:[%s4] sm:$0xff]
      %v7149 = vld [vmem:[%s4 + $0x8] sm:$0xff]
      %v7150 = vld [vmem:[%s4 + $0x10] sm:$0xff]
      %v7151 = vld [vmem:[%s4 + $0x18] sm:$0xff]
      %v7152 = vld [vmem:[%s4 + $0x20] sm:$0xff]
      %v7153 = vld [vmem:[%s4 + $0x28] sm:$0xff]
      %v7154 = vld [vmem:[%s4 + $0x30] sm:$0xff]
      %v7155 = vld [vmem:[%s4 + $0x38] sm:$0xff]
      %v7156 = vld [vmem:[%s4 + $0x40] sm:$0xff]
      %v7157 = vld [vmem:[%s4 + $0x48] sm:$0xff]
      %v7158 = vld [vmem:[%s4 + $0x50] sm:$0xff]
      %v7159 = vld [vmem:[%s4 + $0x58] sm:$0xff]
      %v7160 = vld [vmem:[%s4 + $0x60] sm:$0xff]
      %v7161 = vld [vmem:[%s4 + $0x68] sm:$0xff]
      %v7162 = vld [vmem:[%s4 + $0x70] sm:$0xff]
      %v7163 = vld [vmem:[%s4 + $0x78] sm:$0xff]
      %s7164 = scalar_lea.vmem %s4, 128
      %v7165 = vld [vmem:[%s7164] sm:$0xff]
      %v7166 = vld [vmem:[%s7164 + $0x8] sm:$0xff]
      %v7167 = vld [vmem:[%s7164 + $0x10] sm:$0xff]
      %v7168 = vld [vmem:[%s7164 + $0x18] sm:$0xff]
      %v7169 = vld [vmem:[%s7164 + $0x20] sm:$0xff]
      %v7170 = vld [vmem:[%s7164 + $0x28] sm:$0xff]
      %v7171 = vld [vmem:[%s7164 + $0x30] sm:$0xff]
      %v7172 = vld [vmem:[%s7164 + $0x38] sm:$0xff]
      %v7173 = vld [vmem:[%s7164 + $0x40] sm:$0xff]
      %v7174 = vld [vmem:[%s7164 + $0x48] sm:$0xff]
      %v7175 = vld [vmem:[%s7164 + $0x50] sm:$0xff]
      %v7176 = vld [vmem:[%s7164 + $0x58] sm:$0xff]
      %v7177 = vld [vmem:[%s7164 + $0x60] sm:$0xff]
      %v7178 = vld [vmem:[%s7164 + $0x68] sm:$0xff]
      %v7179 = vld [vmem:[%s7164 + $0x70] sm:$0xff]
      %v7180 = vld [vmem:[%s7164 + $0x78] sm:$0xff]
      %v7191 = vrot.slane %v7137, 2
      %v7192 = vrot.slane %v7138, 2
      %v7193 = vsel %vm3600, %v7191, %v7192
      %v7194 = vrot.slane %v7139, 2
      %v7195 = vsel %vm3600, %v7192, %v7194
      %v7196 = vrot.slane %v7140, 2
      %v7197 = vsel %vm3600, %v7194, %v7196
      %v7198 = vrot.slane %v7141, 2
      %v7199 = vsel %vm3600, %v7196, %v7198
      %v7200 = vrot.slane %v7142, 2
      %v7201 = vsel %vm3600, %v7198, %v7200
      %v7202 = vrot.slane %v7143, 2
      %v7203 = vsel %vm3600, %v7200, %v7202
      %v7204 = vrot.slane %v7144, 2
      %v7205 = vsel %vm3600, %v7202, %v7204
      %v7206 = vrot.slane %v7145, 2
      %v7207 = vsel %vm3600, %v7204, %v7206
      %v7208 = vrot.slane %v7146, 2
      %v7209 = vsel %vm3600, %v7206, %v7208
      %v7235 = vunpack.c.l.b16 %v7165
      %v7236 = vunpack.c.h.b16 %v7165
      %v7237 = vunpack.c.l.b16 %v7166
      %v7238 = vunpack.c.h.b16 %v7166
      %v7239 = vunpack.c.l.b16 %v7167
      %v7240 = vunpack.c.h.b16 %v7167
      %v7241 = vunpack.c.l.b16 %v7168
      %v7242 = vunpack.c.h.b16 %v7168
      %v7243 = vunpack.c.l.b16 %v7169
      %v7244 = vunpack.c.h.b16 %v7169
      %v7245 = vunpack.c.l.b16 %v7170
      %v7246 = vunpack.c.h.b16 %v7170
      %v7247 = vunpack.c.l.b16 %v7171
      %v7248 = vunpack.c.h.b16 %v7171
      %v7249 = vunpack.c.l.b16 %v7172
      %v7250 = vunpack.c.h.b16 %v7172
      %v7251 = vunpack.c.l.b16 %v7173
      %v7252 = vunpack.c.h.b16 %v7173
      %v7253 = vunpack.c.l.b16 %v7174
      %v7254 = vunpack.c.h.b16 %v7174
      %v7255 = vunpack.c.l.b16 %v7175
      %v7256 = vunpack.c.h.b16 %v7175
      %v7257 = vunpack.c.l.b16 %v7176
      %v7258 = vunpack.c.h.b16 %v7176
      %v7259 = vunpack.c.l.b16 %v7177
      %v7260 = vunpack.c.h.b16 %v7177
      %v7261 = vunpack.c.l.b16 %v7178
      %v7262 = vunpack.c.h.b16 %v7178
      %v7263 = vunpack.c.l.b16 %v7179
      %v7264 = vunpack.c.h.b16 %v7179
      %v7265 = vunpack.c.l.b16 %v7180
      %v7266 = vunpack.c.h.b16 %v7180
      %v7267 = vpack.c.b16 %v7237, %v7235
      %v7268 = vpack.c.b16 %v7238, %v7236
      %v7269 = vpack.c.b16 %v7241, %v7239
      %v7270 = vpack.c.b16 %v7242, %v7240
      %v7271 = vpack.c.b16 %v7245, %v7243
      %v7272 = vpack.c.b16 %v7246, %v7244
      %v7273 = vpack.c.b16 %v7249, %v7247
      %v7274 = vpack.c.b16 %v7250, %v7248
      %v7275 = vpack.c.b16 %v7253, %v7251
      %v7276 = vpack.c.b16 %v7254, %v7252
      %v7277 = vpack.c.b16 %v7257, %v7255
      %v7278 = vpack.c.b16 %v7258, %v7256
      %v7279 = vpack.c.b16 %v7261, %v7259
      %v7280 = vpack.c.b16 %v7262, %v7260
      %v7281 = vpack.c.b16 %v7265, %v7263
      %v7282 = vpack.c.b16 %v7266, %v7264
      %7299 = vmatprep.subr.bf16.mxu0 %v7268
      %7300 = vmatpush1.bf16.msra.mxu0 %v7267
      %7301 = vmatprep.subr.bf16.mxu0 %v7270
      %7302 = vmatpush1.bf16.msra.mxu0 %v7269
      %7303 = vmatprep.subr.bf16.mxu0 %v7272
      %7304 = vmatpush1.bf16.msra.mxu0 %v7271
      %7305 = vmatprep.subr.bf16.mxu0 %v7274
      %7306 = vmatpush1.bf16.msra.mxu0 %v7273
      %7307 = vmatprep.subr.bf16.mxu0 %v7276
      %7308 = vmatpush1.bf16.msra.mxu0 %v7275
      %7309 = vmatprep.subr.bf16.mxu0 %v7278
      %7310 = vmatpush1.bf16.msra.mxu0 %v7277
      %7311 = vmatprep.subr.bf16.mxu0 %v7280
      %7312 = vmatpush1.bf16.msra.mxu0 %v7279
      %7313 = vmatprep.subr.bf16.mxu0 %v7282
      %7314 = vmatpush1.bf16.msra.mxu0 %v7281
      %7315 = vmatprep.subr.bf16.mxu0 0
      %7316 = vmatpush1.bf16.msra.mxu0 0
      %7317 = vmatprep.subr.bf16.mxu0 0
      %7318 = vmatpush1.bf16.msra.mxu0 0
      %7319 = vmatprep.subr.bf16.mxu0 0
      %7320 = vmatpush1.bf16.msra.mxu0 0
      %7321 = vmatprep.subr.bf16.mxu0 0
      %7322 = vmatpush1.bf16.msra.mxu0 0
      %7323 = vmatprep.subr.bf16.mxu0 0
      %7324 = vmatpush1.bf16.msra.mxu0 0
      %7325 = vmatprep.subr.bf16.mxu0 0
      %7326 = vmatpush1.bf16.msra.mxu0 0
      %7327 = vmatprep.subr.bf16.mxu0 0
      %7328 = vmatpush1.bf16.msra.mxu0 0
      %7329 = vmatprep.subr.bf16.mxu0 0
      %7330 = vmatpush1.bf16.msra.mxu0 0
      %7331 = vmatprep.mubr.bf16.mxu0 0
      %7332 = vmatmul.mubr.bf16.gmra.mrb[0].mxu0 %v7193
      %v7333 = vpop.f32.mrb[0].mxu0
      %v7334 = vadd.f32 0.0, %v7333
      %v7335 = vpop.f32.mrb[0].mxu0
      %v7336 = vadd.f32 0.0, %v7335
      %v7337 = vpop.f32.mrb[0].mxu0
      %v7338 = vadd.f32 0.0, %v7337
      %v7339 = vpop.f32.mrb[0].mxu0
      %v7340 = vadd.f32 0.0, %v7339
      %7341 = vmatprep.mubr.bf16.mxu0 0
      %7342 = vmatmul.mubr.bf16.gmra.mrb[0].mxu0 %v7195
      %v7343 = vpop.f32.mrb[0].mxu0
      %v7344 = vadd.f32 0.0, %v7343
      %v7345 = vpop.f32.mrb[0].mxu0
      %v7346 = vadd.f32 0.0, %v7345
      %v7347 = vpop.f32.mrb[0].mxu0
      %v7348 = vadd.f32 0.0, %v7347
      %v7349 = vpop.f32.mrb[0].mxu0
      %v7350 = vadd.f32 0.0, %v7349
      %7351 = vmatprep.mubr.bf16.mxu0 0
      %7352 = vmatmul.mubr.bf16.gmra.mrb[0].mxu0 %v7197
      %v7353 = vpop.f32.mrb[0].mxu0
      %v7354 = vadd.f32 0.0, %v7353
      %v7355 = vpop.f32.mrb[0].mxu0
      %v7356 = vadd.f32 0.0, %v7355
      %v7357 = vpop.f32.mrb[0].mxu0
      %v7358 = vadd.f32 0.0, %v7357
      %v7359 = vpop.f32.mrb[0].mxu0
      %v7360 = vadd.f32 0.0, %v7359
      %7361 = vmatprep.mubr.bf16.mxu0 0
      %7362 = vmatmul.mubr.bf16.gmra.mrb[0].mxu0 %v7199
      %v7363 = vpop.f32.mrb[0].mxu0
      %v7364 = vadd.f32 0.0, %v7363
      %v7365 = vpop.f32.mrb[0].mxu0
      %v7366 = vadd.f32 0.0, %v7365
      %v7367 = vpop.f32.mrb[0].mxu0
      %v7368 = vadd.f32 0.0, %v7367
      %v7369 = vpop.f32.mrb[0].mxu0
      %v7370 = vadd.f32 0.0, %v7369
      %7371 = vmatprep.mubr.bf16.mxu0 0
      %7372 = vmatmul.mubr.bf16.gmra.mrb[0].mxu0 %v7201
      %v7373 = vpop.f32.mrb[0].mxu0
      %v7374 = vadd.f32 0.0, %v7373
      %v7375 = vpop.f32.mrb[0].mxu0
      %v7376 = vadd.f32 0.0, %v7375
      %v7377 = vpop.f32.mrb[0].mxu0
      %v7378 = vadd.f32 0.0, %v7377
      %v7379 = vpop.f32.mrb[0].mxu0
      %v7380 = vadd.f32 0.0, %v7379
      %7381 = vmatprep.mubr.bf16.mxu0 0
      %7382 = vmatmul.mubr.bf16.gmra.mrb[0].mxu0 %v7203
      %v7383 = vpop.f32.mrb[0].mxu0
      %v7384 = vadd.f32 0.0, %v7383
      %v7385 = vpop.f32.mrb[0].mxu0
      %v7386 = vadd.f32 0.0, %v7385
      %v7387 = vpop.f32.mrb[0].mxu0
      %v7388 = vadd.f32 0.0, %v7387
      %v7389 = vpop.f32.mrb[0].mxu0
      %v7390 = vadd.f32 0.0, %v7389
      %7391 = vmatprep.mubr.bf16.mxu0 0
      %7392 = vmatmul.mubr.bf16.gmra.mrb[0].mxu0 %v7205
      %v7393 = vpop.f32.mrb[0].mxu0
      %v7394 = vadd.f32 0.0, %v7393
      %v7395 = vpop.f32.mrb[0].mxu0
      %v7396 = vadd.f32 0.0, %v7395
      %v7397 = vpop.f32.mrb[0].mxu0
      %v7398 = vadd.f32 0.0, %v7397
      %v7399 = vpop.f32.mrb[0].mxu0
      %v7400 = vadd.f32 0.0, %v7399
      %7401 = vmatprep.mubr.bf16.mxu0 0
      %7402 = vmatmul.mubr.bf16.gmra.mrb[0].mxu0 %v7207
      %v7403 = vpop.f32.mrb[0].mxu0
      %v7404 = vadd.f32 0.0, %v7403
      %v7405 = vpop.f32.mrb[0].mxu0
      %v7406 = vadd.f32 0.0, %v7405
      %v7407 = vpop.f32.mrb[0].mxu0
      %v7408 = vadd.f32 0.0, %v7407
      %v7409 = vpop.f32.mrb[0].mxu0
      %v7410 = vadd.f32 0.0, %v7409
      %7411 = vmatprep.mubr.bf16.mxu0 0
      %7412 = vmatmul.mubr.bf16.gmra.mrb[0].mxu0 %v7209
      %v7413 = vpop.f32.mrb[0].mxu0
      %v7414 = vadd.f32 0.0, %v7413
      %v7415 = vpop.f32.mrb[0].mxu0
      %v7416 = vadd.f32 0.0, %v7415
      %v7417 = vpop.f32.mrb[0].mxu0
      %v7418 = vadd.f32 0.0, %v7417
      %v7419 = vpop.f32.mrb[0].mxu0
      %v7420 = vadd.f32 0.0, %v7419
      %7421 = vdwg.mxu0
      %v7423 = vshrl.u32 %v7137, 16
      %v7425 = vrot.slane %v7423, 1
      %v7426 = vshll.u32 %v7137, 16
      %v7428 = vrot.slane %v7426, 2
      %v7429 = vor.u32 %v7425, %v7428
      %v7431 = vshrl.u32 %v7138, 16
      %v7433 = vrot.slane %v7431, 1
      %v7434 = vshll.u32 %v7138, 16
      %v7436 = vrot.slane %v7434, 2
      %v7437 = vor.u32 %v7433, %v7436
      %v7438 = vsel %vm3832, %v7429, %v7437
      %v7440 = vshrl.u32 %v7139, 16
      %v7442 = vrot.slane %v7440, 1
      %v7443 = vshll.u32 %v7139, 16
      %v7445 = vrot.slane %v7443, 2
      %v7446 = vor.u32 %v7442, %v7445
      %v7447 = vsel %vm3832, %v7437, %v7446
      %v7449 = vshrl.u32 %v7140, 16
      %v7451 = vrot.slane %v7449, 1
      %v7452 = vshll.u32 %v7140, 16
      %v7454 = vrot.slane %v7452, 2
      %v7455 = vor.u32 %v7451, %v7454
      %v7456 = vsel %vm3832, %v7446, %v7455
      %v7458 = vshrl.u32 %v7141, 16
      %v7460 = vrot.slane %v7458, 1
      %v7461 = vshll.u32 %v7141, 16
      %v7463 = vrot.slane %v7461, 2
      %v7464 = vor.u32 %v7460, %v7463
      %v7465 = vsel %vm3832, %v7455, %v7464
      %v7467 = vshrl.u32 %v7142, 16
      %v7469 = vrot.slane %v7467, 1
      %v7470 = vshll.u32 %v7142, 16
      %v7472 = vrot.slane %v7470, 2
      %v7473 = vor.u32 %v7469, %v7472
      %v7474 = vsel %vm3832, %v7464, %v7473
      %v7476 = vshrl.u32 %v7143, 16
      %v7478 = vrot.slane %v7476, 1
      %v7479 = vshll.u32 %v7143, 16
      %v7481 = vrot.slane %v7479, 2
      %v7482 = vor.u32 %v7478, %v7481
      %v7483 = vsel %vm3832, %v7473, %v7482
      %v7485 = vshrl.u32 %v7144, 16
      %v7487 = vrot.slane %v7485, 1
      %v7488 = vshll.u32 %v7144, 16
      %v7490 = vrot.slane %v7488, 2
      %v7491 = vor.u32 %v7487, %v7490
      %v7492 = vsel %vm3832, %v7482, %v7491
      %v7494 = vshrl.u32 %v7145, 16
      %v7496 = vrot.slane %v7494, 1
      %v7497 = vshll.u32 %v7145, 16
      %v7499 = vrot.slane %v7497, 2
      %v7500 = vor.u32 %v7496, %v7499
      %v7501 = vsel %vm3832, %v7491, %v7500
      %v7503 = vshrl.u32 %v7146, 16
      %v7505 = vrot.slane %v7503, 1
      %v7506 = vshll.u32 %v7146, 16
      %v7508 = vrot.slane %v7506, 2
      %v7509 = vor.u32 %v7505, %v7508
      %v7510 = vsel %vm3832, %v7500, %v7509
      %v7536 = vunpack.c.l.b16 %v7148
      %v7537 = vunpack.c.h.b16 %v7148
      %v7538 = vunpack.c.l.b16 %v7149
      %v7539 = vunpack.c.h.b16 %v7149
      %v7540 = vunpack.c.l.b16 %v7150
      %v7541 = vunpack.c.h.b16 %v7150
      %v7542 = vunpack.c.l.b16 %v7151
      %v7543 = vunpack.c.h.b16 %v7151
      %v7544 = vunpack.c.l.b16 %v7152
      %v7545 = vunpack.c.h.b16 %v7152
      %v7546 = vunpack.c.l.b16 %v7153
      %v7547 = vunpack.c.h.b16 %v7153
      %v7548 = vunpack.c.l.b16 %v7154
      %v7549 = vunpack.c.h.b16 %v7154
      %v7550 = vunpack.c.l.b16 %v7155
      %v7551 = vunpack.c.h.b16 %v7155
      %v7552 = vunpack.c.l.b16 %v7156
      %v7553 = vunpack.c.h.b16 %v7156
      %v7554 = vunpack.c.l.b16 %v7157
      %v7555 = vunpack.c.h.b16 %v7157
      %v7556 = vunpack.c.l.b16 %v7158
      %v7557 = vunpack.c.h.b16 %v7158
      %v7558 = vunpack.c.l.b16 %v7159
      %v7559 = vunpack.c.h.b16 %v7159
      %v7560 = vunpack.c.l.b16 %v7160
      %v7561 = vunpack.c.h.b16 %v7160
      %v7562 = vunpack.c.l.b16 %v7161
      %v7563 = vunpack.c.h.b16 %v7161
      %v7564 = vunpack.c.l.b16 %v7162
      %v7565 = vunpack.c.h.b16 %v7162
      %v7566 = vunpack.c.l.b16 %v7163
      %v7567 = vunpack.c.h.b16 %v7163
      %v7568 = vpack.c.b16 %v7538, %v7536
      %v7569 = vpack.c.b16 %v7539, %v7537
      %v7570 = vpack.c.b16 %v7542, %v7540
      %v7571 = vpack.c.b16 %v7543, %v7541
      %v7572 = vpack.c.b16 %v7546, %v7544
      %v7573 = vpack.c.b16 %v7547, %v7545
      %v7574 = vpack.c.b16 %v7550, %v7548
      %v7575 = vpack.c.b16 %v7551, %v7549
      %v7576 = vpack.c.b16 %v7554, %v7552
      %v7577 = vpack.c.b16 %v7555, %v7553
      %v7578 = vpack.c.b16 %v7558, %v7556
      %v7579 = vpack.c.b16 %v7559, %v7557
      %v7580 = vpack.c.b16 %v7562, %v7560
      %v7581 = vpack.c.b16 %v7563, %v7561
      %v7582 = vpack.c.b16 %v7566, %v7564
      %v7583 = vpack.c.b16 %v7567, %v7565
      %7600 = vmatprep.subr.bf16.mxu0 %v7569
      %7601 = vmatpush1.bf16.msra.mxu0 %v7568
      %7602 = vmatprep.subr.bf16.mxu0 %v7571
      %7603 = vmatpush1.bf16.msra.mxu0 %v7570
      %7604 = vmatprep.subr.bf16.mxu0 %v7573
      %7605 = vmatpush1.bf16.msra.mxu0 %v7572
      %7606 = vmatprep.subr.bf16.mxu0 %v7575
      %7607 = vmatpush1.bf16.msra.mxu0 %v7574
      %7608 = vmatprep.subr.bf16.mxu0 %v7577
      %7609 = vmatpush1.bf16.msra.mxu0 %v7576
      %7610 = vmatprep.subr.bf16.mxu0 %v7579
      %7611 = vmatpush1.bf16.msra.mxu0 %v7578
      %7612 = vmatprep.subr.bf16.mxu0 %v7581
      %7613 = vmatpush1.bf16.msra.mxu0 %v7580
      %7614 = vmatprep.subr.bf16.mxu0 %v7583
      %7615 = vmatpush1.bf16.msra.mxu0 %v7582
      %7616 = vmatprep.subr.bf16.mxu0 0
      %7617 = vmatpush1.bf16.msra.mxu0 0
      %7618 = vmatprep.subr.bf16.mxu0 0
      %7619 = vmatpush1.bf16.msra.mxu0 0
      %7620 = vmatprep.subr.bf16.mxu0 0
      %7621 = vmatpush1.bf16.msra.mxu0 0
      %7622 = vmatprep.subr.bf16.mxu0 0
      %7623 = vmatpush1.bf16.msra.mxu0 0
      %7624 = vmatprep.subr.bf16.mxu0 0
      %7625 = vmatpush1.bf16.msra.mxu0 0
      %7626 = vmatprep.subr.bf16.mxu0 0
      %7627 = vmatpush1.bf16.msra.mxu0 0
      %7628 = vmatprep.subr.bf16.mxu0 0
      %7629 = vmatpush1.bf16.msra.mxu0 0
      %7630 = vmatprep.subr.bf16.mxu0 0
      %7631 = vmatpush1.bf16.msra.mxu0 0
      %7632 = vmatprep.mubr.bf16.mxu0 0
      %7633 = vmatmul.mubr.bf16.gmra.mrb[0].mxu0 %v7438
      %v7634 = vpop.f32.mrb[0].mxu0
      %v7635 = vadd.f32 %v7334, %v7634
      %v7636 = vpop.f32.mrb[0].mxu0
      %v7637 = vadd.f32 %v7336, %v7636
      %v7638 = vpop.f32.mrb[0].mxu0
      %v7639 = vadd.f32 %v7338, %v7638
      %v7640 = vpop.f32.mrb[0].mxu0
      %v7641 = vadd.f32 %v7340, %v7640
      %7642 = vmatprep.mubr.bf16.mxu0 0
      %7643 = vmatmul.mubr.bf16.gmra.mrb[0].mxu0 %v7447
      %v7644 = vpop.f32.mrb[0].mxu0
      %v7645 = vadd.f32 %v7344, %v7644
      %v7646 = vpop.f32.mrb[0].mxu0
      %v7647 = vadd.f32 %v7346, %v7646
      %v7648 = vpop.f32.mrb[0].mxu0
      %v7649 = vadd.f32 %v7348, %v7648
      %v7650 = vpop.f32.mrb[0].mxu0
      %v7651 = vadd.f32 %v7350, %v7650
      %7652 = vmatprep.mubr.bf16.mxu0 0
      %7653 = vmatmul.mubr.bf16.gmra.mrb[0].mxu0 %v7456
      %v7654 = vpop.f32.mrb[0].mxu0
      %v7655 = vadd.f32 %v7354, %v7654
      %v7656 = vpop.f32.mrb[0].mxu0
      %v7657 = vadd.f32 %v7356, %v7656
      %v7658 = vpop.f32.mrb[0].mxu0
      %v7659 = vadd.f32 %v7358, %v7658
      %v7660 = vpop.f32.mrb[0].mxu0
      %v7661 = vadd.f32 %v7360, %v7660
      %7662 = vmatprep.mubr.bf16.mxu0 0
      %7663 = vmatmul.mubr.bf16.gmra.mrb[0].mxu0 %v7465
      %v7664 = vpop.f32.mrb[0].mxu0
      %v7665 = vadd.f32 %v7364, %v7664
      %v7666 = vpop.f32.mrb[0].mxu0
      %v7667 = vadd.f32 %v7366, %v7666
      %v7668 = vpop.f32.mrb[0].mxu0
      %v7669 = vadd.f32 %v7368, %v7668
      %v7670 = vpop.f32.mrb[0].mxu0
      %v7671 = vadd.f32 %v7370, %v7670
      %7672 = vmatprep.mubr.bf16.mxu0 0
      %7673 = vmatmul.mubr.bf16.gmra.mrb[0].mxu0 %v7474
      %v7674 = vpop.f32.mrb[0].mxu0
      %v7675 = vadd.f32 %v7374, %v7674
      %v7676 = vpop.f32.mrb[0].mxu0
      %v7677 = vadd.f32 %v7376, %v7676
      %v7678 = vpop.f32.mrb[0].mxu0
      %v7679 = vadd.f32 %v7378, %v7678
      %v7680 = vpop.f32.mrb[0].mxu0
      %v7681 = vadd.f32 %v7380, %v7680
      %7682 = vmatprep.mubr.bf16.mxu0 0
      %7683 = vmatmul.mubr.bf16.gmra.mrb[0].mxu0 %v7483
      %v7684 = vpop.f32.mrb[0].mxu0
      %v7685 = vadd.f32 %v7384, %v7684
      %v7686 = vpop.f32.mrb[0].mxu0
      %v7687 = vadd.f32 %v7386, %v7686
      %v7688 = vpop.f32.mrb[0].mxu0
      %v7689 = vadd.f32 %v7388, %v7688
      %v7690 = vpop.f32.mrb[0].mxu0
      %v7691 = vadd.f32 %v7390, %v7690
      %7692 = vmatprep.mubr.bf16.mxu0 0
      %7693 = vmatmul.mubr.bf16.gmra.mrb[0].mxu0 %v7492
      %v7694 = vpop.f32.mrb[0].mxu0
      %v7695 = vadd.f32 %v7394, %v7694
      %v7696 = vpop.f32.mrb[0].mxu0
      %v7697 = vadd.f32 %v7396, %v7696
      %v7698 = vpop.f32.mrb[0].mxu0
      %v7699 = vadd.f32 %v7398, %v7698
      %v7700 = vpop.f32.mrb[0].mxu0
      %v7701 = vadd.f32 %v7400, %v7700
      %7702 = vmatprep.mubr.bf16.mxu0 0
      %7703 = vmatmul.mubr.bf16.gmra.mrb[0].mxu0 %v7501
      %v7704 = vpop.f32.mrb[0].mxu0
      %v7705 = vadd.f32 %v7404, %v7704
      %v7706 = vpop.f32.mrb[0].mxu0
      %v7707 = vadd.f32 %v7406, %v7706
      %v7708 = vpop.f32.mrb[0].mxu0
      %v7709 = vadd.f32 %v7408, %v7708
      %v7710 = vpop.f32.mrb[0].mxu0
      %v7711 = vadd.f32 %v7410, %v7710
      %7712 = vmatprep.mubr.bf16.mxu0 0
      %7713 = vmatmul.mubr.bf16.gmra.mrb[0].mxu0 %v7510
      %v7714 = vpop.f32.mrb[0].mxu0
      %v7715 = vadd.f32 %v7414, %v7714
      %v7716 = vpop.f32.mrb[0].mxu0
      %v7717 = vadd.f32 %v7416, %v7716
      %v7718 = vpop.f32.mrb[0].mxu0
      %v7719 = vadd.f32 %v7418, %v7718
      %v7720 = vpop.f32.mrb[0].mxu0
      %v7721 = vadd.f32 %v7420, %v7720
      %7722 = vdwg.mxu0
      %s7723 = scalar_lea.vmem %s4, 256
      %v7724 = vld [vmem:[%s7723] sm:$0xff]
      %v7725 = vld [vmem:[%s7723 + $0x8] sm:$0xff]
      %v7726 = vld [vmem:[%s7723 + $0x10] sm:$0xff]
      %v7727 = vld [vmem:[%s7723 + $0x18] sm:$0xff]
      %v7728 = vld [vmem:[%s7723 + $0x20] sm:$0xff]
      %v7729 = vld [vmem:[%s7723 + $0x28] sm:$0xff]
      %v7730 = vld [vmem:[%s7723 + $0x30] sm:$0xff]
      %v7731 = vld [vmem:[%s7723 + $0x38] sm:$0xff]
      %v7732 = vld [vmem:[%s7723 + $0x40] sm:$0xff]
      %v7733 = vld [vmem:[%s7723 + $0x48] sm:$0xff]
      %v7734 = vld [vmem:[%s7723 + $0x50] sm:$0xff]
      %v7735 = vld [vmem:[%s7723 + $0x58] sm:$0xff]
      %v7736 = vld [vmem:[%s7723 + $0x60] sm:$0xff]
      %v7737 = vld [vmem:[%s7723 + $0x68] sm:$0xff]
      %v7738 = vld [vmem:[%s7723 + $0x70] sm:$0xff]
      %v7739 = vld [vmem:[%s7723 + $0x78] sm:$0xff]
      %v7740 = vrot.slane %v7423, 2
      %v7741 = vrot.slane %v7426, 3
      %v7742 = vor.u32 %v7740, %v7741
      %v7743 = vrot.slane %v7431, 2
      %v7744 = vrot.slane %v7434, 3
      %v7745 = vor.u32 %v7743, %v7744
      %v7746 = vsel %vm4151, %v7742, %v7745
      %v7747 = vrot.slane %v7440, 2
      %v7748 = vrot.slane %v7443, 3
      %v7749 = vor.u32 %v7747, %v7748
      %v7750 = vsel %vm4151, %v7745, %v7749
      %v7751 = vrot.slane %v7449, 2
      %v7752 = vrot.slane %v7452, 3
      %v7753 = vor.u32 %v7751, %v7752
      %v7754 = vsel %vm4151, %v7749, %v7753
      %v7755 = vrot.slane %v7458, 2
      %v7756 = vrot.slane %v7461, 3
      %v7757 = vor.u32 %v7755, %v7756
      %v7758 = vsel %vm4151, %v7753, %v7757
      %v7759 = vrot.slane %v7467, 2
      %v7760 = vrot.slane %v7470, 3
      %v7761 = vor.u32 %v7759, %v7760
      %v7762 = vsel %vm4151, %v7757, %v7761
      %v7763 = vrot.slane %v7476, 2
      %v7764 = vrot.slane %v7479, 3
      %v7765 = vor.u32 %v7763, %v7764
      %v7766 = vsel %vm4151, %v7761, %v7765
      %v7767 = vrot.slane %v7485, 2
      %v7768 = vrot.slane %v7488, 3
      %v7769 = vor.u32 %v7767, %v7768
      %v7770 = vsel %vm4151, %v7765, %v7769
      %v7771 = vrot.slane %v7494, 2
      %v7772 = vrot.slane %v7497, 3
      %v7773 = vor.u32 %v7771, %v7772
      %v7774 = vsel %vm4151, %v7769, %v7773
      %v7775 = vrot.slane %v7503, 2
      %v7776 = vrot.slane %v7506, 3
      %v7777 = vor.u32 %v7775, %v7776
      %v7778 = vsel %vm4151, %v7773, %v7777
      %v7804 = vunpack.c.l.b16 %v7724
      %v7805 = vunpack.c.h.b16 %v7724
      %v7806 = vunpack.c.l.b16 %v7725
      %v7807 = vunpack.c.h.b16 %v7725
      %v7808 = vunpack.c.l.b16 %v7726
      %v7809 = vunpack.c.h.b16 %v7726
      %v7810 = vunpack.c.l.b16 %v7727
      %v7811 = vunpack.c.h.b16 %v7727
      %v7812 = vunpack.c.l.b16 %v7728
      %v7813 = vunpack.c.h.b16 %v7728
      %v7814 = vunpack.c.l.b16 %v7729
      %v7815 = vunpack.c.h.b16 %v7729
      %v7816 = vunpack.c.l.b16 %v7730
      %v7817 = vunpack.c.h.b16 %v7730
      %v7818 = vunpack.c.l.b16 %v7731
      %v7819 = vunpack.c.h.b16 %v7731
      %v7820 = vunpack.c.l.b16 %v7732
      %v7821 = vunpack.c.h.b16 %v7732
      %v7822 = vunpack.c.l.b16 %v7733
      %v7823 = vunpack.c.h.b16 %v7733
      %v7824 = vunpack.c.l.b16 %v7734
      %v7825 = vunpack.c.h.b16 %v7734
      %v7826 = vunpack.c.l.b16 %v7735
      %v7827 = vunpack.c.h.b16 %v7735
      %v7828 = vunpack.c.l.b16 %v7736
      %v7829 = vunpack.c.h.b16 %v7736
      %v7830 = vunpack.c.l.b16 %v7737
      %v7831 = vunpack.c.h.b16 %v7737
      %v7832 = vunpack.c.l.b16 %v7738
      %v7833 = vunpack.c.h.b16 %v7738
      %v7834 = vunpack.c.l.b16 %v7739
      %v7835 = vunpack.c.h.b16 %v7739
      %v7836 = vpack.c.b16 %v7806, %v7804
      %v7837 = vpack.c.b16 %v7807, %v7805
      %v7838 = vpack.c.b16 %v7810, %v7808
      %v7839 = vpack.c.b16 %v7811, %v7809
      %v7840 = vpack.c.b16 %v7814, %v7812
      %v7841 = vpack.c.b16 %v7815, %v7813
      %v7842 = vpack.c.b16 %v7818, %v7816
      %v7843 = vpack.c.b16 %v7819, %v7817
      %v7844 = vpack.c.b16 %v7822, %v7820
      %v7845 = vpack.c.b16 %v7823, %v7821
      %v7846 = vpack.c.b16 %v7826, %v7824
      %v7847 = vpack.c.b16 %v7827, %v7825
      %v7848 = vpack.c.b16 %v7830, %v7828
      %v7849 = vpack.c.b16 %v7831, %v7829
      %v7850 = vpack.c.b16 %v7834, %v7832
      %v7851 = vpack.c.b16 %v7835, %v7833
      %7868 = vmatprep.subr.bf16.mxu0 %v7837
      %7869 = vmatpush1.bf16.msra.mxu0 %v7836
      %7870 = vmatprep.subr.bf16.mxu0 %v7839
      %7871 = vmatpush1.bf16.msra.mxu0 %v7838
      %7872 = vmatprep.subr.bf16.mxu0 %v7841
      %7873 = vmatpush1.bf16.msra.mxu0 %v7840
      %7874 = vmatprep.subr.bf16.mxu0 %v7843
      %7875 = vmatpush1.bf16.msra.mxu0 %v7842
      %7876 = vmatprep.subr.bf16.mxu0 %v7845
      %7877 = vmatpush1.bf16.msra.mxu0 %v7844
      %7878 = vmatprep.subr.bf16.mxu0 %v7847
      %7879 = vmatpush1.bf16.msra.mxu0 %v7846
      %7880 = vmatprep.subr.bf16.mxu0 %v7849
      %7881 = vmatpush1.bf16.msra.mxu0 %v7848
      %7882 = vmatprep.subr.bf16.mxu0 %v7851
      %7883 = vmatpush1.bf16.msra.mxu0 %v7850
      %7884 = vmatprep.subr.bf16.mxu0 0
      %7885 = vmatpush1.bf16.msra.mxu0 0
      %7886 = vmatprep.subr.bf16.mxu0 0
      %7887 = vmatpush1.bf16.msra.mxu0 0
      %7888 = vmatprep.subr.bf16.mxu0 0
      %7889 = vmatpush1.bf16.msra.mxu0 0
      %7890 = vmatprep.subr.bf16.mxu0 0
      %7891 = vmatpush1.bf16.msra.mxu0 0
      %7892 = vmatprep.subr.bf16.mxu0 0
      %7893 = vmatpush1.bf16.msra.mxu0 0
      %7894 = vmatprep.subr.bf16.mxu0 0
      %7895 = vmatpush1.bf16.msra.mxu0 0
      %7896 = vmatprep.subr.bf16.mxu0 0
      %7897 = vmatpush1.bf16.msra.mxu0 0
      %7898 = vmatprep.subr.bf16.mxu0 0
      %7899 = vmatpush1.bf16.msra.mxu0 0
      %7900 = vmatprep.mubr.bf16.mxu0 0
      %7901 = vmatmul.mubr.bf16.gmra.mrb[0].mxu0 %v7746
      %v7902 = vpop.f32.mrb[0].mxu0
      %v7903 = vadd.f32 0.0, %v7902
      %v7904 = vpop.f32.mrb[0].mxu0
      %v7905 = vadd.f32 0.0, %v7904
      %v7906 = vpop.f32.mrb[0].mxu0
      %v7907 = vadd.f32 0.0, %v7906
      %v7908 = vpop.f32.mrb[0].mxu0
      %v7909 = vadd.f32 0.0, %v7908
      %7910 = vmatprep.mubr.bf16.mxu0 0
      %7911 = vmatmul.mubr.bf16.gmra.mrb[0].mxu0 %v7750
      %v7912 = vpop.f32.mrb[0].mxu0
      %v7913 = vadd.f32 0.0, %v7912
      %v7914 = vpop.f32.mrb[0].mxu0
      %v7915 = vadd.f32 0.0, %v7914
      %v7916 = vpop.f32.mrb[0].mxu0
      %v7917 = vadd.f32 0.0, %v7916
      %v7918 = vpop.f32.mrb[0].mxu0
      %v7919 = vadd.f32 0.0, %v7918
      %7920 = vmatprep.mubr.bf16.mxu0 0
      %7921 = vmatmul.mubr.bf16.gmra.mrb[0].mxu0 %v7754
      %v7922 = vpop.f32.mrb[0].mxu0
      %v7923 = vadd.f32 0.0, %v7922
      %v7924 = vpop.f32.mrb[0].mxu0
      %v7925 = vadd.f32 0.0, %v7924
      %v7926 = vpop.f32.mrb[0].mxu0
      %v7927 = vadd.f32 0.0, %v7926
      %v7928 = vpop.f32.mrb[0].mxu0
      %v7929 = vadd.f32 0.0, %v7928
      %7930 = vmatprep.mubr.bf16.mxu0 0
      %7931 = vmatmul.mubr.bf16.gmra.mrb[0].mxu0 %v7758
      %v7932 = vpop.f32.mrb[0].mxu0
      %v7933 = vadd.f32 0.0, %v7932
      %v7934 = vpop.f32.mrb[0].mxu0
      %v7935 = vadd.f32 0.0, %v7934
      %v7936 = vpop.f32.mrb[0].mxu0
      %v7937 = vadd.f32 0.0, %v7936
      %v7938 = vpop.f32.mrb[0].mxu0
      %v7939 = vadd.f32 0.0, %v7938
      %7940 = vmatprep.mubr.bf16.mxu0 0
      %7941 = vmatmul.mubr.bf16.gmra.mrb[0].mxu0 %v7762
      %v7942 = vpop.f32.mrb[0].mxu0
      %v7943 = vadd.f32 0.0, %v7942
      %v7944 = vpop.f32.mrb[0].mxu0
      %v7945 = vadd.f32 0.0, %v7944
      %v7946 = vpop.f32.mrb[0].mxu0
      %v7947 = vadd.f32 0.0, %v7946
      %v7948 = vpop.f32.mrb[0].mxu0
      %v7949 = vadd.f32 0.0, %v7948
      %7950 = vmatprep.mubr.bf16.mxu0 0
      %7951 = vmatmul.mubr.bf16.gmra.mrb[0].mxu0 %v7766
      %v7952 = vpop.f32.mrb[0].mxu0
      %v7953 = vadd.f32 0.0, %v7952
      %v7954 = vpop.f32.mrb[0].mxu0
      %v7955 = vadd.f32 0.0, %v7954
      %v7956 = vpop.f32.mrb[0].mxu0
      %v7957 = vadd.f32 0.0, %v7956
      %v7958 = vpop.f32.mrb[0].mxu0
      %v7959 = vadd.f32 0.0, %v7958
      %7960 = vmatprep.mubr.bf16.mxu0 0
      %7961 = vmatmul.mubr.bf16.gmra.mrb[0].mxu0 %v7770
      %v7962 = vpop.f32.mrb[0].mxu0
      %v7963 = vadd.f32 0.0, %v7962
      %v7964 = vpop.f32.mrb[0].mxu0
      %v7965 = vadd.f32 0.0, %v7964
      %v7966 = vpop.f32.mrb[0].mxu0
      %v7967 = vadd.f32 0.0, %v7966
      %v7968 = vpop.f32.mrb[0].mxu0
      %v7969 = vadd.f32 0.0, %v7968
      %7970 = vmatprep.mubr.bf16.mxu0 0
      %7971 = vmatmul.mubr.bf16.gmra.mrb[0].mxu0 %v7774
      %v7972 = vpop.f32.mrb[0].mxu0
      %v7973 = vadd.f32 0.0, %v7972
      %v7974 = vpop.f32.mrb[0].mxu0
      %v7975 = vadd.f32 0.0, %v7974
      %v7976 = vpop.f32.mrb[0].mxu0
      %v7977 = vadd.f32 0.0, %v7976
      %v7978 = vpop.f32.mrb[0].mxu0
      %v7979 = vadd.f32 0.0, %v7978
      %7980 = vmatprep.mubr.bf16.mxu0 0
      %7981 = vmatmul.mubr.bf16.gmra.mrb[0].mxu0 %v7778
      %v7982 = vpop.f32.mrb[0].mxu0
      %v7983 = vadd.f32 0.0, %v7982
      %v7984 = vpop.f32.mrb[0].mxu0
      %v7985 = vadd.f32 0.0, %v7984
      %v7986 = vpop.f32.mrb[0].mxu0
      %v7987 = vadd.f32 0.0, %v7986
      %v7988 = vpop.f32.mrb[0].mxu0
      %v7989 = vadd.f32 0.0, %v7988
      %7990 = vdwg.mxu0
      %v7991 = vadd.f32 %v7635, %v7903
      %v7992 = vadd.f32 %v7637, %v7905
      %v7993 = vadd.f32 %v7639, %v7907
      %v7994 = vadd.f32 %v7641, %v7909
      %v7995 = vadd.f32 %v7645, %v7913
      %v7996 = vadd.f32 %v7647, %v7915
      %v7997 = vadd.f32 %v7649, %v7917
      %v7998 = vadd.f32 %v7651, %v7919
      %v7999 = vadd.f32 %v7655, %v7923
      %v8000 = vadd.f32 %v7657, %v7925
      %v8001 = vadd.f32 %v7659, %v7927
      %v8002 = vadd.f32 %v7661, %v7929
      %v8003 = vadd.f32 %v7665, %v7933
      %v8004 = vadd.f32 %v7667, %v7935
      %v8005 = vadd.f32 %v7669, %v7937
      %v8006 = vadd.f32 %v7671, %v7939
      %v8007 = vadd.f32 %v7675, %v7943
      %v8008 = vadd.f32 %v7677, %v7945
      %v8009 = vadd.f32 %v7679, %v7947
      %v8010 = vadd.f32 %v7681, %v7949
      %v8011 = vadd.f32 %v7685, %v7953
      %v8012 = vadd.f32 %v7687, %v7955
      %v8013 = vadd.f32 %v7689, %v7957
      %v8014 = vadd.f32 %v7691, %v7959
      %v8015 = vadd.f32 %v7695, %v7963
      %v8016 = vadd.f32 %v7697, %v7965
      %v8017 = vadd.f32 %v7699, %v7967
      %v8018 = vadd.f32 %v7701, %v7969
      %v8019 = vadd.f32 %v7705, %v7973
      %v8020 = vadd.f32 %v7707, %v7975
      %v8021 = vadd.f32 %v7709, %v7977
      %v8022 = vadd.f32 %v7711, %v7979
      %v8023 = vadd.f32 %v7715, %v7983
      %v8024 = vadd.f32 %v7717, %v7985
      %v8025 = vadd.f32 %v7719, %v7987
      %v8026 = vadd.f32 %v7721, %v7989
      %s8027 = scalar_lea.vmem %s4, 384
      %v8028 = vld [vmem:[%s8027] sm:$0xff]
      %v8029 = vld [vmem:[%s8027 + $0x8] sm:$0xff]
      %v8030 = vld [vmem:[%s8027 + $0x10] sm:$0xff]
      %v8031 = vld [vmem:[%s8027 + $0x18] sm:$0xff]
      %v8032 = vld [vmem:[%s8027 + $0x20] sm:$0xff]
      %v8033 = vld [vmem:[%s8027 + $0x28] sm:$0xff]
      %v8034 = vld [vmem:[%s8027 + $0x30] sm:$0xff]
      %v8035 = vld [vmem:[%s8027 + $0x38] sm:$0xff]
      %v8036 = vld [vmem:[%s8027 + $0x40] sm:$0xff]
      %v8037 = vld [vmem:[%s8027 + $0x48] sm:$0xff]
      %v8038 = vld [vmem:[%s8027 + $0x50] sm:$0xff]
      %v8039 = vld [vmem:[%s8027 + $0x58] sm:$0xff]
      %v8040 = vld [vmem:[%s8027 + $0x60] sm:$0xff]
      %v8041 = vld [vmem:[%s8027 + $0x68] sm:$0xff]
      %v8042 = vld [vmem:[%s8027 + $0x70] sm:$0xff]
      %v8043 = vld [vmem:[%s8027 + $0x78] sm:$0xff]
      %v8044 = vrot.slane %v7423, 7
      %v8045 = vrot.slane %v7431, 7
      %v8046 = vor.u32 %v8045, %v7434
      %v8047 = vsel %vm4456, %v8044, %v8046
      %v8048 = vrot.slane %v7440, 7
      %v8049 = vor.u32 %v8048, %v7443
      %v8050 = vsel %vm4456, %v8045, %v8049
      %v8051 = vrot.slane %v7449, 7
      %v8052 = vor.u32 %v8051, %v7452
      %v8053 = vsel %vm4456, %v8048, %v8052
      %v8054 = vrot.slane %v7458, 7
      %v8055 = vor.u32 %v8054, %v7461
      %v8056 = vsel %vm4456, %v8051, %v8055
      %v8057 = vrot.slane %v7467, 7
      %v8058 = vor.u32 %v8057, %v7470
      %v8059 = vsel %vm4456, %v8054, %v8058
      %v8060 = vrot.slane %v7476, 7
      %v8061 = vor.u32 %v8060, %v7479
      %v8062 = vsel %vm4456, %v8057, %v8061
      %v8063 = vrot.slane %v7485, 7
      %v8064 = vor.u32 %v8063, %v7488
      %v8065 = vsel %vm4456, %v8060, %v8064
      %v8066 = vrot.slane %v7494, 7
      %v8067 = vor.u32 %v8066, %v7497
      %v8068 = vsel %vm4456, %v8063, %v8067
      %v8069 = vrot.slane %v7503, 7
      %v8070 = vor.u32 %v8069, %v7506
      %v8071 = vsel %vm4456, %v8066, %v8070
      %v8097 = vunpack.c.l.b16 %v8028
      %v8098 = vunpack.c.h.b16 %v8028
      %v8099 = vunpack.c.l.b16 %v8029
      %v8100 = vunpack.c.h.b16 %v8029
      %v8101 = vunpack.c.l.b16 %v8030
      %v8102 = vunpack.c.h.b16 %v8030
      %v8103 = vunpack.c.l.b16 %v8031
      %v8104 = vunpack.c.h.b16 %v8031
      %v8105 = vunpack.c.l.b16 %v8032
      %v8106 = vunpack.c.h.b16 %v8032
      %v8107 = vunpack.c.l.b16 %v8033
      %v8108 = vunpack.c.h.b16 %v8033
      %v8109 = vunpack.c.l.b16 %v8034
      %v8110 = vunpack.c.h.b16 %v8034
      %v8111 = vunpack.c.l.b16 %v8035
      %v8112 = vunpack.c.h.b16 %v8035
      %v8113 = vunpack.c.l.b16 %v8036
      %v8114 = vunpack.c.h.b16 %v8036
      %v8115 = vunpack.c.l.b16 %v8037
      %v8116 = vunpack.c.h.b16 %v8037
      %v8117 = vunpack.c.l.b16 %v8038
      %v8118 = vunpack.c.h.b16 %v8038
      %v8119 = vunpack.c.l.b16 %v8039
      %v8120 = vunpack.c.h.b16 %v8039
      %v8121 = vunpack.c.l.b16 %v8040
      %v8122 = vunpack.c.h.b16 %v8040
      %v8123 = vunpack.c.l.b16 %v8041
      %v8124 = vunpack.c.h.b16 %v8041
      %v8125 = vunpack.c.l.b16 %v8042
      %v8126 = vunpack.c.h.b16 %v8042
      %v8127 = vunpack.c.l.b16 %v8043
      %v8128 = vunpack.c.h.b16 %v8043
      %v8129 = vpack.c.b16 %v8099, %v8097
      %v8130 = vpack.c.b16 %v8100, %v8098
      %v8131 = vpack.c.b16 %v8103, %v8101
      %v8132 = vpack.c.b16 %v8104, %v8102
      %v8133 = vpack.c.b16 %v8107, %v8105
      %v8134 = vpack.c.b16 %v8108, %v8106
      %v8135 = vpack.c.b16 %v8111, %v8109
      %v8136 = vpack.c.b16 %v8112, %v8110
      %v8137 = vpack.c.b16 %v8115, %v8113
      %v8138 = vpack.c.b16 %v8116, %v8114
      %v8139 = vpack.c.b16 %v8119, %v8117
      %v8140 = vpack.c.b16 %v8120, %v8118
      %v8141 = vpack.c.b16 %v8123, %v8121
      %v8142 = vpack.c.b16 %v8124, %v8122
      %v8143 = vpack.c.b16 %v8127, %v8125
      %v8144 = vpack.c.b16 %v8128, %v8126
      %8161 = vmatprep.subr.bf16.mxu0 %v8130
      %8162 = vmatpush1.bf16.msra.mxu0 %v8129
      %8163 = vmatprep.subr.bf16.mxu0 %v8132
      %8164 = vmatpush1.bf16.msra.mxu0 %v8131
      %8165 = vmatprep.subr.bf16.mxu0 %v8134
      %8166 = vmatpush1.bf16.msra.mxu0 %v8133
      %8167 = vmatprep.subr.bf16.mxu0 %v8136
      %8168 = vmatpush1.bf16.msra.mxu0 %v8135
      %8169 = vmatprep.subr.bf16.mxu0 %v8138
      %8170 = vmatpush1.bf16.msra.mxu0 %v8137
      %8171 = vmatprep.subr.bf16.mxu0 %v8140
      %8172 = vmatpush1.bf16.msra.mxu0 %v8139
      %8173 = vmatprep.subr.bf16.mxu0 %v8142
      %8174 = vmatpush1.bf16.msra.mxu0 %v8141
      %8175 = vmatprep.subr.bf16.mxu0 %v8144
      %8176 = vmatpush1.bf16.msra.mxu0 %v8143
      %8177 = vmatprep.subr.bf16.mxu0 0
      %8178 = vmatpush1.bf16.msra.mxu0 0
      %8179 = vmatprep.subr.bf16.mxu0 0
      %8180 = vmatpush1.bf16.msra.mxu0 0
      %8181 = vmatprep.subr.bf16.mxu0 0
      %8182 = vmatpush1.bf16.msra.mxu0 0
      %8183 = vmatprep.subr.bf16.mxu0 0
      %8184 = vmatpush1.bf16.msra.mxu0 0
      %8185 = vmatprep.subr.bf16.mxu0 0
      %8186 = vmatpush1.bf16.msra.mxu0 0
      %8187 = vmatprep.subr.bf16.mxu0 0
      %8188 = vmatpush1.bf16.msra.mxu0 0
      %8189 = vmatprep.subr.bf16.mxu0 0
      %8190 = vmatpush1.bf16.msra.mxu0 0
      %8191 = vmatprep.subr.bf16.mxu0 0
      %8192 = vmatpush1.bf16.msra.mxu0 0
      %8193 = vmatprep.mubr.bf16.mxu0 0
      %8194 = vmatmul.mubr.bf16.gmra.mrb[0].mxu0 %v8047
      %v8195 = vpop.f32.mrb[0].mxu0
      %v8196 = vadd.f32 0.0, %v8195
      %v8197 = vpop.f32.mrb[0].mxu0
      %v8198 = vadd.f32 0.0, %v8197
      %v8199 = vpop.f32.mrb[0].mxu0
      %v8200 = vadd.f32 0.0, %v8199
      %v8201 = vpop.f32.mrb[0].mxu0
      %v8202 = vadd.f32 0.0, %v8201
      %8203 = vmatprep.mubr.bf16.mxu0 0
      %8204 = vmatmul.mubr.bf16.gmra.mrb[0].mxu0 %v8050
      %v8205 = vpop.f32.mrb[0].mxu0
      %v8206 = vadd.f32 0.0, %v8205
      %v8207 = vpop.f32.mrb[0].mxu0
      %v8208 = vadd.f32 0.0, %v8207
      %v8209 = vpop.f32.mrb[0].mxu0
      %v8210 = vadd.f32 0.0, %v8209
      %v8211 = vpop.f32.mrb[0].mxu0
      %v8212 = vadd.f32 0.0, %v8211
      %8213 = vmatprep.mubr.bf16.mxu0 0
      %8214 = vmatmul.mubr.bf16.gmra.mrb[0].mxu0 %v8053
      %v8215 = vpop.f32.mrb[0].mxu0
      %v8216 = vadd.f32 0.0, %v8215
      %v8217 = vpop.f32.mrb[0].mxu0
      %v8218 = vadd.f32 0.0, %v8217
      %v8219 = vpop.f32.mrb[0].mxu0
      %v8220 = vadd.f32 0.0, %v8219
      %v8221 = vpop.f32.mrb[0].mxu0
      %v8222 = vadd.f32 0.0, %v8221
      %8223 = vmatprep.mubr.bf16.mxu0 0
      %8224 = vmatmul.mubr.bf16.gmra.mrb[0].mxu0 %v8056
      %v8225 = vpop.f32.mrb[0].mxu0
      %v8226 = vadd.f32 0.0, %v8225
      %v8227 = vpop.f32.mrb[0].mxu0
      %v8228 = vadd.f32 0.0, %v8227
      %v8229 = vpop.f32.mrb[0].mxu0
      %v8230 = vadd.f32 0.0, %v8229
      %v8231 = vpop.f32.mrb[0].mxu0
      %v8232 = vadd.f32 0.0, %v8231
      %8233 = vmatprep.mubr.bf16.mxu0 0
      %8234 = vmatmul.mubr.bf16.gmra.mrb[0].mxu0 %v8059
      %v8235 = vpop.f32.mrb[0].mxu0
      %v8236 = vadd.f32 0.0, %v8235
      %v8237 = vpop.f32.mrb[0].mxu0
      %v8238 = vadd.f32 0.0, %v8237
      %v8239 = vpop.f32.mrb[0].mxu0
      %v8240 = vadd.f32 0.0, %v8239
      %v8241 = vpop.f32.mrb[0].mxu0
      %v8242 = vadd.f32 0.0, %v8241
      %8243 = vmatprep.mubr.bf16.mxu0 0
      %8244 = vmatmul.mubr.bf16.gmra.mrb[0].mxu0 %v8062
      %v8245 = vpop.f32.mrb[0].mxu0
      %v8246 = vadd.f32 0.0, %v8245
      %v8247 = vpop.f32.mrb[0].mxu0
      %v8248 = vadd.f32 0.0, %v8247
      %v8249 = vpop.f32.mrb[0].mxu0
      %v8250 = vadd.f32 0.0, %v8249
      %v8251 = vpop.f32.mrb[0].mxu0
      %v8252 = vadd.f32 0.0, %v8251
      %8253 = vmatprep.mubr.bf16.mxu0 0
      %8254 = vmatmul.mubr.bf16.gmra.mrb[0].mxu0 %v8065
      %v8255 = vpop.f32.mrb[0].mxu0
      %v8256 = vadd.f32 0.0, %v8255
      %v8257 = vpop.f32.mrb[0].mxu0
      %v8258 = vadd.f32 0.0, %v8257
      %v8259 = vpop.f32.mrb[0].mxu0
      %v8260 = vadd.f32 0.0, %v8259
      %v8261 = vpop.f32.mrb[0].mxu0
      %v8262 = vadd.f32 0.0, %v8261
      %8263 = vmatprep.mubr.bf16.mxu0 0
      %8264 = vmatmul.mubr.bf16.gmra.mrb[0].mxu0 %v8068
      %v8265 = vpop.f32.mrb[0].mxu0
      %v8266 = vadd.f32 0.0, %v8265
      %v8267 = vpop.f32.mrb[0].mxu0
      %v8268 = vadd.f32 0.0, %v8267
      %v8269 = vpop.f32.mrb[0].mxu0
      %v8270 = vadd.f32 0.0, %v8269
      %v8271 = vpop.f32.mrb[0].mxu0
      %v8272 = vadd.f32 0.0, %v8271
      %8273 = vmatprep.mubr.bf16.mxu0 0
      %8274 = vmatmul.mubr.bf16.gmra.mrb[0].mxu0 %v8071
      %v8275 = vpop.f32.mrb[0].mxu0
      %v8276 = vadd.f32 0.0, %v8275
      %v8277 = vpop.f32.mrb[0].mxu0
      %v8278 = vadd.f32 0.0, %v8277
      %v8279 = vpop.f32.mrb[0].mxu0
      %v8280 = vadd.f32 0.0, %v8279
      %v8281 = vpop.f32.mrb[0].mxu0
      %v8282 = vadd.f32 0.0, %v8281
      %8283 = vdwg.mxu0
      %v8284 = vadd.f32 %v7991, %v8196
      %v8285 = vadd.f32 %v7992, %v8198
      %v8286 = vadd.f32 %v7993, %v8200
      %v8287 = vadd.f32 %v7994, %v8202
      %v8288 = vadd.f32 %v7995, %v8206
      %v8289 = vadd.f32 %v7996, %v8208
      %v8290 = vadd.f32 %v7997, %v8210
      %v8291 = vadd.f32 %v7998, %v8212
      %v8292 = vadd.f32 %v7999, %v8216
      %v8293 = vadd.f32 %v8000, %v8218
      %v8294 = vadd.f32 %v8001, %v8220
      %v8295 = vadd.f32 %v8002, %v8222
      %v8296 = vadd.f32 %v8003, %v8226
      %v8297 = vadd.f32 %v8004, %v8228
      %v8298 = vadd.f32 %v8005, %v8230
      %v8299 = vadd.f32 %v8006, %v8232
      %v8300 = vadd.f32 %v8007, %v8236
      %v8301 = vadd.f32 %v8008, %v8238
      %v8302 = vadd.f32 %v8009, %v8240
      %v8303 = vadd.f32 %v8010, %v8242
      %v8304 = vadd.f32 %v8011, %v8246
      %v8305 = vadd.f32 %v8012, %v8248
      %v8306 = vadd.f32 %v8013, %v8250
      %v8307 = vadd.f32 %v8014, %v8252
      %v8308 = vadd.f32 %v8015, %v8256
      %v8309 = vadd.f32 %v8016, %v8258
      %v8310 = vadd.f32 %v8017, %v8260
      %v8311 = vadd.f32 %v8018, %v8262
      %v8312 = vadd.f32 %v8019, %v8266
      %v8313 = vadd.f32 %v8020, %v8268
      %v8314 = vadd.f32 %v8021, %v8270
      %v8315 = vadd.f32 %v8022, %v8272
      %v8316 = vadd.f32 %v8023, %v8276
      %v8317 = vadd.f32 %v8024, %v8278
      %v8318 = vadd.f32 %v8025, %v8280
      %v8319 = vadd.f32 %v8026, %v8282
      %s8320 = scalar_lea.vmem %s4, 512
      %v8321 = vld [vmem:[%s8320] sm:$0xff]
      %v8322 = vld [vmem:[%s8320 + $0x8] sm:$0xff]
      %v8323 = vld [vmem:[%s8320 + $0x10] sm:$0xff]
      %v8324 = vld [vmem:[%s8320 + $0x18] sm:$0xff]
      %v8325 = vld [vmem:[%s8320 + $0x20] sm:$0xff]
      %v8326 = vld [vmem:[%s8320 + $0x28] sm:$0xff]
      %v8327 = vld [vmem:[%s8320 + $0x30] sm:$0xff]
      %v8328 = vld [vmem:[%s8320 + $0x38] sm:$0xff]
      %v8329 = vld [vmem:[%s8320 + $0x40] sm:$0xff]
      %v8330 = vld [vmem:[%s8320 + $0x48] sm:$0xff]
      %v8331 = vld [vmem:[%s8320 + $0x50] sm:$0xff]
      %v8332 = vld [vmem:[%s8320 + $0x58] sm:$0xff]
      %v8333 = vld [vmem:[%s8320 + $0x60] sm:$0xff]
      %v8334 = vld [vmem:[%s8320 + $0x68] sm:$0xff]
      %v8335 = vld [vmem:[%s8320 + $0x70] sm:$0xff]
      %v8336 = vld [vmem:[%s8320 + $0x78] sm:$0xff]
      %v8353 = vunpack.c.l.b16 %v8321
      %v8354 = vunpack.c.h.b16 %v8321
      %v8355 = vunpack.c.l.b16 %v8322
      %v8356 = vunpack.c.h.b16 %v8322
      %v8357 = vunpack.c.l.b16 %v8323
      %v8358 = vunpack.c.h.b16 %v8323
      %v8359 = vunpack.c.l.b16 %v8324
      %v8360 = vunpack.c.h.b16 %v8324
      %v8361 = vunpack.c.l.b16 %v8325
      %v8362 = vunpack.c.h.b16 %v8325
      %v8363 = vunpack.c.l.b16 %v8326
      %v8364 = vunpack.c.h.b16 %v8326
      %v8365 = vunpack.c.l.b16 %v8327
      %v8366 = vunpack.c.h.b16 %v8327
      %v8367 = vunpack.c.l.b16 %v8328
      %v8368 = vunpack.c.h.b16 %v8328
      %v8369 = vunpack.c.l.b16 %v8329
      %v8370 = vunpack.c.h.b16 %v8329
      %v8371 = vunpack.c.l.b16 %v8330
      %v8372 = vunpack.c.h.b16 %v8330
      %v8373 = vunpack.c.l.b16 %v8331
      %v8374 = vunpack.c.h.b16 %v8331
      %v8375 = vunpack.c.l.b16 %v8332
      %v8376 = vunpack.c.h.b16 %v8332
      %v8377 = vunpack.c.l.b16 %v8333
      %v8378 = vunpack.c.h.b16 %v8333
      %v8379 = vunpack.c.l.b16 %v8334
      %v8380 = vunpack.c.h.b16 %v8334
      %v8381 = vunpack.c.l.b16 %v8335
      %v8382 = vunpack.c.h.b16 %v8335
      %v8383 = vunpack.c.l.b16 %v8336
      %v8384 = vunpack.c.h.b16 %v8336
      %v8385 = vpack.c.b16 %v8355, %v8353
      %v8386 = vpack.c.b16 %v8356, %v8354
      %v8387 = vpack.c.b16 %v8359, %v8357
      %v8388 = vpack.c.b16 %v8360, %v8358
      %v8389 = vpack.c.b16 %v8363, %v8361
      %v8390 = vpack.c.b16 %v8364, %v8362
      %v8391 = vpack.c.b16 %v8367, %v8365
      %v8392 = vpack.c.b16 %v8368, %v8366
      %v8393 = vpack.c.b16 %v8371, %v8369
      %v8394 = vpack.c.b16 %v8372, %v8370
      %v8395 = vpack.c.b16 %v8375, %v8373
      %v8396 = vpack.c.b16 %v8376, %v8374
      %v8397 = vpack.c.b16 %v8379, %v8377
      %v8398 = vpack.c.b16 %v8380, %v8378
      %v8399 = vpack.c.b16 %v8383, %v8381
      %v8400 = vpack.c.b16 %v8384, %v8382
      %8417 = vmatprep.subr.bf16.mxu0 %v8386
      %8418 = vmatpush1.bf16.msra.mxu0 %v8385
      %8419 = vmatprep.subr.bf16.mxu0 %v8388
      %8420 = vmatpush1.bf16.msra.mxu0 %v8387
      %8421 = vmatprep.subr.bf16.mxu0 %v8390
      %8422 = vmatpush1.bf16.msra.mxu0 %v8389
      %8423 = vmatprep.subr.bf16.mxu0 %v8392
      %8424 = vmatpush1.bf16.msra.mxu0 %v8391
      %8425 = vmatprep.subr.bf16.mxu0 %v8394
      %8426 = vmatpush1.bf16.msra.mxu0 %v8393
      %8427 = vmatprep.subr.bf16.mxu0 %v8396
      %8428 = vmatpush1.bf16.msra.mxu0 %v8395
      %8429 = vmatprep.subr.bf16.mxu0 %v8398
      %8430 = vmatpush1.bf16.msra.mxu0 %v8397
      %8431 = vmatprep.subr.bf16.mxu0 %v8400
      %8432 = vmatpush1.bf16.msra.mxu0 %v8399
      %8433 = vmatprep.subr.bf16.mxu0 0
      %8434 = vmatpush1.bf16.msra.mxu0 0
      %8435 = vmatprep.subr.bf16.mxu0 0
      %8436 = vmatpush1.bf16.msra.mxu0 0
      %8437 = vmatprep.subr.bf16.mxu0 0
      %8438 = vmatpush1.bf16.msra.mxu0 0
      %8439 = vmatprep.subr.bf16.mxu0 0
      %8440 = vmatpush1.bf16.msra.mxu0 0
      %8441 = vmatprep.subr.bf16.mxu0 0
      %8442 = vmatpush1.bf16.msra.mxu0 0
      %8443 = vmatprep.subr.bf16.mxu0 0
      %8444 = vmatpush1.bf16.msra.mxu0 0
      %8445 = vmatprep.subr.bf16.mxu0 0
      %8446 = vmatpush1.bf16.msra.mxu0 0
      %8447 = vmatprep.subr.bf16.mxu0 0
      %8448 = vmatpush1.bf16.msra.mxu0 0
      %8449 = vmatprep.mubr.bf16.mxu0 0
      %8450 = vmatmul.mubr.bf16.gmra.mrb[0].mxu0 %v7138
      %v8451 = vpop.f32.mrb[0].mxu0
      %v8452 = vadd.f32 0.0, %v8451
      %v8453 = vpop.f32.mrb[0].mxu0
      %v8454 = vadd.f32 0.0, %v8453
      %v8455 = vpop.f32.mrb[0].mxu0
      %v8456 = vadd.f32 0.0, %v8455
      %v8457 = vpop.f32.mrb[0].mxu0
      %v8458 = vadd.f32 0.0, %v8457
      %8459 = vmatprep.mubr.bf16.mxu0 0
      %8460 = vmatmul.mubr.bf16.gmra.mrb[0].mxu0 %v7139
      %v8461 = vpop.f32.mrb[0].mxu0
      %v8462 = vadd.f32 0.0, %v8461
      %v8463 = vpop.f32.mrb[0].mxu0
      %v8464 = vadd.f32 0.0, %v8463
      %v8465 = vpop.f32.mrb[0].mxu0
      %v8466 = vadd.f32 0.0, %v8465
      %v8467 = vpop.f32.mrb[0].mxu0
      %v8468 = vadd.f32 0.0, %v8467
      %8469 = vmatprep.mubr.bf16.mxu0 0
      %8470 = vmatmul.mubr.bf16.gmra.mrb[0].mxu0 %v7140
      %v8471 = vpop.f32.mrb[0].mxu0
      %v8472 = vadd.f32 0.0, %v8471
      %v8473 = vpop.f32.mrb[0].mxu0
      %v8474 = vadd.f32 0.0, %v8473
      %v8475 = vpop.f32.mrb[0].mxu0
      %v8476 = vadd.f32 0.0, %v8475
      %v8477 = vpop.f32.mrb[0].mxu0
      %v8478 = vadd.f32 0.0, %v8477
      %8479 = vmatprep.mubr.bf16.mxu0 0
      %8480 = vmatmul.mubr.bf16.gmra.mrb[0].mxu0 %v7141
      %v8481 = vpop.f32.mrb[0].mxu0
      %v8482 = vadd.f32 0.0, %v8481
      %v8483 = vpop.f32.mrb[0].mxu0
      %v8484 = vadd.f32 0.0, %v8483
      %v8485 = vpop.f32.mrb[0].mxu0
      %v8486 = vadd.f32 0.0, %v8485
      %v8487 = vpop.f32.mrb[0].mxu0
      %v8488 = vadd.f32 0.0, %v8487
      %8489 = vmatprep.mubr.bf16.mxu0 0
      %8490 = vmatmul.mubr.bf16.gmra.mrb[0].mxu0 %v7142
      %v8491 = vpop.f32.mrb[0].mxu0
      %v8492 = vadd.f32 0.0, %v8491
      %v8493 = vpop.f32.mrb[0].mxu0
      %v8494 = vadd.f32 0.0, %v8493
      %v8495 = vpop.f32.mrb[0].mxu0
      %v8496 = vadd.f32 0.0, %v8495
      %v8497 = vpop.f32.mrb[0].mxu0
      %v8498 = vadd.f32 0.0, %v8497
      %8499 = vmatprep.mubr.bf16.mxu0 0
      %8500 = vmatmul.mubr.bf16.gmra.mrb[0].mxu0 %v7143
      %v8501 = vpop.f32.mrb[0].mxu0
      %v8502 = vadd.f32 0.0, %v8501
      %v8503 = vpop.f32.mrb[0].mxu0
      %v8504 = vadd.f32 0.0, %v8503
      %v8505 = vpop.f32.mrb[0].mxu0
      %v8506 = vadd.f32 0.0, %v8505
      %v8507 = vpop.f32.mrb[0].mxu0
      %v8508 = vadd.f32 0.0, %v8507
      %8509 = vmatprep.mubr.bf16.mxu0 0
      %8510 = vmatmul.mubr.bf16.gmra.mrb[0].mxu0 %v7144
      %v8511 = vpop.f32.mrb[0].mxu0
      %v8512 = vadd.f32 0.0, %v8511
      %v8513 = vpop.f32.mrb[0].mxu0
      %v8514 = vadd.f32 0.0, %v8513
      %v8515 = vpop.f32.mrb[0].mxu0
      %v8516 = vadd.f32 0.0, %v8515
      %v8517 = vpop.f32.mrb[0].mxu0
      %v8518 = vadd.f32 0.0, %v8517
      %8519 = vmatprep.mubr.bf16.mxu0 0
      %8520 = vmatmul.mubr.bf16.gmra.mrb[0].mxu0 %v7145
      %v8521 = vpop.f32.mrb[0].mxu0
      %v8522 = vadd.f32 0.0, %v8521
      %v8523 = vpop.f32.mrb[0].mxu0
      %v8524 = vadd.f32 0.0, %v8523
      %v8525 = vpop.f32.mrb[0].mxu0
      %v8526 = vadd.f32 0.0, %v8525
      %v8527 = vpop.f32.mrb[0].mxu0
      %v8528 = vadd.f32 0.0, %v8527
      %8529 = vmatprep.mubr.bf16.mxu0 0
      %8530 = vmatmul.mubr.bf16.gmra.mrb[0].mxu0 %v7146
      %v8531 = vpop.f32.mrb[0].mxu0
      %v8532 = vadd.f32 0.0, %v8531
      %v8533 = vpop.f32.mrb[0].mxu0
      %v8534 = vadd.f32 0.0, %v8533
      %v8535 = vpop.f32.mrb[0].mxu0
      %v8536 = vadd.f32 0.0, %v8535
      %v8537 = vpop.f32.mrb[0].mxu0
      %v8538 = vadd.f32 0.0, %v8537
      %8539 = vdwg.mxu0
      %v8540 = vadd.f32 %v8284, %v8452
      %v8541 = vadd.f32 %v8285, %v8454
      %v8542 = vadd.f32 %v8286, %v8456
      %v8543 = vadd.f32 %v8287, %v8458
      %v8544 = vadd.f32 %v8288, %v8462
      %v8545 = vadd.f32 %v8289, %v8464
      %v8546 = vadd.f32 %v8290, %v8466
      %v8547 = vadd.f32 %v8291, %v8468
      %v8548 = vadd.f32 %v8292, %v8472
      %v8549 = vadd.f32 %v8293, %v8474
      %v8550 = vadd.f32 %v8294, %v8476
      %v8551 = vadd.f32 %v8295, %v8478
      %v8552 = vadd.f32 %v8296, %v8482
      %v8553 = vadd.f32 %v8297, %v8484
      %v8554 = vadd.f32 %v8298, %v8486
      %v8555 = vadd.f32 %v8299, %v8488
      %v8556 = vadd.f32 %v8300, %v8492
      %v8557 = vadd.f32 %v8301, %v8494
      %v8558 = vadd.f32 %v8302, %v8496
      %v8559 = vadd.f32 %v8303, %v8498
      %v8560 = vadd.f32 %v8304, %v8502
      %v8561 = vadd.f32 %v8305, %v8504
      %v8562 = vadd.f32 %v8306, %v8506
      %v8563 = vadd.f32 %v8307, %v8508
      %v8564 = vadd.f32 %v8308, %v8512
      %v8565 = vadd.f32 %v8309, %v8514
      %v8566 = vadd.f32 %v8310, %v8516
      %v8567 = vadd.f32 %v8311, %v8518
      %v8568 = vadd.f32 %v8312, %v8522
      %v8569 = vadd.f32 %v8313, %v8524
      %v8570 = vadd.f32 %v8314, %v8526
      %v8571 = vadd.f32 %v8315, %v8528
      %v8572 = vadd.f32 %v8316, %v8532
      %v8573 = vadd.f32 %v8317, %v8534
      %v8574 = vadd.f32 %v8318, %v8536
      %v8575 = vadd.f32 %v8319, %v8538
      %s8576 = scalar_lea.vmem %s4, 640
      %v8577 = vld [vmem:[%s8576] sm:$0xff]
      %v8578 = vld [vmem:[%s8576 + $0x8] sm:$0xff]
      %v8579 = vld [vmem:[%s8576 + $0x10] sm:$0xff]
      %v8580 = vld [vmem:[%s8576 + $0x18] sm:$0xff]
      %v8581 = vld [vmem:[%s8576 + $0x20] sm:$0xff]
      %v8582 = vld [vmem:[%s8576 + $0x28] sm:$0xff]
      %v8583 = vld [vmem:[%s8576 + $0x30] sm:$0xff]
      %v8584 = vld [vmem:[%s8576 + $0x38] sm:$0xff]
      %v8585 = vld [vmem:[%s8576 + $0x40] sm:$0xff]
      %v8586 = vld [vmem:[%s8576 + $0x48] sm:$0xff]
      %v8587 = vld [vmem:[%s8576 + $0x50] sm:$0xff]
      %v8588 = vld [vmem:[%s8576 + $0x58] sm:$0xff]
      %v8589 = vld [vmem:[%s8576 + $0x60] sm:$0xff]
      %v8590 = vld [vmem:[%s8576 + $0x68] sm:$0xff]
      %v8591 = vld [vmem:[%s8576 + $0x70] sm:$0xff]
      %v8592 = vld [vmem:[%s8576 + $0x78] sm:$0xff]
      %v8593 = vrot.slane %v7434, 1
      %v8594 = vor.u32 %v7431, %v8593
      %v8595 = vrot.slane %v7443, 1
      %v8596 = vsel %vm5006, %v8594, %v8595
      %v8597 = vor.u32 %v7440, %v8595
      %v8598 = vrot.slane %v7452, 1
      %v8599 = vsel %vm5006, %v8597, %v8598
      %v8600 = vor.u32 %v7449, %v8598
      %v8601 = vrot.slane %v7461, 1
      %v8602 = vsel %vm5006, %v8600, %v8601
      %v8603 = vor.u32 %v7458, %v8601
      %v8604 = vrot.slane %v7470, 1
      %v8605 = vsel %vm5006, %v8603, %v8604
      %v8606 = vor.u32 %v7467, %v8604
      %v8607 = vrot.slane %v7479, 1
      %v8608 = vsel %vm5006, %v8606, %v8607
      %v8609 = vor.u32 %v7476, %v8607
      %v8610 = vrot.slane %v7488, 1
      %v8611 = vsel %vm5006, %v8609, %v8610
      %v8612 = vor.u32 %v7485, %v8610
      %v8613 = vrot.slane %v7497, 1
      %v8614 = vsel %vm5006, %v8612, %v8613
      %v8615 = vor.u32 %v7494, %v8613
      %v8616 = vrot.slane %v7506, 1
      %v8617 = vsel %vm5006, %v8615, %v8616
      %v8618 = vor.u32 %v7503, %v8616
      %v8620 = vshll.u32 %v7147, 16
      %v8622 = vrot.slane %v8620, 1
      %v8623 = vsel %vm5006, %v8618, %v8622
      %v8649 = vunpack.c.l.b16 %v8577
      %v8650 = vunpack.c.h.b16 %v8577
      %v8651 = vunpack.c.l.b16 %v8578
      %v8652 = vunpack.c.h.b16 %v8578
      %v8653 = vunpack.c.l.b16 %v8579
      %v8654 = vunpack.c.h.b16 %v8579
      %v8655 = vunpack.c.l.b16 %v8580
      %v8656 = vunpack.c.h.b16 %v8580
      %v8657 = vunpack.c.l.b16 %v8581
      %v8658 = vunpack.c.h.b16 %v8581
      %v8659 = vunpack.c.l.b16 %v8582
      %v8660 = vunpack.c.h.b16 %v8582
      %v8661 = vunpack.c.l.b16 %v8583
      %v8662 = vunpack.c.h.b16 %v8583
      %v8663 = vunpack.c.l.b16 %v8584
      %v8664 = vunpack.c.h.b16 %v8584
      %v8665 = vunpack.c.l.b16 %v8585
      %v8666 = vunpack.c.h.b16 %v8585
      %v8667 = vunpack.c.l.b16 %v8586
      %v8668 = vunpack.c.h.b16 %v8586
      %v8669 = vunpack.c.l.b16 %v8587
      %v8670 = vunpack.c.h.b16 %v8587
      %v8671 = vunpack.c.l.b16 %v8588
      %v8672 = vunpack.c.h.b16 %v8588
      %v8673 = vunpack.c.l.b16 %v8589
      %v8674 = vunpack.c.h.b16 %v8589
      %v8675 = vunpack.c.l.b16 %v8590
      %v8676 = vunpack.c.h.b16 %v8590
      %v8677 = vunpack.c.l.b16 %v8591
      %v8678 = vunpack.c.h.b16 %v8591
      %v8679 = vunpack.c.l.b16 %v8592
      %v8680 = vunpack.c.h.b16 %v8592
      %v8681 = vpack.c.b16 %v8651, %v8649
      %v8682 = vpack.c.b16 %v8652, %v8650
      %v8683 = vpack.c.b16 %v8655, %v8653
      %v8684 = vpack.c.b16 %v8656, %v8654
      %v8685 = vpack.c.b16 %v8659, %v8657
      %v8686 = vpack.c.b16 %v8660, %v8658
      %v8687 = vpack.c.b16 %v8663, %v8661
      %v8688 = vpack.c.b16 %v8664, %v8662
      %v8689 = vpack.c.b16 %v8667, %v8665
      %v8690 = vpack.c.b16 %v8668, %v8666
      %v8691 = vpack.c.b16 %v8671, %v8669
      %v8692 = vpack.c.b16 %v8672, %v8670
      %v8693 = vpack.c.b16 %v8675, %v8673
      %v8694 = vpack.c.b16 %v8676, %v8674
      %v8695 = vpack.c.b16 %v8679, %v8677
      %v8696 = vpack.c.b16 %v8680, %v8678
      %8713 = vmatprep.subr.bf16.mxu0 %v8682
      %8714 = vmatpush1.bf16.msra.mxu0 %v8681
      %8715 = vmatprep.subr.bf16.mxu0 %v8684
      %8716 = vmatpush1.bf16.msra.mxu0 %v8683
      %8717 = vmatprep.subr.bf16.mxu0 %v8686
      %8718 = vmatpush1.bf16.msra.mxu0 %v8685
      %8719 = vmatprep.subr.bf16.mxu0 %v8688
      %8720 = vmatpush1.bf16.msra.mxu0 %v8687
      %8721 = vmatprep.subr.bf16.mxu0 %v8690
      %8722 = vmatpush1.bf16.msra.mxu0 %v8689
      %8723 = vmatprep.subr.bf16.mxu0 %v8692
      %8724 = vmatpush1.bf16.msra.mxu0 %v8691
      %8725 = vmatprep.subr.bf16.mxu0 %v8694
      %8726 = vmatpush1.bf16.msra.mxu0 %v8693
      %8727 = vmatprep.subr.bf16.mxu0 %v8696
      %8728 = vmatpush1.bf16.msra.mxu0 %v8695
      %8729 = vmatprep.subr.bf16.mxu0 0
      %8730 = vmatpush1.bf16.msra.mxu0 0
      %8731 = vmatprep.subr.bf16.mxu0 0
      %8732 = vmatpush1.bf16.msra.mxu0 0
      %8733 = vmatprep.subr.bf16.mxu0 0
      %8734 = vmatpush1.bf16.msra.mxu0 0
      %8735 = vmatprep.subr.bf16.mxu0 0
      %8736 = vmatpush1.bf16.msra.mxu0 0
      %8737 = vmatprep.subr.bf16.mxu0 0
      %8738 = vmatpush1.bf16.msra.mxu0 0
      %8739 = vmatprep.subr.bf16.mxu0 0
      %8740 = vmatpush1.bf16.msra.mxu0 0
      %8741 = vmatprep.subr.bf16.mxu0 0
      %8742 = vmatpush1.bf16.msra.mxu0 0
      %8743 = vmatprep.subr.bf16.mxu0 0
      %8744 = vmatpush1.bf16.msra.mxu0 0
      %8745 = vmatprep.mubr.bf16.mxu0 0
      %8746 = vmatmul.mubr.bf16.gmra.mrb[0].mxu0 %v8596
      %v8747 = vpop.f32.mrb[0].mxu0
      %v8748 = vadd.f32 0.0, %v8747
      %v8749 = vpop.f32.mrb[0].mxu0
      %v8750 = vadd.f32 0.0, %v8749
      %v8751 = vpop.f32.mrb[0].mxu0
      %v8752 = vadd.f32 0.0, %v8751
      %v8753 = vpop.f32.mrb[0].mxu0
      %v8754 = vadd.f32 0.0, %v8753
      %8755 = vmatprep.mubr.bf16.mxu0 0
      %8756 = vmatmul.mubr.bf16.gmra.mrb[0].mxu0 %v8599
      %v8757 = vpop.f32.mrb[0].mxu0
      %v8758 = vadd.f32 0.0, %v8757
      %v8759 = vpop.f32.mrb[0].mxu0
      %v8760 = vadd.f32 0.0, %v8759
      %v8761 = vpop.f32.mrb[0].mxu0
      %v8762 = vadd.f32 0.0, %v8761
      %v8763 = vpop.f32.mrb[0].mxu0
      %v8764 = vadd.f32 0.0, %v8763
      %8765 = vmatprep.mubr.bf16.mxu0 0
      %8766 = vmatmul.mubr.bf16.gmra.mrb[0].mxu0 %v8602
      %v8767 = vpop.f32.mrb[0].mxu0
      %v8768 = vadd.f32 0.0, %v8767
      %v8769 = vpop.f32.mrb[0].mxu0
      %v8770 = vadd.f32 0.0, %v8769
      %v8771 = vpop.f32.mrb[0].mxu0
      %v8772 = vadd.f32 0.0, %v8771
      %v8773 = vpop.f32.mrb[0].mxu0
      %v8774 = vadd.f32 0.0, %v8773
      %8775 = vmatprep.mubr.bf16.mxu0 0
      %8776 = vmatmul.mubr.bf16.gmra.mrb[0].mxu0 %v8605
      %v8777 = vpop.f32.mrb[0].mxu0
      %v8778 = vadd.f32 0.0, %v8777
      %v8779 = vpop.f32.mrb[0].mxu0
      %v8780 = vadd.f32 0.0, %v8779
      %v8781 = vpop.f32.mrb[0].mxu0
      %v8782 = vadd.f32 0.0, %v8781
      %v8783 = vpop.f32.mrb[0].mxu0
      %v8784 = vadd.f32 0.0, %v8783
      %8785 = vmatprep.mubr.bf16.mxu0 0
      %8786 = vmatmul.mubr.bf16.gmra.mrb[0].mxu0 %v8608
      %v8787 = vpop.f32.mrb[0].mxu0
      %v8788 = vadd.f32 0.0, %v8787
      %v8789 = vpop.f32.mrb[0].mxu0
      %v8790 = vadd.f32 0.0, %v8789
      %v8791 = vpop.f32.mrb[0].mxu0
      %v8792 = vadd.f32 0.0, %v8791
      %v8793 = vpop.f32.mrb[0].mxu0
      %v8794 = vadd.f32 0.0, %v8793
      %8795 = vmatprep.mubr.bf16.mxu0 0
      %8796 = vmatmul.mubr.bf16.gmra.mrb[0].mxu0 %v8611
      %v8797 = vpop.f32.mrb[0].mxu0
      %v8798 = vadd.f32 0.0, %v8797
      %v8799 = vpop.f32.mrb[0].mxu0
      %v8800 = vadd.f32 0.0, %v8799
      %v8801 = vpop.f32.mrb[0].mxu0
      %v8802 = vadd.f32 0.0, %v8801
      %v8803 = vpop.f32.mrb[0].mxu0
      %v8804 = vadd.f32 0.0, %v8803
      %8805 = vmatprep.mubr.bf16.mxu0 0
      %8806 = vmatmul.mubr.bf16.gmra.mrb[0].mxu0 %v8614
      %v8807 = vpop.f32.mrb[0].mxu0
      %v8808 = vadd.f32 0.0, %v8807
      %v8809 = vpop.f32.mrb[0].mxu0
      %v8810 = vadd.f32 0.0, %v8809
      %v8811 = vpop.f32.mrb[0].mxu0
      %v8812 = vadd.f32 0.0, %v8811
      %v8813 = vpop.f32.mrb[0].mxu0
      %v8814 = vadd.f32 0.0, %v8813
      %8815 = vmatprep.mubr.bf16.mxu0 0
      %8816 = vmatmul.mubr.bf16.gmra.mrb[0].mxu0 %v8617
      %v8817 = vpop.f32.mrb[0].mxu0
      %v8818 = vadd.f32 0.0, %v8817
      %v8819 = vpop.f32.mrb[0].mxu0
      %v8820 = vadd.f32 0.0, %v8819
      %v8821 = vpop.f32.mrb[0].mxu0
      %v8822 = vadd.f32 0.0, %v8821
      %v8823 = vpop.f32.mrb[0].mxu0
      %v8824 = vadd.f32 0.0, %v8823
      %8825 = vmatprep.mubr.bf16.mxu0 0
      %8826 = vmatmul.mubr.bf16.gmra.mrb[0].mxu0 %v8623
      %v8827 = vpop.f32.mrb[0].mxu0
      %v8828 = vadd.f32 0.0, %v8827
      %v8829 = vpop.f32.mrb[0].mxu0
      %v8830 = vadd.f32 0.0, %v8829
      %v8831 = vpop.f32.mrb[0].mxu0
      %v8832 = vadd.f32 0.0, %v8831
      %v8833 = vpop.f32.mrb[0].mxu0
      %v8834 = vadd.f32 0.0, %v8833
      %8835 = vdwg.mxu0
      %v8836 = vadd.f32 %v8540, %v8748
      %v8837 = vadd.f32 %v8541, %v8750
      %v8838 = vadd.f32 %v8542, %v8752
      %v8839 = vadd.f32 %v8543, %v8754
      %v8840 = vadd.f32 %v8544, %v8758
      %v8841 = vadd.f32 %v8545, %v8760
      %v8842 = vadd.f32 %v8546, %v8762
      %v8843 = vadd.f32 %v8547, %v8764
      %v8844 = vadd.f32 %v8548, %v8768
      %v8845 = vadd.f32 %v8549, %v8770
      %v8846 = vadd.f32 %v8550, %v8772
      %v8847 = vadd.f32 %v8551, %v8774
      %v8848 = vadd.f32 %v8552, %v8778
      %v8849 = vadd.f32 %v8553, %v8780
      %v8850 = vadd.f32 %v8554, %v8782
      %v8851 = vadd.f32 %v8555, %v8784
      %v8852 = vadd.f32 %v8556, %v8788
      %v8853 = vadd.f32 %v8557, %v8790
      %v8854 = vadd.f32 %v8558, %v8792
      %v8855 = vadd.f32 %v8559, %v8794
      %v8856 = vadd.f32 %v8560, %v8798
      %v8857 = vadd.f32 %v8561, %v8800
      %v8858 = vadd.f32 %v8562, %v8802
      %v8859 = vadd.f32 %v8563, %v8804
      %v8860 = vadd.f32 %v8564, %v8808
      %v8861 = vadd.f32 %v8565, %v8810
      %v8862 = vadd.f32 %v8566, %v8812
      %v8863 = vadd.f32 %v8567, %v8814
      %v8864 = vadd.f32 %v8568, %v8818
      %v8865 = vadd.f32 %v8569, %v8820
      %v8866 = vadd.f32 %v8570, %v8822
      %v8867 = vadd.f32 %v8571, %v8824
      %v8868 = vadd.f32 %v8572, %v8828
      %v8869 = vadd.f32 %v8573, %v8830
      %v8870 = vadd.f32 %v8574, %v8832
      %v8871 = vadd.f32 %v8575, %v8834
      %s8872 = scalar_lea.vmem %s4, 768
      %v8873 = vld [vmem:[%s8872] sm:$0xff]
      %v8874 = vld [vmem:[%s8872 + $0x8] sm:$0xff]
      %v8875 = vld [vmem:[%s8872 + $0x10] sm:$0xff]
      %v8876 = vld [vmem:[%s8872 + $0x18] sm:$0xff]
      %v8877 = vld [vmem:[%s8872 + $0x20] sm:$0xff]
      %v8878 = vld [vmem:[%s8872 + $0x28] sm:$0xff]
      %v8879 = vld [vmem:[%s8872 + $0x30] sm:$0xff]
      %v8880 = vld [vmem:[%s8872 + $0x38] sm:$0xff]
      %v8881 = vld [vmem:[%s8872 + $0x40] sm:$0xff]
      %v8882 = vld [vmem:[%s8872 + $0x48] sm:$0xff]
      %v8883 = vld [vmem:[%s8872 + $0x50] sm:$0xff]
      %v8884 = vld [vmem:[%s8872 + $0x58] sm:$0xff]
      %v8885 = vld [vmem:[%s8872 + $0x60] sm:$0xff]
      %v8886 = vld [vmem:[%s8872 + $0x68] sm:$0xff]
      %v8887 = vld [vmem:[%s8872 + $0x70] sm:$0xff]
      %v8888 = vld [vmem:[%s8872 + $0x78] sm:$0xff]
      %v8889 = vrot.slane %v7431, 5
      %v8890 = vrot.slane %v7434, 6
      %v8891 = vor.u32 %v8889, %v8890
      %v8892 = vrot.slane %v7440, 5
      %v8893 = vrot.slane %v7443, 6
      %v8894 = vor.u32 %v8892, %v8893
      %v8895 = vsel %vm5303, %v8891, %v8894
      %v8896 = vrot.slane %v7449, 5
      %v8897 = vrot.slane %v7452, 6
      %v8898 = vor.u32 %v8896, %v8897
      %v8899 = vsel %vm5303, %v8894, %v8898
      %v8900 = vrot.slane %v7458, 5
      %v8901 = vrot.slane %v7461, 6
      %v8902 = vor.u32 %v8900, %v8901
      %v8903 = vsel %vm5303, %v8898, %v8902
      %v8904 = vrot.slane %v7467, 5
      %v8905 = vrot.slane %v7470, 6
      %v8906 = vor.u32 %v8904, %v8905
      %v8907 = vsel %vm5303, %v8902, %v8906
      %v8908 = vrot.slane %v7476, 5
      %v8909 = vrot.slane %v7479, 6
      %v8910 = vor.u32 %v8908, %v8909
      %v8911 = vsel %vm5303, %v8906, %v8910
      %v8912 = vrot.slane %v7485, 5
      %v8913 = vrot.slane %v7488, 6
      %v8914 = vor.u32 %v8912, %v8913
      %v8915 = vsel %vm5303, %v8910, %v8914
      %v8916 = vrot.slane %v7494, 5
      %v8917 = vrot.slane %v7497, 6
      %v8918 = vor.u32 %v8916, %v8917
      %v8919 = vsel %vm5303, %v8914, %v8918
      %v8920 = vrot.slane %v7503, 5
      %v8921 = vrot.slane %v7506, 6
      %v8922 = vor.u32 %v8920, %v8921
      %v8923 = vsel %vm5303, %v8918, %v8922
      %v8924 = vshrl.u32 %v7147, 16
      %v8926 = vrot.slane %v8924, 5
      %v8927 = vrot.slane %v8620, 6
      %v8928 = vor.u32 %v8926, %v8927
      %v8929 = vsel %vm5303, %v8922, %v8928
      %v8955 = vunpack.c.l.b16 %v8873
      %v8956 = vunpack.c.h.b16 %v8873
      %v8957 = vunpack.c.l.b16 %v8874
      %v8958 = vunpack.c.h.b16 %v8874
      %v8959 = vunpack.c.l.b16 %v8875
      %v8960 = vunpack.c.h.b16 %v8875
      %v8961 = vunpack.c.l.b16 %v8876
      %v8962 = vunpack.c.h.b16 %v8876
      %v8963 = vunpack.c.l.b16 %v8877
      %v8964 = vunpack.c.h.b16 %v8877
      %v8965 = vunpack.c.l.b16 %v8878
      %v8966 = vunpack.c.h.b16 %v8878
      %v8967 = vunpack.c.l.b16 %v8879
      %v8968 = vunpack.c.h.b16 %v8879
      %v8969 = vunpack.c.l.b16 %v8880
      %v8970 = vunpack.c.h.b16 %v8880
      %v8971 = vunpack.c.l.b16 %v8881
      %v8972 = vunpack.c.h.b16 %v8881
      %v8973 = vunpack.c.l.b16 %v8882
      %v8974 = vunpack.c.h.b16 %v8882
      %v8975 = vunpack.c.l.b16 %v8883
      %v8976 = vunpack.c.h.b16 %v8883
      %v8977 = vunpack.c.l.b16 %v8884
      %v8978 = vunpack.c.h.b16 %v8884
      %v8979 = vunpack.c.l.b16 %v8885
      %v8980 = vunpack.c.h.b16 %v8885
      %v8981 = vunpack.c.l.b16 %v8886
      %v8982 = vunpack.c.h.b16 %v8886
      %v8983 = vunpack.c.l.b16 %v8887
      %v8984 = vunpack.c.h.b16 %v8887
      %v8985 = vunpack.c.l.b16 %v8888
      %v8986 = vunpack.c.h.b16 %v8888
      %v8987 = vpack.c.b16 %v8957, %v8955
      %v8988 = vpack.c.b16 %v8958, %v8956
      %v8989 = vpack.c.b16 %v8961, %v8959
      %v8990 = vpack.c.b16 %v8962, %v8960
      %v8991 = vpack.c.b16 %v8965, %v8963
      %v8992 = vpack.c.b16 %v8966, %v8964
      %v8993 = vpack.c.b16 %v8969, %v8967
      %v8994 = vpack.c.b16 %v8970, %v8968
      %v8995 = vpack.c.b16 %v8973, %v8971
      %v8996 = vpack.c.b16 %v8974, %v8972
      %v8997 = vpack.c.b16 %v8977, %v8975
      %v8998 = vpack.c.b16 %v8978, %v8976
      %v8999 = vpack.c.b16 %v8981, %v8979
      %v9000 = vpack.c.b16 %v8982, %v8980
      %v9001 = vpack.c.b16 %v8985, %v8983
      %v9002 = vpack.c.b16 %v8986, %v8984
      %9019 = vmatprep.subr.bf16.mxu0 %v8988
      %9020 = vmatpush1.bf16.msra.mxu0 %v8987
      %9021 = vmatprep.subr.bf16.mxu0 %v8990
      %9022 = vmatpush1.bf16.msra.mxu0 %v8989
      %9023 = vmatprep.subr.bf16.mxu0 %v8992
      %9024 = vmatpush1.bf16.msra.mxu0 %v8991
      %9025 = vmatprep.subr.bf16.mxu0 %v8994
      %9026 = vmatpush1.bf16.msra.mxu0 %v8993
      %9027 = vmatprep.subr.bf16.mxu0 %v8996
      %9028 = vmatpush1.bf16.msra.mxu0 %v8995
      %9029 = vmatprep.subr.bf16.mxu0 %v8998
      %9030 = vmatpush1.bf16.msra.mxu0 %v8997
      %9031 = vmatprep.subr.bf16.mxu0 %v9000
      %9032 = vmatpush1.bf16.msra.mxu0 %v8999
      %9033 = vmatprep.subr.bf16.mxu0 %v9002
      %9034 = vmatpush1.bf16.msra.mxu0 %v9001
      %9035 = vmatprep.subr.bf16.mxu0 0
      %9036 = vmatpush1.bf16.msra.mxu0 0
      %9037 = vmatprep.subr.bf16.mxu0 0
      %9038 = vmatpush1.bf16.msra.mxu0 0
      %9039 = vmatprep.subr.bf16.mxu0 0
      %9040 = vmatpush1.bf16.msra.mxu0 0
      %9041 = vmatprep.subr.bf16.mxu0 0
      %9042 = vmatpush1.bf16.msra.mxu0 0
      %9043 = vmatprep.subr.bf16.mxu0 0
      %9044 = vmatpush1.bf16.msra.mxu0 0
      %9045 = vmatprep.subr.bf16.mxu0 0
      %9046 = vmatpush1.bf16.msra.mxu0 0
      %9047 = vmatprep.subr.bf16.mxu0 0
      %9048 = vmatpush1.bf16.msra.mxu0 0
      %9049 = vmatprep.subr.bf16.mxu0 0
      %9050 = vmatpush1.bf16.msra.mxu0 0
      %9051 = vmatprep.mubr.bf16.mxu0 0
      %9052 = vmatmul.mubr.bf16.gmra.mrb[0].mxu0 %v8895
      %v9053 = vpop.f32.mrb[0].mxu0
      %v9054 = vadd.f32 0.0, %v9053
      %v9055 = vpop.f32.mrb[0].mxu0
      %v9056 = vadd.f32 0.0, %v9055
      %v9057 = vpop.f32.mrb[0].mxu0
      %v9058 = vadd.f32 0.0, %v9057
      %v9059 = vpop.f32.mrb[0].mxu0
      %v9060 = vadd.f32 0.0, %v9059
      %9061 = vmatprep.mubr.bf16.mxu0 0
      %9062 = vmatmul.mubr.bf16.gmra.mrb[0].mxu0 %v8899
      %v9063 = vpop.f32.mrb[0].mxu0
      %v9064 = vadd.f32 0.0, %v9063
      %v9065 = vpop.f32.mrb[0].mxu0
      %v9066 = vadd.f32 0.0, %v9065
      %v9067 = vpop.f32.mrb[0].mxu0
      %v9068 = vadd.f32 0.0, %v9067
      %v9069 = vpop.f32.mrb[0].mxu0
      %v9070 = vadd.f32 0.0, %v9069
      %9071 = vmatprep.mubr.bf16.mxu0 0
      %9072 = vmatmul.mubr.bf16.gmra.mrb[0].mxu0 %v8903
      %v9073 = vpop.f32.mrb[0].mxu0
      %v9074 = vadd.f32 0.0, %v9073
      %v9075 = vpop.f32.mrb[0].mxu0
      %v9076 = vadd.f32 0.0, %v9075
      %v9077 = vpop.f32.mrb[0].mxu0
      %v9078 = vadd.f32 0.0, %v9077
      %v9079 = vpop.f32.mrb[0].mxu0
      %v9080 = vadd.f32 0.0, %v9079
      %9081 = vmatprep.mubr.bf16.mxu0 0
      %9082 = vmatmul.mubr.bf16.gmra.mrb[0].mxu0 %v8907
      %v9083 = vpop.f32.mrb[0].mxu0
      %v9084 = vadd.f32 0.0, %v9083
      %v9085 = vpop.f32.mrb[0].mxu0
      %v9086 = vadd.f32 0.0, %v9085
      %v9087 = vpop.f32.mrb[0].mxu0
      %v9088 = vadd.f32 0.0, %v9087
      %v9089 = vpop.f32.mrb[0].mxu0
      %v9090 = vadd.f32 0.0, %v9089
      %9091 = vmatprep.mubr.bf16.mxu0 0
      %9092 = vmatmul.mubr.bf16.gmra.mrb[0].mxu0 %v8911
      %v9093 = vpop.f32.mrb[0].mxu0
      %v9094 = vadd.f32 0.0, %v9093
      %v9095 = vpop.f32.mrb[0].mxu0
      %v9096 = vadd.f32 0.0, %v9095
      %v9097 = vpop.f32.mrb[0].mxu0
      %v9098 = vadd.f32 0.0, %v9097
      %v9099 = vpop.f32.mrb[0].mxu0
      %v9100 = vadd.f32 0.0, %v9099
      %9101 = vmatprep.mubr.bf16.mxu0 0
      %9102 = vmatmul.mubr.bf16.gmra.mrb[0].mxu0 %v8915
      %v9103 = vpop.f32.mrb[0].mxu0
      %v9104 = vadd.f32 0.0, %v9103
      %v9105 = vpop.f32.mrb[0].mxu0
      %v9106 = vadd.f32 0.0, %v9105
      %v9107 = vpop.f32.mrb[0].mxu0
      %v9108 = vadd.f32 0.0, %v9107
      %v9109 = vpop.f32.mrb[0].mxu0
      %v9110 = vadd.f32 0.0, %v9109
      %9111 = vmatprep.mubr.bf16.mxu0 0
      %9112 = vmatmul.mubr.bf16.gmra.mrb[0].mxu0 %v8919
      %v9113 = vpop.f32.mrb[0].mxu0
      %v9114 = vadd.f32 0.0, %v9113
      %v9115 = vpop.f32.mrb[0].mxu0
      %v9116 = vadd.f32 0.0, %v9115
      %v9117 = vpop.f32.mrb[0].mxu0
      %v9118 = vadd.f32 0.0, %v9117
      %v9119 = vpop.f32.mrb[0].mxu0
      %v9120 = vadd.f32 0.0, %v9119
      %9121 = vmatprep.mubr.bf16.mxu0 0
      %9122 = vmatmul.mubr.bf16.gmra.mrb[0].mxu0 %v8923
      %v9123 = vpop.f32.mrb[0].mxu0
      %v9124 = vadd.f32 0.0, %v9123
      %v9125 = vpop.f32.mrb[0].mxu0
      %v9126 = vadd.f32 0.0, %v9125
      %v9127 = vpop.f32.mrb[0].mxu0
      %v9128 = vadd.f32 0.0, %v9127
      %v9129 = vpop.f32.mrb[0].mxu0
      %v9130 = vadd.f32 0.0, %v9129
      %9131 = vmatprep.mubr.bf16.mxu0 0
      %9132 = vmatmul.mubr.bf16.gmra.mrb[0].mxu0 %v8929
      %v9133 = vpop.f32.mrb[0].mxu0
      %v9134 = vadd.f32 0.0, %v9133
      %v9135 = vpop.f32.mrb[0].mxu0
      %v9136 = vadd.f32 0.0, %v9135
      %v9137 = vpop.f32.mrb[0].mxu0
      %v9138 = vadd.f32 0.0, %v9137
      %v9139 = vpop.f32.mrb[0].mxu0
      %v9140 = vadd.f32 0.0, %v9139
      %9141 = vdwg.mxu0
      %v9142 = vadd.f32 %v8836, %v9054
      %v9143 = vadd.f32 %v8837, %v9056
      %v9144 = vadd.f32 %v8838, %v9058
      %v9145 = vadd.f32 %v8839, %v9060
      %v9146 = vadd.f32 %v8840, %v9064
      %v9147 = vadd.f32 %v8841, %v9066
      %v9148 = vadd.f32 %v8842, %v9068
      %v9149 = vadd.f32 %v8843, %v9070
      %v9150 = vadd.f32 %v8844, %v9074
      %v9151 = vadd.f32 %v8845, %v9076
      %v9152 = vadd.f32 %v8846, %v9078
      %v9153 = vadd.f32 %v8847, %v9080
      %v9154 = vadd.f32 %v8848, %v9084
      %v9155 = vadd.f32 %v8849, %v9086
      %v9156 = vadd.f32 %v8850, %v9088
      %v9157 = vadd.f32 %v8851, %v9090
      %v9158 = vadd.f32 %v8852, %v9094
      %v9159 = vadd.f32 %v8853, %v9096
      %v9160 = vadd.f32 %v8854, %v9098
      %v9161 = vadd.f32 %v8855, %v9100
      %v9162 = vadd.f32 %v8856, %v9104
      %v9163 = vadd.f32 %v8857, %v9106
      %v9164 = vadd.f32 %v8858, %v9108
      %v9165 = vadd.f32 %v8859, %v9110
      %v9166 = vadd.f32 %v8860, %v9114
      %v9167 = vadd.f32 %v8861, %v9116
      %v9168 = vadd.f32 %v8862, %v9118
      %v9169 = vadd.f32 %v8863, %v9120
      %v9170 = vadd.f32 %v8864, %v9124
      %v9171 = vadd.f32 %v8865, %v9126
      %v9172 = vadd.f32 %v8866, %v9128
      %v9173 = vadd.f32 %v8867, %v9130
      %v9174 = vadd.f32 %v8868, %v9134
      %v9175 = vadd.f32 %v8869, %v9136
      %v9176 = vadd.f32 %v8870, %v9138
      %v9177 = vadd.f32 %v8871, %v9140
      %s9178 = scalar_lea.vmem %s4, 896
      %v9179 = vld [vmem:[%s9178] sm:$0xff]
      %v9180 = vld [vmem:[%s9178 + $0x8] sm:$0xff]
      %v9181 = vld [vmem:[%s9178 + $0x10] sm:$0xff]
      %v9182 = vld [vmem:[%s9178 + $0x18] sm:$0xff]
      %v9183 = vld [vmem:[%s9178 + $0x20] sm:$0xff]
      %v9184 = vld [vmem:[%s9178 + $0x28] sm:$0xff]
      %v9185 = vld [vmem:[%s9178 + $0x30] sm:$0xff]
      %v9186 = vld [vmem:[%s9178 + $0x38] sm:$0xff]
      %v9187 = vld [vmem:[%s9178 + $0x40] sm:$0xff]
      %v9188 = vld [vmem:[%s9178 + $0x48] sm:$0xff]
      %v9189 = vld [vmem:[%s9178 + $0x50] sm:$0xff]
      %v9190 = vld [vmem:[%s9178 + $0x58] sm:$0xff]
      %v9191 = vld [vmem:[%s9178 + $0x60] sm:$0xff]
      %v9192 = vld [vmem:[%s9178 + $0x68] sm:$0xff]
      %v9193 = vld [vmem:[%s9178 + $0x70] sm:$0xff]
      %v9194 = vld [vmem:[%s9178 + $0x78] sm:$0xff]
      %v9196 = vrot.slane %v7138, 6
      %v9197 = vrot.slane %v7139, 6
      %v9198 = vsel %vm5611, %v9196, %v9197
      %v9199 = vrot.slane %v7140, 6
      %v9200 = vsel %vm5611, %v9197, %v9199
      %v9201 = vrot.slane %v7141, 6
      %v9202 = vsel %vm5611, %v9199, %v9201
      %v9203 = vrot.slane %v7142, 6
      %v9204 = vsel %vm5611, %v9201, %v9203
      %v9205 = vrot.slane %v7143, 6
      %v9206 = vsel %vm5611, %v9203, %v9205
      %v9207 = vrot.slane %v7144, 6
      %v9208 = vsel %vm5611, %v9205, %v9207
      %v9209 = vrot.slane %v7145, 6
      %v9210 = vsel %vm5611, %v9207, %v9209
      %v9211 = vrot.slane %v7146, 6
      %v9212 = vsel %vm5611, %v9209, %v9211
      %v9213 = vrot.slane %v7147, 6
      %v9214 = vsel %vm5611, %v9211, %v9213
      %v9240 = vunpack.c.l.b16 %v9179
      %v9241 = vunpack.c.h.b16 %v9179
      %v9242 = vunpack.c.l.b16 %v9180
      %v9243 = vunpack.c.h.b16 %v9180
      %v9244 = vunpack.c.l.b16 %v9181
      %v9245 = vunpack.c.h.b16 %v9181
      %v9246 = vunpack.c.l.b16 %v9182
      %v9247 = vunpack.c.h.b16 %v9182
      %v9248 = vunpack.c.l.b16 %v9183
      %v9249 = vunpack.c.h.b16 %v9183
      %v9250 = vunpack.c.l.b16 %v9184
      %v9251 = vunpack.c.h.b16 %v9184
      %v9252 = vunpack.c.l.b16 %v9185
      %v9253 = vunpack.c.h.b16 %v9185
      %v9254 = vunpack.c.l.b16 %v9186
      %v9255 = vunpack.c.h.b16 %v9186
      %v9256 = vunpack.c.l.b16 %v9187
      %v9257 = vunpack.c.h.b16 %v9187
      %v9258 = vunpack.c.l.b16 %v9188
      %v9259 = vunpack.c.h.b16 %v9188
      %v9260 = vunpack.c.l.b16 %v9189
      %v9261 = vunpack.c.h.b16 %v9189
      %v9262 = vunpack.c.l.b16 %v9190
      %v9263 = vunpack.c.h.b16 %v9190
      %v9264 = vunpack.c.l.b16 %v9191
      %v9265 = vunpack.c.h.b16 %v9191
      %v9266 = vunpack.c.l.b16 %v9192
      %v9267 = vunpack.c.h.b16 %v9192
      %v9268 = vunpack.c.l.b16 %v9193
      %v9269 = vunpack.c.h.b16 %v9193
      %v9270 = vunpack.c.l.b16 %v9194
      %v9271 = vunpack.c.h.b16 %v9194
      %v9272 = vpack.c.b16 %v9242, %v9240
      %v9273 = vpack.c.b16 %v9243, %v9241
      %v9274 = vpack.c.b16 %v9246, %v9244
      %v9275 = vpack.c.b16 %v9247, %v9245
      %v9276 = vpack.c.b16 %v9250, %v9248
      %v9277 = vpack.c.b16 %v9251, %v9249
      %v9278 = vpack.c.b16 %v9254, %v9252
      %v9279 = vpack.c.b16 %v9255, %v9253
      %v9280 = vpack.c.b16 %v9258, %v9256
      %v9281 = vpack.c.b16 %v9259, %v9257
      %v9282 = vpack.c.b16 %v9262, %v9260
      %v9283 = vpack.c.b16 %v9263, %v9261
      %v9284 = vpack.c.b16 %v9266, %v9264
      %v9285 = vpack.c.b16 %v9267, %v9265
      %v9286 = vpack.c.b16 %v9270, %v9268
      %v9287 = vpack.c.b16 %v9271, %v9269
      %9304 = vmatprep.subr.bf16.mxu0 %v9273
      %9305 = vmatpush1.bf16.msra.mxu0 %v9272
      %9306 = vmatprep.subr.bf16.mxu0 %v9275
      %9307 = vmatpush1.bf16.msra.mxu0 %v9274
      %9308 = vmatprep.subr.bf16.mxu0 %v9277
      %9309 = vmatpush1.bf16.msra.mxu0 %v9276
      %9310 = vmatprep.subr.bf16.mxu0 %v9279
      %9311 = vmatpush1.bf16.msra.mxu0 %v9278
      %9312 = vmatprep.subr.bf16.mxu0 %v9281
      %9313 = vmatpush1.bf16.msra.mxu0 %v9280
      %9314 = vmatprep.subr.bf16.mxu0 %v9283
      %9315 = vmatpush1.bf16.msra.mxu0 %v9282
      %9316 = vmatprep.subr.bf16.mxu0 %v9285
      %9317 = vmatpush1.bf16.msra.mxu0 %v9284
      %9318 = vmatprep.subr.bf16.mxu0 %v9287
      %9319 = vmatpush1.bf16.msra.mxu0 %v9286
      %9320 = vmatprep.subr.bf16.mxu0 0
      %9321 = vmatpush1.bf16.msra.mxu0 0
      %9322 = vmatprep.subr.bf16.mxu0 0
      %9323 = vmatpush1.bf16.msra.mxu0 0
      %9324 = vmatprep.subr.bf16.mxu0 0
      %9325 = vmatpush1.bf16.msra.mxu0 0
      %9326 = vmatprep.subr.bf16.mxu0 0
      %9327 = vmatpush1.bf16.msra.mxu0 0
      %9328 = vmatprep.subr.bf16.mxu0 0
      %9329 = vmatpush1.bf16.msra.mxu0 0
      %9330 = vmatprep.subr.bf16.mxu0 0
      %9331 = vmatpush1.bf16.msra.mxu0 0
      %9332 = vmatprep.subr.bf16.mxu0 0
      %9333 = vmatpush1.bf16.msra.mxu0 0
      %9334 = vmatprep.subr.bf16.mxu0 0
      %9335 = vmatpush1.bf16.msra.mxu0 0
      %9336 = vmatprep.mubr.bf16.mxu0 0
      %9337 = vmatmul.mubr.bf16.gmra.mrb[0].mxu0 %v9198
      %v9338 = vpop.f32.mrb[0].mxu0
      %v9339 = vadd.f32 0.0, %v9338
      %v9340 = vpop.f32.mrb[0].mxu0
      %v9341 = vadd.f32 0.0, %v9340
      %v9342 = vpop.f32.mrb[0].mxu0
      %v9343 = vadd.f32 0.0, %v9342
      %v9344 = vpop.f32.mrb[0].mxu0
      %v9345 = vadd.f32 0.0, %v9344
      %9346 = vmatprep.mubr.bf16.mxu0 0
      %9347 = vmatmul.mubr.bf16.gmra.mrb[0].mxu0 %v9200
      %v9348 = vpop.f32.mrb[0].mxu0
      %v9349 = vadd.f32 0.0, %v9348
      %v9350 = vpop.f32.mrb[0].mxu0
      %v9351 = vadd.f32 0.0, %v9350
      %v9352 = vpop.f32.mrb[0].mxu0
      %v9353 = vadd.f32 0.0, %v9352
      %v9354 = vpop.f32.mrb[0].mxu0
      %v9355 = vadd.f32 0.0, %v9354
      %9356 = vmatprep.mubr.bf16.mxu0 0
      %9357 = vmatmul.mubr.bf16.gmra.mrb[0].mxu0 %v9202
      %v9358 = vpop.f32.mrb[0].mxu0
      %v9359 = vadd.f32 0.0, %v9358
      %v9360 = vpop.f32.mrb[0].mxu0
      %v9361 = vadd.f32 0.0, %v9360
      %v9362 = vpop.f32.mrb[0].mxu0
      %v9363 = vadd.f32 0.0, %v9362
      %v9364 = vpop.f32.mrb[0].mxu0
      %v9365 = vadd.f32 0.0, %v9364
      %9366 = vmatprep.mubr.bf16.mxu0 0
      %9367 = vmatmul.mubr.bf16.gmra.mrb[0].mxu0 %v9204
      %v9368 = vpop.f32.mrb[0].mxu0
      %v9369 = vadd.f32 0.0, %v9368
      %v9370 = vpop.f32.mrb[0].mxu0
      %v9371 = vadd.f32 0.0, %v9370
      %v9372 = vpop.f32.mrb[0].mxu0
      %v9373 = vadd.f32 0.0, %v9372
      %v9374 = vpop.f32.mrb[0].mxu0
      %v9375 = vadd.f32 0.0, %v9374
      %9376 = vmatprep.mubr.bf16.mxu0 0
      %9377 = vmatmul.mubr.bf16.gmra.mrb[0].mxu0 %v9206
      %v9378 = vpop.f32.mrb[0].mxu0
      %v9379 = vadd.f32 0.0, %v9378
      %v9380 = vpop.f32.mrb[0].mxu0
      %v9381 = vadd.f32 0.0, %v9380
      %v9382 = vpop.f32.mrb[0].mxu0
      %v9383 = vadd.f32 0.0, %v9382
      %v9384 = vpop.f32.mrb[0].mxu0
      %v9385 = vadd.f32 0.0, %v9384
      %9386 = vmatprep.mubr.bf16.mxu0 0
      %9387 = vmatmul.mubr.bf16.gmra.mrb[0].mxu0 %v9208
      %v9388 = vpop.f32.mrb[0].mxu0
      %v9389 = vadd.f32 0.0, %v9388
      %v9390 = vpop.f32.mrb[0].mxu0
      %v9391 = vadd.f32 0.0, %v9390
      %v9392 = vpop.f32.mrb[0].mxu0
      %v9393 = vadd.f32 0.0, %v9392
      %v9394 = vpop.f32.mrb[0].mxu0
      %v9395 = vadd.f32 0.0, %v9394
      %9396 = vmatprep.mubr.bf16.mxu0 0
      %9397 = vmatmul.mubr.bf16.gmra.mrb[0].mxu0 %v9210
      %v9398 = vpop.f32.mrb[0].mxu0
      %v9399 = vadd.f32 0.0, %v9398
      %v9400 = vpop.f32.mrb[0].mxu0
      %v9401 = vadd.f32 0.0, %v9400
      %v9402 = vpop.f32.mrb[0].mxu0
      %v9403 = vadd.f32 0.0, %v9402
      %v9404 = vpop.f32.mrb[0].mxu0
      %v9405 = vadd.f32 0.0, %v9404
      %9406 = vmatprep.mubr.bf16.mxu0 0
      %9407 = vmatmul.mubr.bf16.gmra.mrb[0].mxu0 %v9212
      %v9408 = vpop.f32.mrb[0].mxu0
      %v9409 = vadd.f32 0.0, %v9408
      %v9410 = vpop.f32.mrb[0].mxu0
      %v9411 = vadd.f32 0.0, %v9410
      %v9412 = vpop.f32.mrb[0].mxu0
      %v9413 = vadd.f32 0.0, %v9412
      %v9414 = vpop.f32.mrb[0].mxu0
      %v9415 = vadd.f32 0.0, %v9414
      %9416 = vmatprep.mubr.bf16.mxu0 0
      %9417 = vmatmul.mubr.bf16.gmra.mrb[0].mxu0 %v9214
      %v9418 = vpop.f32.mrb[0].mxu0
      %v9419 = vadd.f32 0.0, %v9418
      %v9420 = vpop.f32.mrb[0].mxu0
      %v9421 = vadd.f32 0.0, %v9420
      %v9422 = vpop.f32.mrb[0].mxu0
      %v9423 = vadd.f32 0.0, %v9422
      %v9424 = vpop.f32.mrb[0].mxu0
      %v9425 = vadd.f32 0.0, %v9424
      %9426 = vdwg.mxu0
      %v9427 = vadd.f32 %v9142, %v9339
      %v9428 = vadd.f32 %v9143, %v9341
      %v9429 = vadd.f32 %v9144, %v9343
      %v9430 = vadd.f32 %v9145, %v9345
      %v9431 = vadd.f32 %v9146, %v9349
      %v9432 = vadd.f32 %v9147, %v9351
      %v9433 = vadd.f32 %v9148, %v9353
      %v9434 = vadd.f32 %v9149, %v9355
      %v9435 = vadd.f32 %v9150, %v9359
      %v9436 = vadd.f32 %v9151, %v9361
      %v9437 = vadd.f32 %v9152, %v9363
      %v9438 = vadd.f32 %v9153, %v9365
      %v9439 = vadd.f32 %v9154, %v9369
      %v9440 = vadd.f32 %v9155, %v9371
      %v9441 = vadd.f32 %v9156, %v9373
      %v9442 = vadd.f32 %v9157, %v9375
      %v9443 = vadd.f32 %v9158, %v9379
      %v9444 = vadd.f32 %v9159, %v9381
      %v9445 = vadd.f32 %v9160, %v9383
      %v9446 = vadd.f32 %v9161, %v9385
      %v9447 = vadd.f32 %v9162, %v9389
      %v9448 = vadd.f32 %v9163, %v9391
      %v9449 = vadd.f32 %v9164, %v9393
      %v9450 = vadd.f32 %v9165, %v9395
      %v9451 = vadd.f32 %v9166, %v9399
      %v9452 = vadd.f32 %v9167, %v9401
      %v9453 = vadd.f32 %v9168, %v9403
      %v9454 = vadd.f32 %v9169, %v9405
      %v9455 = vadd.f32 %v9170, %v9409
      %v9456 = vadd.f32 %v9171, %v9411
      %v9457 = vadd.f32 %v9172, %v9413
      %v9458 = vadd.f32 %v9173, %v9415
      %v9459 = vadd.f32 %v9174, %v9419
      %v9460 = vadd.f32 %v9175, %v9421
      %v9461 = vadd.f32 %v9176, %v9423
      %v9462 = vadd.f32 %v9177, %v9425
      %s9463 = scalar_lea.vmem %s4, 1024
      %v9464 = vld [vmem:[%s9463] sm:$0xff]
      %v9465 = vld [vmem:[%s9463 + $0x8] sm:$0xff]
      %v9466 = vld [vmem:[%s9463 + $0x10] sm:$0xff]
      %v9467 = vld [vmem:[%s9463 + $0x18] sm:$0xff]
      %v9468 = vld [vmem:[%s9463 + $0x20] sm:$0xff]
      %v9469 = vld [vmem:[%s9463 + $0x28] sm:$0xff]
      %v9470 = vld [vmem:[%s9463 + $0x30] sm:$0xff]
      %v9471 = vld [vmem:[%s9463 + $0x38] sm:$0xff]
      %v9472 = vld [vmem:[%s9463 + $0x40] sm:$0xff]
      %v9473 = vld [vmem:[%s9463 + $0x48] sm:$0xff]
      %v9474 = vld [vmem:[%s9463 + $0x50] sm:$0xff]
      %v9475 = vld [vmem:[%s9463 + $0x58] sm:$0xff]
      %v9476 = vld [vmem:[%s9463 + $0x60] sm:$0xff]
      %v9477 = vld [vmem:[%s9463 + $0x68] sm:$0xff]
      %v9478 = vld [vmem:[%s9463 + $0x70] sm:$0xff]
      %v9479 = vld [vmem:[%s9463 + $0x78] sm:$0xff]
      %v9480 = vrot.slane %v7431, 6
      %v9481 = vrot.slane %v7434, 7
      %v9482 = vor.u32 %v9480, %v9481
      %v9483 = vrot.slane %v7440, 6
      %v9484 = vrot.slane %v7443, 7
      %v9485 = vor.u32 %v9483, %v9484
      %v9486 = vsel %vm5896, %v9482, %v9485
      %v9487 = vrot.slane %v7449, 6
      %v9488 = vrot.slane %v7452, 7
      %v9489 = vor.u32 %v9487, %v9488
      %v9490 = vsel %vm5896, %v9485, %v9489
      %v9491 = vrot.slane %v7458, 6
      %v9492 = vrot.slane %v7461, 7
      %v9493 = vor.u32 %v9491, %v9492
      %v9494 = vsel %vm5896, %v9489, %v9493
      %v9495 = vrot.slane %v7467, 6
      %v9496 = vrot.slane %v7470, 7
      %v9497 = vor.u32 %v9495, %v9496
      %v9498 = vsel %vm5896, %v9493, %v9497
      %v9499 = vrot.slane %v7476, 6
      %v9500 = vrot.slane %v7479, 7
      %v9501 = vor.u32 %v9499, %v9500
      %v9502 = vsel %vm5896, %v9497, %v9501
      %v9503 = vrot.slane %v7485, 6
      %v9504 = vrot.slane %v7488, 7
      %v9505 = vor.u32 %v9503, %v9504
      %v9506 = vsel %vm5896, %v9501, %v9505
      %v9507 = vrot.slane %v7494, 6
      %v9508 = vrot.slane %v7497, 7
      %v9509 = vor.u32 %v9507, %v9508
      %v9510 = vsel %vm5896, %v9505, %v9509
      %v9511 = vrot.slane %v7503, 6
      %v9512 = vrot.slane %v7506, 7
      %v9513 = vor.u32 %v9511, %v9512
      %v9514 = vsel %vm5896, %v9509, %v9513
      %v9515 = vrot.slane %v8924, 6
      %v9516 = vrot.slane %v8620, 7
      %v9517 = vor.u32 %v9515, %v9516
      %v9518 = vsel %vm5896, %v9513, %v9517
      %v9544 = vunpack.c.l.b16 %v9464
      %v9545 = vunpack.c.h.b16 %v9464
      %v9546 = vunpack.c.l.b16 %v9465
      %v9547 = vunpack.c.h.b16 %v9465
      %v9548 = vunpack.c.l.b16 %v9466
      %v9549 = vunpack.c.h.b16 %v9466
      %v9550 = vunpack.c.l.b16 %v9467
      %v9551 = vunpack.c.h.b16 %v9467
      %v9552 = vunpack.c.l.b16 %v9468
      %v9553 = vunpack.c.h.b16 %v9468
      %v9554 = vunpack.c.l.b16 %v9469
      %v9555 = vunpack.c.h.b16 %v9469
      %v9556 = vunpack.c.l.b16 %v9470
      %v9557 = vunpack.c.h.b16 %v9470
      %v9558 = vunpack.c.l.b16 %v9471
      %v9559 = vunpack.c.h.b16 %v9471
      %v9560 = vunpack.c.l.b16 %v9472
      %v9561 = vunpack.c.h.b16 %v9472
      %v9562 = vunpack.c.l.b16 %v9473
      %v9563 = vunpack.c.h.b16 %v9473
      %v9564 = vunpack.c.l.b16 %v9474
      %v9565 = vunpack.c.h.b16 %v9474
      %v9566 = vunpack.c.l.b16 %v9475
      %v9567 = vunpack.c.h.b16 %v9475
      %v9568 = vunpack.c.l.b16 %v9476
      %v9569 = vunpack.c.h.b16 %v9476
      %v9570 = vunpack.c.l.b16 %v9477
      %v9571 = vunpack.c.h.b16 %v9477
      %v9572 = vunpack.c.l.b16 %v9478
      %v9573 = vunpack.c.h.b16 %v9478
      %v9574 = vunpack.c.l.b16 %v9479
      %v9575 = vunpack.c.h.b16 %v9479
      %v9576 = vpack.c.b16 %v9546, %v9544
      %v9577 = vpack.c.b16 %v9547, %v9545
      %v9578 = vpack.c.b16 %v9550, %v9548
      %v9579 = vpack.c.b16 %v9551, %v9549
      %v9580 = vpack.c.b16 %v9554, %v9552
      %v9581 = vpack.c.b16 %v9555, %v9553
      %v9582 = vpack.c.b16 %v9558, %v9556
      %v9583 = vpack.c.b16 %v9559, %v9557
      %v9584 = vpack.c.b16 %v9562, %v9560
      %v9585 = vpack.c.b16 %v9563, %v9561
      %v9586 = vpack.c.b16 %v9566, %v9564
      %v9587 = vpack.c.b16 %v9567, %v9565
      %v9588 = vpack.c.b16 %v9570, %v9568
      %v9589 = vpack.c.b16 %v9571, %v9569
      %v9590 = vpack.c.b16 %v9574, %v9572
      %v9591 = vpack.c.b16 %v9575, %v9573
      %9608 = vmatprep.subr.bf16.mxu0 %v9577
      %9609 = vmatpush1.bf16.msra.mxu0 %v9576
      %9610 = vmatprep.subr.bf16.mxu0 %v9579
      %9611 = vmatpush1.bf16.msra.mxu0 %v9578
      %9612 = vmatprep.subr.bf16.mxu0 %v9581
      %9613 = vmatpush1.bf16.msra.mxu0 %v9580
      %9614 = vmatprep.subr.bf16.mxu0 %v9583
      %9615 = vmatpush1.bf16.msra.mxu0 %v9582
      %9616 = vmatprep.subr.bf16.mxu0 %v9585
      %9617 = vmatpush1.bf16.msra.mxu0 %v9584
      %9618 = vmatprep.subr.bf16.mxu0 %v9587
      %9619 = vmatpush1.bf16.msra.mxu0 %v9586
      %9620 = vmatprep.subr.bf16.mxu0 %v9589
      %9621 = vmatpush1.bf16.msra.mxu0 %v9588
      %9622 = vmatprep.subr.bf16.mxu0 %v9591
      %9623 = vmatpush1.bf16.msra.mxu0 %v9590
      %9624 = vmatprep.subr.bf16.mxu0 0
      %9625 = vmatpush1.bf16.msra.mxu0 0
      %9626 = vmatprep.subr.bf16.mxu0 0
      %9627 = vmatpush1.bf16.msra.mxu0 0
      %9628 = vmatprep.subr.bf16.mxu0 0
      %9629 = vmatpush1.bf16.msra.mxu0 0
      %9630 = vmatprep.subr.bf16.mxu0 0
      %9631 = vmatpush1.bf16.msra.mxu0 0
      %9632 = vmatprep.subr.bf16.mxu0 0
      %9633 = vmatpush1.bf16.msra.mxu0 0
      %9634 = vmatprep.subr.bf16.mxu0 0
      %9635 = vmatpush1.bf16.msra.mxu0 0
      %9636 = vmatprep.subr.bf16.mxu0 0
      %9637 = vmatpush1.bf16.msra.mxu0 0
      %9638 = vmatprep.subr.bf16.mxu0 0
      %9639 = vmatpush1.bf16.msra.mxu0 0
      %9640 = vmatprep.mubr.bf16.mxu0 0
      %9641 = vmatmul.mubr.bf16.gmra.mrb[0].mxu0 %v9486
      %v9642 = vpop.f32.mrb[0].mxu0
      %v9643 = vadd.f32 0.0, %v9642
      %v9644 = vpop.f32.mrb[0].mxu0
      %v9645 = vadd.f32 0.0, %v9644
      %v9646 = vpop.f32.mrb[0].mxu0
      %v9647 = vadd.f32 0.0, %v9646
      %v9648 = vpop.f32.mrb[0].mxu0
      %v9649 = vadd.f32 0.0, %v9648
      %9650 = vmatprep.mubr.bf16.mxu0 0
      %9651 = vmatmul.mubr.bf16.gmra.mrb[0].mxu0 %v9490
      %v9652 = vpop.f32.mrb[0].mxu0
      %v9653 = vadd.f32 0.0, %v9652
      %v9654 = vpop.f32.mrb[0].mxu0
      %v9655 = vadd.f32 0.0, %v9654
      %v9656 = vpop.f32.mrb[0].mxu0
      %v9657 = vadd.f32 0.0, %v9656
      %v9658 = vpop.f32.mrb[0].mxu0
      %v9659 = vadd.f32 0.0, %v9658
      %9660 = vmatprep.mubr.bf16.mxu0 0
      %9661 = vmatmul.mubr.bf16.gmra.mrb[0].mxu0 %v9494
      %v9662 = vpop.f32.mrb[0].mxu0
      %v9663 = vadd.f32 0.0, %v9662
      %v9664 = vpop.f32.mrb[0].mxu0
      %v9665 = vadd.f32 0.0, %v9664
      %v9666 = vpop.f32.mrb[0].mxu0
      %v9667 = vadd.f32 0.0, %v9666
      %v9668 = vpop.f32.mrb[0].mxu0
      %v9669 = vadd.f32 0.0, %v9668
      %9670 = vmatprep.mubr.bf16.mxu0 0
      %9671 = vmatmul.mubr.bf16.gmra.mrb[0].mxu0 %v9498
      %v9672 = vpop.f32.mrb[0].mxu0
      %v9673 = vadd.f32 0.0, %v9672
      %v9674 = vpop.f32.mrb[0].mxu0
      %v9675 = vadd.f32 0.0, %v9674
      %v9676 = vpop.f32.mrb[0].mxu0
      %v9677 = vadd.f32 0.0, %v9676
      %v9678 = vpop.f32.mrb[0].mxu0
      %v9679 = vadd.f32 0.0, %v9678
      %9680 = vmatprep.mubr.bf16.mxu0 0
      %9681 = vmatmul.mubr.bf16.gmra.mrb[0].mxu0 %v9502
      %v9682 = vpop.f32.mrb[0].mxu0
      %v9683 = vadd.f32 0.0, %v9682
      %v9684 = vpop.f32.mrb[0].mxu0
      %v9685 = vadd.f32 0.0, %v9684
      %v9686 = vpop.f32.mrb[0].mxu0
      %v9687 = vadd.f32 0.0, %v9686
      %v9688 = vpop.f32.mrb[0].mxu0
      %v9689 = vadd.f32 0.0, %v9688
      %9690 = vmatprep.mubr.bf16.mxu0 0
      %9691 = vmatmul.mubr.bf16.gmra.mrb[0].mxu0 %v9506
      %v9692 = vpop.f32.mrb[0].mxu0
      %v9693 = vadd.f32 0.0, %v9692
      %v9694 = vpop.f32.mrb[0].mxu0
      %v9695 = vadd.f32 0.0, %v9694
      %v9696 = vpop.f32.mrb[0].mxu0
      %v9697 = vadd.f32 0.0, %v9696
      %v9698 = vpop.f32.mrb[0].mxu0
      %v9699 = vadd.f32 0.0, %v9698
      %9700 = vmatprep.mubr.bf16.mxu0 0
      %9701 = vmatmul.mubr.bf16.gmra.mrb[0].mxu0 %v9510
      %v9702 = vpop.f32.mrb[0].mxu0
      %v9703 = vadd.f32 0.0, %v9702
      %v9704 = vpop.f32.mrb[0].mxu0
      %v9705 = vadd.f32 0.0, %v9704
      %v9706 = vpop.f32.mrb[0].mxu0
      %v9707 = vadd.f32 0.0, %v9706
      %v9708 = vpop.f32.mrb[0].mxu0
      %v9709 = vadd.f32 0.0, %v9708
      %9710 = vmatprep.mubr.bf16.mxu0 0
      %9711 = vmatmul.mubr.bf16.gmra.mrb[0].mxu0 %v9514
      %v9712 = vpop.f32.mrb[0].mxu0
      %v9713 = vadd.f32 0.0, %v9712
      %v9714 = vpop.f32.mrb[0].mxu0
      %v9715 = vadd.f32 0.0, %v9714
      %v9716 = vpop.f32.mrb[0].mxu0
      %v9717 = vadd.f32 0.0, %v9716
      %v9718 = vpop.f32.mrb[0].mxu0
      %v9719 = vadd.f32 0.0, %v9718
      %9720 = vmatprep.mubr.bf16.mxu0 0
      %9721 = vmatmul.mubr.bf16.gmra.mrb[0].mxu0 %v9518
      %v9722 = vpop.f32.mrb[0].mxu0
      %v9723 = vadd.f32 0.0, %v9722
      %v9724 = vpop.f32.mrb[0].mxu0
      %v9725 = vadd.f32 0.0, %v9724
      %v9726 = vpop.f32.mrb[0].mxu0
      %v9727 = vadd.f32 0.0, %v9726
      %v9728 = vpop.f32.mrb[0].mxu0
      %v9729 = vadd.f32 0.0, %v9728
      %9730 = vdwg.mxu0
      %v9731 = vadd.f32 %v9427, %v9643
      %v9732 = vadd.f32 %v9428, %v9645
      %v9733 = vadd.f32 %v9429, %v9647
      %v9734 = vadd.f32 %v9430, %v9649
      %v9735 = vadd.f32 %v9431, %v9653
      %v9736 = vadd.f32 %v9432, %v9655
      %v9737 = vadd.f32 %v9433, %v9657
      %v9738 = vadd.f32 %v9434, %v9659
      %v9739 = vadd.f32 %v9435, %v9663
      %v9740 = vadd.f32 %v9436, %v9665
      %v9741 = vadd.f32 %v9437, %v9667
      %v9742 = vadd.f32 %v9438, %v9669
      %v9743 = vadd.f32 %v9439, %v9673
      %v9744 = vadd.f32 %v9440, %v9675
      %v9745 = vadd.f32 %v9441, %v9677
      %v9746 = vadd.f32 %v9442, %v9679
      %v9747 = vadd.f32 %v9443, %v9683
      %v9748 = vadd.f32 %v9444, %v9685
      %v9749 = vadd.f32 %v9445, %v9687
      %v9750 = vadd.f32 %v9446, %v9689
      %v9751 = vadd.f32 %v9447, %v9693
      %v9752 = vadd.f32 %v9448, %v9695
      %v9753 = vadd.f32 %v9449, %v9697
      %v9754 = vadd.f32 %v9450, %v9699
      %v9755 = vadd.f32 %v9451, %v9703
      %v9756 = vadd.f32 %v9452, %v9705
      %v9757 = vadd.f32 %v9453, %v9707
      %v9758 = vadd.f32 %v9454, %v9709
      %v9759 = vadd.f32 %v9455, %v9713
      %v9760 = vadd.f32 %v9456, %v9715
      %v9761 = vadd.f32 %v9457, %v9717
      %v9762 = vadd.f32 %v9458, %v9719
      %v9763 = vadd.f32 %v9459, %v9723
      %v9764 = vadd.f32 %v9460, %v9725
      %v9765 = vadd.f32 %v9461, %v9727
      %v9766 = vadd.f32 %v9462, %v9729
      %v9767 = vld [vmem:[%s5] sm:$0x3]
      %v9769 = vlaneseq
      %v9770 = vshrl.u32 %v9769, 7
      %v9771 = vsub.s32 0, %v9770
      %v9772 = vrot.slane %v9767, %v9771
      %v9773 = vlaneseq
      %v9774 = vshrl.u32 %v9773, 7
      %v9775 = vsub.s32 1, %v9774
      %v9776 = vrot.slane %v9767, %v9775
      %v9779 = vadd.f32 %v9731, %v9772
      %v9780 = vadd.f32 %v9732, %v9776
      %v9781 = vadd.f32 %v9733, %v9772
      %v9782 = vadd.f32 %v9734, %v9776
      %v9783 = vadd.f32 %v9735, %v9772
      %v9784 = vadd.f32 %v9736, %v9776
      %v9785 = vadd.f32 %v9737, %v9772
      %v9786 = vadd.f32 %v9738, %v9776
      %v9787 = vadd.f32 %v9739, %v9772
      %v9788 = vadd.f32 %v9740, %v9776
      %v9789 = vadd.f32 %v9741, %v9772
      %v9790 = vadd.f32 %v9742, %v9776
      %v9791 = vadd.f32 %v9743, %v9772
      %v9792 = vadd.f32 %v9744, %v9776
      %v9793 = vadd.f32 %v9745, %v9772
      %v9794 = vadd.f32 %v9746, %v9776
      %v9795 = vadd.f32 %v9747, %v9772
      %v9796 = vadd.f32 %v9748, %v9776
      %v9797 = vadd.f32 %v9749, %v9772
      %v9798 = vadd.f32 %v9750, %v9776
      %v9799 = vadd.f32 %v9751, %v9772
      %v9800 = vadd.f32 %v9752, %v9776
      %v9801 = vadd.f32 %v9753, %v9772
      %v9802 = vadd.f32 %v9754, %v9776
      %v9803 = vadd.f32 %v9755, %v9772
      %v9804 = vadd.f32 %v9756, %v9776
      %v9805 = vadd.f32 %v9757, %v9772
      %v9806 = vadd.f32 %v9758, %v9776
      %v9807 = vadd.f32 %v9759, %v9772
      %v9808 = vadd.f32 %v9760, %v9776
      %v9809 = vadd.f32 %v9761, %v9772
      %v9810 = vadd.f32 %v9762, %v9776
      %v9811 = vadd.f32 %v9763, %v9772
      %v9812 = vadd.f32 %v9764, %v9776
      %v9813 = vadd.f32 %v9765, %v9772
      %v9814 = vadd.f32 %v9766, %v9776
      %v9815 = vxor.u32 %v9779, 2147483648
      %v9816 = vxor.u32 %v9780, 2147483648
      %v9817 = vxor.u32 %v9781, 2147483648
      %v9818 = vxor.u32 %v9782, 2147483648
      %v9819 = vxor.u32 %v9783, 2147483648
      %v9820 = vxor.u32 %v9784, 2147483648
      %v9821 = vxor.u32 %v9785, 2147483648
      %v9822 = vxor.u32 %v9786, 2147483648
      %v9823 = vxor.u32 %v9787, 2147483648
      %v9824 = vxor.u32 %v9788, 2147483648
      %v9825 = vxor.u32 %v9789, 2147483648
      %v9826 = vxor.u32 %v9790, 2147483648
      %v9827 = vxor.u32 %v9791, 2147483648
      %v9828 = vxor.u32 %v9792, 2147483648
      %v9829 = vxor.u32 %v9793, 2147483648
      %v9830 = vxor.u32 %v9794, 2147483648
      %v9831 = vxor.u32 %v9795, 2147483648
      %v9832 = vxor.u32 %v9796, 2147483648
      %v9833 = vxor.u32 %v9797, 2147483648
      %v9834 = vxor.u32 %v9798, 2147483648
      %v9835 = vxor.u32 %v9799, 2147483648
      %v9836 = vxor.u32 %v9800, 2147483648
      %v9837 = vxor.u32 %v9801, 2147483648
      %v9838 = vxor.u32 %v9802, 2147483648
      %v9839 = vxor.u32 %v9803, 2147483648
      %v9840 = vxor.u32 %v9804, 2147483648
      %v9841 = vxor.u32 %v9805, 2147483648
      %v9842 = vxor.u32 %v9806, 2147483648
      %v9843 = vxor.u32 %v9807, 2147483648
      %v9844 = vxor.u32 %v9808, 2147483648
      %v9845 = vxor.u32 %v9809, 2147483648
      %v9846 = vxor.u32 %v9810, 2147483648
      %v9847 = vxor.u32 %v9811, 2147483648
      %v9848 = vxor.u32 %v9812, 2147483648
      %v9849 = vxor.u32 %v9813, 2147483648
      %v9850 = vxor.u32 %v9814, 2147483648
      %v9851 = vmul.f32 %v9815, 1.442695
      %v9852 = vpow.pop %v9851
      %v9853 = vmul.f32 %v9816, 1.442695
      %v9854 = vpow.pop %v9853
      %v9855 = vmul.f32 %v9817, 1.442695
      %v9856 = vpow.pop %v9855
      %v9857 = vmul.f32 %v9818, 1.442695
      %v9858 = vpow.pop %v9857
      %v9859 = vmul.f32 %v9819, 1.442695
      %v9860 = vpow.pop %v9859
      %v9861 = vmul.f32 %v9820, 1.442695
      %v9862 = vpow.pop %v9861
      %v9863 = vmul.f32 %v9821, 1.442695
      %v9864 = vpow.pop %v9863
      %v9865 = vmul.f32 %v9822, 1.442695
      %v9866 = vpow.pop %v9865
      %v9867 = vmul.f32 %v9823, 1.442695
      %v9868 = vpow.pop %v9867
      %v9869 = vmul.f32 %v9824, 1.442695
      %v9870 = vpow.pop %v9869
      %v9871 = vmul.f32 %v9825, 1.442695
      %v9872 = vpow.pop %v9871
      %v9873 = vmul.f32 %v9826, 1.442695
      %v9874 = vpow.pop %v9873
      %v9875 = vmul.f32 %v9827, 1.442695
      %v9876 = vpow.pop %v9875
      %v9877 = vmul.f32 %v9828, 1.442695
      %v9878 = vpow.pop %v9877
      %v9879 = vmul.f32 %v9829, 1.442695
      %v9880 = vpow.pop %v9879
      %v9881 = vmul.f32 %v9830, 1.442695
      %v9882 = vpow.pop %v9881
      %v9883 = vmul.f32 %v9831, 1.442695
      %v9884 = vpow.pop %v9883
      %v9885 = vmul.f32 %v9832, 1.442695
      %v9886 = vpow.pop %v9885
      %v9887 = vmul.f32 %v9833, 1.442695
      %v9888 = vpow.pop %v9887
      %v9889 = vmul.f32 %v9834, 1.442695
      %v9890 = vpow.pop %v9889
      %v9891 = vmul.f32 %v9835, 1.442695
      %v9892 = vpow.pop %v9891
      %v9893 = vmul.f32 %v9836, 1.442695
      %v9894 = vpow.pop %v9893
      %v9895 = vmul.f32 %v9837, 1.442695
      %v9896 = vpow.pop %v9895
      %v9897 = vmul.f32 %v9838, 1.442695
      %v9898 = vpow.pop %v9897
      %v9899 = vmul.f32 %v9839, 1.442695
      %v9900 = vpow.pop %v9899
      %v9901 = vmul.f32 %v9840, 1.442695
      %v9902 = vpow.pop %v9901
      %v9903 = vmul.f32 %v9841, 1.442695
      %v9904 = vpow.pop %v9903
      %v9905 = vmul.f32 %v9842, 1.442695
      %v9906 = vpow.pop %v9905
      %v9907 = vmul.f32 %v9843, 1.442695
      %v9908 = vpow.pop %v9907
      %v9909 = vmul.f32 %v9844, 1.442695
      %v9910 = vpow.pop %v9909
      %v9911 = vmul.f32 %v9845, 1.442695
      %v9912 = vpow.pop %v9911
      %v9913 = vmul.f32 %v9846, 1.442695
      %v9914 = vpow.pop %v9913
      %v9915 = vmul.f32 %v9847, 1.442695
      %v9916 = vpow.pop %v9915
      %v9917 = vmul.f32 %v9848, 1.442695
      %v9918 = vpow.pop %v9917
      %v9919 = vmul.f32 %v9849, 1.442695
      %v9920 = vpow.pop %v9919
      %v9921 = vmul.f32 %v9850, 1.442695
      %v9922 = vpow.pop %v9921
      %v9923 = vadd.f32 %v9852, 1.0
      %v9924 = vadd.f32 %v9854, 1.0
      %v9925 = vadd.f32 %v9856, 1.0
      %v9926 = vadd.f32 %v9858, 1.0
      %v9927 = vadd.f32 %v9860, 1.0
      %v9928 = vadd.f32 %v9862, 1.0
      %v9929 = vadd.f32 %v9864, 1.0
      %v9930 = vadd.f32 %v9866, 1.0
      %v9931 = vadd.f32 %v9868, 1.0
      %v9932 = vadd.f32 %v9870, 1.0
      %v9933 = vadd.f32 %v9872, 1.0
      %v9934 = vadd.f32 %v9874, 1.0
      %v9935 = vadd.f32 %v9876, 1.0
      %v9936 = vadd.f32 %v9878, 1.0
      %v9937 = vadd.f32 %v9880, 1.0
      %v9938 = vadd.f32 %v9882, 1.0
      %v9939 = vadd.f32 %v9884, 1.0
      %v9940 = vadd.f32 %v9886, 1.0
      %v9941 = vadd.f32 %v9888, 1.0
      %v9942 = vadd.f32 %v9890, 1.0
      %v9943 = vadd.f32 %v9892, 1.0
      %v9944 = vadd.f32 %v9894, 1.0
      %v9945 = vadd.f32 %v9896, 1.0
      %v9946 = vadd.f32 %v9898, 1.0
      %v9947 = vadd.f32 %v9900, 1.0
      %v9948 = vadd.f32 %v9902, 1.0
      %v9949 = vadd.f32 %v9904, 1.0
      %v9950 = vadd.f32 %v9906, 1.0
      %v9951 = vadd.f32 %v9908, 1.0
      %v9952 = vadd.f32 %v9910, 1.0
      %v9953 = vadd.f32 %v9912, 1.0
      %v9954 = vadd.f32 %v9914, 1.0
      %v9955 = vadd.f32 %v9916, 1.0
      %v9956 = vadd.f32 %v9918, 1.0
      %v9957 = vadd.f32 %v9920, 1.0
      %v9958 = vadd.f32 %v9922, 1.0
      %v9959 = vrcp.pop %v9923
      %v9960 = vmul.f32 1.0, %v9959
      %v9961 = vrcp.pop %v9924
      %v9962 = vmul.f32 1.0, %v9961
      %v9963 = vrcp.pop %v9925
      %v9964 = vmul.f32 1.0, %v9963
      %v9965 = vrcp.pop %v9926
      %v9966 = vmul.f32 1.0, %v9965
      %v9967 = vrcp.pop %v9927
      %v9968 = vmul.f32 1.0, %v9967
      %v9969 = vrcp.pop %v9928
      %v9970 = vmul.f32 1.0, %v9969
      %v9971 = vrcp.pop %v9929
      %v9972 = vmul.f32 1.0, %v9971
      %v9973 = vrcp.pop %v9930
      %v9974 = vmul.f32 1.0, %v9973
      %v9975 = vrcp.pop %v9931
      %v9976 = vmul.f32 1.0, %v9975
      %v9977 = vrcp.pop %v9932
      %v9978 = vmul.f32 1.0, %v9977
      %v9979 = vrcp.pop %v9933
      %v9980 = vmul.f32 1.0, %v9979
      %v9981 = vrcp.pop %v9934
      %v9982 = vmul.f32 1.0, %v9981
      %v9983 = vrcp.pop %v9935
      %v9984 = vmul.f32 1.0, %v9983
      %v9985 = vrcp.pop %v9936
      %v9986 = vmul.f32 1.0, %v9985
      %v9987 = vrcp.pop %v9937
      %v9988 = vmul.f32 1.0, %v9987
      %v9989 = vrcp.pop %v9938
      %v9990 = vmul.f32 1.0, %v9989
      %v9991 = vrcp.pop %v9939
      %v9992 = vmul.f32 1.0, %v9991
      %v9993 = vrcp.pop %v9940
      %v9994 = vmul.f32 1.0, %v9993
      %v9995 = vrcp.pop %v9941
      %v9996 = vmul.f32 1.0, %v9995
      %v9997 = vrcp.pop %v9942
      %v9998 = vmul.f32 1.0, %v9997
      %v9999 = vrcp.pop %v9943
      %v10000 = vmul.f32 1.0, %v9999
      %v10001 = vrcp.pop %v9944
      %v10002 = vmul.f32 1.0, %v10001
      %v10003 = vrcp.pop %v9945
      %v10004 = vmul.f32 1.0, %v10003
      %v10005 = vrcp.pop %v9946
      %v10006 = vmul.f32 1.0, %v10005
      %v10007 = vrcp.pop %v9947
      %v10008 = vmul.f32 1.0, %v10007
      %v10009 = vrcp.pop %v9948
      %v10010 = vmul.f32 1.0, %v10009
      %v10011 = vrcp.pop %v9949
      %v10012 = vmul.f32 1.0, %v10011
      %v10013 = vrcp.pop %v9950
      %v10014 = vmul.f32 1.0, %v10013
      %v10015 = vrcp.pop %v9951
      %v10016 = vmul.f32 1.0, %v10015
      %v10017 = vrcp.pop %v9952
      %v10018 = vmul.f32 1.0, %v10017
      %v10019 = vrcp.pop %v9953
      %v10020 = vmul.f32 1.0, %v10019
      %v10021 = vrcp.pop %v9954
      %v10022 = vmul.f32 1.0, %v10021
      %v10023 = vrcp.pop %v9955
      %v10024 = vmul.f32 1.0, %v10023
      %v10025 = vrcp.pop %v9956
      %v10026 = vmul.f32 1.0, %v10025
      %v10027 = vrcp.pop %v9957
      %v10028 = vmul.f32 1.0, %v10027
      %v10029 = vrcp.pop %v9958
      %v10030 = vmul.f32 1.0, %v10029
      %v10031 = vtanh.pop %v9780
      %v10032 = vtanh.pop %v9782
      %v10033 = vtanh.pop %v9784
      %v10034 = vtanh.pop %v9786
      %v10035 = vtanh.pop %v9788
      %v10036 = vtanh.pop %v9790
      %v10037 = vtanh.pop %v9792
      %v10038 = vtanh.pop %v9794
      %v10039 = vtanh.pop %v9796
      %v10040 = vtanh.pop %v9798
      %v10041 = vtanh.pop %v9800
      %v10042 = vtanh.pop %v9802
      %v10043 = vtanh.pop %v9804
      %v10044 = vtanh.pop %v9806
      %v10045 = vtanh.pop %v9808
      %v10046 = vtanh.pop %v9810
      %v10047 = vtanh.pop %v9812
      %v10048 = vtanh.pop %v9814
      %v10049 = vld [vmem:[#allocation5] sm:$0xff]
      %v10050 = vld [vmem:[#allocation5 + $0x8] sm:$0xff]
      %v10051 = vld [vmem:[#allocation5 + $0x10] sm:$0xff]
      %v10052 = vld [vmem:[#allocation5 + $0x18] sm:$0xff]
      %v10053 = vld [vmem:[#allocation5 + $0x20] sm:$0xff]
      %v10054 = vld [vmem:[#allocation5 + $0x28] sm:$0xff]
      %v10055 = vld [vmem:[#allocation5 + $0x30] sm:$0xff]
      %v10056 = vld [vmem:[#allocation5 + $0x38] sm:$0xff]
      %v10057 = vld [vmem:[#allocation5 + $0x40] sm:$0xff]
      %v10058 = vld [vmem:[#allocation5 + $0x48] sm:$0xff]
      %v10059 = vld [vmem:[#allocation5 + $0x50] sm:$0xff]
      %v10060 = vld [vmem:[#allocation5 + $0x58] sm:$0xff]
      %v10061 = vld [vmem:[#allocation5 + $0x60] sm:$0xff]
      %v10062 = vld [vmem:[#allocation5 + $0x68] sm:$0xff]
      %v10063 = vld [vmem:[#allocation5 + $0x70] sm:$0xff]
      %v10064 = vld [vmem:[#allocation5 + $0x78] sm:$0xff]
      %v10065 = vld [vmem:[#allocation5 + $0x80] sm:$0xff]
      %v10066 = vld [vmem:[#allocation5 + $0x88] sm:$0xff]
      %10085 = vrot.lane.b32.xlu0 %v10049, 64
      %v10086 = vpop.permute.xlu0 %10085
      %10087 = vrot.lane.b32.xlu0 %v10050, 64
      %v10088 = vpop.permute.xlu0 %10087
      %10089 = vrot.lane.b32.xlu0 %v10051, 64
      %v10090 = vpop.permute.xlu0 %10089
      %10091 = vrot.lane.b32.xlu0 %v10052, 64
      %v10092 = vpop.permute.xlu0 %10091
      %10093 = vrot.lane.b32.xlu0 %v10053, 64
      %v10094 = vpop.permute.xlu0 %10093
      %10095 = vrot.lane.b32.xlu0 %v10054, 64
      %v10096 = vpop.permute.xlu0 %10095
      %10097 = vrot.lane.b32.xlu0 %v10055, 64
      %v10098 = vpop.permute.xlu0 %10097
      %10099 = vrot.lane.b32.xlu0 %v10056, 64
      %v10100 = vpop.permute.xlu0 %10099
      %10101 = vrot.lane.b32.xlu0 %v10057, 64
      %v10102 = vpop.permute.xlu0 %10101
      %10103 = vrot.lane.b32.xlu0 %v10058, 64
      %v10104 = vpop.permute.xlu0 %10103
      %10105 = vrot.lane.b32.xlu0 %v10059, 64
      %v10106 = vpop.permute.xlu0 %10105
      %10107 = vrot.lane.b32.xlu0 %v10060, 64
      %v10108 = vpop.permute.xlu0 %10107
      %10109 = vrot.lane.b32.xlu0 %v10061, 64
      %v10110 = vpop.permute.xlu0 %10109
      %10111 = vrot.lane.b32.xlu0 %v10062, 64
      %v10112 = vpop.permute.xlu0 %10111
      %10113 = vrot.lane.b32.xlu0 %v10063, 64
      %v10114 = vpop.permute.xlu0 %10113
      %10115 = vrot.lane.b32.xlu0 %v10064, 64
      %v10116 = vpop.permute.xlu0 %10115
      %10117 = vrot.lane.b32.xlu0 %v10065, 64
      %v10118 = vpop.permute.xlu0 %10117
      %10119 = vrot.lane.b32.xlu0 %v10066, 64
      %v10120 = vpop.permute.xlu0 %10119
      %v10139 = vmul.f32 %v9960, %v10086
      %v10140 = vmul.f32 %v9964, %v10088
      %v10141 = vmul.f32 %v9968, %v10090
      %v10142 = vmul.f32 %v9972, %v10092
      %v10143 = vmul.f32 %v9976, %v10094
      %v10144 = vmul.f32 %v9980, %v10096
      %v10145 = vmul.f32 %v9984, %v10098
      %v10146 = vmul.f32 %v9988, %v10100
      %v10147 = vmul.f32 %v9992, %v10102
      %v10148 = vmul.f32 %v9996, %v10104
      %v10149 = vmul.f32 %v10000, %v10106
      %v10150 = vmul.f32 %v10004, %v10108
      %v10151 = vmul.f32 %v10008, %v10110
      %v10152 = vmul.f32 %v10012, %v10112
      %v10153 = vmul.f32 %v10016, %v10114
      %v10154 = vmul.f32 %v10020, %v10116
      %v10155 = vmul.f32 %v10024, %v10118
      %v10156 = vmul.f32 %v10028, %v10120
      %10175 = vrot.lane.b32.xlu0 %v10031, 64
      %v10176 = vpop.permute.xlu0 %10175
      %10177 = vrot.lane.b32.xlu0 %v10032, 64
      %v10178 = vpop.permute.xlu0 %10177
      %10179 = vrot.lane.b32.xlu0 %v10033, 64
      %v10180 = vpop.permute.xlu0 %10179
      %10181 = vrot.lane.b32.xlu0 %v10034, 64
      %v10182 = vpop.permute.xlu0 %10181
      %10183 = vrot.lane.b32.xlu0 %v10035, 64
      %v10184 = vpop.permute.xlu0 %10183
      %10185 = vrot.lane.b32.xlu0 %v10036, 64
      %v10186 = vpop.permute.xlu0 %10185
      %10187 = vrot.lane.b32.xlu0 %v10037, 64
      %v10188 = vpop.permute.xlu0 %10187
      %10189 = vrot.lane.b32.xlu0 %v10038, 64
      %v10190 = vpop.permute.xlu0 %10189
      %10191 = vrot.lane.b32.xlu0 %v10039, 64
      %v10192 = vpop.permute.xlu0 %10191
      %10193 = vrot.lane.b32.xlu0 %v10040, 64
      %v10194 = vpop.permute.xlu0 %10193
      %10195 = vrot.lane.b32.xlu0 %v10041, 64
      %v10196 = vpop.permute.xlu0 %10195
      %10197 = vrot.lane.b32.xlu0 %v10042, 64
      %v10198 = vpop.permute.xlu0 %10197
      %10199 = vrot.lane.b32.xlu0 %v10043, 64
      %v10200 = vpop.permute.xlu0 %10199
      %10201 = vrot.lane.b32.xlu0 %v10044, 64
      %v10202 = vpop.permute.xlu0 %10201
      %10203 = vrot.lane.b32.xlu0 %v10045, 64
      %v10204 = vpop.permute.xlu0 %10203
      %10205 = vrot.lane.b32.xlu0 %v10046, 64
      %v10206 = vpop.permute.xlu0 %10205
      %10207 = vrot.lane.b32.xlu0 %v10047, 64
      %v10208 = vpop.permute.xlu0 %10207
      %10209 = vrot.lane.b32.xlu0 %v10048, 64
      %v10210 = vpop.permute.xlu0 %10209
      %v10229 = vmul.f32 %v9960, %v10176
      %v10230 = vmul.f32 %v9964, %v10178
      %v10231 = vmul.f32 %v9968, %v10180
      %v10232 = vmul.f32 %v9972, %v10182
      %v10233 = vmul.f32 %v9976, %v10184
      %v10234 = vmul.f32 %v9980, %v10186
      %v10235 = vmul.f32 %v9984, %v10188
      %v10236 = vmul.f32 %v9988, %v10190
      %v10237 = vmul.f32 %v9992, %v10192
      %v10238 = vmul.f32 %v9996, %v10194
      %v10239 = vmul.f32 %v10000, %v10196
      %v10240 = vmul.f32 %v10004, %v10198
      %v10241 = vmul.f32 %v10008, %v10200
      %v10242 = vmul.f32 %v10012, %v10202
      %v10243 = vmul.f32 %v10016, %v10204
      %v10244 = vmul.f32 %v10020, %v10206
      %v10245 = vmul.f32 %v10024, %v10208
      %v10246 = vmul.f32 %v10028, %v10210
      %10265 = vrot.lane.b32.xlu0 %v10229, 64
      %v10266 = vpop.permute.xlu0 %10265
      %10267 = vrot.lane.b32.xlu0 %v10230, 64
      %v10268 = vpop.permute.xlu0 %10267
      %10269 = vrot.lane.b32.xlu0 %v10231, 64
      %v10270 = vpop.permute.xlu0 %10269
      %10271 = vrot.lane.b32.xlu0 %v10232, 64
      %v10272 = vpop.permute.xlu0 %10271
      %10273 = vrot.lane.b32.xlu0 %v10233, 64
      %v10274 = vpop.permute.xlu0 %10273
      %10275 = vrot.lane.b32.xlu0 %v10234, 64
      %v10276 = vpop.permute.xlu0 %10275
      %10277 = vrot.lane.b32.xlu0 %v10235, 64
      %v10278 = vpop.permute.xlu0 %10277
      %10279 = vrot.lane.b32.xlu0 %v10236, 64
      %v10280 = vpop.permute.xlu0 %10279
      %10281 = vrot.lane.b32.xlu0 %v10237, 64
      %v10282 = vpop.permute.xlu0 %10281
      %10283 = vrot.lane.b32.xlu0 %v10238, 64
      %v10284 = vpop.permute.xlu0 %10283
      %10285 = vrot.lane.b32.xlu0 %v10239, 64
      %v10286 = vpop.permute.xlu0 %10285
      %10287 = vrot.lane.b32.xlu0 %v10240, 64
      %v10288 = vpop.permute.xlu0 %10287
      %10289 = vrot.lane.b32.xlu0 %v10241, 64
      %v10290 = vpop.permute.xlu0 %10289
      %10291 = vrot.lane.b32.xlu0 %v10242, 64
      %v10292 = vpop.permute.xlu0 %10291
      %10293 = vrot.lane.b32.xlu0 %v10243, 64
      %v10294 = vpop.permute.xlu0 %10293
      %10295 = vrot.lane.b32.xlu0 %v10244, 64
      %v10296 = vpop.permute.xlu0 %10295
      %10297 = vrot.lane.b32.xlu0 %v10245, 64
      %v10298 = vpop.permute.xlu0 %10297
      %10299 = vrot.lane.b32.xlu0 %v10246, 64
      %v10300 = vpop.permute.xlu0 %10299
      %v10319 = vadd.f32 %v10139, %v10266
      %v10320 = vadd.f32 %v10140, %v10268
      %v10321 = vadd.f32 %v10141, %v10270
      %v10322 = vadd.f32 %v10142, %v10272
      %v10323 = vadd.f32 %v10143, %v10274
      %v10324 = vadd.f32 %v10144, %v10276
      %v10325 = vadd.f32 %v10145, %v10278
      %v10326 = vadd.f32 %v10146, %v10280
      %v10327 = vadd.f32 %v10147, %v10282
      %v10328 = vadd.f32 %v10148, %v10284
      %v10329 = vadd.f32 %v10149, %v10286
      %v10330 = vadd.f32 %v10150, %v10288
      %v10331 = vadd.f32 %v10151, %v10290
      %v10332 = vadd.f32 %v10152, %v10292
      %v10333 = vadd.f32 %v10153, %v10294
      %v10334 = vadd.f32 %v10154, %v10296
      %v10335 = vadd.f32 %v10155, %v10298
      %v10336 = vadd.f32 %v10156, %v10300
      %v10337 = vtanh.pop %v10319
      %v10338 = vtanh.pop %v10320
      %v10339 = vtanh.pop %v10321
      %v10340 = vtanh.pop %v10322
      %v10341 = vtanh.pop %v10323
      %v10342 = vtanh.pop %v10324
      %v10343 = vtanh.pop %v10325
      %v10344 = vtanh.pop %v10326
      %v10345 = vtanh.pop %v10327
      %v10346 = vtanh.pop %v10328
      %v10347 = vtanh.pop %v10329
      %v10348 = vtanh.pop %v10330
      %v10349 = vtanh.pop %v10331
      %v10350 = vtanh.pop %v10332
      %v10351 = vtanh.pop %v10333
      %v10352 = vtanh.pop %v10334
      %v10353 = vtanh.pop %v10335
      %v10354 = vtanh.pop %v10336
      %10373 = vrot.lane.b32.xlu0 %v10337, 64
      %v10374 = vpop.permute.xlu0 %10373
      %10375 = vrot.lane.b32.xlu0 %v10338, 64
      %v10376 = vpop.permute.xlu0 %10375
      %10377 = vrot.lane.b32.xlu0 %v10339, 64
      %v10378 = vpop.permute.xlu0 %10377
      %10379 = vrot.lane.b32.xlu0 %v10340, 64
      %v10380 = vpop.permute.xlu0 %10379
      %10381 = vrot.lane.b32.xlu0 %v10341, 64
      %v10382 = vpop.permute.xlu0 %10381
      %10383 = vrot.lane.b32.xlu0 %v10342, 64
      %v10384 = vpop.permute.xlu0 %10383
      %10385 = vrot.lane.b32.xlu0 %v10343, 64
      %v10386 = vpop.permute.xlu0 %10385
      %10387 = vrot.lane.b32.xlu0 %v10344, 64
      %v10388 = vpop.permute.xlu0 %10387
      %10389 = vrot.lane.b32.xlu0 %v10345, 64
      %v10390 = vpop.permute.xlu0 %10389
      %10391 = vrot.lane.b32.xlu0 %v10346, 64
      %v10392 = vpop.permute.xlu0 %10391
      %10393 = vrot.lane.b32.xlu0 %v10347, 64
      %v10394 = vpop.permute.xlu0 %10393
      %10395 = vrot.lane.b32.xlu0 %v10348, 64
      %v10396 = vpop.permute.xlu0 %10395
      %10397 = vrot.lane.b32.xlu0 %v10349, 64
      %v10398 = vpop.permute.xlu0 %10397
      %10399 = vrot.lane.b32.xlu0 %v10350, 64
      %v10400 = vpop.permute.xlu0 %10399
      %10401 = vrot.lane.b32.xlu0 %v10351, 64
      %v10402 = vpop.permute.xlu0 %10401
      %10403 = vrot.lane.b32.xlu0 %v10352, 64
      %v10404 = vpop.permute.xlu0 %10403
      %10405 = vrot.lane.b32.xlu0 %v10353, 64
      %v10406 = vpop.permute.xlu0 %10405
      %10407 = vrot.lane.b32.xlu0 %v10354, 64
      %v10408 = vpop.permute.xlu0 %10407
      %v10427 = vmul.f32 %v9962, %v10374
      %v10428 = vmul.f32 %v9966, %v10376
      %v10429 = vmul.f32 %v9970, %v10378
      %v10430 = vmul.f32 %v9974, %v10380
      %v10431 = vmul.f32 %v9978, %v10382
      %v10432 = vmul.f32 %v9982, %v10384
      %v10433 = vmul.f32 %v9986, %v10386
      %v10434 = vmul.f32 %v9990, %v10388
      %v10435 = vmul.f32 %v9994, %v10390
      %v10436 = vmul.f32 %v9998, %v10392
      %v10437 = vmul.f32 %v10002, %v10394
      %v10438 = vmul.f32 %v10006, %v10396
      %v10439 = vmul.f32 %v10010, %v10398
      %v10440 = vmul.f32 %v10014, %v10400
      %v10441 = vmul.f32 %v10018, %v10402
      %v10442 = vmul.f32 %v10022, %v10404
      %v10443 = vmul.f32 %v10026, %v10406
      %v10444 = vmul.f32 %v10030, %v10408
      %v10445 = vsel %vm6934, %v10319, 0.0
      %v10446 = vsel %vm6935, %v10320, 0.0
      %v10447 = vsel %vm6936, %v10321, 0.0
      %v10448 = vsel %vm6937, %v10322, 0.0
      %v10449 = vsel %vm6938, %v10323, 0.0
      %v10450 = vsel %vm6939, %v10324, 0.0
      %v10451 = vsel %vm6940, %v10325, 0.0
      %v10452 = vsel %vm6941, %v10326, 0.0
      %v10453 = vsel %vm6942, %v10327, 0.0
      %v10454 = vsel %vm6943, %v10328, 0.0
      %v10455 = vsel %vm6944, %v10329, 0.0
      %v10456 = vsel %vm6945, %v10330, 0.0
      %v10457 = vsel %vm6946, %v10331, 0.0
      %v10458 = vsel %vm6947, %v10332, 0.0
      %v10459 = vsel %vm6948, %v10333, 0.0
      %v10460 = vsel %vm6949, %v10334, 0.0
      %v10461 = vsel %vm6950, %v10335, 0.0
      %v10462 = vsel %vm6951, %v10336, 0.0
      %10481 = vrot.lane.b32.xlu0 %v10445, 64
      %v10482 = vpop.permute.xlu0 %10481
      %10483 = vrot.lane.b32.xlu0 %v10446, 64
      %v10484 = vpop.permute.xlu0 %10483
      %10485 = vrot.lane.b32.xlu0 %v10447, 64
      %v10486 = vpop.permute.xlu0 %10485
      %10487 = vrot.lane.b32.xlu0 %v10448, 64
      %v10488 = vpop.permute.xlu0 %10487
      %10489 = vrot.lane.b32.xlu0 %v10449, 64
      %v10490 = vpop.permute.xlu0 %10489
      %10491 = vrot.lane.b32.xlu0 %v10450, 64
      %v10492 = vpop.permute.xlu0 %10491
      %10493 = vrot.lane.b32.xlu0 %v10451, 64
      %v10494 = vpop.permute.xlu0 %10493
      %10495 = vrot.lane.b32.xlu0 %v10452, 64
      %v10496 = vpop.permute.xlu0 %10495
      %10497 = vrot.lane.b32.xlu0 %v10453, 64
      %v10498 = vpop.permute.xlu0 %10497
      %10499 = vrot.lane.b32.xlu0 %v10454, 64
      %v10500 = vpop.permute.xlu0 %10499
      %10501 = vrot.lane.b32.xlu0 %v10455, 64
      %v10502 = vpop.permute.xlu0 %10501
      %10503 = vrot.lane.b32.xlu0 %v10456, 64
      %v10504 = vpop.permute.xlu0 %10503
      %10505 = vrot.lane.b32.xlu0 %v10457, 64
      %v10506 = vpop.permute.xlu0 %10505
      %10507 = vrot.lane.b32.xlu0 %v10458, 64
      %v10508 = vpop.permute.xlu0 %10507
      %10509 = vrot.lane.b32.xlu0 %v10459, 64
      %v10510 = vpop.permute.xlu0 %10509
      %10511 = vrot.lane.b32.xlu0 %v10460, 64
      %v10512 = vpop.permute.xlu0 %10511
      %10513 = vrot.lane.b32.xlu0 %v10461, 64
      %v10514 = vpop.permute.xlu0 %10513
      %10515 = vrot.lane.b32.xlu0 %v10462, 64
      %v10516 = vpop.permute.xlu0 %10515
      %10535 = vst.msk [vmem:[#allocation5] sm:$0xff] %vm7042, %v10482
      %10536 = vst.msk [vmem:[#allocation5 + $0x8] sm:$0xff] %vm7042, %v10484
      %10537 = vst.msk [vmem:[#allocation5 + $0x10] sm:$0xff] %vm7042, %v10486
      %10538 = vst.msk [vmem:[#allocation5 + $0x18] sm:$0xff] %vm7042, %v10488
      %10539 = vst.msk [vmem:[#allocation5 + $0x20] sm:$0xff] %vm7042, %v10490
      %10540 = vst.msk [vmem:[#allocation5 + $0x28] sm:$0xff] %vm7042, %v10492
      %10541 = vst.msk [vmem:[#allocation5 + $0x30] sm:$0xff] %vm7042, %v10494
      %10542 = vst.msk [vmem:[#allocation5 + $0x38] sm:$0xff] %vm7042, %v10496
      %10543 = vst.msk [vmem:[#allocation5 + $0x40] sm:$0xff] %vm7042, %v10498
      %10544 = vst.msk [vmem:[#allocation5 + $0x48] sm:$0xff] %vm7042, %v10500
      %10545 = vst.msk [vmem:[#allocation5 + $0x50] sm:$0xff] %vm7042, %v10502
      %10546 = vst.msk [vmem:[#allocation5 + $0x58] sm:$0xff] %vm7042, %v10504
      %10547 = vst.msk [vmem:[#allocation5 + $0x60] sm:$0xff] %vm7042, %v10506
      %10548 = vst.msk [vmem:[#allocation5 + $0x68] sm:$0xff] %vm7042, %v10508
      %10549 = vst.msk [vmem:[#allocation5 + $0x70] sm:$0xff] %vm7042, %v10510
      %10550 = vst.msk [vmem:[#allocation5 + $0x78] sm:$0xff] %vm7042, %v10512
      %10551 = vst.msk [vmem:[#allocation5 + $0x80] sm:$0xff] %vm7042, %v10514
      %10552 = vst.msk [vmem:[#allocation5 + $0x88] sm:$0xff] %vm7042, %v10516
      %v10553 = vsel %vm6934, %v10427, 0.0
      %v10554 = vsel %vm6935, %v10428, 0.0
      %v10555 = vsel %vm6936, %v10429, 0.0
      %v10556 = vsel %vm6937, %v10430, 0.0
      %v10557 = vsel %vm6938, %v10431, 0.0
      %v10558 = vsel %vm6939, %v10432, 0.0
      %v10559 = vsel %vm6940, %v10433, 0.0
      %v10560 = vsel %vm6941, %v10434, 0.0
      %v10561 = vsel %vm6942, %v10435, 0.0
      %v10562 = vsel %vm6943, %v10436, 0.0
      %v10563 = vsel %vm6944, %v10437, 0.0
      %v10564 = vsel %vm6945, %v10438, 0.0
      %v10565 = vsel %vm6946, %v10439, 0.0
      %v10566 = vsel %vm6947, %v10440, 0.0
      %v10567 = vsel %vm6948, %v10441, 0.0
      %v10568 = vsel %vm6949, %v10442, 0.0
      %v10569 = vsel %vm6950, %v10443, 0.0
      %v10570 = vsel %vm6951, %v10444, 0.0
      %10589 = vrot.lane.b32.xlu0 %v10553, 64
      %v10590 = vpop.permute.xlu0 %10589
      %10591 = vrot.lane.b32.xlu0 %v10554, 64
      %v10592 = vpop.permute.xlu0 %10591
      %10593 = vrot.lane.b32.xlu0 %v10555, 64
      %v10594 = vpop.permute.xlu0 %10593
      %10595 = vrot.lane.b32.xlu0 %v10556, 64
      %v10596 = vpop.permute.xlu0 %10595
      %10597 = vrot.lane.b32.xlu0 %v10557, 64
      %v10598 = vpop.permute.xlu0 %10597
      %10599 = vrot.lane.b32.xlu0 %v10558, 64
      %v10600 = vpop.permute.xlu0 %10599
      %10601 = vrot.lane.b32.xlu0 %v10559, 64
      %v10602 = vpop.permute.xlu0 %10601
      %10603 = vrot.lane.b32.xlu0 %v10560, 64
      %v10604 = vpop.permute.xlu0 %10603
      %10605 = vrot.lane.b32.xlu0 %v10561, 64
      %v10606 = vpop.permute.xlu0 %10605
      %10607 = vrot.lane.b32.xlu0 %v10562, 64
      %v10608 = vpop.permute.xlu0 %10607
      %10609 = vrot.lane.b32.xlu0 %v10563, 64
      %v10610 = vpop.permute.xlu0 %10609
      %10611 = vrot.lane.b32.xlu0 %v10564, 64
      %v10612 = vpop.permute.xlu0 %10611
      %10613 = vrot.lane.b32.xlu0 %v10565, 64
      %v10614 = vpop.permute.xlu0 %10613
      %10615 = vrot.lane.b32.xlu0 %v10566, 64
      %v10616 = vpop.permute.xlu0 %10615
      %10617 = vrot.lane.b32.xlu0 %v10567, 64
      %v10618 = vpop.permute.xlu0 %10617
      %10619 = vrot.lane.b32.xlu0 %v10568, 64
      %v10620 = vpop.permute.xlu0 %10619
      %10621 = vrot.lane.b32.xlu0 %v10569, 64
      %v10622 = vpop.permute.xlu0 %10621
      %10623 = vrot.lane.b32.xlu0 %v10570, 64
      %v10624 = vpop.permute.xlu0 %10623
      %vm10643 = vcmask 1048064
      %10644 = vst.msk [vmem:[#allocation3 + $0x10] sm:$0xff] %vm10643, %v10590
      %10645 = vst.msk [vmem:[#allocation3 + $0x18] sm:$0xff] %vm10643, %v10592
      %10646 = vst.msk [vmem:[#allocation3 + $0x20] sm:$0xff] %vm10643, %v10594
      %10647 = vst.msk [vmem:[#allocation3 + $0x28] sm:$0xff] %vm10643, %v10596
      %10648 = vst.msk [vmem:[#allocation3 + $0x30] sm:$0xff] %vm10643, %v10598
      %10649 = vst.msk [vmem:[#allocation3 + $0x38] sm:$0xff] %vm10643, %v10600
      %10650 = vst.msk [vmem:[#allocation3 + $0x40] sm:$0xff] %vm10643, %v10602
      %10651 = vst.msk [vmem:[#allocation3 + $0x48] sm:$0xff] %vm10643, %v10604
      %10652 = vst.msk [vmem:[#allocation3 + $0x50] sm:$0xff] %vm10643, %v10606
      %10653 = vst.msk [vmem:[#allocation3 + $0x58] sm:$0xff] %vm10643, %v10608
      %10654 = vst.msk [vmem:[#allocation3 + $0x60] sm:$0xff] %vm10643, %v10610
      %10655 = vst.msk [vmem:[#allocation3 + $0x68] sm:$0xff] %vm10643, %v10612
      %10656 = vst.msk [vmem:[#allocation3 + $0x70] sm:$0xff] %vm10643, %v10614
      %10657 = vst.msk [vmem:[#allocation3 + $0x78] sm:$0xff] %vm10643, %v10616
      %10658 = vst.msk [vmem:[#allocation3 + $0x80] sm:$0xff] %vm10643, %v10618
      %10659 = vst.msk [vmem:[#allocation3 + $0x88] sm:$0xff] %vm10643, %v10620
      %10660 = vst.msk [vmem:[#allocation3 + $0x90] sm:$0xff] %vm10643, %v10622
      %10661 = vst.msk [vmem:[#allocation3 + $0x98] sm:$0xff] %vm10643, %v10624
      %v10662 = vld [vmem:[#allocation3 + $0x10] sm:$0xff]
      %v10663 = vld [vmem:[#allocation3 + $0x18] sm:$0xff]
      %v10664 = vld [vmem:[#allocation3 + $0x20] sm:$0xff]
      %v10665 = vld [vmem:[#allocation3 + $0x28] sm:$0xff]
      %v10666 = vld [vmem:[#allocation3 + $0x30] sm:$0xff]
      %v10667 = vld [vmem:[#allocation3 + $0x38] sm:$0xff]
      %v10668 = vld [vmem:[#allocation3 + $0x40] sm:$0xff]
      %v10669 = vld [vmem:[#allocation3 + $0x48] sm:$0xff]
      %v10670 = vld [vmem:[#allocation3 + $0x50] sm:$0xff]
      %v10671 = vld [vmem:[#allocation3 + $0x58] sm:$0xff]
      %v10672 = vld [vmem:[#allocation3 + $0x60] sm:$0xff]
      %v10673 = vld [vmem:[#allocation3 + $0x68] sm:$0xff]
      %v10674 = vld [vmem:[#allocation3 + $0x70] sm:$0xff]
      %v10675 = vld [vmem:[#allocation3 + $0x78] sm:$0xff]
      %v10676 = vld [vmem:[#allocation3 + $0x80] sm:$0xff]
      %v10677 = vld [vmem:[#allocation3 + $0x88] sm:$0xff]
      %v10678 = vld [vmem:[#allocation3 + $0x90] sm:$0xff]
      %v10679 = vld [vmem:[#allocation3 + $0x98] sm:$0xff]
      %v10680 = vpack.c.bf16 %v10663, %v10662
      %v10681 = vpack.c.bf16 %v10665, %v10664
      %v10682 = vpack.c.bf16 %v10667, %v10666
      %v10683 = vpack.c.bf16 %v10669, %v10668
      %v10684 = vpack.c.bf16 %v10671, %v10670
      %v10685 = vpack.c.bf16 %v10673, %v10672
      %v10686 = vpack.c.bf16 %v10675, %v10674
      %v10687 = vpack.c.bf16 %v10677, %v10676
      %v10688 = vpack.c.bf16 %v10679, %v10678
      %v10689 = vld [vmem:[%s8] sm:$0xf]
      %v10690 = vld [vmem:[%s8 + $0x4] sm:$0xf]
      %v10691 = vld [vmem:[%s8 + $0x8] sm:$0xf]
      %v10692 = vld [vmem:[%s8 + $0xc] sm:$0xf]
      %v10693 = vld [vmem:[%s8 + $0x10] sm:$0xf]
      %v10694 = vld [vmem:[%s8 + $0x14] sm:$0xf]
      %v10695 = vld [vmem:[%s8 + $0x18] sm:$0xf]
      %v10696 = vld [vmem:[%s8 + $0x1c] sm:$0xf]
      %v10697 = vld [vmem:[%s8 + $0x20] sm:$0xf]
      %v10698 = vld [vmem:[%s8 + $0x24] sm:$0xf]
      %v10699 = vld [vmem:[%s8 + $0x28] sm:$0xf]
      %v10700 = vld [vmem:[%s8 + $0x2c] sm:$0xf]
      %v10701 = vld [vmem:[%s8 + $0x30] sm:$0xf]
      %v10702 = vld [vmem:[%s8 + $0x34] sm:$0xf]
      %v10703 = vld [vmem:[%s8 + $0x38] sm:$0xf]
      %v10704 = vld [vmem:[%s8 + $0x3c] sm:$0xf]
      %v10721 = vunpack.c.l.b16 %v10689
      %v10722 = vunpack.c.l.b16 %v10690
      %v10723 = vunpack.c.l.b16 %v10691
      %v10724 = vunpack.c.l.b16 %v10692
      %v10725 = vunpack.c.l.b16 %v10693
      %v10726 = vunpack.c.l.b16 %v10694
      %v10727 = vunpack.c.l.b16 %v10695
      %v10728 = vunpack.c.l.b16 %v10696
      %v10729 = vunpack.c.l.b16 %v10697
      %v10730 = vunpack.c.l.b16 %v10698
      %v10731 = vunpack.c.l.b16 %v10699
      %v10732 = vunpack.c.l.b16 %v10700
      %v10733 = vunpack.c.l.b16 %v10701
      %v10734 = vunpack.c.l.b16 %v10702
      %v10735 = vunpack.c.l.b16 %v10703
      %v10736 = vunpack.c.l.b16 %v10704
      %v10737 = vpack.c.b16 %v10722, %v10721
      %v10738 = vpack.c.b16 %v10724, %v10723
      %v10739 = vpack.c.b16 %v10726, %v10725
      %v10740 = vpack.c.b16 %v10728, %v10727
      %v10741 = vpack.c.b16 %v10730, %v10729
      %v10742 = vpack.c.b16 %v10732, %v10731
      %v10743 = vpack.c.b16 %v10734, %v10733
      %v10744 = vpack.c.b16 %v10736, %v10735
      %10753 = vmatprep.subr.bf16.mxu0 0
      %10754 = vmatpush1.bf16.msra.mxu0 %v10737
      %10755 = vmatprep.subr.bf16.mxu0 0
      %10756 = vmatpush1.bf16.msra.mxu0 %v10738
      %10757 = vmatprep.subr.bf16.mxu0 0
      %10758 = vmatpush1.bf16.msra.mxu0 %v10739
      %10759 = vmatprep.subr.bf16.mxu0 0
      %10760 = vmatpush1.bf16.msra.mxu0 %v10740
      %10761 = vmatprep.subr.bf16.mxu0 0
      %10762 = vmatpush1.bf16.msra.mxu0 %v10741
      %10763 = vmatprep.subr.bf16.mxu0 0
      %10764 = vmatpush1.bf16.msra.mxu0 %v10742
      %10765 = vmatprep.subr.bf16.mxu0 0
      %10766 = vmatpush1.bf16.msra.mxu0 %v10743
      %10767 = vmatprep.subr.bf16.mxu0 0
      %10768 = vmatpush1.bf16.msra.mxu0 %v10744
      %10769 = vmatprep.subr.bf16.mxu0 0
      %10770 = vmatpush1.bf16.msra.mxu0 0
      %10771 = vmatprep.subr.bf16.mxu0 0
      %10772 = vmatpush1.bf16.msra.mxu0 0
      %10773 = vmatprep.subr.bf16.mxu0 0
      %10774 = vmatpush1.bf16.msra.mxu0 0
      %10775 = vmatprep.subr.bf16.mxu0 0
      %10776 = vmatpush1.bf16.msra.mxu0 0
      %10777 = vmatprep.subr.bf16.mxu0 0
      %10778 = vmatpush1.bf16.msra.mxu0 0
      %10779 = vmatprep.subr.bf16.mxu0 0
      %10780 = vmatpush1.bf16.msra.mxu0 0
      %10781 = vmatprep.subr.bf16.mxu0 0
      %10782 = vmatpush1.bf16.msra.mxu0 0
      %10783 = vmatprep.subr.bf16.mxu0 0
      %10784 = vmatpush1.bf16.msra.mxu0 0
      %10785 = vmatprep.mubr.bf16.mxu0 0
      %10786 = vmatmul.mubr.bf16.gmra.mrb[0].mxu0 %v10680
      %v10787 = vpop.f32.mrb[0].mxu0
      %v10788 = vadd.f32 0.0, %v10787
      %v10789 = vpop.f32.mrb[0].mxu0
      %v10790 = vpop.f32.mrb[0].mxu0
      %v10791 = vadd.f32 0.0, %v10790
      %v10792 = vpop.f32.mrb[0].mxu0
      %10793 = vmatprep.mubr.bf16.mxu0 0
      %10794 = vmatmul.mubr.bf16.gmra.mrb[0].mxu0 %v10681
      %v10795 = vpop.f32.mrb[0].mxu0
      %v10796 = vadd.f32 0.0, %v10795
      %v10797 = vpop.f32.mrb[0].mxu0
      %v10798 = vpop.f32.mrb[0].mxu0
      %v10799 = vadd.f32 0.0, %v10798
      %v10800 = vpop.f32.mrb[0].mxu0
      %10801 = vmatprep.mubr.bf16.mxu0 0
      %10802 = vmatmul.mubr.bf16.gmra.mrb[0].mxu0 %v10682
      %v10803 = vpop.f32.mrb[0].mxu0
      %v10804 = vadd.f32 0.0, %v10803
      %v10805 = vpop.f32.mrb[0].mxu0
      %v10806 = vpop.f32.mrb[0].mxu0
      %v10807 = vadd.f32 0.0, %v10806
      %v10808 = vpop.f32.mrb[0].mxu0
      %10809 = vmatprep.mubr.bf16.mxu0 0
      %10810 = vmatmul.mubr.bf16.gmra.mrb[0].mxu0 %v10683
      %v10811 = vpop.f32.mrb[0].mxu0
      %v10812 = vadd.f32 0.0, %v10811
      %v10813 = vpop.f32.mrb[0].mxu0
      %v10814 = vpop.f32.mrb[0].mxu0
      %v10815 = vadd.f32 0.0, %v10814
      %v10816 = vpop.f32.mrb[0].mxu0
      %10817 = vmatprep.mubr.bf16.mxu0 0
      %10818 = vmatmul.mubr.bf16.gmra.mrb[0].mxu0 %v10684
      %v10819 = vpop.f32.mrb[0].mxu0
      %v10820 = vadd.f32 0.0, %v10819
      %v10821 = vpop.f32.mrb[0].mxu0
      %v10822 = vpop.f32.mrb[0].mxu0
      %v10823 = vadd.f32 0.0, %v10822
      %v10824 = vpop.f32.mrb[0].mxu0
      %10825 = vmatprep.mubr.bf16.mxu0 0
      %10826 = vmatmul.mubr.bf16.gmra.mrb[0].mxu0 %v10685
      %v10827 = vpop.f32.mrb[0].mxu0
      %v10828 = vadd.f32 0.0, %v10827
      %v10829 = vpop.f32.mrb[0].mxu0
      %v10830 = vpop.f32.mrb[0].mxu0
      %v10831 = vadd.f32 0.0, %v10830
      %v10832 = vpop.f32.mrb[0].mxu0
      %10833 = vmatprep.mubr.bf16.mxu0 0
      %10834 = vmatmul.mubr.bf16.gmra.mrb[0].mxu0 %v10686
      %v10835 = vpop.f32.mrb[0].mxu0
      %v10836 = vadd.f32 0.0, %v10835
      %v10837 = vpop.f32.mrb[0].mxu0
      %v10838 = vpop.f32.mrb[0].mxu0
      %v10839 = vadd.f32 0.0, %v10838
      %v10840 = vpop.f32.mrb[0].mxu0
      %10841 = vmatprep.mubr.bf16.mxu0 0
      %10842 = vmatmul.mubr.bf16.gmra.mrb[0].mxu0 %v10687
      %v10843 = vpop.f32.mrb[0].mxu0
      %v10844 = vadd.f32 0.0, %v10843
      %v10845 = vpop.f32.mrb[0].mxu0
      %v10846 = vpop.f32.mrb[0].mxu0
      %v10847 = vadd.f32 0.0, %v10846
      %v10848 = vpop.f32.mrb[0].mxu0
      %10849 = vmatprep.mubr.bf16.mxu0 0
      %10850 = vmatmul.mubr.bf16.gmra.mrb[0].mxu0 %v10688
      %v10851 = vpop.f32.mrb[0].mxu0
      %v10852 = vadd.f32 0.0, %v10851
      %v10853 = vpop.f32.mrb[0].mxu0
      %v10854 = vpop.f32.mrb[0].mxu0
      %v10855 = vadd.f32 0.0, %v10854
      %v10856 = vpop.f32.mrb[0].mxu0
      %10857 = vdwg.mxu0
      %vm10858 = vcmask 130048
      %10859 = vst.msk [vmem:[%s382] sm:$0xff] %vm10858, %v10788
      %10860 = vst.msk [vmem:[%s382 + $0x8] sm:$0xff] %vm10858, %v10791
      %10861 = vst.msk [vmem:[%s382 + $0x10] sm:$0xff] %vm10858, %v10796
      %10862 = vst.msk [vmem:[%s382 + $0x18] sm:$0xff] %vm10858, %v10799
      %10863 = vst.msk [vmem:[%s382 + $0x20] sm:$0xff] %vm10858, %v10804
      %10864 = vst.msk [vmem:[%s382 + $0x28] sm:$0xff] %vm10858, %v10807
      %10865 = vst.msk [vmem:[%s382 + $0x30] sm:$0xff] %vm10858, %v10812
      %10866 = vst.msk [vmem:[%s382 + $0x38] sm:$0xff] %vm10858, %v10815
      %10867 = vst.msk [vmem:[%s382 + $0x40] sm:$0xff] %vm10858, %v10820
      %10868 = vst.msk [vmem:[%s382 + $0x48] sm:$0xff] %vm10858, %v10823
      %10869 = vst.msk [vmem:[%s382 + $0x50] sm:$0xff] %vm10858, %v10828
      %10870 = vst.msk [vmem:[%s382 + $0x58] sm:$0xff] %vm10858, %v10831
      %10871 = vst.msk [vmem:[%s382 + $0x60] sm:$0xff] %vm10858, %v10836
      %10872 = vst.msk [vmem:[%s382 + $0x68] sm:$0xff] %vm10858, %v10839
      %10873 = vst.msk [vmem:[%s382 + $0x70] sm:$0xff] %vm10858, %v10844
      %10874 = vst.msk [vmem:[%s382 + $0x78] sm:$0xff] %vm10858, %v10847
      %10875 = vst.msk [vmem:[%s382 + $0x80] sm:$0xff] %vm10858, %v10852
      %10876 = vst.msk [vmem:[%s382 + $0x88] sm:$0xff] %vm10858, %v10855
      %p10877 = scmp.lt.s32.totalorder %s24, 1
      %s10878 = scalar_select %p10877, %s24, 1
      %p10879 = scmp.lt.s32.totalorder %s25, 7
      %s10880 = scalar_select %p10879, %s25, 7
      %s10881 = smul.addr %s10880, 18
      %s10882 = smul.addr %s10878, 144
      %s10883 = sadd.s32 %s10881, %s10882
      %s10884 = smul.addr %s10883, 8
      %s10885 = scalar_lea.vmem %s9, %s10884
      // Predicated region
      $region69: #{conv_lstm_forward.1} parent=55 // pred_check
        %p10886 = pneg %p252
      $region70: #{conv_lstm_forward.1} parent=55 // pred_check_branch
        %10888 = sbr.rel (%p10886) target = $region72
      $region71: #{conv_lstm_forward.1} parent=55 // pred_region
        _
      $region72: #{conv_lstm_forward.1} parent=55 // pred_fallthru
        _
    $region56: #{conv_lstm_forward.1} parent=5 // pred_fallthru
      _
    %p10889 = scmp.le.s32.totalorder 2, %s15
    // Predicated region
    $region73: #{conv_lstm_forward.1} parent=5 // pred_check
      %p10890 = pneg %p10889
    $region74: #{conv_lstm_forward.1} parent=5 // pred_check_branch
      %10892 = sbr.rel (%p10890) target = $region76
    $region75: #{conv_lstm_forward.1} parent=5 // pred_region
      %s10893 = ssub.s32 %s15, 2
      // Predicated region
      $region77: #{conv_lstm_forward.1} parent=75 // pred_check
        %p10894 = pneg %p258
      $region78: #{conv_lstm_forward.1} parent=75 // pred_check_branch
        %10896 = sbr.rel (%p10894) target = $region80
      $region79: #{conv_lstm_forward.1} parent=75 // pred_region
        %p10897 = scmp.lt.s32.totalorder %s26, 1
        %s10898 = scalar_select %p10897, %s26, 1
        %p10899 = scmp.lt.s32.totalorder %s27, 7
        %s10900 = scalar_select %p10899, %s27, 7
        %s10901 = smul.addr %s10900, 18
        %s10902 = smul.addr %s10898, 144
        %s10903 = sadd.s32 %s10901, %s10902
        %s10904 = smul.addr %s10903, 8
        %s10905 = scalar_lea.vmem %s9, %s10904
      $region80: #{conv_lstm_forward.1} parent=75 // pred_fallthru
        _
    $region76: #{conv_lstm_forward.1} parent=5 // pred_fallthru
      _
  $region6: #{conv_lstm_forward.1} parent=0 // loop_footer
    %s19 = sadd.s32 1, %s15
  $region7: #{conv_lstm_forward.1} parent=0 // loop_footer_branch
    %14 = sbr.rel target = $region3
  $region8: #{conv_lstm_forward.1} parent=0 // loop_exit
    _

</llo_original>
